<compile_context>
chip_gen: v7x
topology: tpu7x:2x2x1
jax: 0.10.0
libtpu: 0.0.40
codegen_flags: <defaults>
</compile_context>

<pallas_src>
import functools

import jax
import jax.numpy as jnp
from jax.experimental import pallas as pl
from jax.experimental.pallas import tpu as pltpu

# ----------------------------- model hyper-params ---------------------------
HIDDEN_SIZE = 32
NUM_LAYERS = 2
OUTPUT_SIZE = 8
PRED_SIZE = 4
SEQUENCE_LENGTH = 16
INPUT_SIZE = 128
SEQ = SEQUENCE_LENGTH - PRED_SIZE  # 12 : sequence length seen by forward()
BATCH = 2


# ----------------------------- fused Pallas kernel ---------------------------
def _fused_forward_kernel(*refs, batch):
    """Whole forward pass in one kernel.

    refs layout (inputs, then the single output):
      x,
      (w_ih_t, w_hh_t, b) * NUM_LAYERS   for lstm1,
      (w_ih_t, w_hh_t, b) * NUM_LAYERS   for lstm2,
      h0, c0,
      fc1_w_t, fc1_b, fc2_w_t, fc2_b, fc3_w_t, fc3_b,
      out
    Shapes: x (B*S, I) batch-major ('(b s) h'); w_ih_t (in, 4H); w_hh_t (H, 4H);
    b (1, 4H) = b_ih + b_hh; h0/c0 (NUM_LAYERS, 1, H); out (B*S, OUTPUT_SIZE).
    Gate order follows PyTorch: i, f, g, o.
    """
    B, H, S, L = batch, HIDDEN_SIZE, SEQ, NUM_LAYERS

    it = iter(refs)
    x_ref = next(it)
    lstm1 = [(next(it), next(it), next(it)) for _ in range(L)]
    lstm2 = [(next(it), next(it), next(it)) for _ in range(L)]
    h0_ref = next(it)
    c0_ref = next(it)
    fc1_w_ref = next(it)
    fc1_b_ref = next(it)
    fc2_w_ref = next(it)
    fc2_b_ref = next(it)
    fc3_w_ref = next(it)
    fc3_b_ref = next(it)
    out_ref = next(it)

    def dot(a, b):
        return jnp.dot(a, b, preferred_element_type=jnp.float32)

    def cell(g, c):
        # g: (B, 4H) pre-activation gates, PyTorch order i | f | g | o.
        sg = jax.nn.sigmoid(g)                       # i | f | . | o
        th = jnp.tanh(g)                             # . | . | g | .
        c_new = sg[:, H:2 * H] * c + sg[:, 0:H] * th[:, 2 * H:3 * H]
        h_new = sg[:, 3 * H:4 * H] * jnp.tanh(c_new)
        return h_new, c_new

    h0 = h0_ref[...]                                 # (L, 1, H)
    c0 = c0_ref[...]

    def init_state(l):
        return (jnp.broadcast_to(h0[l], (B, H)),
                jnp.broadcast_to(c0[l], (B, H)))

    def stacked_lstm(xgate0, layers, states):
        """Wavefront-interleaved stacked LSTM (fully unrolled).

        xgate0(t) -> (B, 4H): precomputed layer-0 input projection (bias folded).
        layers:  list of (w_ih_t_ref, w_hh_t_ref, b_ref), len == L.
        states:  list of (h, c) initial states per layer.
        Returns (top-layer per-step outputs [time-major list], final hs, final cs).
        Upper layers' input projections are done per step so layer l's step t
        depends only on layer l-1's step t (no full-sequence barrier).
        """
        w_hh0 = layers[0][1][...]
        upper = [(layers[l][0][...], layers[l][1][...],
                  jnp.broadcast_to(layers[l][2][...], (B, 4 * H)))   # hoisted bcast
                 for l in range(1, L)]
        hs = [s[0] for s in states]
        cs = [s[1] for s in states]
        outs = []
        for t in range(S):
            g = xgate0(t) + dot(hs[0], w_hh0)
            hs[0], cs[0] = cell(g, cs[0])
            for l in range(1, L):
                w_ih, w_hh, b = upper[l - 1]
                g = dot(hs[l - 1], w_ih) + b + dot(hs[l], w_hh)
                hs[l], cs[l] = cell(g, cs[l])
            outs.append(hs[L - 1])
        return outs, hs, cs

    # ------------------------------- lstm1 -----------------------------------
    x = x_ref[...]                                   # (B*S, I), row = b*S + t
    w_ih0, _, b0 = lstm1[0]
    xp1 = dot(x, w_ih0[...]) + b0[...]               # (B*S, 4H) batch-major

    def xg1(t):  # gather the B rows of time step t from the batch-major projection
        return jnp.concatenate(
            [xp1[bb * S + t:bb * S + t + 1, :] for bb in range(B)], axis=0)

    outs1, hn, cn = stacked_lstm(xg1, lstm1, [init_state(l) for l in range(L)])

    # fc1 + ReLU (dropout = identity in eval mode), batched over the sequence
    seq1 = jnp.concatenate(outs1, axis=0)            # (S*B, H) time-major
    a1 = jnp.maximum(dot(seq1, fc1_w_ref[...]) + fc1_b_ref[...], 0.0)

    # --------------------- lstm2 (init = (hn, cn) from lstm1) ----------------
    w_ih20, _, b20 = lstm2[0]
    xp2 = dot(a1, w_ih20[...]) + b20[...]            # (S*B, 4H) time-major

    def xg2(t):
        return xp2[t * B:(t + 1) * B, :]

    outs2, _, _ = stacked_lstm(xg2, lstm2, [(hn[l], cn[l]) for l in range(L)])

    # fc2 + ReLU (dropout identity), then fc3 -- batched over the sequence
    seq2 = jnp.concatenate(outs2, axis=0)            # (S*B, H) time-major
    y = jnp.maximum(dot(seq2, fc2_w_ref[...]) + fc2_b_ref[...], 0.0)
    y = dot(y, fc3_w_ref[...]) + fc3_b_ref[...]      # (S*B, OUT) time-major

    # time-major -> batch-major '(b s) h' reorder, then a single store.
    rows = [y[t * B + bb:t * B + bb + 1, :] for bb in range(B) for t in range(S)]
    out_ref[...] = jnp.concatenate(rows, axis=0)


# ----------------------------- wrapper ---------------------------------------
_VMEM = pl.BlockSpec(memory_space=pltpu.MemorySpace.VMEM)


def _cost_estimate(batch):
    n = batch * SEQ
    h = HIDDEN_SIZE
    g = 4 * h
    flops = 2 * n * INPUT_SIZE * g                    # lstm1.l0 batched input proj
    flops += 2 * n * h * g                            # lstm2.l0 batched input proj
    flops += 2 * (NUM_LAYERS - 1) * SEQ * 2 * batch * h * g   # upper-layer per-step proj
    flops += 2 * NUM_LAYERS * SEQ * 2 * batch * h * g         # recurrent h @ W_hh
    flops += 2 * (2 * n * h * h) + 2 * n * h * OUTPUT_SIZE    # fc1, fc2, fc3
    transcendentals = 2 * NUM_LAYERS * SEQ * (2 * batch * g + batch * h)
    return flops, transcendentals


def lstm_model_forward(x_flat, params):
    """Mirrors LSTM.forward: x_flat is (B*S, input_size), S = seq_len - pred_size."""
    n_rows, _ = x_flat.shape
    batch = n_rows // SEQ

    args = [x_flat]
    for w_ih_t, w_hh_t, b in params["lstm1"]:
        args += [w_ih_t, w_hh_t, b]
    for w_ih_t, w_hh_t, b in params["lstm2"]:
        args += [w_ih_t, w_hh_t, b]
    args += [params["h0"], params["c0"],
             params["fc1_w_t"], params["fc1_b"],
             params["fc2_w_t"], params["fc2_b"],
             params["fc3_w_t"], params["fc3_b"]]

    flops, transcendentals = _cost_estimate(batch)
    bytes_accessed = (sum(int(a.size) * a.dtype.itemsize for a in args)
                      + n_rows * OUTPUT_SIZE * 4)

    # Footprint (< 1 MiB) is far below the scoped-VMEM default on v5e/v6e/v7x, so no
    # vmem_limit / tiling / multi-core grid is needed; one launch on one TensorCore.
    return pl.pallas_call(
        functools.partial(_fused_forward_kernel, batch=batch),
        out_shape=jax.ShapeDtypeStruct((n_rows, OUTPUT_SIZE), jnp.float32),
        in_specs=[_VMEM] * len(args),
        out_specs=_VMEM,
        cost_estimate=pl.CostEstimate(flops=flops,
                                      transcendentals=transcendentals,
                                      bytes_accessed=bytes_accessed),
    )(*args)


# ----------------------------- pure-JAX reference ----------------------------
def _reference_forward(x_flat, params):
    """Straightforward jnp re-implementation of the module (eval mode)."""
    H = HIDDEN_SIZE
    B = x_flat.shape[0] // SEQ
    x = x_flat.reshape(B, SEQ, INPUT_SIZE)

    def lstm_layer(xs, w_ih_t, w_hh_t, b, h, c):
        outs = []
        for t in range(SEQ):
            g = xs[:, t, :] @ w_ih_t + b + h @ w_hh_t
            i = jax.nn.sigmoid(g[:, 0:H])
            f = jax.nn.sigmoid(g[:, H:2 * H])
            gg = jnp.tanh(g[:, 2 * H:3 * H])
            o = jax.nn.sigmoid(g[:, 3 * H:4 * H])
            c = f * c + i * gg
            h = o * jnp.tanh(c)
            outs.append(h)
        return jnp.stack(outs, axis=1), h, c

    out, hn, cn = x, [], []
    for l, (w_ih_t, w_hh_t, b) in enumerate(params["lstm1"]):
        out, h, c = lstm_layer(out, w_ih_t, w_hh_t, b,
                               jnp.broadcast_to(params["h0"][l], (B, H)),
                               jnp.broadcast_to(params["c0"][l], (B, H)))
        hn.append(h)
        cn.append(c)
    out = jnp.maximum(out @ params["fc1_w_t"] + params["fc1_b"], 0.0)
    for l, (w_ih_t, w_hh_t, b) in enumerate(params["lstm2"]):
        out, _, _ = lstm_layer(out, w_ih_t, w_hh_t, b, hn[l], cn[l])
    out = jnp.maximum(out @ params["fc2_w_t"] + params["fc2_b"], 0.0)
    out = out @ params["fc3_w_t"] + params["fc3_b"]
    return out.reshape(B * SEQ, OUTPUT_SIZE)


# ----------------------------- parameter init --------------------------------
def init_params(key):
    scale = 1.0 / jnp.sqrt(jnp.float32(HIDDEN_SIZE))

    def uni(k, shape):
        return jax.random.uniform(k, shape, jnp.float32, -scale, scale)

    keys = iter(jax.random.split(key, 64))

    def lstm_params(first_in):
        layers = []
        for l in range(NUM_LAYERS):
            in_f = first_in if l == 0 else HIDDEN_SIZE
            w_ih = uni(next(keys), (4 * HIDDEN_SIZE, in_f))      # PyTorch layout
            w_hh = uni(next(keys), (4 * HIDDEN_SIZE, HIDDEN_SIZE))
            b_ih = uni(next(keys), (4 * HIDDEN_SIZE,))
            b_hh = uni(next(keys), (4 * HIDDEN_SIZE,))
            layers.append((w_ih.T, w_hh.T, (b_ih + b_hh).reshape(1, 4 * HIDDEN_SIZE)))
        return layers

    params = {
        "lstm1": lstm_params(INPUT_SIZE),
        "lstm2": lstm_params(HIDDEN_SIZE),
        "fc1_w_t": uni(next(keys), (HIDDEN_SIZE, HIDDEN_SIZE)).T,
        "fc1_b": uni(next(keys), (HIDDEN_SIZE,)).reshape(1, HIDDEN_SIZE),
        "fc2_w_t": uni(next(keys), (HIDDEN_SIZE, HIDDEN_SIZE)).T,
        "fc2_b": uni(next(keys), (HIDDEN_SIZE,)).reshape(1, HIDDEN_SIZE),
        "fc3_w_t": uni(next(keys), (OUTPUT_SIZE, HIDDEN_SIZE)).T,
        "fc3_b": uni(next(keys), (OUTPUT_SIZE,)).reshape(1, OUTPUT_SIZE),
        # learned initial states (num_layers, 1, H) as in the module
        "h0": jax.random.normal(next(keys), (NUM_LAYERS, 1, HIDDEN_SIZE), jnp.float32),
        "c0": jax.random.normal(next(keys), (NUM_LAYERS, 1, HIDDEN_SIZE), jnp.float32),
    }
    return params


# ----------------------------- main ------------------------------------------
if __name__ == "__main__":
    key = jax.random.PRNGKey(0)
    k_x, k_p = jax.random.split(key)

    params = init_params(k_p)
    # forward() expects a flattened (batch * (sequence_length - pred_size), input_size) input
    x = jax.random.normal(k_x, (BATCH * SEQ, INPUT_SIZE), jnp.float32)

    fwd = jax.jit(functools.partial(lstm_model_forward, params=params))
    out = fwd(x)
    jax.block_until_ready(out)

    assert out.shape == (BATCH * SEQ, OUTPUT_SIZE), out.shape
    assert bool(jnp.all(jnp.isfinite(out)))

    ref = jax.jit(_reference_forward)(x, params)
    jax.block_until_ready(ref)
    max_err = float(jnp.max(jnp.abs(out - ref)))
    assert max_err < 1e-3, f"kernel/reference mismatch: max abs err = {max_err}"

    print("KERNEL_OK")
</pallas_src>

<mosaic_0001>
module attributes {stable_mosaic.version = 11 : i64} {
  func.func @_fused_forward_kernel(%arg0: memref<24x128xf32, #tpu.memory_space<vmem>>, %arg1: memref<128x128xf32, #tpu.memory_space<vmem>>, %arg2: memref<32x128xf32, #tpu.memory_space<vmem>>, %arg3: memref<1x128xf32, #tpu.memory_space<vmem>>, %arg4: memref<32x128xf32, #tpu.memory_space<vmem>>, %arg5: memref<32x128xf32, #tpu.memory_space<vmem>>, %arg6: memref<1x128xf32, #tpu.memory_space<vmem>>, %arg7: memref<32x128xf32, #tpu.memory_space<vmem>>, %arg8: memref<32x128xf32, #tpu.memory_space<vmem>>, %arg9: memref<1x128xf32, #tpu.memory_space<vmem>>, %arg10: memref<32x128xf32, #tpu.memory_space<vmem>>, %arg11: memref<32x128xf32, #tpu.memory_space<vmem>>, %arg12: memref<1x128xf32, #tpu.memory_space<vmem>>, %arg13: memref<2x1x32xf32, #tpu.memory_space<vmem>>, %arg14: memref<2x1x32xf32, #tpu.memory_space<vmem>>, %arg15: memref<32x32xf32, #tpu.memory_space<vmem>>, %arg16: memref<1x32xf32, #tpu.memory_space<vmem>>, %arg17: memref<32x32xf32, #tpu.memory_space<vmem>>, %arg18: memref<1x32xf32, #tpu.memory_space<vmem>>, %arg19: memref<32x8xf32, #tpu.memory_space<vmem>>, %arg20: memref<1x8xf32, #tpu.memory_space<vmem>>, %arg21: memref<24x8xf32, #tpu.memory_space<vmem>>) attributes {dimension_semantics = [], scalar_prefetch = 0 : i64, scratch_operands = 0 : i64, tpu.core_type = #tpu.core_type<tc>} {
    %c0 = arith.constant 0 : index
    %c0_0 = arith.constant 0 : index
    %c0_1 = arith.constant 0 : index
    %0 = vector.load %arg13[%c0, %c0_0, %c0_1] : memref<2x1x32xf32, #tpu.memory_space<vmem>>, vector<2x1x32xf32>
    %c0_2 = arith.constant 0 : index
    %c0_3 = arith.constant 0 : index
    %c0_4 = arith.constant 0 : index
    %1 = vector.load %arg14[%c0_2, %c0_3, %c0_4] : memref<2x1x32xf32, #tpu.memory_space<vmem>>, vector<2x1x32xf32>
    %c0_5 = arith.constant 0 : index
    %c0_6 = arith.constant 0 : index
    %2 = vector.load %arg0[%c0_5, %c0_6] : memref<24x128xf32, #tpu.memory_space<vmem>>, vector<24x128xf32>
    %c0_7 = arith.constant 0 : index
    %c0_8 = arith.constant 0 : index
    %3 = vector.load %arg1[%c0_7, %c0_8] : memref<128x128xf32, #tpu.memory_space<vmem>>, vector<128x128xf32>
    %cst = arith.constant dense<0.000000e+00> : vector<24x128xf32>
    %4 = tpu.matmul %2, %3, %cst {dimension_numbers = #tpu.dot_dimension_numbers<[1], [0], [0], [1], [0, 0, 1, 1], [], []>} : vector<24x128xf32>, vector<128x128xf32>, vector<24x128xf32> -> vector<24x128xf32>
    %c0_9 = arith.constant 0 : index
    %c0_10 = arith.constant 0 : index
    %5 = vector.load %arg3[%c0_9, %c0_10] : memref<1x128xf32, #tpu.memory_space<vmem>>, vector<1x128xf32>
    %6 = vector.broadcast %5 : vector<1x128xf32> to vector<24x128xf32>
    %7 = arith.addf %4, %6 : vector<24x128xf32>
    %8 = vector.extract_strided_slice %0 {offsets = [0, 0, 0], sizes = [1, 1, 32], strides = [1, 1, 1]} : vector<2x1x32xf32> to vector<1x1x32xf32>
    %9 = vector.shape_cast %8 : vector<1x1x32xf32> to vector<1x32xf32>
    %10 = vector.shape_cast %9 : vector<1x32xf32> to vector<1x32xf32>
    %11 = vector.broadcast %10 : vector<1x32xf32> to vector<2x32xf32>
    %12 = vector.extract_strided_slice %1 {offsets = [0, 0, 0], sizes = [1, 1, 32], strides = [1, 1, 1]} : vector<2x1x32xf32> to vector<1x1x32xf32>
    %13 = vector.shape_cast %12 : vector<1x1x32xf32> to vector<1x32xf32>
    %14 = vector.shape_cast %13 : vector<1x32xf32> to vector<1x32xf32>
    %15 = vector.broadcast %14 : vector<1x32xf32> to vector<2x32xf32>
    %16 = vector.extract_strided_slice %0 {offsets = [1, 0, 0], sizes = [1, 1, 32], strides = [1, 1, 1]} : vector<2x1x32xf32> to vector<1x1x32xf32>
    %17 = vector.shape_cast %16 : vector<1x1x32xf32> to vector<1x32xf32>
    %18 = vector.shape_cast %17 : vector<1x32xf32> to vector<1x32xf32>
    %19 = vector.broadcast %18 : vector<1x32xf32> to vector<2x32xf32>
    %20 = vector.extract_strided_slice %1 {offsets = [1, 0, 0], sizes = [1, 1, 32], strides = [1, 1, 1]} : vector<2x1x32xf32> to vector<1x1x32xf32>
    %21 = vector.shape_cast %20 : vector<1x1x32xf32> to vector<1x32xf32>
    %22 = vector.shape_cast %21 : vector<1x32xf32> to vector<1x32xf32>
    %23 = vector.broadcast %22 : vector<1x32xf32> to vector<2x32xf32>
    %c0_11 = arith.constant 0 : index
    %c0_12 = arith.constant 0 : index
    %24 = vector.load %arg2[%c0_11, %c0_12] : memref<32x128xf32, #tpu.memory_space<vmem>>, vector<32x128xf32>
    %c0_13 = arith.constant 0 : index
    %c0_14 = arith.constant 0 : index
    %25 = vector.load %arg4[%c0_13, %c0_14] : memref<32x128xf32, #tpu.memory_space<vmem>>, vector<32x128xf32>
    %c0_15 = arith.constant 0 : index
    %c0_16 = arith.constant 0 : index
    %26 = vector.load %arg5[%c0_15, %c0_16] : memref<32x128xf32, #tpu.memory_space<vmem>>, vector<32x128xf32>
    %c0_17 = arith.constant 0 : index
    %c0_18 = arith.constant 0 : index
    %27 = vector.load %arg6[%c0_17, %c0_18] : memref<1x128xf32, #tpu.memory_space<vmem>>, vector<1x128xf32>
    %28 = vector.shape_cast %27 : vector<1x128xf32> to vector<1x128xf32>
    %29 = vector.broadcast %28 : vector<1x128xf32> to vector<2x128xf32>
    %30 = vector.extract_strided_slice %7 {offsets = [0, 0], sizes = [1, 128], strides = [1, 1]} : vector<24x128xf32> to vector<1x128xf32>
    %31 = vector.extract_strided_slice %7 {offsets = [12, 0], sizes = [1, 128], strides = [1, 1]} : vector<24x128xf32> to vector<1x128xf32>
    %32 = tpu.concatenate %30, %31 in 0 : vector<1x128xf32>, vector<1x128xf32> -> vector<2x128xf32>
    %cst_19 = arith.constant dense<0.000000e+00> : vector<2x128xf32>
    %33 = tpu.matmul %11, %24, %cst_19 {dimension_numbers = #tpu.dot_dimension_numbers<[1], [0], [0], [1], [0, 0, 1, 1], [], []>} : vector<2x32xf32>, vector<32x128xf32>, vector<2x128xf32> -> vector<2x128xf32>
    %34 = arith.addf %32, %33 : vector<2x128xf32>
    %35 = arith.negf %34 : vector<2x128xf32>
    %36 = math.exp %35 : vector<2x128xf32>
    %cst_20 = arith.constant 1.000000e+00 : f32
    %37 = vector.broadcast %cst_20 : f32 to vector<2x128xf32>
    %38 = arith.addf %37, %36 : vector<2x128xf32>
    %39 = arith.divf %37, %38 : vector<2x128xf32>
    %40 = math.tanh %34 : vector<2x128xf32>
    %41 = vector.extract_strided_slice %39 {offsets = [0, 32], sizes = [2, 32], strides = [1, 1]} : vector<2x128xf32> to vector<2x32xf32>
    %42 = arith.mulf %41, %15 : vector<2x32xf32>
    %43 = vector.extract_strided_slice %39 {offsets = [0, 0], sizes = [2, 32], strides = [1, 1]} : vector<2x128xf32> to vector<2x32xf32>
    %44 = vector.extract_strided_slice %40 {offsets = [0, 64], sizes = [2, 32], strides = [1, 1]} : vector<2x128xf32> to vector<2x32xf32>
    %45 = arith.mulf %43, %44 : vector<2x32xf32>
    %46 = arith.addf %42, %45 : vector<2x32xf32>
    %47 = vector.extract_strided_slice %39 {offsets = [0, 96], sizes = [2, 32], strides = [1, 1]} : vector<2x128xf32> to vector<2x32xf32>
    %48 = math.tanh %46 : vector<2x32xf32>
    %49 = arith.mulf %47, %48 : vector<2x32xf32>
    %cst_21 = arith.constant dense<0.000000e+00> : vector<2x128xf32>
    %50 = tpu.matmul %49, %25, %cst_21 {dimension_numbers = #tpu.dot_dimension_numbers<[1], [0], [0], [1], [0, 0, 1, 1], [], []>} : vector<2x32xf32>, vector<32x128xf32>, vector<2x128xf32> -> vector<2x128xf32>
    %51 = arith.addf %50, %29 : vector<2x128xf32>
    %cst_22 = arith.constant dense<0.000000e+00> : vector<2x128xf32>
    %52 = tpu.matmul %19, %26, %cst_22 {dimension_numbers = #tpu.dot_dimension_numbers<[1], [0], [0], [1], [0, 0, 1, 1], [], []>} : vector<2x32xf32>, vector<32x128xf32>, vector<2x128xf32> -> vector<2x128xf32>
    %53 = arith.addf %51, %52 : vector<2x128xf32>
    %54 = arith.negf %53 : vector<2x128xf32>
    %55 = math.exp %54 : vector<2x128xf32>
    %cst_23 = arith.constant 1.000000e+00 : f32
    %56 = vector.broadcast %cst_23 : f32 to vector<2x128xf32>
    %57 = arith.addf %56, %55 : vector<2x128xf32>
    %58 = arith.divf %56, %57 : vector<2x128xf32>
    %59 = math.tanh %53 : vector<2x128xf32>
    %60 = vector.extract_strided_slice %58 {offsets = [0, 32], sizes = [2, 32], strides = [1, 1]} : vector<2x128xf32> to vector<2x32xf32>
    %61 = arith.mulf %60, %23 : vector<2x32xf32>
    %62 = vector.extract_strided_slice %58 {offsets = [0, 0], sizes = [2, 32], strides = [1, 1]} : vector<2x128xf32> to vector<2x32xf32>
    %63 = vector.extract_strided_slice %59 {offsets = [0, 64], sizes = [2, 32], strides = [1, 1]} : vector<2x128xf32> to vector<2x32xf32>
    %64 = arith.mulf %62, %63 : vector<2x32xf32>
    %65 = arith.addf %61, %64 : vector<2x32xf32>
    %66 = vector.extract_strided_slice %58 {offsets = [0, 96], sizes = [2, 32], strides = [1, 1]} : vector<2x128xf32> to vector<2x32xf32>
    %67 = math.tanh %65 : vector<2x32xf32>
    %68 = arith.mulf %66, %67 : vector<2x32xf32>
    %69 = vector.extract_strided_slice %7 {offsets = [1, 0], sizes = [1, 128], strides = [1, 1]} : vector<24x128xf32> to vector<1x128xf32>
    %70 = vector.extract_strided_slice %7 {offsets = [13, 0], sizes = [1, 128], strides = [1, 1]} : vector<24x128xf32> to vector<1x128xf32>
    %71 = tpu.concatenate %69, %70 in 0 : vector<1x128xf32>, vector<1x128xf32> -> vector<2x128xf32>
    %cst_24 = arith.constant dense<0.000000e+00> : vector<2x128xf32>
    %72 = tpu.matmul %49, %24, %cst_24 {dimension_numbers = #tpu.dot_dimension_numbers<[1], [0], [0], [1], [0, 0, 1, 1], [], []>} : vector<2x32xf32>, vector<32x128xf32>, vector<2x128xf32> -> vector<2x128xf32>
    %73 = arith.addf %71, %72 : vector<2x128xf32>
    %74 = arith.negf %73 : vector<2x128xf32>
    %75 = math.exp %74 : vector<2x128xf32>
    %cst_25 = arith.constant 1.000000e+00 : f32
    %76 = vector.broadcast %cst_25 : f32 to vector<2x128xf32>
    %77 = arith.addf %76, %75 : vector<2x128xf32>
    %78 = arith.divf %76, %77 : vector<2x128xf32>
    %79 = math.tanh %73 : vector<2x128xf32>
    %80 = vector.extract_strided_slice %78 {offsets = [0, 32], sizes = [2, 32], strides = [1, 1]} : vector<2x128xf32> to vector<2x32xf32>
    %81 = arith.mulf %80, %46 : vector<2x32xf32>
    %82 = vector.extract_strided_slice %78 {offsets = [0, 0], sizes = [2, 32], strides = [1, 1]} : vector<2x128xf32> to vector<2x32xf32>
    %83 = vector.extract_strided_slice %79 {offsets = [0, 64], sizes = [2, 32], strides = [1, 1]} : vector<2x128xf32> to vector<2x32xf32>
    %84 = arith.mulf %82, %83 : vector<2x32xf32>
    %85 = arith.addf %81, %84 : vector<2x32xf32>
    %86 = vector.extract_strided_slice %78 {offsets = [0, 96], sizes = [2, 32], strides = [1, 1]} : vector<2x128xf32> to vector<2x32xf32>
    %87 = math.tanh %85 : vector<2x32xf32>
    %88 = arith.mulf %86, %87 : vector<2x32xf32>
    %cst_26 = arith.constant dense<0.000000e+00> : vector<2x128xf32>
    %89 = tpu.matmul %88, %25, %cst_26 {dimension_numbers = #tpu.dot_dimension_numbers<[1], [0], [0], [1], [0, 0, 1, 1], [], []>} : vector<2x32xf32>, vector<32x128xf32>, vector<2x128xf32> -> vector<2x128xf32>
    %90 = arith.addf %89, %29 : vector<2x128xf32>
    %cst_27 = arith.constant dense<0.000000e+00> : vector<2x128xf32>
    %91 = tpu.matmul %68, %26, %cst_27 {dimension_numbers = #tpu.dot_dimension_numbers<[1], [0], [0], [1], [0, 0, 1, 1], [], []>} : vector<2x32xf32>, vector<32x128xf32>, vector<2x128xf32> -> vector<2x128xf32>
    %92 = arith.addf %90, %91 : vector<2x128xf32>
    %93 = arith.negf %92 : vector<2x128xf32>
    %94 = math.exp %93 : vector<2x128xf32>
    %cst_28 = arith.constant 1.000000e+00 : f32
    %95 = vector.broadcast %cst_28 : f32 to vector<2x128xf32>
    %96 = arith.addf %95, %94 : vector<2x128xf32>
    %97 = arith.divf %95, %96 : vector<2x128xf32>
    %98 = math.tanh %92 : vector<2x128xf32>
    %99 = vector.extract_strided_slice %97 {offsets = [0, 32], sizes = [2, 32], strides = [1, 1]} : vector<2x128xf32> to vector<2x32xf32>
    %100 = arith.mulf %99, %65 : vector<2x32xf32>
    %101 = vector.extract_strided_slice %97 {offsets = [0, 0], sizes = [2, 32], strides = [1, 1]} : vector<2x128xf32> to vector<2x32xf32>
    %102 = vector.extract_strided_slice %98 {offsets = [0, 64], sizes = [2, 32], strides = [1, 1]} : vector<2x128xf32> to vector<2x32xf32>
    %103 = arith.mulf %101, %102 : vector<2x32xf32>
    %104 = arith.addf %100, %103 : vector<2x32xf32>
    %105 = vector.extract_strided_slice %97 {offsets = [0, 96], sizes = [2, 32], strides = [1, 1]} : vector<2x128xf32> to vector<2x32xf32>
    %106 = math.tanh %104 : vector<2x32xf32>
    %107 = arith.mulf %105, %106 : vector<2x32xf32>
    %108 = vector.extract_strided_slice %7 {offsets = [2, 0], sizes = [1, 128], strides = [1, 1]} : vector<24x128xf32> to vector<1x128xf32>
    %109 = vector.extract_strided_slice %7 {offsets = [14, 0], sizes = [1, 128], strides = [1, 1]} : vector<24x128xf32> to vector<1x128xf32>
    %110 = tpu.concatenate %108, %109 in 0 : vector<1x128xf32>, vector<1x128xf32> -> vector<2x128xf32>
    %cst_29 = arith.constant dense<0.000000e+00> : vector<2x128xf32>
    %111 = tpu.matmul %88, %24, %cst_29 {dimension_numbers = #tpu.dot_dimension_numbers<[1], [0], [0], [1], [0, 0, 1, 1], [], []>} : vector<2x32xf32>, vector<32x128xf32>, vector<2x128xf32> -> vector<2x128xf32>
    %112 = arith.addf %110, %111 : vector<2x128xf32>
    %113 = arith.negf %112 : vector<2x128xf32>
    %114 = math.exp %113 : vector<2x128xf32>
    %cst_30 = arith.constant 1.000000e+00 : f32
    %115 = vector.broadcast %cst_30 : f32 to vector<2x128xf32>
    %116 = arith.addf %115, %114 : vector<2x128xf32>
    %117 = arith.divf %115, %116 : vector<2x128xf32>
    %118 = math.tanh %112 : vector<2x128xf32>
    %119 = vector.extract_strided_slice %117 {offsets = [0, 32], sizes = [2, 32], strides = [1, 1]} : vector<2x128xf32> to vector<2x32xf32>
    %120 = arith.mulf %119, %85 : vector<2x32xf32>
    %121 = vector.extract_strided_slice %117 {offsets = [0, 0], sizes = [2, 32], strides = [1, 1]} : vector<2x128xf32> to vector<2x32xf32>
    %122 = vector.extract_strided_slice %118 {offsets = [0, 64], sizes = [2, 32], strides = [1, 1]} : vector<2x128xf32> to vector<2x32xf32>
    %123 = arith.mulf %121, %122 : vector<2x32xf32>
    %124 = arith.addf %120, %123 : vector<2x32xf32>
    %125 = vector.extract_strided_slice %117 {offsets = [0, 96], sizes = [2, 32], strides = [1, 1]} : vector<2x128xf32> to vector<2x32xf32>
    %126 = math.tanh %124 : vector<2x32xf32>
    %127 = arith.mulf %125, %126 : vector<2x32xf32>
    %cst_31 = arith.constant dense<0.000000e+00> : vector<2x128xf32>
    %128 = tpu.matmul %127, %25, %cst_31 {dimension_numbers = #tpu.dot_dimension_numbers<[1], [0], [0], [1], [0, 0, 1, 1], [], []>} : vector<2x32xf32>, vector<32x128xf32>, vector<2x128xf32> -> vector<2x128xf32>
    %129 = arith.addf %128, %29 : vector<2x128xf32>
    %cst_32 = arith.constant dense<0.000000e+00> : vector<2x128xf32>
    %130 = tpu.matmul %107, %26, %cst_32 {dimension_numbers = #tpu.dot_dimension_numbers<[1], [0], [0], [1], [0, 0, 1, 1], [], []>} : vector<2x32xf32>, vector<32x128xf32>, vector<2x128xf32> -> vector<2x128xf32>
    %131 = arith.addf %129, %130 : vector<2x128xf32>
    %132 = arith.negf %131 : vector<2x128xf32>
    %133 = math.exp %132 : vector<2x128xf32>
    %cst_33 = arith.constant 1.000000e+00 : f32
    %134 = vector.broadcast %cst_33 : f32 to vector<2x128xf32>
    %135 = arith.addf %134, %133 : vector<2x128xf32>
    %136 = arith.divf %134, %135 : vector<2x128xf32>
    %137 = math.tanh %131 : vector<2x128xf32>
    %138 = vector.extract_strided_slice %136 {offsets = [0, 32], sizes = [2, 32], strides = [1, 1]} : vector<2x128xf32> to vector<2x32xf32>
    %139 = arith.mulf %138, %104 : vector<2x32xf32>
    %140 = vector.extract_strided_slice %136 {offsets = [0, 0], sizes = [2, 32], strides = [1, 1]} : vector<2x128xf32> to vector<2x32xf32>
    %141 = vector.extract_strided_slice %137 {offsets = [0, 64], sizes = [2, 32], strides = [1, 1]} : vector<2x128xf32> to vector<2x32xf32>
    %142 = arith.mulf %140, %141 : vector<2x32xf32>
    %143 = arith.addf %139, %142 : vector<2x32xf32>
    %144 = vector.extract_strided_slice %136 {offsets = [0, 96], sizes = [2, 32], strides = [1, 1]} : vector<2x128xf32> to vector<2x32xf32>
    %145 = math.tanh %143 : vector<2x32xf32>
    %146 = arith.mulf %144, %145 : vector<2x32xf32>
    %147 = vector.extract_strided_slice %7 {offsets = [3, 0], sizes = [1, 128], strides = [1, 1]} : vector<24x128xf32> to vector<1x128xf32>
    %148 = vector.extract_strided_slice %7 {offsets = [15, 0], sizes = [1, 128], strides = [1, 1]} : vector<24x128xf32> to vector<1x128xf32>
    %149 = tpu.concatenate %147, %148 in 0 : vector<1x128xf32>, vector<1x128xf32> -> vector<2x128xf32>
    %cst_34 = arith.constant dense<0.000000e+00> : vector<2x128xf32>
    %150 = tpu.matmul %127, %24, %cst_34 {dimension_numbers = #tpu.dot_dimension_numbers<[1], [0], [0], [1], [0, 0, 1, 1], [], []>} : vector<2x32xf32>, vector<32x128xf32>, vector<2x128xf32> -> vector<2x128xf32>
    %151 = arith.addf %149, %150 : vector<2x128xf32>
    %152 = arith.negf %151 : vector<2x128xf32>
    %153 = math.exp %152 : vector<2x128xf32>
    %cst_35 = arith.constant 1.000000e+00 : f32
    %154 = vector.broadcast %cst_35 : f32 to vector<2x128xf32>
    %155 = arith.addf %154, %153 : vector<2x128xf32>
    %156 = arith.divf %154, %155 : vector<2x128xf32>
    %157 = math.tanh %151 : vector<2x128xf32>
    %158 = vector.extract_strided_slice %156 {offsets = [0, 32], sizes = [2, 32], strides = [1, 1]} : vector<2x128xf32> to vector<2x32xf32>
    %159 = arith.mulf %158, %124 : vector<2x32xf32>
    %160 = vector.extract_strided_slice %156 {offsets = [0, 0], sizes = [2, 32], strides = [1, 1]} : vector<2x128xf32> to vector<2x32xf32>
    %161 = vector.extract_strided_slice %157 {offsets = [0, 64], sizes = [2, 32], strides = [1, 1]} : vector<2x128xf32> to vector<2x32xf32>
    %162 = arith.mulf %160, %161 : vector<2x32xf32>
    %163 = arith.addf %159, %162 : vector<2x32xf32>
    %164 = vector.extract_strided_slice %156 {offsets = [0, 96], sizes = [2, 32], strides = [1, 1]} : vector<2x128xf32> to vector<2x32xf32>
    %165 = math.tanh %163 : vector<2x32xf32>
    %166 = arith.mulf %164, %165 : vector<2x32xf32>
    %cst_36 = arith.constant dense<0.000000e+00> : vector<2x128xf32>
    %167 = tpu.matmul %166, %25, %cst_36 {dimension_numbers = #tpu.dot_dimension_numbers<[1], [0], [0], [1], [0, 0, 1, 1], [], []>} : vector<2x32xf32>, vector<32x128xf32>, vector<2x128xf32> -> vector<2x128xf32>
    %168 = arith.addf %167, %29 : vector<2x128xf32>
    %cst_37 = arith.constant dense<0.000000e+00> : vector<2x128xf32>
    %169 = tpu.matmul %146, %26, %cst_37 {dimension_numbers = #tpu.dot_dimension_numbers<[1], [0], [0], [1], [0, 0, 1, 1], [], []>} : vector<2x32xf32>, vector<32x128xf32>, vector<2x128xf32> -> vector<2x128xf32>
    %170 = arith.addf %168, %169 : vector<2x128xf32>
    %171 = arith.negf %170 : vector<2x128xf32>
    %172 = math.exp %171 : vector<2x128xf32>
    %cst_38 = arith.constant 1.000000e+00 : f32
    %173 = vector.broadcast %cst_38 : f32 to vector<2x128xf32>
    %174 = arith.addf %173, %172 : vector<2x128xf32>
    %175 = arith.divf %173, %174 : vector<2x128xf32>
    %176 = math.tanh %170 : vector<2x128xf32>
    %177 = vector.extract_strided_slice %175 {offsets = [0, 32], sizes = [2, 32], strides = [1, 1]} : vector<2x128xf32> to vector<2x32xf32>
    %178 = arith.mulf %177, %143 : vector<2x32xf32>
    %179 = vector.extract_strided_slice %175 {offsets = [0, 0], sizes = [2, 32], strides = [1, 1]} : vector<2x128xf32> to vector<2x32xf32>
    %180 = vector.extract_strided_slice %176 {offsets = [0, 64], sizes = [2, 32], strides = [1, 1]} : vector<2x128xf32> to vector<2x32xf32>
    %181 = arith.mulf %179, %180 : vector<2x32xf32>
    %182 = arith.addf %178, %181 : vector<2x32xf32>
    %183 = vector.extract_strided_slice %175 {offsets = [0, 96], sizes = [2, 32], strides = [1, 1]} : vector<2x128xf32> to vector<2x32xf32>
    %184 = math.tanh %182 : vector<2x32xf32>
    %185 = arith.mulf %183, %184 : vector<2x32xf32>
    %186 = vector.extract_strided_slice %7 {offsets = [4, 0], sizes = [1, 128], strides = [1, 1]} : vector<24x128xf32> to vector<1x128xf32>
    %187 = vector.extract_strided_slice %7 {offsets = [16, 0], sizes = [1, 128], strides = [1, 1]} : vector<24x128xf32> to vector<1x128xf32>
    %188 = tpu.concatenate %186, %187 in 0 : vector<1x128xf32>, vector<1x128xf32> -> vector<2x128xf32>
    %cst_39 = arith.constant dense<0.000000e+00> : vector<2x128xf32>
    %189 = tpu.matmul %166, %24, %cst_39 {dimension_numbers = #tpu.dot_dimension_numbers<[1], [0], [0], [1], [0, 0, 1, 1], [], []>} : vector<2x32xf32>, vector<32x128xf32>, vector<2x128xf32> -> vector<2x128xf32>
    %190 = arith.addf %188, %189 : vector<2x128xf32>
    %191 = arith.negf %190 : vector<2x128xf32>
    %192 = math.exp %191 : vector<2x128xf32>
    %cst_40 = arith.constant 1.000000e+00 : f32
    %193 = vector.broadcast %cst_40 : f32 to vector<2x128xf32>
    %194 = arith.addf %193, %192 : vector<2x128xf32>
    %195 = arith.divf %193, %194 : vector<2x128xf32>
    %196 = math.tanh %190 : vector<2x128xf32>
    %197 = vector.extract_strided_slice %195 {offsets = [0, 32], sizes = [2, 32], strides = [1, 1]} : vector<2x128xf32> to vector<2x32xf32>
    %198 = arith.mulf %197, %163 : vector<2x32xf32>
    %199 = vector.extract_strided_slice %195 {offsets = [0, 0], sizes = [2, 32], strides = [1, 1]} : vector<2x128xf32> to vector<2x32xf32>
    %200 = vector.extract_strided_slice %196 {offsets = [0, 64], sizes = [2, 32], strides = [1, 1]} : vector<2x128xf32> to vector<2x32xf32>
    %201 = arith.mulf %199, %200 : vector<2x32xf32>
    %202 = arith.addf %198, %201 : vector<2x32xf32>
    %203 = vector.extract_strided_slice %195 {offsets = [0, 96], sizes = [2, 32], strides = [1, 1]} : vector<2x128xf32> to vector<2x32xf32>
    %204 = math.tanh %202 : vector<2x32xf32>
    %205 = arith.mulf %203, %204 : vector<2x32xf32>
    %cst_41 = arith.constant dense<0.000000e+00> : vector<2x128xf32>
    %206 = tpu.matmul %205, %25, %cst_41 {dimension_numbers = #tpu.dot_dimension_numbers<[1], [0], [0], [1], [0, 0, 1, 1], [], []>} : vector<2x32xf32>, vector<32x128xf32>, vector<2x128xf32> -> vector<2x128xf32>
    %207 = arith.addf %206, %29 : vector<2x128xf32>
    %cst_42 = arith.constant dense<0.000000e+00> : vector<2x128xf32>
    %208 = tpu.matmul %185, %26, %cst_42 {dimension_numbers = #tpu.dot_dimension_numbers<[1], [0], [0], [1], [0, 0, 1, 1], [], []>} : vector<2x32xf32>, vector<32x128xf32>, vector<2x128xf32> -> vector<2x128xf32>
    %209 = arith.addf %207, %208 : vector<2x128xf32>
    %210 = arith.negf %209 : vector<2x128xf32>
    %211 = math.exp %210 : vector<2x128xf32>
    %cst_43 = arith.constant 1.000000e+00 : f32
    %212 = vector.broadcast %cst_43 : f32 to vector<2x128xf32>
    %213 = arith.addf %212, %211 : vector<2x128xf32>
    %214 = arith.divf %212, %213 : vector<2x128xf32>
    %215 = math.tanh %209 : vector<2x128xf32>
    %216 = vector.extract_strided_slice %214 {offsets = [0, 32], sizes = [2, 32], strides = [1, 1]} : vector<2x128xf32> to vector<2x32xf32>
    %217 = arith.mulf %216, %182 : vector<2x32xf32>
    %218 = vector.extract_strided_slice %214 {offsets = [0, 0], sizes = [2, 32], strides = [1, 1]} : vector<2x128xf32> to vector<2x32xf32>
    %219 = vector.extract_strided_slice %215 {offsets = [0, 64], sizes = [2, 32], strides = [1, 1]} : vector<2x128xf32> to vector<2x32xf32>
    %220 = arith.mulf %218, %219 : vector<2x32xf32>
    %221 = arith.addf %217, %220 : vector<2x32xf32>
    %222 = vector.extract_strided_slice %214 {offsets = [0, 96], sizes = [2, 32], strides = [1, 1]} : vector<2x128xf32> to vector<2x32xf32>
    %223 = math.tanh %221 : vector<2x32xf32>
    %224 = arith.mulf %222, %223 : vector<2x32xf32>
    %225 = vector.extract_strided_slice %7 {offsets = [5, 0], sizes = [1, 128], strides = [1, 1]} : vector<24x128xf32> to vector<1x128xf32>
    %226 = vector.extract_strided_slice %7 {offsets = [17, 0], sizes = [1, 128], strides = [1, 1]} : vector<24x128xf32> to vector<1x128xf32>
    %227 = tpu.concatenate %225, %226 in 0 : vector<1x128xf32>, vector<1x128xf32> -> vector<2x128xf32>
    %cst_44 = arith.constant dense<0.000000e+00> : vector<2x128xf32>
    %228 = tpu.matmul %205, %24, %cst_44 {dimension_numbers = #tpu.dot_dimension_numbers<[1], [0], [0], [1], [0, 0, 1, 1], [], []>} : vector<2x32xf32>, vector<32x128xf32>, vector<2x128xf32> -> vector<2x128xf32>
    %229 = arith.addf %227, %228 : vector<2x128xf32>
    %230 = arith.negf %229 : vector<2x128xf32>
    %231 = math.exp %230 : vector<2x128xf32>
    %cst_45 = arith.constant 1.000000e+00 : f32
    %232 = vector.broadcast %cst_45 : f32 to vector<2x128xf32>
    %233 = arith.addf %232, %231 : vector<2x128xf32>
    %234 = arith.divf %232, %233 : vector<2x128xf32>
    %235 = math.tanh %229 : vector<2x128xf32>
    %236 = vector.extract_strided_slice %234 {offsets = [0, 32], sizes = [2, 32], strides = [1, 1]} : vector<2x128xf32> to vector<2x32xf32>
    %237 = arith.mulf %236, %202 : vector<2x32xf32>
    %238 = vector.extract_strided_slice %234 {offsets = [0, 0], sizes = [2, 32], strides = [1, 1]} : vector<2x128xf32> to vector<2x32xf32>
    %239 = vector.extract_strided_slice %235 {offsets = [0, 64], sizes = [2, 32], strides = [1, 1]} : vector<2x128xf32> to vector<2x32xf32>
    %240 = arith.mulf %238, %239 : vector<2x32xf32>
    %241 = arith.addf %237, %240 : vector<2x32xf32>
    %242 = vector.extract_strided_slice %234 {offsets = [0, 96], sizes = [2, 32], strides = [1, 1]} : vector<2x128xf32> to vector<2x32xf32>
    %243 = math.tanh %241 : vector<2x32xf32>
    %244 = arith.mulf %242, %243 : vector<2x32xf32>
    %cst_46 = arith.constant dense<0.000000e+00> : vector<2x128xf32>
    %245 = tpu.matmul %244, %25, %cst_46 {dimension_numbers = #tpu.dot_dimension_numbers<[1], [0], [0], [1], [0, 0, 1, 1], [], []>} : vector<2x32xf32>, vector<32x128xf32>, vector<2x128xf32> -> vector<2x128xf32>
    %246 = arith.addf %245, %29 : vector<2x128xf32>
    %cst_47 = arith.constant dense<0.000000e+00> : vector<2x128xf32>
    %247 = tpu.matmul %224, %26, %cst_47 {dimension_numbers = #tpu.dot_dimension_numbers<[1], [0], [0], [1], [0, 0, 1, 1], [], []>} : vector<2x32xf32>, vector<32x128xf32>, vector<2x128xf32> -> vector<2x128xf32>
    %248 = arith.addf %246, %247 : vector<2x128xf32>
    %249 = arith.negf %248 : vector<2x128xf32>
    %250 = math.exp %249 : vector<2x128xf32>
    %cst_48 = arith.constant 1.000000e+00 : f32
    %251 = vector.broadcast %cst_48 : f32 to vector<2x128xf32>
    %252 = arith.addf %251, %250 : vector<2x128xf32>
    %253 = arith.divf %251, %252 : vector<2x128xf32>
    %254 = math.tanh %248 : vector<2x128xf32>
    %255 = vector.extract_strided_slice %253 {offsets = [0, 32], sizes = [2, 32], strides = [1, 1]} : vector<2x128xf32> to vector<2x32xf32>
    %256 = arith.mulf %255, %221 : vector<2x32xf32>
    %257 = vector.extract_strided_slice %253 {offsets = [0, 0], sizes = [2, 32], strides = [1, 1]} : vector<2x128xf32> to vector<2x32xf32>
    %258 = vector.extract_strided_slice %254 {offsets = [0, 64], sizes = [2, 32], strides = [1, 1]} : vector<2x128xf32> to vector<2x32xf32>
    %259 = arith.mulf %257, %258 : vector<2x32xf32>
    %260 = arith.addf %256, %259 : vector<2x32xf32>
    %261 = vector.extract_strided_slice %253 {offsets = [0, 96], sizes = [2, 32], strides = [1, 1]} : vector<2x128xf32> to vector<2x32xf32>
    %262 = math.tanh %260 : vector<2x32xf32>
    %263 = arith.mulf %261, %262 : vector<2x32xf32>
    %264 = vector.extract_strided_slice %7 {offsets = [6, 0], sizes = [1, 128], strides = [1, 1]} : vector<24x128xf32> to vector<1x128xf32>
    %265 = vector.extract_strided_slice %7 {offsets = [18, 0], sizes = [1, 128], strides = [1, 1]} : vector<24x128xf32> to vector<1x128xf32>
    %266 = tpu.concatenate %264, %265 in 0 : vector<1x128xf32>, vector<1x128xf32> -> vector<2x128xf32>
    %cst_49 = arith.constant dense<0.000000e+00> : vector<2x128xf32>
    %267 = tpu.matmul %244, %24, %cst_49 {dimension_numbers = #tpu.dot_dimension_numbers<[1], [0], [0], [1], [0, 0, 1, 1], [], []>} : vector<2x32xf32>, vector<32x128xf32>, vector<2x128xf32> -> vector<2x128xf32>
    %268 = arith.addf %266, %267 : vector<2x128xf32>
    %269 = arith.negf %268 : vector<2x128xf32>
    %270 = math.exp %269 : vector<2x128xf32>
    %cst_50 = arith.constant 1.000000e+00 : f32
    %271 = vector.broadcast %cst_50 : f32 to vector<2x128xf32>
    %272 = arith.addf %271, %270 : vector<2x128xf32>
    %273 = arith.divf %271, %272 : vector<2x128xf32>
    %274 = math.tanh %268 : vector<2x128xf32>
    %275 = vector.extract_strided_slice %273 {offsets = [0, 32], sizes = [2, 32], strides = [1, 1]} : vector<2x128xf32> to vector<2x32xf32>
    %276 = arith.mulf %275, %241 : vector<2x32xf32>
    %277 = vector.extract_strided_slice %273 {offsets = [0, 0], sizes = [2, 32], strides = [1, 1]} : vector<2x128xf32> to vector<2x32xf32>
    %278 = vector.extract_strided_slice %274 {offsets = [0, 64], sizes = [2, 32], strides = [1, 1]} : vector<2x128xf32> to vector<2x32xf32>
    %279 = arith.mulf %277, %278 : vector<2x32xf32>
    %280 = arith.addf %276, %279 : vector<2x32xf32>
    %281 = vector.extract_strided_slice %273 {offsets = [0, 96], sizes = [2, 32], strides = [1, 1]} : vector<2x128xf32> to vector<2x32xf32>
    %282 = math.tanh %280 : vector<2x32xf32>
    %283 = arith.mulf %281, %282 : vector<2x32xf32>
    %cst_51 = arith.constant dense<0.000000e+00> : vector<2x128xf32>
    %284 = tpu.matmul %283, %25, %cst_51 {dimension_numbers = #tpu.dot_dimension_numbers<[1], [0], [0], [1], [0, 0, 1, 1], [], []>} : vector<2x32xf32>, vector<32x128xf32>, vector<2x128xf32> -> vector<2x128xf32>
    %285 = arith.addf %284, %29 : vector<2x128xf32>
    %cst_52 = arith.constant dense<0.000000e+00> : vector<2x128xf32>
    %286 = tpu.matmul %263, %26, %cst_52 {dimension_numbers = #tpu.dot_dimension_numbers<[1], [0], [0], [1], [0, 0, 1, 1], [], []>} : vector<2x32xf32>, vector<32x128xf32>, vector<2x128xf32> -> vector<2x128xf32>
    %287 = arith.addf %285, %286 : vector<2x128xf32>
    %288 = arith.negf %287 : vector<2x128xf32>
    %289 = math.exp %288 : vector<2x128xf32>
    %cst_53 = arith.constant 1.000000e+00 : f32
    %290 = vector.broadcast %cst_53 : f32 to vector<2x128xf32>
    %291 = arith.addf %290, %289 : vector<2x128xf32>
    %292 = arith.divf %290, %291 : vector<2x128xf32>
    %293 = math.tanh %287 : vector<2x128xf32>
    %294 = vector.extract_strided_slice %292 {offsets = [0, 32], sizes = [2, 32], strides = [1, 1]} : vector<2x128xf32> to vector<2x32xf32>
    %295 = arith.mulf %294, %260 : vector<2x32xf32>
    %296 = vector.extract_strided_slice %292 {offsets = [0, 0], sizes = [2, 32], strides = [1, 1]} : vector<2x128xf32> to vector<2x32xf32>
    %297 = vector.extract_strided_slice %293 {offsets = [0, 64], sizes = [2, 32], strides = [1, 1]} : vector<2x128xf32> to vector<2x32xf32>
    %298 = arith.mulf %296, %297 : vector<2x32xf32>
    %299 = arith.addf %295, %298 : vector<2x32xf32>
    %300 = vector.extract_strided_slice %292 {offsets = [0, 96], sizes = [2, 32], strides = [1, 1]} : vector<2x128xf32> to vector<2x32xf32>
    %301 = math.tanh %299 : vector<2x32xf32>
    %302 = arith.mulf %300, %301 : vector<2x32xf32>
    %303 = vector.extract_strided_slice %7 {offsets = [7, 0], sizes = [1, 128], strides = [1, 1]} : vector<24x128xf32> to vector<1x128xf32>
    %304 = vector.extract_strided_slice %7 {offsets = [19, 0], sizes = [1, 128], strides = [1, 1]} : vector<24x128xf32> to vector<1x128xf32>
    %305 = tpu.concatenate %303, %304 in 0 : vector<1x128xf32>, vector<1x128xf32> -> vector<2x128xf32>
    %cst_54 = arith.constant dense<0.000000e+00> : vector<2x128xf32>
    %306 = tpu.matmul %283, %24, %cst_54 {dimension_numbers = #tpu.dot_dimension_numbers<[1], [0], [0], [1], [0, 0, 1, 1], [], []>} : vector<2x32xf32>, vector<32x128xf32>, vector<2x128xf32> -> vector<2x128xf32>
    %307 = arith.addf %305, %306 : vector<2x128xf32>
    %308 = arith.negf %307 : vector<2x128xf32>
    %309 = math.exp %308 : vector<2x128xf32>
    %cst_55 = arith.constant 1.000000e+00 : f32
    %310 = vector.broadcast %cst_55 : f32 to vector<2x128xf32>
    %311 = arith.addf %310, %309 : vector<2x128xf32>
    %312 = arith.divf %310, %311 : vector<2x128xf32>
    %313 = math.tanh %307 : vector<2x128xf32>
    %314 = vector.extract_strided_slice %312 {offsets = [0, 32], sizes = [2, 32], strides = [1, 1]} : vector<2x128xf32> to vector<2x32xf32>
    %315 = arith.mulf %314, %280 : vector<2x32xf32>
    %316 = vector.extract_strided_slice %312 {offsets = [0, 0], sizes = [2, 32], strides = [1, 1]} : vector<2x128xf32> to vector<2x32xf32>
    %317 = vector.extract_strided_slice %313 {offsets = [0, 64], sizes = [2, 32], strides = [1, 1]} : vector<2x128xf32> to vector<2x32xf32>
    %318 = arith.mulf %316, %317 : vector<2x32xf32>
    %319 = arith.addf %315, %318 : vector<2x32xf32>
    %320 = vector.extract_strided_slice %312 {offsets = [0, 96], sizes = [2, 32], strides = [1, 1]} : vector<2x128xf32> to vector<2x32xf32>
    %321 = math.tanh %319 : vector<2x32xf32>
    %322 = arith.mulf %320, %321 : vector<2x32xf32>
    %cst_56 = arith.constant dense<0.000000e+00> : vector<2x128xf32>
    %323 = tpu.matmul %322, %25, %cst_56 {dimension_numbers = #tpu.dot_dimension_numbers<[1], [0], [0], [1], [0, 0, 1, 1], [], []>} : vector<2x32xf32>, vector<32x128xf32>, vector<2x128xf32> -> vector<2x128xf32>
    %324 = arith.addf %323, %29 : vector<2x128xf32>
    %cst_57 = arith.constant dense<0.000000e+00> : vector<2x128xf32>
    %325 = tpu.matmul %302, %26, %cst_57 {dimension_numbers = #tpu.dot_dimension_numbers<[1], [0], [0], [1], [0, 0, 1, 1], [], []>} : vector<2x32xf32>, vector<32x128xf32>, vector<2x128xf32> -> vector<2x128xf32>
    %326 = arith.addf %324, %325 : vector<2x128xf32>
    %327 = arith.negf %326 : vector<2x128xf32>
    %328 = math.exp %327 : vector<2x128xf32>
    %cst_58 = arith.constant 1.000000e+00 : f32
    %329 = vector.broadcast %cst_58 : f32 to vector<2x128xf32>
    %330 = arith.addf %329, %328 : vector<2x128xf32>
    %331 = arith.divf %329, %330 : vector<2x128xf32>
    %332 = math.tanh %326 : vector<2x128xf32>
    %333 = vector.extract_strided_slice %331 {offsets = [0, 32], sizes = [2, 32], strides = [1, 1]} : vector<2x128xf32> to vector<2x32xf32>
    %334 = arith.mulf %333, %299 : vector<2x32xf32>
    %335 = vector.extract_strided_slice %331 {offsets = [0, 0], sizes = [2, 32], strides = [1, 1]} : vector<2x128xf32> to vector<2x32xf32>
    %336 = vector.extract_strided_slice %332 {offsets = [0, 64], sizes = [2, 32], strides = [1, 1]} : vector<2x128xf32> to vector<2x32xf32>
    %337 = arith.mulf %335, %336 : vector<2x32xf32>
    %338 = arith.addf %334, %337 : vector<2x32xf32>
    %339 = vector.extract_strided_slice %331 {offsets = [0, 96], sizes = [2, 32], strides = [1, 1]} : vector<2x128xf32> to vector<2x32xf32>
    %340 = math.tanh %338 : vector<2x32xf32>
    %341 = arith.mulf %339, %340 : vector<2x32xf32>
    %342 = vector.extract_strided_slice %7 {offsets = [8, 0], sizes = [1, 128], strides = [1, 1]} : vector<24x128xf32> to vector<1x128xf32>
    %343 = vector.extract_strided_slice %7 {offsets = [20, 0], sizes = [1, 128], strides = [1, 1]} : vector<24x128xf32> to vector<1x128xf32>
    %344 = tpu.concatenate %342, %343 in 0 : vector<1x128xf32>, vector<1x128xf32> -> vector<2x128xf32>
    %cst_59 = arith.constant dense<0.000000e+00> : vector<2x128xf32>
    %345 = tpu.matmul %322, %24, %cst_59 {dimension_numbers = #tpu.dot_dimension_numbers<[1], [0], [0], [1], [0, 0, 1, 1], [], []>} : vector<2x32xf32>, vector<32x128xf32>, vector<2x128xf32> -> vector<2x128xf32>
    %346 = arith.addf %344, %345 : vector<2x128xf32>
    %347 = arith.negf %346 : vector<2x128xf32>
    %348 = math.exp %347 : vector<2x128xf32>
    %cst_60 = arith.constant 1.000000e+00 : f32
    %349 = vector.broadcast %cst_60 : f32 to vector<2x128xf32>
    %350 = arith.addf %349, %348 : vector<2x128xf32>
    %351 = arith.divf %349, %350 : vector<2x128xf32>
    %352 = math.tanh %346 : vector<2x128xf32>
    %353 = vector.extract_strided_slice %351 {offsets = [0, 32], sizes = [2, 32], strides = [1, 1]} : vector<2x128xf32> to vector<2x32xf32>
    %354 = arith.mulf %353, %319 : vector<2x32xf32>
    %355 = vector.extract_strided_slice %351 {offsets = [0, 0], sizes = [2, 32], strides = [1, 1]} : vector<2x128xf32> to vector<2x32xf32>
    %356 = vector.extract_strided_slice %352 {offsets = [0, 64], sizes = [2, 32], strides = [1, 1]} : vector<2x128xf32> to vector<2x32xf32>
    %357 = arith.mulf %355, %356 : vector<2x32xf32>
    %358 = arith.addf %354, %357 : vector<2x32xf32>
    %359 = vector.extract_strided_slice %351 {offsets = [0, 96], sizes = [2, 32], strides = [1, 1]} : vector<2x128xf32> to vector<2x32xf32>
    %360 = math.tanh %358 : vector<2x32xf32>
    %361 = arith.mulf %359, %360 : vector<2x32xf32>
    %cst_61 = arith.constant dense<0.000000e+00> : vector<2x128xf32>
    %362 = tpu.matmul %361, %25, %cst_61 {dimension_numbers = #tpu.dot_dimension_numbers<[1], [0], [0], [1], [0, 0, 1, 1], [], []>} : vector<2x32xf32>, vector<32x128xf32>, vector<2x128xf32> -> vector<2x128xf32>
    %363 = arith.addf %362, %29 : vector<2x128xf32>
    %cst_62 = arith.constant dense<0.000000e+00> : vector<2x128xf32>
    %364 = tpu.matmul %341, %26, %cst_62 {dimension_numbers = #tpu.dot_dimension_numbers<[1], [0], [0], [1], [0, 0, 1, 1], [], []>} : vector<2x32xf32>, vector<32x128xf32>, vector<2x128xf32> -> vector<2x128xf32>
    %365 = arith.addf %363, %364 : vector<2x128xf32>
    %366 = arith.negf %365 : vector<2x128xf32>
    %367 = math.exp %366 : vector<2x128xf32>
    %cst_63 = arith.constant 1.000000e+00 : f32
    %368 = vector.broadcast %cst_63 : f32 to vector<2x128xf32>
    %369 = arith.addf %368, %367 : vector<2x128xf32>
    %370 = arith.divf %368, %369 : vector<2x128xf32>
    %371 = math.tanh %365 : vector<2x128xf32>
    %372 = vector.extract_strided_slice %370 {offsets = [0, 32], sizes = [2, 32], strides = [1, 1]} : vector<2x128xf32> to vector<2x32xf32>
    %373 = arith.mulf %372, %338 : vector<2x32xf32>
    %374 = vector.extract_strided_slice %370 {offsets = [0, 0], sizes = [2, 32], strides = [1, 1]} : vector<2x128xf32> to vector<2x32xf32>
    %375 = vector.extract_strided_slice %371 {offsets = [0, 64], sizes = [2, 32], strides = [1, 1]} : vector<2x128xf32> to vector<2x32xf32>
    %376 = arith.mulf %374, %375 : vector<2x32xf32>
    %377 = arith.addf %373, %376 : vector<2x32xf32>
    %378 = vector.extract_strided_slice %370 {offsets = [0, 96], sizes = [2, 32], strides = [1, 1]} : vector<2x128xf32> to vector<2x32xf32>
    %379 = math.tanh %377 : vector<2x32xf32>
    %380 = arith.mulf %378, %379 : vector<2x32xf32>
    %381 = vector.extract_strided_slice %7 {offsets = [9, 0], sizes = [1, 128], strides = [1, 1]} : vector<24x128xf32> to vector<1x128xf32>
    %382 = vector.extract_strided_slice %7 {offsets = [21, 0], sizes = [1, 128], strides = [1, 1]} : vector<24x128xf32> to vector<1x128xf32>
    %383 = tpu.concatenate %381, %382 in 0 : vector<1x128xf32>, vector<1x128xf32> -> vector<2x128xf32>
    %cst_64 = arith.constant dense<0.000000e+00> : vector<2x128xf32>
    %384 = tpu.matmul %361, %24, %cst_64 {dimension_numbers = #tpu.dot_dimension_numbers<[1], [0], [0], [1], [0, 0, 1, 1], [], []>} : vector<2x32xf32>, vector<32x128xf32>, vector<2x128xf32> -> vector<2x128xf32>
    %385 = arith.addf %383, %384 : vector<2x128xf32>
    %386 = arith.negf %385 : vector<2x128xf32>
    %387 = math.exp %386 : vector<2x128xf32>
    %cst_65 = arith.constant 1.000000e+00 : f32
    %388 = vector.broadcast %cst_65 : f32 to vector<2x128xf32>
    %389 = arith.addf %388, %387 : vector<2x128xf32>
    %390 = arith.divf %388, %389 : vector<2x128xf32>
    %391 = math.tanh %385 : vector<2x128xf32>
    %392 = vector.extract_strided_slice %390 {offsets = [0, 32], sizes = [2, 32], strides = [1, 1]} : vector<2x128xf32> to vector<2x32xf32>
    %393 = arith.mulf %392, %358 : vector<2x32xf32>
    %394 = vector.extract_strided_slice %390 {offsets = [0, 0], sizes = [2, 32], strides = [1, 1]} : vector<2x128xf32> to vector<2x32xf32>
    %395 = vector.extract_strided_slice %391 {offsets = [0, 64], sizes = [2, 32], strides = [1, 1]} : vector<2x128xf32> to vector<2x32xf32>
    %396 = arith.mulf %394, %395 : vector<2x32xf32>
    %397 = arith.addf %393, %396 : vector<2x32xf32>
    %398 = vector.extract_strided_slice %390 {offsets = [0, 96], sizes = [2, 32], strides = [1, 1]} : vector<2x128xf32> to vector<2x32xf32>
    %399 = math.tanh %397 : vector<2x32xf32>
    %400 = arith.mulf %398, %399 : vector<2x32xf32>
    %cst_66 = arith.constant dense<0.000000e+00> : vector<2x128xf32>
    %401 = tpu.matmul %400, %25, %cst_66 {dimension_numbers = #tpu.dot_dimension_numbers<[1], [0], [0], [1], [0, 0, 1, 1], [], []>} : vector<2x32xf32>, vector<32x128xf32>, vector<2x128xf32> -> vector<2x128xf32>
    %402 = arith.addf %401, %29 : vector<2x128xf32>
    %cst_67 = arith.constant dense<0.000000e+00> : vector<2x128xf32>
    %403 = tpu.matmul %380, %26, %cst_67 {dimension_numbers = #tpu.dot_dimension_numbers<[1], [0], [0], [1], [0, 0, 1, 1], [], []>} : vector<2x32xf32>, vector<32x128xf32>, vector<2x128xf32> -> vector<2x128xf32>
    %404 = arith.addf %402, %403 : vector<2x128xf32>
    %405 = arith.negf %404 : vector<2x128xf32>
    %406 = math.exp %405 : vector<2x128xf32>
    %cst_68 = arith.constant 1.000000e+00 : f32
    %407 = vector.broadcast %cst_68 : f32 to vector<2x128xf32>
    %408 = arith.addf %407, %406 : vector<2x128xf32>
    %409 = arith.divf %407, %408 : vector<2x128xf32>
    %410 = math.tanh %404 : vector<2x128xf32>
    %411 = vector.extract_strided_slice %409 {offsets = [0, 32], sizes = [2, 32], strides = [1, 1]} : vector<2x128xf32> to vector<2x32xf32>
    %412 = arith.mulf %411, %377 : vector<2x32xf32>
    %413 = vector.extract_strided_slice %409 {offsets = [0, 0], sizes = [2, 32], strides = [1, 1]} : vector<2x128xf32> to vector<2x32xf32>
    %414 = vector.extract_strided_slice %410 {offsets = [0, 64], sizes = [2, 32], strides = [1, 1]} : vector<2x128xf32> to vector<2x32xf32>
    %415 = arith.mulf %413, %414 : vector<2x32xf32>
    %416 = arith.addf %412, %415 : vector<2x32xf32>
    %417 = vector.extract_strided_slice %409 {offsets = [0, 96], sizes = [2, 32], strides = [1, 1]} : vector<2x128xf32> to vector<2x32xf32>
    %418 = math.tanh %416 : vector<2x32xf32>
    %419 = arith.mulf %417, %418 : vector<2x32xf32>
    %420 = vector.extract_strided_slice %7 {offsets = [10, 0], sizes = [1, 128], strides = [1, 1]} : vector<24x128xf32> to vector<1x128xf32>
    %421 = vector.extract_strided_slice %7 {offsets = [22, 0], sizes = [1, 128], strides = [1, 1]} : vector<24x128xf32> to vector<1x128xf32>
    %422 = tpu.concatenate %420, %421 in 0 : vector<1x128xf32>, vector<1x128xf32> -> vector<2x128xf32>
    %cst_69 = arith.constant dense<0.000000e+00> : vector<2x128xf32>
    %423 = tpu.matmul %400, %24, %cst_69 {dimension_numbers = #tpu.dot_dimension_numbers<[1], [0], [0], [1], [0, 0, 1, 1], [], []>} : vector<2x32xf32>, vector<32x128xf32>, vector<2x128xf32> -> vector<2x128xf32>
    %424 = arith.addf %422, %423 : vector<2x128xf32>
    %425 = arith.negf %424 : vector<2x128xf32>
    %426 = math.exp %425 : vector<2x128xf32>
    %cst_70 = arith.constant 1.000000e+00 : f32
    %427 = vector.broadcast %cst_70 : f32 to vector<2x128xf32>
    %428 = arith.addf %427, %426 : vector<2x128xf32>
    %429 = arith.divf %427, %428 : vector<2x128xf32>
    %430 = math.tanh %424 : vector<2x128xf32>
    %431 = vector.extract_strided_slice %429 {offsets = [0, 32], sizes = [2, 32], strides = [1, 1]} : vector<2x128xf32> to vector<2x32xf32>
    %432 = arith.mulf %431, %397 : vector<2x32xf32>
    %433 = vector.extract_strided_slice %429 {offsets = [0, 0], sizes = [2, 32], strides = [1, 1]} : vector<2x128xf32> to vector<2x32xf32>
    %434 = vector.extract_strided_slice %430 {offsets = [0, 64], sizes = [2, 32], strides = [1, 1]} : vector<2x128xf32> to vector<2x32xf32>
    %435 = arith.mulf %433, %434 : vector<2x32xf32>
    %436 = arith.addf %432, %435 : vector<2x32xf32>
    %437 = vector.extract_strided_slice %429 {offsets = [0, 96], sizes = [2, 32], strides = [1, 1]} : vector<2x128xf32> to vector<2x32xf32>
    %438 = math.tanh %436 : vector<2x32xf32>
    %439 = arith.mulf %437, %438 : vector<2x32xf32>
    %cst_71 = arith.constant dense<0.000000e+00> : vector<2x128xf32>
    %440 = tpu.matmul %439, %25, %cst_71 {dimension_numbers = #tpu.dot_dimension_numbers<[1], [0], [0], [1], [0, 0, 1, 1], [], []>} : vector<2x32xf32>, vector<32x128xf32>, vector<2x128xf32> -> vector<2x128xf32>
    %441 = arith.addf %440, %29 : vector<2x128xf32>
    %cst_72 = arith.constant dense<0.000000e+00> : vector<2x128xf32>
    %442 = tpu.matmul %419, %26, %cst_72 {dimension_numbers = #tpu.dot_dimension_numbers<[1], [0], [0], [1], [0, 0, 1, 1], [], []>} : vector<2x32xf32>, vector<32x128xf32>, vector<2x128xf32> -> vector<2x128xf32>
    %443 = arith.addf %441, %442 : vector<2x128xf32>
    %444 = arith.negf %443 : vector<2x128xf32>
    %445 = math.exp %444 : vector<2x128xf32>
    %cst_73 = arith.constant 1.000000e+00 : f32
    %446 = vector.broadcast %cst_73 : f32 to vector<2x128xf32>
    %447 = arith.addf %446, %445 : vector<2x128xf32>
    %448 = arith.divf %446, %447 : vector<2x128xf32>
    %449 = math.tanh %443 : vector<2x128xf32>
    %450 = vector.extract_strided_slice %448 {offsets = [0, 32], sizes = [2, 32], strides = [1, 1]} : vector<2x128xf32> to vector<2x32xf32>
    %451 = arith.mulf %450, %416 : vector<2x32xf32>
    %452 = vector.extract_strided_slice %448 {offsets = [0, 0], sizes = [2, 32], strides = [1, 1]} : vector<2x128xf32> to vector<2x32xf32>
    %453 = vector.extract_strided_slice %449 {offsets = [0, 64], sizes = [2, 32], strides = [1, 1]} : vector<2x128xf32> to vector<2x32xf32>
    %454 = arith.mulf %452, %453 : vector<2x32xf32>
    %455 = arith.addf %451, %454 : vector<2x32xf32>
    %456 = vector.extract_strided_slice %448 {offsets = [0, 96], sizes = [2, 32], strides = [1, 1]} : vector<2x128xf32> to vector<2x32xf32>
    %457 = math.tanh %455 : vector<2x32xf32>
    %458 = arith.mulf %456, %457 : vector<2x32xf32>
    %459 = vector.extract_strided_slice %7 {offsets = [11, 0], sizes = [1, 128], strides = [1, 1]} : vector<24x128xf32> to vector<1x128xf32>
    %460 = vector.extract_strided_slice %7 {offsets = [23, 0], sizes = [1, 128], strides = [1, 1]} : vector<24x128xf32> to vector<1x128xf32>
    %461 = tpu.concatenate %459, %460 in 0 : vector<1x128xf32>, vector<1x128xf32> -> vector<2x128xf32>
    %cst_74 = arith.constant dense<0.000000e+00> : vector<2x128xf32>
    %462 = tpu.matmul %439, %24, %cst_74 {dimension_numbers = #tpu.dot_dimension_numbers<[1], [0], [0], [1], [0, 0, 1, 1], [], []>} : vector<2x32xf32>, vector<32x128xf32>, vector<2x128xf32> -> vector<2x128xf32>
    %463 = arith.addf %461, %462 : vector<2x128xf32>
    %464 = arith.negf %463 : vector<2x128xf32>
    %465 = math.exp %464 : vector<2x128xf32>
    %cst_75 = arith.constant 1.000000e+00 : f32
    %466 = vector.broadcast %cst_75 : f32 to vector<2x128xf32>
    %467 = arith.addf %466, %465 : vector<2x128xf32>
    %468 = arith.divf %466, %467 : vector<2x128xf32>
    %469 = math.tanh %463 : vector<2x128xf32>
    %470 = vector.extract_strided_slice %468 {offsets = [0, 32], sizes = [2, 32], strides = [1, 1]} : vector<2x128xf32> to vector<2x32xf32>
    %471 = arith.mulf %470, %436 : vector<2x32xf32>
    %472 = vector.extract_strided_slice %468 {offsets = [0, 0], sizes = [2, 32], strides = [1, 1]} : vector<2x128xf32> to vector<2x32xf32>
    %473 = vector.extract_strided_slice %469 {offsets = [0, 64], sizes = [2, 32], strides = [1, 1]} : vector<2x128xf32> to vector<2x32xf32>
    %474 = arith.mulf %472, %473 : vector<2x32xf32>
    %475 = arith.addf %471, %474 : vector<2x32xf32>
    %476 = vector.extract_strided_slice %468 {offsets = [0, 96], sizes = [2, 32], strides = [1, 1]} : vector<2x128xf32> to vector<2x32xf32>
    %477 = math.tanh %475 : vector<2x32xf32>
    %478 = arith.mulf %476, %477 : vector<2x32xf32>
    %cst_76 = arith.constant dense<0.000000e+00> : vector<2x128xf32>
    %479 = tpu.matmul %478, %25, %cst_76 {dimension_numbers = #tpu.dot_dimension_numbers<[1], [0], [0], [1], [0, 0, 1, 1], [], []>} : vector<2x32xf32>, vector<32x128xf32>, vector<2x128xf32> -> vector<2x128xf32>
    %480 = arith.addf %479, %29 : vector<2x128xf32>
    %cst_77 = arith.constant dense<0.000000e+00> : vector<2x128xf32>
    %481 = tpu.matmul %458, %26, %cst_77 {dimension_numbers = #tpu.dot_dimension_numbers<[1], [0], [0], [1], [0, 0, 1, 1], [], []>} : vector<2x32xf32>, vector<32x128xf32>, vector<2x128xf32> -> vector<2x128xf32>
    %482 = arith.addf %480, %481 : vector<2x128xf32>
    %483 = arith.negf %482 : vector<2x128xf32>
    %484 = math.exp %483 : vector<2x128xf32>
    %cst_78 = arith.constant 1.000000e+00 : f32
    %485 = vector.broadcast %cst_78 : f32 to vector<2x128xf32>
    %486 = arith.addf %485, %484 : vector<2x128xf32>
    %487 = arith.divf %485, %486 : vector<2x128xf32>
    %488 = math.tanh %482 : vector<2x128xf32>
    %489 = vector.extract_strided_slice %487 {offsets = [0, 32], sizes = [2, 32], strides = [1, 1]} : vector<2x128xf32> to vector<2x32xf32>
    %490 = arith.mulf %489, %455 : vector<2x32xf32>
    %491 = vector.extract_strided_slice %487 {offsets = [0, 0], sizes = [2, 32], strides = [1, 1]} : vector<2x128xf32> to vector<2x32xf32>
    %492 = vector.extract_strided_slice %488 {offsets = [0, 64], sizes = [2, 32], strides = [1, 1]} : vector<2x128xf32> to vector<2x32xf32>
    %493 = arith.mulf %491, %492 : vector<2x32xf32>
    %494 = arith.addf %490, %493 : vector<2x32xf32>
    %495 = vector.extract_strided_slice %487 {offsets = [0, 96], sizes = [2, 32], strides = [1, 1]} : vector<2x128xf32> to vector<2x32xf32>
    %496 = math.tanh %494 : vector<2x32xf32>
    %497 = arith.mulf %495, %496 : vector<2x32xf32>
    %498 = tpu.concatenate %68, %107, %146, %185, %224, %263, %302, %341, %380, %419, %458, %497 in 0 : vector<2x32xf32>, vector<2x32xf32>, vector<2x32xf32>, vector<2x32xf32>, vector<2x32xf32>, vector<2x32xf32>, vector<2x32xf32>, vector<2x32xf32>, vector<2x32xf32>, vector<2x32xf32>, vector<2x32xf32>, vector<2x32xf32> -> vector<24x32xf32>
    %c0_79 = arith.constant 0 : index
    %c0_80 = arith.constant 0 : index
    %499 = vector.load %arg15[%c0_79, %c0_80] : memref<32x32xf32, #tpu.memory_space<vmem>>, vector<32x32xf32>
    %cst_81 = arith.constant dense<0.000000e+00> : vector<24x32xf32>
    %500 = tpu.matmul %498, %499, %cst_81 {dimension_numbers = #tpu.dot_dimension_numbers<[1], [0], [0], [1], [0, 0, 1, 1], [], []>} : vector<24x32xf32>, vector<32x32xf32>, vector<24x32xf32> -> vector<24x32xf32>
    %c0_82 = arith.constant 0 : index
    %c0_83 = arith.constant 0 : index
    %501 = vector.load %arg16[%c0_82, %c0_83] : memref<1x32xf32, #tpu.memory_space<vmem>>, vector<1x32xf32>
    %502 = vector.broadcast %501 : vector<1x32xf32> to vector<24x32xf32>
    %503 = arith.addf %500, %502 : vector<24x32xf32>
    %cst_84 = arith.constant 0.000000e+00 : f32
    %504 = vector.broadcast %cst_84 : f32 to vector<24x32xf32>
    %505 = arith.maximumf %503, %504 : vector<24x32xf32>
    %c0_85 = arith.constant 0 : index
    %c0_86 = arith.constant 0 : index
    %506 = vector.load %arg7[%c0_85, %c0_86] : memref<32x128xf32, #tpu.memory_space<vmem>>, vector<32x128xf32>
    %cst_87 = arith.constant dense<0.000000e+00> : vector<24x128xf32>
    %507 = tpu.matmul %505, %506, %cst_87 {dimension_numbers = #tpu.dot_dimension_numbers<[1], [0], [0], [1], [0, 0, 1, 1], [], []>} : vector<24x32xf32>, vector<32x128xf32>, vector<24x128xf32> -> vector<24x128xf32>
    %c0_88 = arith.constant 0 : index
    %c0_89 = arith.constant 0 : index
    %508 = vector.load %arg9[%c0_88, %c0_89] : memref<1x128xf32, #tpu.memory_space<vmem>>, vector<1x128xf32>
    %509 = vector.broadcast %508 : vector<1x128xf32> to vector<24x128xf32>
    %510 = arith.addf %507, %509 : vector<24x128xf32>
    %c0_90 = arith.constant 0 : index
    %c0_91 = arith.constant 0 : index
    %511 = vector.load %arg8[%c0_90, %c0_91] : memref<32x128xf32, #tpu.memory_space<vmem>>, vector<32x128xf32>
    %c0_92 = arith.constant 0 : index
    %c0_93 = arith.constant 0 : index
    %512 = vector.load %arg10[%c0_92, %c0_93] : memref<32x128xf32, #tpu.memory_space<vmem>>, vector<32x128xf32>
    %c0_94 = arith.constant 0 : index
    %c0_95 = arith.constant 0 : index
    %513 = vector.load %arg11[%c0_94, %c0_95] : memref<32x128xf32, #tpu.memory_space<vmem>>, vector<32x128xf32>
    %c0_96 = arith.constant 0 : index
    %c0_97 = arith.constant 0 : index
    %514 = vector.load %arg12[%c0_96, %c0_97] : memref<1x128xf32, #tpu.memory_space<vmem>>, vector<1x128xf32>
    %515 = vector.shape_cast %514 : vector<1x128xf32> to vector<1x128xf32>
    %516 = vector.broadcast %515 : vector<1x128xf32> to vector<2x128xf32>
    %517 = vector.extract_strided_slice %510 {offsets = [0, 0], sizes = [2, 128], strides = [1, 1]} : vector<24x128xf32> to vector<2x128xf32>
    %cst_98 = arith.constant dense<0.000000e+00> : vector<2x128xf32>
    %518 = tpu.matmul %478, %511, %cst_98 {dimension_numbers = #tpu.dot_dimension_numbers<[1], [0], [0], [1], [0, 0, 1, 1], [], []>} : vector<2x32xf32>, vector<32x128xf32>, vector<2x128xf32> -> vector<2x128xf32>
    %519 = arith.addf %517, %518 : vector<2x128xf32>
    %520 = arith.negf %519 : vector<2x128xf32>
    %521 = math.exp %520 : vector<2x128xf32>
    %cst_99 = arith.constant 1.000000e+00 : f32
    %522 = vector.broadcast %cst_99 : f32 to vector<2x128xf32>
    %523 = arith.addf %522, %521 : vector<2x128xf32>
    %524 = arith.divf %522, %523 : vector<2x128xf32>
    %525 = math.tanh %519 : vector<2x128xf32>
    %526 = vector.extract_strided_slice %524 {offsets = [0, 32], sizes = [2, 32], strides = [1, 1]} : vector<2x128xf32> to vector<2x32xf32>
    %527 = arith.mulf %526, %475 : vector<2x32xf32>
    %528 = vector.extract_strided_slice %524 {offsets = [0, 0], sizes = [2, 32], strides = [1, 1]} : vector<2x128xf32> to vector<2x32xf32>
    %529 = vector.extract_strided_slice %525 {offsets = [0, 64], sizes = [2, 32], strides = [1, 1]} : vector<2x128xf32> to vector<2x32xf32>
    %530 = arith.mulf %528, %529 : vector<2x32xf32>
    %531 = arith.addf %527, %530 : vector<2x32xf32>
    %532 = vector.extract_strided_slice %524 {offsets = [0, 96], sizes = [2, 32], strides = [1, 1]} : vector<2x128xf32> to vector<2x32xf32>
    %533 = math.tanh %531 : vector<2x32xf32>
    %534 = arith.mulf %532, %533 : vector<2x32xf32>
    %cst_100 = arith.constant dense<0.000000e+00> : vector<2x128xf32>
    %535 = tpu.matmul %534, %512, %cst_100 {dimension_numbers = #tpu.dot_dimension_numbers<[1], [0], [0], [1], [0, 0, 1, 1], [], []>} : vector<2x32xf32>, vector<32x128xf32>, vector<2x128xf32> -> vector<2x128xf32>
    %536 = arith.addf %535, %516 : vector<2x128xf32>
    %cst_101 = arith.constant dense<0.000000e+00> : vector<2x128xf32>
    %537 = tpu.matmul %497, %513, %cst_101 {dimension_numbers = #tpu.dot_dimension_numbers<[1], [0], [0], [1], [0, 0, 1, 1], [], []>} : vector<2x32xf32>, vector<32x128xf32>, vector<2x128xf32> -> vector<2x128xf32>
    %538 = arith.addf %536, %537 : vector<2x128xf32>
    %539 = arith.negf %538 : vector<2x128xf32>
    %540 = math.exp %539 : vector<2x128xf32>
    %cst_102 = arith.constant 1.000000e+00 : f32
    %541 = vector.broadcast %cst_102 : f32 to vector<2x128xf32>
    %542 = arith.addf %541, %540 : vector<2x128xf32>
    %543 = arith.divf %541, %542 : vector<2x128xf32>
    %544 = math.tanh %538 : vector<2x128xf32>
    %545 = vector.extract_strided_slice %543 {offsets = [0, 32], sizes = [2, 32], strides = [1, 1]} : vector<2x128xf32> to vector<2x32xf32>
    %546 = arith.mulf %545, %494 : vector<2x32xf32>
    %547 = vector.extract_strided_slice %543 {offsets = [0, 0], sizes = [2, 32], strides = [1, 1]} : vector<2x128xf32> to vector<2x32xf32>
    %548 = vector.extract_strided_slice %544 {offsets = [0, 64], sizes = [2, 32], strides = [1, 1]} : vector<2x128xf32> to vector<2x32xf32>
    %549 = arith.mulf %547, %548 : vector<2x32xf32>
    %550 = arith.addf %546, %549 : vector<2x32xf32>
    %551 = vector.extract_strided_slice %543 {offsets = [0, 96], sizes = [2, 32], strides = [1, 1]} : vector<2x128xf32> to vector<2x32xf32>
    %552 = math.tanh %550 : vector<2x32xf32>
    %553 = arith.mulf %551, %552 : vector<2x32xf32>
    %554 = vector.extract_strided_slice %510 {offsets = [2, 0], sizes = [2, 128], strides = [1, 1]} : vector<24x128xf32> to vector<2x128xf32>
    %cst_103 = arith.constant dense<0.000000e+00> : vector<2x128xf32>
    %555 = tpu.matmul %534, %511, %cst_103 {dimension_numbers = #tpu.dot_dimension_numbers<[1], [0], [0], [1], [0, 0, 1, 1], [], []>} : vector<2x32xf32>, vector<32x128xf32>, vector<2x128xf32> -> vector<2x128xf32>
    %556 = arith.addf %554, %555 : vector<2x128xf32>
    %557 = arith.negf %556 : vector<2x128xf32>
    %558 = math.exp %557 : vector<2x128xf32>
    %cst_104 = arith.constant 1.000000e+00 : f32
    %559 = vector.broadcast %cst_104 : f32 to vector<2x128xf32>
    %560 = arith.addf %559, %558 : vector<2x128xf32>
    %561 = arith.divf %559, %560 : vector<2x128xf32>
    %562 = math.tanh %556 : vector<2x128xf32>
    %563 = vector.extract_strided_slice %561 {offsets = [0, 32], sizes = [2, 32], strides = [1, 1]} : vector<2x128xf32> to vector<2x32xf32>
    %564 = arith.mulf %563, %531 : vector<2x32xf32>
    %565 = vector.extract_strided_slice %561 {offsets = [0, 0], sizes = [2, 32], strides = [1, 1]} : vector<2x128xf32> to vector<2x32xf32>
    %566 = vector.extract_strided_slice %562 {offsets = [0, 64], sizes = [2, 32], strides = [1, 1]} : vector<2x128xf32> to vector<2x32xf32>
    %567 = arith.mulf %565, %566 : vector<2x32xf32>
    %568 = arith.addf %564, %567 : vector<2x32xf32>
    %569 = vector.extract_strided_slice %561 {offsets = [0, 96], sizes = [2, 32], strides = [1, 1]} : vector<2x128xf32> to vector<2x32xf32>
    %570 = math.tanh %568 : vector<2x32xf32>
    %571 = arith.mulf %569, %570 : vector<2x32xf32>
    %cst_105 = arith.constant dense<0.000000e+00> : vector<2x128xf32>
    %572 = tpu.matmul %571, %512, %cst_105 {dimension_numbers = #tpu.dot_dimension_numbers<[1], [0], [0], [1], [0, 0, 1, 1], [], []>} : vector<2x32xf32>, vector<32x128xf32>, vector<2x128xf32> -> vector<2x128xf32>
    %573 = arith.addf %572, %516 : vector<2x128xf32>
    %cst_106 = arith.constant dense<0.000000e+00> : vector<2x128xf32>
    %574 = tpu.matmul %553, %513, %cst_106 {dimension_numbers = #tpu.dot_dimension_numbers<[1], [0], [0], [1], [0, 0, 1, 1], [], []>} : vector<2x32xf32>, vector<32x128xf32>, vector<2x128xf32> -> vector<2x128xf32>
    %575 = arith.addf %573, %574 : vector<2x128xf32>
    %576 = arith.negf %575 : vector<2x128xf32>
    %577 = math.exp %576 : vector<2x128xf32>
    %cst_107 = arith.constant 1.000000e+00 : f32
    %578 = vector.broadcast %cst_107 : f32 to vector<2x128xf32>
    %579 = arith.addf %578, %577 : vector<2x128xf32>
    %580 = arith.divf %578, %579 : vector<2x128xf32>
    %581 = math.tanh %575 : vector<2x128xf32>
    %582 = vector.extract_strided_slice %580 {offsets = [0, 32], sizes = [2, 32], strides = [1, 1]} : vector<2x128xf32> to vector<2x32xf32>
    %583 = arith.mulf %582, %550 : vector<2x32xf32>
    %584 = vector.extract_strided_slice %580 {offsets = [0, 0], sizes = [2, 32], strides = [1, 1]} : vector<2x128xf32> to vector<2x32xf32>
    %585 = vector.extract_strided_slice %581 {offsets = [0, 64], sizes = [2, 32], strides = [1, 1]} : vector<2x128xf32> to vector<2x32xf32>
    %586 = arith.mulf %584, %585 : vector<2x32xf32>
    %587 = arith.addf %583, %586 : vector<2x32xf32>
    %588 = vector.extract_strided_slice %580 {offsets = [0, 96], sizes = [2, 32], strides = [1, 1]} : vector<2x128xf32> to vector<2x32xf32>
    %589 = math.tanh %587 : vector<2x32xf32>
    %590 = arith.mulf %588, %589 : vector<2x32xf32>
    %591 = vector.extract_strided_slice %510 {offsets = [4, 0], sizes = [2, 128], strides = [1, 1]} : vector<24x128xf32> to vector<2x128xf32>
    %cst_108 = arith.constant dense<0.000000e+00> : vector<2x128xf32>
    %592 = tpu.matmul %571, %511, %cst_108 {dimension_numbers = #tpu.dot_dimension_numbers<[1], [0], [0], [1], [0, 0, 1, 1], [], []>} : vector<2x32xf32>, vector<32x128xf32>, vector<2x128xf32> -> vector<2x128xf32>
    %593 = arith.addf %591, %592 : vector<2x128xf32>
    %594 = arith.negf %593 : vector<2x128xf32>
    %595 = math.exp %594 : vector<2x128xf32>
    %cst_109 = arith.constant 1.000000e+00 : f32
    %596 = vector.broadcast %cst_109 : f32 to vector<2x128xf32>
    %597 = arith.addf %596, %595 : vector<2x128xf32>
    %598 = arith.divf %596, %597 : vector<2x128xf32>
    %599 = math.tanh %593 : vector<2x128xf32>
    %600 = vector.extract_strided_slice %598 {offsets = [0, 32], sizes = [2, 32], strides = [1, 1]} : vector<2x128xf32> to vector<2x32xf32>
    %601 = arith.mulf %600, %568 : vector<2x32xf32>
    %602 = vector.extract_strided_slice %598 {offsets = [0, 0], sizes = [2, 32], strides = [1, 1]} : vector<2x128xf32> to vector<2x32xf32>
    %603 = vector.extract_strided_slice %599 {offsets = [0, 64], sizes = [2, 32], strides = [1, 1]} : vector<2x128xf32> to vector<2x32xf32>
    %604 = arith.mulf %602, %603 : vector<2x32xf32>
    %605 = arith.addf %601, %604 : vector<2x32xf32>
    %606 = vector.extract_strided_slice %598 {offsets = [0, 96], sizes = [2, 32], strides = [1, 1]} : vector<2x128xf32> to vector<2x32xf32>
    %607 = math.tanh %605 : vector<2x32xf32>
    %608 = arith.mulf %606, %607 : vector<2x32xf32>
    %cst_110 = arith.constant dense<0.000000e+00> : vector<2x128xf32>
    %609 = tpu.matmul %608, %512, %cst_110 {dimension_numbers = #tpu.dot_dimension_numbers<[1], [0], [0], [1], [0, 0, 1, 1], [], []>} : vector<2x32xf32>, vector<32x128xf32>, vector<2x128xf32> -> vector<2x128xf32>
    %610 = arith.addf %609, %516 : vector<2x128xf32>
    %cst_111 = arith.constant dense<0.000000e+00> : vector<2x128xf32>
    %611 = tpu.matmul %590, %513, %cst_111 {dimension_numbers = #tpu.dot_dimension_numbers<[1], [0], [0], [1], [0, 0, 1, 1], [], []>} : vector<2x32xf32>, vector<32x128xf32>, vector<2x128xf32> -> vector<2x128xf32>
    %612 = arith.addf %610, %611 : vector<2x128xf32>
    %613 = arith.negf %612 : vector<2x128xf32>
    %614 = math.exp %613 : vector<2x128xf32>
    %cst_112 = arith.constant 1.000000e+00 : f32
    %615 = vector.broadcast %cst_112 : f32 to vector<2x128xf32>
    %616 = arith.addf %615, %614 : vector<2x128xf32>
    %617 = arith.divf %615, %616 : vector<2x128xf32>
    %618 = math.tanh %612 : vector<2x128xf32>
    %619 = vector.extract_strided_slice %617 {offsets = [0, 32], sizes = [2, 32], strides = [1, 1]} : vector<2x128xf32> to vector<2x32xf32>
    %620 = arith.mulf %619, %587 : vector<2x32xf32>
    %621 = vector.extract_strided_slice %617 {offsets = [0, 0], sizes = [2, 32], strides = [1, 1]} : vector<2x128xf32> to vector<2x32xf32>
    %622 = vector.extract_strided_slice %618 {offsets = [0, 64], sizes = [2, 32], strides = [1, 1]} : vector<2x128xf32> to vector<2x32xf32>
    %623 = arith.mulf %621, %622 : vector<2x32xf32>
    %624 = arith.addf %620, %623 : vector<2x32xf32>
    %625 = vector.extract_strided_slice %617 {offsets = [0, 96], sizes = [2, 32], strides = [1, 1]} : vector<2x128xf32> to vector<2x32xf32>
    %626 = math.tanh %624 : vector<2x32xf32>
    %627 = arith.mulf %625, %626 : vector<2x32xf32>
    %628 = vector.extract_strided_slice %510 {offsets = [6, 0], sizes = [2, 128], strides = [1, 1]} : vector<24x128xf32> to vector<2x128xf32>
    %cst_113 = arith.constant dense<0.000000e+00> : vector<2x128xf32>
    %629 = tpu.matmul %608, %511, %cst_113 {dimension_numbers = #tpu.dot_dimension_numbers<[1], [0], [0], [1], [0, 0, 1, 1], [], []>} : vector<2x32xf32>, vector<32x128xf32>, vector<2x128xf32> -> vector<2x128xf32>
    %630 = arith.addf %628, %629 : vector<2x128xf32>
    %631 = arith.negf %630 : vector<2x128xf32>
    %632 = math.exp %631 : vector<2x128xf32>
    %cst_114 = arith.constant 1.000000e+00 : f32
    %633 = vector.broadcast %cst_114 : f32 to vector<2x128xf32>
    %634 = arith.addf %633, %632 : vector<2x128xf32>
    %635 = arith.divf %633, %634 : vector<2x128xf32>
    %636 = math.tanh %630 : vector<2x128xf32>
    %637 = vector.extract_strided_slice %635 {offsets = [0, 32], sizes = [2, 32], strides = [1, 1]} : vector<2x128xf32> to vector<2x32xf32>
    %638 = arith.mulf %637, %605 : vector<2x32xf32>
    %639 = vector.extract_strided_slice %635 {offsets = [0, 0], sizes = [2, 32], strides = [1, 1]} : vector<2x128xf32> to vector<2x32xf32>
    %640 = vector.extract_strided_slice %636 {offsets = [0, 64], sizes = [2, 32], strides = [1, 1]} : vector<2x128xf32> to vector<2x32xf32>
    %641 = arith.mulf %639, %640 : vector<2x32xf32>
    %642 = arith.addf %638, %641 : vector<2x32xf32>
    %643 = vector.extract_strided_slice %635 {offsets = [0, 96], sizes = [2, 32], strides = [1, 1]} : vector<2x128xf32> to vector<2x32xf32>
    %644 = math.tanh %642 : vector<2x32xf32>
    %645 = arith.mulf %643, %644 : vector<2x32xf32>
    %cst_115 = arith.constant dense<0.000000e+00> : vector<2x128xf32>
    %646 = tpu.matmul %645, %512, %cst_115 {dimension_numbers = #tpu.dot_dimension_numbers<[1], [0], [0], [1], [0, 0, 1, 1], [], []>} : vector<2x32xf32>, vector<32x128xf32>, vector<2x128xf32> -> vector<2x128xf32>
    %647 = arith.addf %646, %516 : vector<2x128xf32>
    %cst_116 = arith.constant dense<0.000000e+00> : vector<2x128xf32>
    %648 = tpu.matmul %627, %513, %cst_116 {dimension_numbers = #tpu.dot_dimension_numbers<[1], [0], [0], [1], [0, 0, 1, 1], [], []>} : vector<2x32xf32>, vector<32x128xf32>, vector<2x128xf32> -> vector<2x128xf32>
    %649 = arith.addf %647, %648 : vector<2x128xf32>
    %650 = arith.negf %649 : vector<2x128xf32>
    %651 = math.exp %650 : vector<2x128xf32>
    %cst_117 = arith.constant 1.000000e+00 : f32
    %652 = vector.broadcast %cst_117 : f32 to vector<2x128xf32>
    %653 = arith.addf %652, %651 : vector<2x128xf32>
    %654 = arith.divf %652, %653 : vector<2x128xf32>
    %655 = math.tanh %649 : vector<2x128xf32>
    %656 = vector.extract_strided_slice %654 {offsets = [0, 32], sizes = [2, 32], strides = [1, 1]} : vector<2x128xf32> to vector<2x32xf32>
    %657 = arith.mulf %656, %624 : vector<2x32xf32>
    %658 = vector.extract_strided_slice %654 {offsets = [0, 0], sizes = [2, 32], strides = [1, 1]} : vector<2x128xf32> to vector<2x32xf32>
    %659 = vector.extract_strided_slice %655 {offsets = [0, 64], sizes = [2, 32], strides = [1, 1]} : vector<2x128xf32> to vector<2x32xf32>
    %660 = arith.mulf %658, %659 : vector<2x32xf32>
    %661 = arith.addf %657, %660 : vector<2x32xf32>
    %662 = vector.extract_strided_slice %654 {offsets = [0, 96], sizes = [2, 32], strides = [1, 1]} : vector<2x128xf32> to vector<2x32xf32>
    %663 = math.tanh %661 : vector<2x32xf32>
    %664 = arith.mulf %662, %663 : vector<2x32xf32>
    %665 = vector.extract_strided_slice %510 {offsets = [8, 0], sizes = [2, 128], strides = [1, 1]} : vector<24x128xf32> to vector<2x128xf32>
    %cst_118 = arith.constant dense<0.000000e+00> : vector<2x128xf32>
    %666 = tpu.matmul %645, %511, %cst_118 {dimension_numbers = #tpu.dot_dimension_numbers<[1], [0], [0], [1], [0, 0, 1, 1], [], []>} : vector<2x32xf32>, vector<32x128xf32>, vector<2x128xf32> -> vector<2x128xf32>
    %667 = arith.addf %665, %666 : vector<2x128xf32>
    %668 = arith.negf %667 : vector<2x128xf32>
    %669 = math.exp %668 : vector<2x128xf32>
    %cst_119 = arith.constant 1.000000e+00 : f32
    %670 = vector.broadcast %cst_119 : f32 to vector<2x128xf32>
    %671 = arith.addf %670, %669 : vector<2x128xf32>
    %672 = arith.divf %670, %671 : vector<2x128xf32>
    %673 = math.tanh %667 : vector<2x128xf32>
    %674 = vector.extract_strided_slice %672 {offsets = [0, 32], sizes = [2, 32], strides = [1, 1]} : vector<2x128xf32> to vector<2x32xf32>
    %675 = arith.mulf %674, %642 : vector<2x32xf32>
    %676 = vector.extract_strided_slice %672 {offsets = [0, 0], sizes = [2, 32], strides = [1, 1]} : vector<2x128xf32> to vector<2x32xf32>
    %677 = vector.extract_strided_slice %673 {offsets = [0, 64], sizes = [2, 32], strides = [1, 1]} : vector<2x128xf32> to vector<2x32xf32>
    %678 = arith.mulf %676, %677 : vector<2x32xf32>
    %679 = arith.addf %675, %678 : vector<2x32xf32>
    %680 = vector.extract_strided_slice %672 {offsets = [0, 96], sizes = [2, 32], strides = [1, 1]} : vector<2x128xf32> to vector<2x32xf32>
    %681 = math.tanh %679 : vector<2x32xf32>
    %682 = arith.mulf %680, %681 : vector<2x32xf32>
    %cst_120 = arith.constant dense<0.000000e+00> : vector<2x128xf32>
    %683 = tpu.matmul %682, %512, %cst_120 {dimension_numbers = #tpu.dot_dimension_numbers<[1], [0], [0], [1], [0, 0, 1, 1], [], []>} : vector<2x32xf32>, vector<32x128xf32>, vector<2x128xf32> -> vector<2x128xf32>
    %684 = arith.addf %683, %516 : vector<2x128xf32>
    %cst_121 = arith.constant dense<0.000000e+00> : vector<2x128xf32>
    %685 = tpu.matmul %664, %513, %cst_121 {dimension_numbers = #tpu.dot_dimension_numbers<[1], [0], [0], [1], [0, 0, 1, 1], [], []>} : vector<2x32xf32>, vector<32x128xf32>, vector<2x128xf32> -> vector<2x128xf32>
    %686 = arith.addf %684, %685 : vector<2x128xf32>
    %687 = arith.negf %686 : vector<2x128xf32>
    %688 = math.exp %687 : vector<2x128xf32>
    %cst_122 = arith.constant 1.000000e+00 : f32
    %689 = vector.broadcast %cst_122 : f32 to vector<2x128xf32>
    %690 = arith.addf %689, %688 : vector<2x128xf32>
    %691 = arith.divf %689, %690 : vector<2x128xf32>
    %692 = math.tanh %686 : vector<2x128xf32>
    %693 = vector.extract_strided_slice %691 {offsets = [0, 32], sizes = [2, 32], strides = [1, 1]} : vector<2x128xf32> to vector<2x32xf32>
    %694 = arith.mulf %693, %661 : vector<2x32xf32>
    %695 = vector.extract_strided_slice %691 {offsets = [0, 0], sizes = [2, 32], strides = [1, 1]} : vector<2x128xf32> to vector<2x32xf32>
    %696 = vector.extract_strided_slice %692 {offsets = [0, 64], sizes = [2, 32], strides = [1, 1]} : vector<2x128xf32> to vector<2x32xf32>
    %697 = arith.mulf %695, %696 : vector<2x32xf32>
    %698 = arith.addf %694, %697 : vector<2x32xf32>
    %699 = vector.extract_strided_slice %691 {offsets = [0, 96], sizes = [2, 32], strides = [1, 1]} : vector<2x128xf32> to vector<2x32xf32>
    %700 = math.tanh %698 : vector<2x32xf32>
    %701 = arith.mulf %699, %700 : vector<2x32xf32>
    %702 = vector.extract_strided_slice %510 {offsets = [10, 0], sizes = [2, 128], strides = [1, 1]} : vector<24x128xf32> to vector<2x128xf32>
    %cst_123 = arith.constant dense<0.000000e+00> : vector<2x128xf32>
    %703 = tpu.matmul %682, %511, %cst_123 {dimension_numbers = #tpu.dot_dimension_numbers<[1], [0], [0], [1], [0, 0, 1, 1], [], []>} : vector<2x32xf32>, vector<32x128xf32>, vector<2x128xf32> -> vector<2x128xf32>
    %704 = arith.addf %702, %703 : vector<2x128xf32>
    %705 = arith.negf %704 : vector<2x128xf32>
    %706 = math.exp %705 : vector<2x128xf32>
    %cst_124 = arith.constant 1.000000e+00 : f32
    %707 = vector.broadcast %cst_124 : f32 to vector<2x128xf32>
    %708 = arith.addf %707, %706 : vector<2x128xf32>
    %709 = arith.divf %707, %708 : vector<2x128xf32>
    %710 = math.tanh %704 : vector<2x128xf32>
    %711 = vector.extract_strided_slice %709 {offsets = [0, 32], sizes = [2, 32], strides = [1, 1]} : vector<2x128xf32> to vector<2x32xf32>
    %712 = arith.mulf %711, %679 : vector<2x32xf32>
    %713 = vector.extract_strided_slice %709 {offsets = [0, 0], sizes = [2, 32], strides = [1, 1]} : vector<2x128xf32> to vector<2x32xf32>
    %714 = vector.extract_strided_slice %710 {offsets = [0, 64], sizes = [2, 32], strides = [1, 1]} : vector<2x128xf32> to vector<2x32xf32>
    %715 = arith.mulf %713, %714 : vector<2x32xf32>
    %716 = arith.addf %712, %715 : vector<2x32xf32>
    %717 = vector.extract_strided_slice %709 {offsets = [0, 96], sizes = [2, 32], strides = [1, 1]} : vector<2x128xf32> to vector<2x32xf32>
    %718 = math.tanh %716 : vector<2x32xf32>
    %719 = arith.mulf %717, %718 : vector<2x32xf32>
    %cst_125 = arith.constant dense<0.000000e+00> : vector<2x128xf32>
    %720 = tpu.matmul %719, %512, %cst_125 {dimension_numbers = #tpu.dot_dimension_numbers<[1], [0], [0], [1], [0, 0, 1, 1], [], []>} : vector<2x32xf32>, vector<32x128xf32>, vector<2x128xf32> -> vector<2x128xf32>
    %721 = arith.addf %720, %516 : vector<2x128xf32>
    %cst_126 = arith.constant dense<0.000000e+00> : vector<2x128xf32>
    %722 = tpu.matmul %701, %513, %cst_126 {dimension_numbers = #tpu.dot_dimension_numbers<[1], [0], [0], [1], [0, 0, 1, 1], [], []>} : vector<2x32xf32>, vector<32x128xf32>, vector<2x128xf32> -> vector<2x128xf32>
    %723 = arith.addf %721, %722 : vector<2x128xf32>
    %724 = arith.negf %723 : vector<2x128xf32>
    %725 = math.exp %724 : vector<2x128xf32>
    %cst_127 = arith.constant 1.000000e+00 : f32
    %726 = vector.broadcast %cst_127 : f32 to vector<2x128xf32>
    %727 = arith.addf %726, %725 : vector<2x128xf32>
    %728 = arith.divf %726, %727 : vector<2x128xf32>
    %729 = math.tanh %723 : vector<2x128xf32>
    %730 = vector.extract_strided_slice %728 {offsets = [0, 32], sizes = [2, 32], strides = [1, 1]} : vector<2x128xf32> to vector<2x32xf32>
    %731 = arith.mulf %730, %698 : vector<2x32xf32>
    %732 = vector.extract_strided_slice %728 {offsets = [0, 0], sizes = [2, 32], strides = [1, 1]} : vector<2x128xf32> to vector<2x32xf32>
    %733 = vector.extract_strided_slice %729 {offsets = [0, 64], sizes = [2, 32], strides = [1, 1]} : vector<2x128xf32> to vector<2x32xf32>
    %734 = arith.mulf %732, %733 : vector<2x32xf32>
    %735 = arith.addf %731, %734 : vector<2x32xf32>
    %736 = vector.extract_strided_slice %728 {offsets = [0, 96], sizes = [2, 32], strides = [1, 1]} : vector<2x128xf32> to vector<2x32xf32>
    %737 = math.tanh %735 : vector<2x32xf32>
    %738 = arith.mulf %736, %737 : vector<2x32xf32>
    %739 = vector.extract_strided_slice %510 {offsets = [12, 0], sizes = [2, 128], strides = [1, 1]} : vector<24x128xf32> to vector<2x128xf32>
    %cst_128 = arith.constant dense<0.000000e+00> : vector<2x128xf32>
    %740 = tpu.matmul %719, %511, %cst_128 {dimension_numbers = #tpu.dot_dimension_numbers<[1], [0], [0], [1], [0, 0, 1, 1], [], []>} : vector<2x32xf32>, vector<32x128xf32>, vector<2x128xf32> -> vector<2x128xf32>
    %741 = arith.addf %739, %740 : vector<2x128xf32>
    %742 = arith.negf %741 : vector<2x128xf32>
    %743 = math.exp %742 : vector<2x128xf32>
    %cst_129 = arith.constant 1.000000e+00 : f32
    %744 = vector.broadcast %cst_129 : f32 to vector<2x128xf32>
    %745 = arith.addf %744, %743 : vector<2x128xf32>
    %746 = arith.divf %744, %745 : vector<2x128xf32>
    %747 = math.tanh %741 : vector<2x128xf32>
    %748 = vector.extract_strided_slice %746 {offsets = [0, 32], sizes = [2, 32], strides = [1, 1]} : vector<2x128xf32> to vector<2x32xf32>
    %749 = arith.mulf %748, %716 : vector<2x32xf32>
    %750 = vector.extract_strided_slice %746 {offsets = [0, 0], sizes = [2, 32], strides = [1, 1]} : vector<2x128xf32> to vector<2x32xf32>
    %751 = vector.extract_strided_slice %747 {offsets = [0, 64], sizes = [2, 32], strides = [1, 1]} : vector<2x128xf32> to vector<2x32xf32>
    %752 = arith.mulf %750, %751 : vector<2x32xf32>
    %753 = arith.addf %749, %752 : vector<2x32xf32>
    %754 = vector.extract_strided_slice %746 {offsets = [0, 96], sizes = [2, 32], strides = [1, 1]} : vector<2x128xf32> to vector<2x32xf32>
    %755 = math.tanh %753 : vector<2x32xf32>
    %756 = arith.mulf %754, %755 : vector<2x32xf32>
    %cst_130 = arith.constant dense<0.000000e+00> : vector<2x128xf32>
    %757 = tpu.matmul %756, %512, %cst_130 {dimension_numbers = #tpu.dot_dimension_numbers<[1], [0], [0], [1], [0, 0, 1, 1], [], []>} : vector<2x32xf32>, vector<32x128xf32>, vector<2x128xf32> -> vector<2x128xf32>
    %758 = arith.addf %757, %516 : vector<2x128xf32>
    %cst_131 = arith.constant dense<0.000000e+00> : vector<2x128xf32>
    %759 = tpu.matmul %738, %513, %cst_131 {dimension_numbers = #tpu.dot_dimension_numbers<[1], [0], [0], [1], [0, 0, 1, 1], [], []>} : vector<2x32xf32>, vector<32x128xf32>, vector<2x128xf32> -> vector<2x128xf32>
    %760 = arith.addf %758, %759 : vector<2x128xf32>
    %761 = arith.negf %760 : vector<2x128xf32>
    %762 = math.exp %761 : vector<2x128xf32>
    %cst_132 = arith.constant 1.000000e+00 : f32
    %763 = vector.broadcast %cst_132 : f32 to vector<2x128xf32>
    %764 = arith.addf %763, %762 : vector<2x128xf32>
    %765 = arith.divf %763, %764 : vector<2x128xf32>
    %766 = math.tanh %760 : vector<2x128xf32>
    %767 = vector.extract_strided_slice %765 {offsets = [0, 32], sizes = [2, 32], strides = [1, 1]} : vector<2x128xf32> to vector<2x32xf32>
    %768 = arith.mulf %767, %735 : vector<2x32xf32>
    %769 = vector.extract_strided_slice %765 {offsets = [0, 0], sizes = [2, 32], strides = [1, 1]} : vector<2x128xf32> to vector<2x32xf32>
    %770 = vector.extract_strided_slice %766 {offsets = [0, 64], sizes = [2, 32], strides = [1, 1]} : vector<2x128xf32> to vector<2x32xf32>
    %771 = arith.mulf %769, %770 : vector<2x32xf32>
    %772 = arith.addf %768, %771 : vector<2x32xf32>
    %773 = vector.extract_strided_slice %765 {offsets = [0, 96], sizes = [2, 32], strides = [1, 1]} : vector<2x128xf32> to vector<2x32xf32>
    %774 = math.tanh %772 : vector<2x32xf32>
    %775 = arith.mulf %773, %774 : vector<2x32xf32>
    %776 = vector.extract_strided_slice %510 {offsets = [14, 0], sizes = [2, 128], strides = [1, 1]} : vector<24x128xf32> to vector<2x128xf32>
    %cst_133 = arith.constant dense<0.000000e+00> : vector<2x128xf32>
    %777 = tpu.matmul %756, %511, %cst_133 {dimension_numbers = #tpu.dot_dimension_numbers<[1], [0], [0], [1], [0, 0, 1, 1], [], []>} : vector<2x32xf32>, vector<32x128xf32>, vector<2x128xf32> -> vector<2x128xf32>
    %778 = arith.addf %776, %777 : vector<2x128xf32>
    %779 = arith.negf %778 : vector<2x128xf32>
    %780 = math.exp %779 : vector<2x128xf32>
    %cst_134 = arith.constant 1.000000e+00 : f32
    %781 = vector.broadcast %cst_134 : f32 to vector<2x128xf32>
    %782 = arith.addf %781, %780 : vector<2x128xf32>
    %783 = arith.divf %781, %782 : vector<2x128xf32>
    %784 = math.tanh %778 : vector<2x128xf32>
    %785 = vector.extract_strided_slice %783 {offsets = [0, 32], sizes = [2, 32], strides = [1, 1]} : vector<2x128xf32> to vector<2x32xf32>
    %786 = arith.mulf %785, %753 : vector<2x32xf32>
    %787 = vector.extract_strided_slice %783 {offsets = [0, 0], sizes = [2, 32], strides = [1, 1]} : vector<2x128xf32> to vector<2x32xf32>
    %788 = vector.extract_strided_slice %784 {offsets = [0, 64], sizes = [2, 32], strides = [1, 1]} : vector<2x128xf32> to vector<2x32xf32>
    %789 = arith.mulf %787, %788 : vector<2x32xf32>
    %790 = arith.addf %786, %789 : vector<2x32xf32>
    %791 = vector.extract_strided_slice %783 {offsets = [0, 96], sizes = [2, 32], strides = [1, 1]} : vector<2x128xf32> to vector<2x32xf32>
    %792 = math.tanh %790 : vector<2x32xf32>
    %793 = arith.mulf %791, %792 : vector<2x32xf32>
    %cst_135 = arith.constant dense<0.000000e+00> : vector<2x128xf32>
    %794 = tpu.matmul %793, %512, %cst_135 {dimension_numbers = #tpu.dot_dimension_numbers<[1], [0], [0], [1], [0, 0, 1, 1], [], []>} : vector<2x32xf32>, vector<32x128xf32>, vector<2x128xf32> -> vector<2x128xf32>
    %795 = arith.addf %794, %516 : vector<2x128xf32>
    %cst_136 = arith.constant dense<0.000000e+00> : vector<2x128xf32>
    %796 = tpu.matmul %775, %513, %cst_136 {dimension_numbers = #tpu.dot_dimension_numbers<[1], [0], [0], [1], [0, 0, 1, 1], [], []>} : vector<2x32xf32>, vector<32x128xf32>, vector<2x128xf32> -> vector<2x128xf32>
    %797 = arith.addf %795, %796 : vector<2x128xf32>
    %798 = arith.negf %797 : vector<2x128xf32>
    %799 = math.exp %798 : vector<2x128xf32>
    %cst_137 = arith.constant 1.000000e+00 : f32
    %800 = vector.broadcast %cst_137 : f32 to vector<2x128xf32>
    %801 = arith.addf %800, %799 : vector<2x128xf32>
    %802 = arith.divf %800, %801 : vector<2x128xf32>
    %803 = math.tanh %797 : vector<2x128xf32>
    %804 = vector.extract_strided_slice %802 {offsets = [0, 32], sizes = [2, 32], strides = [1, 1]} : vector<2x128xf32> to vector<2x32xf32>
    %805 = arith.mulf %804, %772 : vector<2x32xf32>
    %806 = vector.extract_strided_slice %802 {offsets = [0, 0], sizes = [2, 32], strides = [1, 1]} : vector<2x128xf32> to vector<2x32xf32>
    %807 = vector.extract_strided_slice %803 {offsets = [0, 64], sizes = [2, 32], strides = [1, 1]} : vector<2x128xf32> to vector<2x32xf32>
    %808 = arith.mulf %806, %807 : vector<2x32xf32>
    %809 = arith.addf %805, %808 : vector<2x32xf32>
    %810 = vector.extract_strided_slice %802 {offsets = [0, 96], sizes = [2, 32], strides = [1, 1]} : vector<2x128xf32> to vector<2x32xf32>
    %811 = math.tanh %809 : vector<2x32xf32>
    %812 = arith.mulf %810, %811 : vector<2x32xf32>
    %813 = vector.extract_strided_slice %510 {offsets = [16, 0], sizes = [2, 128], strides = [1, 1]} : vector<24x128xf32> to vector<2x128xf32>
    %cst_138 = arith.constant dense<0.000000e+00> : vector<2x128xf32>
    %814 = tpu.matmul %793, %511, %cst_138 {dimension_numbers = #tpu.dot_dimension_numbers<[1], [0], [0], [1], [0, 0, 1, 1], [], []>} : vector<2x32xf32>, vector<32x128xf32>, vector<2x128xf32> -> vector<2x128xf32>
    %815 = arith.addf %813, %814 : vector<2x128xf32>
    %816 = arith.negf %815 : vector<2x128xf32>
    %817 = math.exp %816 : vector<2x128xf32>
    %cst_139 = arith.constant 1.000000e+00 : f32
    %818 = vector.broadcast %cst_139 : f32 to vector<2x128xf32>
    %819 = arith.addf %818, %817 : vector<2x128xf32>
    %820 = arith.divf %818, %819 : vector<2x128xf32>
    %821 = math.tanh %815 : vector<2x128xf32>
    %822 = vector.extract_strided_slice %820 {offsets = [0, 32], sizes = [2, 32], strides = [1, 1]} : vector<2x128xf32> to vector<2x32xf32>
    %823 = arith.mulf %822, %790 : vector<2x32xf32>
    %824 = vector.extract_strided_slice %820 {offsets = [0, 0], sizes = [2, 32], strides = [1, 1]} : vector<2x128xf32> to vector<2x32xf32>
    %825 = vector.extract_strided_slice %821 {offsets = [0, 64], sizes = [2, 32], strides = [1, 1]} : vector<2x128xf32> to vector<2x32xf32>
    %826 = arith.mulf %824, %825 : vector<2x32xf32>
    %827 = arith.addf %823, %826 : vector<2x32xf32>
    %828 = vector.extract_strided_slice %820 {offsets = [0, 96], sizes = [2, 32], strides = [1, 1]} : vector<2x128xf32> to vector<2x32xf32>
    %829 = math.tanh %827 : vector<2x32xf32>
    %830 = arith.mulf %828, %829 : vector<2x32xf32>
    %cst_140 = arith.constant dense<0.000000e+00> : vector<2x128xf32>
    %831 = tpu.matmul %830, %512, %cst_140 {dimension_numbers = #tpu.dot_dimension_numbers<[1], [0], [0], [1], [0, 0, 1, 1], [], []>} : vector<2x32xf32>, vector<32x128xf32>, vector<2x128xf32> -> vector<2x128xf32>
    %832 = arith.addf %831, %516 : vector<2x128xf32>
    %cst_141 = arith.constant dense<0.000000e+00> : vector<2x128xf32>
    %833 = tpu.matmul %812, %513, %cst_141 {dimension_numbers = #tpu.dot_dimension_numbers<[1], [0], [0], [1], [0, 0, 1, 1], [], []>} : vector<2x32xf32>, vector<32x128xf32>, vector<2x128xf32> -> vector<2x128xf32>
    %834 = arith.addf %832, %833 : vector<2x128xf32>
    %835 = arith.negf %834 : vector<2x128xf32>
    %836 = math.exp %835 : vector<2x128xf32>
    %cst_142 = arith.constant 1.000000e+00 : f32
    %837 = vector.broadcast %cst_142 : f32 to vector<2x128xf32>
    %838 = arith.addf %837, %836 : vector<2x128xf32>
    %839 = arith.divf %837, %838 : vector<2x128xf32>
    %840 = math.tanh %834 : vector<2x128xf32>
    %841 = vector.extract_strided_slice %839 {offsets = [0, 32], sizes = [2, 32], strides = [1, 1]} : vector<2x128xf32> to vector<2x32xf32>
    %842 = arith.mulf %841, %809 : vector<2x32xf32>
    %843 = vector.extract_strided_slice %839 {offsets = [0, 0], sizes = [2, 32], strides = [1, 1]} : vector<2x128xf32> to vector<2x32xf32>
    %844 = vector.extract_strided_slice %840 {offsets = [0, 64], sizes = [2, 32], strides = [1, 1]} : vector<2x128xf32> to vector<2x32xf32>
    %845 = arith.mulf %843, %844 : vector<2x32xf32>
    %846 = arith.addf %842, %845 : vector<2x32xf32>
    %847 = vector.extract_strided_slice %839 {offsets = [0, 96], sizes = [2, 32], strides = [1, 1]} : vector<2x128xf32> to vector<2x32xf32>
    %848 = math.tanh %846 : vector<2x32xf32>
    %849 = arith.mulf %847, %848 : vector<2x32xf32>
    %850 = vector.extract_strided_slice %510 {offsets = [18, 0], sizes = [2, 128], strides = [1, 1]} : vector<24x128xf32> to vector<2x128xf32>
    %cst_143 = arith.constant dense<0.000000e+00> : vector<2x128xf32>
    %851 = tpu.matmul %830, %511, %cst_143 {dimension_numbers = #tpu.dot_dimension_numbers<[1], [0], [0], [1], [0, 0, 1, 1], [], []>} : vector<2x32xf32>, vector<32x128xf32>, vector<2x128xf32> -> vector<2x128xf32>
    %852 = arith.addf %850, %851 : vector<2x128xf32>
    %853 = arith.negf %852 : vector<2x128xf32>
    %854 = math.exp %853 : vector<2x128xf32>
    %cst_144 = arith.constant 1.000000e+00 : f32
    %855 = vector.broadcast %cst_144 : f32 to vector<2x128xf32>
    %856 = arith.addf %855, %854 : vector<2x128xf32>
    %857 = arith.divf %855, %856 : vector<2x128xf32>
    %858 = math.tanh %852 : vector<2x128xf32>
    %859 = vector.extract_strided_slice %857 {offsets = [0, 32], sizes = [2, 32], strides = [1, 1]} : vector<2x128xf32> to vector<2x32xf32>
    %860 = arith.mulf %859, %827 : vector<2x32xf32>
    %861 = vector.extract_strided_slice %857 {offsets = [0, 0], sizes = [2, 32], strides = [1, 1]} : vector<2x128xf32> to vector<2x32xf32>
    %862 = vector.extract_strided_slice %858 {offsets = [0, 64], sizes = [2, 32], strides = [1, 1]} : vector<2x128xf32> to vector<2x32xf32>
    %863 = arith.mulf %861, %862 : vector<2x32xf32>
    %864 = arith.addf %860, %863 : vector<2x32xf32>
    %865 = vector.extract_strided_slice %857 {offsets = [0, 96], sizes = [2, 32], strides = [1, 1]} : vector<2x128xf32> to vector<2x32xf32>
    %866 = math.tanh %864 : vector<2x32xf32>
    %867 = arith.mulf %865, %866 : vector<2x32xf32>
    %cst_145 = arith.constant dense<0.000000e+00> : vector<2x128xf32>
    %868 = tpu.matmul %867, %512, %cst_145 {dimension_numbers = #tpu.dot_dimension_numbers<[1], [0], [0], [1], [0, 0, 1, 1], [], []>} : vector<2x32xf32>, vector<32x128xf32>, vector<2x128xf32> -> vector<2x128xf32>
    %869 = arith.addf %868, %516 : vector<2x128xf32>
    %cst_146 = arith.constant dense<0.000000e+00> : vector<2x128xf32>
    %870 = tpu.matmul %849, %513, %cst_146 {dimension_numbers = #tpu.dot_dimension_numbers<[1], [0], [0], [1], [0, 0, 1, 1], [], []>} : vector<2x32xf32>, vector<32x128xf32>, vector<2x128xf32> -> vector<2x128xf32>
    %871 = arith.addf %869, %870 : vector<2x128xf32>
    %872 = arith.negf %871 : vector<2x128xf32>
    %873 = math.exp %872 : vector<2x128xf32>
    %cst_147 = arith.constant 1.000000e+00 : f32
    %874 = vector.broadcast %cst_147 : f32 to vector<2x128xf32>
    %875 = arith.addf %874, %873 : vector<2x128xf32>
    %876 = arith.divf %874, %875 : vector<2x128xf32>
    %877 = math.tanh %871 : vector<2x128xf32>
    %878 = vector.extract_strided_slice %876 {offsets = [0, 32], sizes = [2, 32], strides = [1, 1]} : vector<2x128xf32> to vector<2x32xf32>
    %879 = arith.mulf %878, %846 : vector<2x32xf32>
    %880 = vector.extract_strided_slice %876 {offsets = [0, 0], sizes = [2, 32], strides = [1, 1]} : vector<2x128xf32> to vector<2x32xf32>
    %881 = vector.extract_strided_slice %877 {offsets = [0, 64], sizes = [2, 32], strides = [1, 1]} : vector<2x128xf32> to vector<2x32xf32>
    %882 = arith.mulf %880, %881 : vector<2x32xf32>
    %883 = arith.addf %879, %882 : vector<2x32xf32>
    %884 = vector.extract_strided_slice %876 {offsets = [0, 96], sizes = [2, 32], strides = [1, 1]} : vector<2x128xf32> to vector<2x32xf32>
    %885 = math.tanh %883 : vector<2x32xf32>
    %886 = arith.mulf %884, %885 : vector<2x32xf32>
    %887 = vector.extract_strided_slice %510 {offsets = [20, 0], sizes = [2, 128], strides = [1, 1]} : vector<24x128xf32> to vector<2x128xf32>
    %cst_148 = arith.constant dense<0.000000e+00> : vector<2x128xf32>
    %888 = tpu.matmul %867, %511, %cst_148 {dimension_numbers = #tpu.dot_dimension_numbers<[1], [0], [0], [1], [0, 0, 1, 1], [], []>} : vector<2x32xf32>, vector<32x128xf32>, vector<2x128xf32> -> vector<2x128xf32>
    %889 = arith.addf %887, %888 : vector<2x128xf32>
    %890 = arith.negf %889 : vector<2x128xf32>
    %891 = math.exp %890 : vector<2x128xf32>
    %cst_149 = arith.constant 1.000000e+00 : f32
    %892 = vector.broadcast %cst_149 : f32 to vector<2x128xf32>
    %893 = arith.addf %892, %891 : vector<2x128xf32>
    %894 = arith.divf %892, %893 : vector<2x128xf32>
    %895 = math.tanh %889 : vector<2x128xf32>
    %896 = vector.extract_strided_slice %894 {offsets = [0, 32], sizes = [2, 32], strides = [1, 1]} : vector<2x128xf32> to vector<2x32xf32>
    %897 = arith.mulf %896, %864 : vector<2x32xf32>
    %898 = vector.extract_strided_slice %894 {offsets = [0, 0], sizes = [2, 32], strides = [1, 1]} : vector<2x128xf32> to vector<2x32xf32>
    %899 = vector.extract_strided_slice %895 {offsets = [0, 64], sizes = [2, 32], strides = [1, 1]} : vector<2x128xf32> to vector<2x32xf32>
    %900 = arith.mulf %898, %899 : vector<2x32xf32>
    %901 = arith.addf %897, %900 : vector<2x32xf32>
    %902 = vector.extract_strided_slice %894 {offsets = [0, 96], sizes = [2, 32], strides = [1, 1]} : vector<2x128xf32> to vector<2x32xf32>
    %903 = math.tanh %901 : vector<2x32xf32>
    %904 = arith.mulf %902, %903 : vector<2x32xf32>
    %cst_150 = arith.constant dense<0.000000e+00> : vector<2x128xf32>
    %905 = tpu.matmul %904, %512, %cst_150 {dimension_numbers = #tpu.dot_dimension_numbers<[1], [0], [0], [1], [0, 0, 1, 1], [], []>} : vector<2x32xf32>, vector<32x128xf32>, vector<2x128xf32> -> vector<2x128xf32>
    %906 = arith.addf %905, %516 : vector<2x128xf32>
    %cst_151 = arith.constant dense<0.000000e+00> : vector<2x128xf32>
    %907 = tpu.matmul %886, %513, %cst_151 {dimension_numbers = #tpu.dot_dimension_numbers<[1], [0], [0], [1], [0, 0, 1, 1], [], []>} : vector<2x32xf32>, vector<32x128xf32>, vector<2x128xf32> -> vector<2x128xf32>
    %908 = arith.addf %906, %907 : vector<2x128xf32>
    %909 = arith.negf %908 : vector<2x128xf32>
    %910 = math.exp %909 : vector<2x128xf32>
    %cst_152 = arith.constant 1.000000e+00 : f32
    %911 = vector.broadcast %cst_152 : f32 to vector<2x128xf32>
    %912 = arith.addf %911, %910 : vector<2x128xf32>
    %913 = arith.divf %911, %912 : vector<2x128xf32>
    %914 = math.tanh %908 : vector<2x128xf32>
    %915 = vector.extract_strided_slice %913 {offsets = [0, 32], sizes = [2, 32], strides = [1, 1]} : vector<2x128xf32> to vector<2x32xf32>
    %916 = arith.mulf %915, %883 : vector<2x32xf32>
    %917 = vector.extract_strided_slice %913 {offsets = [0, 0], sizes = [2, 32], strides = [1, 1]} : vector<2x128xf32> to vector<2x32xf32>
    %918 = vector.extract_strided_slice %914 {offsets = [0, 64], sizes = [2, 32], strides = [1, 1]} : vector<2x128xf32> to vector<2x32xf32>
    %919 = arith.mulf %917, %918 : vector<2x32xf32>
    %920 = arith.addf %916, %919 : vector<2x32xf32>
    %921 = vector.extract_strided_slice %913 {offsets = [0, 96], sizes = [2, 32], strides = [1, 1]} : vector<2x128xf32> to vector<2x32xf32>
    %922 = math.tanh %920 : vector<2x32xf32>
    %923 = arith.mulf %921, %922 : vector<2x32xf32>
    %924 = vector.extract_strided_slice %510 {offsets = [22, 0], sizes = [2, 128], strides = [1, 1]} : vector<24x128xf32> to vector<2x128xf32>
    %cst_153 = arith.constant dense<0.000000e+00> : vector<2x128xf32>
    %925 = tpu.matmul %904, %511, %cst_153 {dimension_numbers = #tpu.dot_dimension_numbers<[1], [0], [0], [1], [0, 0, 1, 1], [], []>} : vector<2x32xf32>, vector<32x128xf32>, vector<2x128xf32> -> vector<2x128xf32>
    %926 = arith.addf %924, %925 : vector<2x128xf32>
    %927 = arith.negf %926 : vector<2x128xf32>
    %928 = math.exp %927 : vector<2x128xf32>
    %cst_154 = arith.constant 1.000000e+00 : f32
    %929 = vector.broadcast %cst_154 : f32 to vector<2x128xf32>
    %930 = arith.addf %929, %928 : vector<2x128xf32>
    %931 = arith.divf %929, %930 : vector<2x128xf32>
    %932 = math.tanh %926 : vector<2x128xf32>
    %933 = vector.extract_strided_slice %931 {offsets = [0, 32], sizes = [2, 32], strides = [1, 1]} : vector<2x128xf32> to vector<2x32xf32>
    %934 = arith.mulf %933, %901 : vector<2x32xf32>
    %935 = vector.extract_strided_slice %931 {offsets = [0, 0], sizes = [2, 32], strides = [1, 1]} : vector<2x128xf32> to vector<2x32xf32>
    %936 = vector.extract_strided_slice %932 {offsets = [0, 64], sizes = [2, 32], strides = [1, 1]} : vector<2x128xf32> to vector<2x32xf32>
    %937 = arith.mulf %935, %936 : vector<2x32xf32>
    %938 = arith.addf %934, %937 : vector<2x32xf32>
    %939 = vector.extract_strided_slice %931 {offsets = [0, 96], sizes = [2, 32], strides = [1, 1]} : vector<2x128xf32> to vector<2x32xf32>
    %940 = math.tanh %938 : vector<2x32xf32>
    %941 = arith.mulf %939, %940 : vector<2x32xf32>
    %cst_155 = arith.constant dense<0.000000e+00> : vector<2x128xf32>
    %942 = tpu.matmul %941, %512, %cst_155 {dimension_numbers = #tpu.dot_dimension_numbers<[1], [0], [0], [1], [0, 0, 1, 1], [], []>} : vector<2x32xf32>, vector<32x128xf32>, vector<2x128xf32> -> vector<2x128xf32>
    %943 = arith.addf %942, %516 : vector<2x128xf32>
    %cst_156 = arith.constant dense<0.000000e+00> : vector<2x128xf32>
    %944 = tpu.matmul %923, %513, %cst_156 {dimension_numbers = #tpu.dot_dimension_numbers<[1], [0], [0], [1], [0, 0, 1, 1], [], []>} : vector<2x32xf32>, vector<32x128xf32>, vector<2x128xf32> -> vector<2x128xf32>
    %945 = arith.addf %943, %944 : vector<2x128xf32>
    %946 = arith.negf %945 : vector<2x128xf32>
    %947 = math.exp %946 : vector<2x128xf32>
    %cst_157 = arith.constant 1.000000e+00 : f32
    %948 = vector.broadcast %cst_157 : f32 to vector<2x128xf32>
    %949 = arith.addf %948, %947 : vector<2x128xf32>
    %950 = arith.divf %948, %949 : vector<2x128xf32>
    %951 = math.tanh %945 : vector<2x128xf32>
    %952 = vector.extract_strided_slice %950 {offsets = [0, 32], sizes = [2, 32], strides = [1, 1]} : vector<2x128xf32> to vector<2x32xf32>
    %953 = arith.mulf %952, %920 : vector<2x32xf32>
    %954 = vector.extract_strided_slice %950 {offsets = [0, 0], sizes = [2, 32], strides = [1, 1]} : vector<2x128xf32> to vector<2x32xf32>
    %955 = vector.extract_strided_slice %951 {offsets = [0, 64], sizes = [2, 32], strides = [1, 1]} : vector<2x128xf32> to vector<2x32xf32>
    %956 = arith.mulf %954, %955 : vector<2x32xf32>
    %957 = arith.addf %953, %956 : vector<2x32xf32>
    %958 = vector.extract_strided_slice %950 {offsets = [0, 96], sizes = [2, 32], strides = [1, 1]} : vector<2x128xf32> to vector<2x32xf32>
    %959 = math.tanh %957 : vector<2x32xf32>
    %960 = arith.mulf %958, %959 : vector<2x32xf32>
    %961 = tpu.concatenate %553, %590, %627, %664, %701, %738, %775, %812, %849, %886, %923, %960 in 0 : vector<2x32xf32>, vector<2x32xf32>, vector<2x32xf32>, vector<2x32xf32>, vector<2x32xf32>, vector<2x32xf32>, vector<2x32xf32>, vector<2x32xf32>, vector<2x32xf32>, vector<2x32xf32>, vector<2x32xf32>, vector<2x32xf32> -> vector<24x32xf32>
    %c0_158 = arith.constant 0 : index
    %c0_159 = arith.constant 0 : index
    %962 = vector.load %arg17[%c0_158, %c0_159] : memref<32x32xf32, #tpu.memory_space<vmem>>, vector<32x32xf32>
    %cst_160 = arith.constant dense<0.000000e+00> : vector<24x32xf32>
    %963 = tpu.matmul %961, %962, %cst_160 {dimension_numbers = #tpu.dot_dimension_numbers<[1], [0], [0], [1], [0, 0, 1, 1], [], []>} : vector<24x32xf32>, vector<32x32xf32>, vector<24x32xf32> -> vector<24x32xf32>
    %c0_161 = arith.constant 0 : index
    %c0_162 = arith.constant 0 : index
    %964 = vector.load %arg18[%c0_161, %c0_162] : memref<1x32xf32, #tpu.memory_space<vmem>>, vector<1x32xf32>
    %965 = vector.broadcast %964 : vector<1x32xf32> to vector<24x32xf32>
    %966 = arith.addf %963, %965 : vector<24x32xf32>
    %cst_163 = arith.constant 0.000000e+00 : f32
    %967 = vector.broadcast %cst_163 : f32 to vector<24x32xf32>
    %968 = arith.maximumf %966, %967 : vector<24x32xf32>
    %c0_164 = arith.constant 0 : index
    %c0_165 = arith.constant 0 : index
    %969 = vector.load %arg19[%c0_164, %c0_165] : memref<32x8xf32, #tpu.memory_space<vmem>>, vector<32x8xf32>
    %cst_166 = arith.constant dense<0.000000e+00> : vector<24x8xf32>
    %970 = tpu.matmul %968, %969, %cst_166 {dimension_numbers = #tpu.dot_dimension_numbers<[1], [0], [0], [1], [0, 0, 1, 1], [], []>} : vector<24x32xf32>, vector<32x8xf32>, vector<24x8xf32> -> vector<24x8xf32>
    %c0_167 = arith.constant 0 : index
    %c0_168 = arith.constant 0 : index
    %971 = vector.load %arg20[%c0_167, %c0_168] : memref<1x8xf32, #tpu.memory_space<vmem>>, vector<1x8xf32>
    %972 = vector.broadcast %971 : vector<1x8xf32> to vector<24x8xf32>
    %973 = arith.addf %970, %972 : vector<24x8xf32>
    %974 = vector.extract_strided_slice %973 {offsets = [0, 0], sizes = [1, 8], strides = [1, 1]} : vector<24x8xf32> to vector<1x8xf32>
    %975 = vector.extract_strided_slice %973 {offsets = [2, 0], sizes = [1, 8], strides = [1, 1]} : vector<24x8xf32> to vector<1x8xf32>
    %976 = vector.extract_strided_slice %973 {offsets = [4, 0], sizes = [1, 8], strides = [1, 1]} : vector<24x8xf32> to vector<1x8xf32>
    %977 = vector.extract_strided_slice %973 {offsets = [6, 0], sizes = [1, 8], strides = [1, 1]} : vector<24x8xf32> to vector<1x8xf32>
    %978 = vector.extract_strided_slice %973 {offsets = [8, 0], sizes = [1, 8], strides = [1, 1]} : vector<24x8xf32> to vector<1x8xf32>
    %979 = vector.extract_strided_slice %973 {offsets = [10, 0], sizes = [1, 8], strides = [1, 1]} : vector<24x8xf32> to vector<1x8xf32>
    %980 = vector.extract_strided_slice %973 {offsets = [12, 0], sizes = [1, 8], strides = [1, 1]} : vector<24x8xf32> to vector<1x8xf32>
    %981 = vector.extract_strided_slice %973 {offsets = [14, 0], sizes = [1, 8], strides = [1, 1]} : vector<24x8xf32> to vector<1x8xf32>
    %982 = vector.extract_strided_slice %973 {offsets = [16, 0], sizes = [1, 8], strides = [1, 1]} : vector<24x8xf32> to vector<1x8xf32>
    %983 = vector.extract_strided_slice %973 {offsets = [18, 0], sizes = [1, 8], strides = [1, 1]} : vector<24x8xf32> to vector<1x8xf32>
    %984 = vector.extract_strided_slice %973 {offsets = [20, 0], sizes = [1, 8], strides = [1, 1]} : vector<24x8xf32> to vector<1x8xf32>
    %985 = vector.extract_strided_slice %973 {offsets = [22, 0], sizes = [1, 8], strides = [1, 1]} : vector<24x8xf32> to vector<1x8xf32>
    %986 = vector.extract_strided_slice %973 {offsets = [1, 0], sizes = [1, 8], strides = [1, 1]} : vector<24x8xf32> to vector<1x8xf32>
    %987 = vector.extract_strided_slice %973 {offsets = [3, 0], sizes = [1, 8], strides = [1, 1]} : vector<24x8xf32> to vector<1x8xf32>
    %988 = vector.extract_strided_slice %973 {offsets = [5, 0], sizes = [1, 8], strides = [1, 1]} : vector<24x8xf32> to vector<1x8xf32>
    %989 = vector.extract_strided_slice %973 {offsets = [7, 0], sizes = [1, 8], strides = [1, 1]} : vector<24x8xf32> to vector<1x8xf32>
    %990 = vector.extract_strided_slice %973 {offsets = [9, 0], sizes = [1, 8], strides = [1, 1]} : vector<24x8xf32> to vector<1x8xf32>
    %991 = vector.extract_strided_slice %973 {offsets = [11, 0], sizes = [1, 8], strides = [1, 1]} : vector<24x8xf32> to vector<1x8xf32>
    %992 = vector.extract_strided_slice %973 {offsets = [13, 0], sizes = [1, 8], strides = [1, 1]} : vector<24x8xf32> to vector<1x8xf32>
    %993 = vector.extract_strided_slice %973 {offsets = [15, 0], sizes = [1, 8], strides = [1, 1]} : vector<24x8xf32> to vector<1x8xf32>
    %994 = vector.extract_strided_slice %973 {offsets = [17, 0], sizes = [1, 8], strides = [1, 1]} : vector<24x8xf32> to vector<1x8xf32>
    %995 = vector.extract_strided_slice %973 {offsets = [19, 0], sizes = [1, 8], strides = [1, 1]} : vector<24x8xf32> to vector<1x8xf32>
    %996 = vector.extract_strided_slice %973 {offsets = [21, 0], sizes = [1, 8], strides = [1, 1]} : vector<24x8xf32> to vector<1x8xf32>
    %997 = vector.extract_strided_slice %973 {offsets = [23, 0], sizes = [1, 8], strides = [1, 1]} : vector<24x8xf32> to vector<1x8xf32>
    %998 = tpu.concatenate %974, %975, %976, %977, %978, %979, %980, %981, %982, %983, %984, %985, %986, %987, %988, %989 in 0 : vector<1x8xf32>, vector<1x8xf32>, vector<1x8xf32>, vector<1x8xf32>, vector<1x8xf32>, vector<1x8xf32>, vector<1x8xf32>, vector<1x8xf32>, vector<1x8xf32>, vector<1x8xf32>, vector<1x8xf32>, vector<1x8xf32>, vector<1x8xf32>, vector<1x8xf32>, vector<1x8xf32>, vector<1x8xf32> -> vector<16x8xf32>
    %999 = tpu.concatenate %990, %991, %992, %993, %994, %995, %996, %997 in 0 : vector<1x8xf32>, vector<1x8xf32>, vector<1x8xf32>, vector<1x8xf32>, vector<1x8xf32>, vector<1x8xf32>, vector<1x8xf32>, vector<1x8xf32> -> vector<8x8xf32>
    %1000 = tpu.concatenate %998, %999 in 0 : vector<16x8xf32>, vector<8x8xf32> -> vector<24x8xf32>
    %c0_169 = arith.constant 0 : index
    %c0_170 = arith.constant 0 : index
    %1001 = vector.load %arg21[%c0_169, %c0_170] : memref<24x8xf32, #tpu.memory_space<vmem>>, vector<24x8xf32>
    tpu.vector_store %arg21[%c0_169, %c0_170], %1000 {strides = array<i32>} : memref<24x8xf32, #tpu.memory_space<vmem>>, vector<24x8xf32>,
    return
  }
}

</mosaic_0001>

<llo_original>
// kernel: lstm_model_forward.1
$region0: #{lstm_model_forward.1}
  #allocation0 [shape = 'u32[]', space=smem, size = 0x4, offset = 0x4, fixed_abs, tag = 'smem constant byte address 0x4 - core index']
  #allocation1 [shape = 'u32[144,128]{1,0:T(1,128)}', space=vmem, size = 0x12000, scoped, tag = 'internal scratch']
  %s0 = inlined_call_operand.hbm [shape: f32[24,128], index: 0, kind: input, shape index: {}]
  %s1 = inlined_call_operand.hbm [shape: f32[128,128], index: 1, kind: input, shape index: {}]
  %s2 = inlined_call_operand.hbm [shape: f32[32,128], index: 2, kind: input, shape index: {}]
  %s3 = inlined_call_operand.hbm [shape: f32[1,128], index: 3, kind: input, shape index: {}]
  %s4 = inlined_call_operand.hbm [shape: f32[32,128], index: 4, kind: input, shape index: {}]
  %s5 = inlined_call_operand.hbm [shape: f32[32,128], index: 5, kind: input, shape index: {}]
  %s6 = inlined_call_operand.hbm [shape: f32[1,128], index: 6, kind: input, shape index: {}]
  %s7 = inlined_call_operand.hbm [shape: f32[32,128], index: 7, kind: input, shape index: {}]
  %s8 = inlined_call_operand.hbm [shape: f32[32,128], index: 8, kind: input, shape index: {}]
  %s9 = inlined_call_operand.hbm [shape: f32[1,128], index: 9, kind: input, shape index: {}]
  %s10 = inlined_call_operand.hbm [shape: f32[32,128], index: 10, kind: input, shape index: {}]
  %s11 = inlined_call_operand.hbm [shape: f32[32,128], index: 11, kind: input, shape index: {}]
  %s12 = inlined_call_operand.hbm [shape: f32[1,128], index: 12, kind: input, shape index: {}]
  %s13 = inlined_call_operand.hbm [shape: f32[2,1,32], index: 13, kind: input, shape index: {}]
  %s14 = inlined_call_operand.hbm [shape: f32[2,1,32], index: 14, kind: input, shape index: {}]
  %s15 = inlined_call_operand.hbm [shape: f32[32,32], index: 15, kind: input, shape index: {}]
  %s16 = inlined_call_operand.hbm [shape: f32[1,32], index: 16, kind: input, shape index: {}]
  %s17 = inlined_call_operand.vmem [shape: f32[32,32], index: 17, kind: input, shape index: {}]
  %s18 = inlined_call_operand.vmem [shape: f32[1,32], index: 18, kind: input, shape index: {}]
  %s19 = inlined_call_operand.vmem [shape: f32[32,8], index: 19, kind: input, shape index: {}]
  %s20 = inlined_call_operand.vmem [shape: f32[1,8], index: 20, kind: input, shape index: {}]
  %s21 = inlined_call_operand.vmem [shape: f32[24,8], index: 21, kind: output, shape index: {}]
  %s22 = sld [smem:[#allocation0]]
  $region162: #{lstm_model_forward.1} parent=0
    _
  %s24 = ssub.s32 1, %s22
  %s25 = scalar_select 0, %s24, %s22
  $region1: #{lstm_model_forward.1} parent=0
    #allocation2 [shape = 'u8[12288]{0}', space=vmem, size = 0x3000, scoped, tag = 'input window, operand 0, single buffered']
    #allocation3 [shape = 's32[1]{0}', space=sflag, size = 0x4, scoped, tag = 'scoped memory for lstm_model_forward.1']
    #allocation4 [shape = 'u8[65536]{0}', space=vmem, size = 0x10000, scoped, tag = 'input window, operand 1, single buffered']
    #allocation5 [shape = 's32[1]{0}', space=sflag, size = 0x4, scoped, tag = 'scoped memory for lstm_model_forward.1']
    #allocation6 [shape = 'u8[16384]{0}', space=vmem, size = 0x4000, scoped, tag = 'input window, operand 2, single buffered']
    #allocation7 [shape = 'u8[512]{0}', space=vmem, size = 0x400, scoped, tag = 'input window, operand 3, single buffered']
    #allocation8 [shape = 's32[1]{0}', space=sflag, size = 0x4, scoped, tag = 'scoped memory for lstm_model_forward.1']
    #allocation9 [shape = 'u8[16384]{0}', space=vmem, size = 0x4000, scoped, tag = 'input window, operand 4, single buffered']
    #allocation10 [shape = 'u8[16384]{0}', space=vmem, size = 0x4000, scoped, tag = 'input window, operand 5, single buffered']
    #allocation11 [shape = 's32[1]{0}', space=sflag, size = 0x4, scoped, tag = 'scoped memory for lstm_model_forward.1']
    #allocation12 [shape = 'u8[512]{0}', space=vmem, size = 0x400, scoped, tag = 'input window, operand 6, single buffered']
    #allocation13 [shape = 'u8[16384]{0}', space=vmem, size = 0x4000, scoped, tag = 'input window, operand 7, single buffered']
    #allocation14 [shape = 's32[1]{0}', space=sflag, size = 0x4, scoped, tag = 'scoped memory for lstm_model_forward.1']
    #allocation15 [shape = 'u8[16384]{0}', space=vmem, size = 0x4000, scoped, tag = 'input window, operand 8, single buffered']
    #allocation16 [shape = 'u8[512]{0}', space=vmem, size = 0x400, scoped, tag = 'input window, operand 9, single buffered']
    #allocation17 [shape = 's32[1]{0}', space=sflag, size = 0x4, scoped, tag = 'scoped memory for lstm_model_forward.1']
    #allocation18 [shape = 'u8[16384]{0}', space=vmem, size = 0x4000, scoped, tag = 'input window, operand 10, single buffered']
    #allocation19 [shape = 'u8[16384]{0}', space=vmem, size = 0x4000, scoped, tag = 'input window, operand 11, single buffered']
    #allocation20 [shape = 's32[1]{0}', space=sflag, size = 0x4, scoped, tag = 'scoped memory for lstm_model_forward.1']
    #allocation21 [shape = 'u8[512]{0}', space=vmem, size = 0x400, scoped, tag = 'input window, operand 12, single buffered']
    #allocation22 [shape = 'u8[1024]{0}', space=vmem, size = 0x400, scoped, tag = 'input window, operand 13, single buffered']
    #allocation23 [shape = 's32[1]{0}', space=sflag, size = 0x4, scoped, tag = 'scoped memory for lstm_model_forward.1']
    #allocation24 [shape = 'u8[1024]{0}', space=vmem, size = 0x400, scoped, tag = 'input window, operand 14, single buffered']
    #allocation25 [shape = 'u8[16384]{0}', space=vmem, size = 0x4000, scoped, tag = 'input window, operand 15, single buffered']
    #allocation26 [shape = 's32[1]{0}', space=sflag, size = 0x4, scoped, tag = 'scoped memory for lstm_model_forward.1']
    #allocation27 [shape = 'u8[512]{0}', space=vmem, size = 0x400, scoped, tag = 'input window, operand 16, single buffered']
    %26 = vsyncpa [#allocation3], 0
    %27 = vsyncpa [#allocation5], 0
    %28 = vsyncpa [#allocation8], 0
    %29 = vsyncpa [#allocation11], 0
    %30 = vsyncpa [#allocation14], 0
    %31 = vsyncpa [#allocation17], 0
    %32 = vsyncpa [#allocation20], 0
    %33 = vsyncpa [#allocation23], 0
    %34 = vsyncpa [#allocation26], 0
    // Predicated region
    $region2: #{lstm_model_forward.1} parent=1 // pred_check
      _
    $region3: #{lstm_model_forward.1} parent=1 // pred_check_branch
      %36 = sbr.rel (0) target = $region5
    $region4: #{lstm_model_forward.1} parent=1 // pred_region
      %s38 = ssub.s32 384, 384
      %39 = vsyncadd [#allocation3], %s38
      %s40 = sshll.u32 [#allocation2], 4
      %s41 = int_to_ptr.vmem [resolvable:$true] %s40
      %46 = dma.hbm_to_vmem [thread:$0]  %s0, 384, %s41, [#allocation3], 128, 128, 8
    $region5: #{lstm_model_forward.1} parent=1 // pred_fallthru
      _
    // Predicated region
    $region6: #{lstm_model_forward.1} parent=1 // pred_check
      _
    $region7: #{lstm_model_forward.1} parent=1 // pred_check_branch
      %48 = sbr.rel (0) target = $region9
    $region8: #{lstm_model_forward.1} parent=1 // pred_region
      %s50 = ssub.s32 2048, 2048
      %51 = vsyncadd [#allocation5], %s50
      %s52 = sshll.u32 [#allocation4], 4
      %s53 = int_to_ptr.vmem [resolvable:$true] %s52
      %58 = dma.hbm_to_vmem [thread:$0]  %s1, 2048, %s53, [#allocation5], 128, 128, 8
    $region9: #{lstm_model_forward.1} parent=1 // pred_fallthru
      _
    // Predicated region
    $region10: #{lstm_model_forward.1} parent=1 // pred_check
      _
    $region11: #{lstm_model_forward.1} parent=1 // pred_check_branch
      %60 = sbr.rel (0) target = $region13
    $region12: #{lstm_model_forward.1} parent=1 // pred_region
      %s62 = ssub.s32 512, 512
      %63 = vsyncadd [#allocation5], %s62
      %s64 = sshll.u32 [#allocation6], 4
      %s65 = int_to_ptr.vmem [resolvable:$true] %s64
      %70 = dma.hbm_to_vmem [thread:$0]  %s2, 512, %s65, [#allocation5], 128, 128, 8
    $region13: #{lstm_model_forward.1} parent=1 // pred_fallthru
      _
    // Predicated region
    $region14: #{lstm_model_forward.1} parent=1 // pred_check
      _
    $region15: #{lstm_model_forward.1} parent=1 // pred_check_branch
      %72 = sbr.rel (0) target = $region17
    $region16: #{lstm_model_forward.1} parent=1 // pred_region
      %s74 = ssub.s32 16, 16
      %75 = vsyncadd [#allocation8], %s74
      %s77 = sshll.u32 [#allocation7], 4
      %s78 = int_to_ptr.vmem [resolvable:$true] %s77
      %80 = dma.hbm_to_vmem [thread:$0]  %s3, 16, %s78, [#allocation8]
    $region17: #{lstm_model_forward.1} parent=1 // pred_fallthru
      _
    // Predicated region
    $region18: #{lstm_model_forward.1} parent=1 // pred_check
      _
    $region19: #{lstm_model_forward.1} parent=1 // pred_check_branch
      %82 = sbr.rel (0) target = $region21
    $region20: #{lstm_model_forward.1} parent=1 // pred_region
      %s84 = ssub.s32 512, 512
      %85 = vsyncadd [#allocation8], %s84
      %s86 = sshll.u32 [#allocation9], 4
      %s87 = int_to_ptr.vmem [resolvable:$true] %s86
      %92 = dma.hbm_to_vmem [thread:$0]  %s4, 512, %s87, [#allocation8], 128, 128, 8
    $region21: #{lstm_model_forward.1} parent=1 // pred_fallthru
      _
    // Predicated region
    $region22: #{lstm_model_forward.1} parent=1 // pred_check
      _
    $region23: #{lstm_model_forward.1} parent=1 // pred_check_branch
      %94 = sbr.rel (0) target = $region25
    $region24: #{lstm_model_forward.1} parent=1 // pred_region
      %s96 = ssub.s32 512, 512
      %97 = vsyncadd [#allocation11], %s96
      %s98 = sshll.u32 [#allocation10], 4
      %s99 = int_to_ptr.vmem [resolvable:$true] %s98
      %104 = dma.hbm_to_vmem [thread:$0]  %s5, 512, %s99, [#allocation11], 128, 128, 8
    $region25: #{lstm_model_forward.1} parent=1 // pred_fallthru
      _
    // Predicated region
    $region26: #{lstm_model_forward.1} parent=1 // pred_check
      _
    $region27: #{lstm_model_forward.1} parent=1 // pred_check_branch
      %106 = sbr.rel (0) target = $region29
    $region28: #{lstm_model_forward.1} parent=1 // pred_region
      %s108 = ssub.s32 16, 16
      %109 = vsyncadd [#allocation11], %s108
      %s111 = sshll.u32 [#allocation12], 4
      %s112 = int_to_ptr.vmem [resolvable:$true] %s111
      %114 = dma.hbm_to_vmem [thread:$0]  %s6, 16, %s112, [#allocation11]
    $region29: #{lstm_model_forward.1} parent=1 // pred_fallthru
      _
    // Predicated region
    $region30: #{lstm_model_forward.1} parent=1 // pred_check
      _
    $region31: #{lstm_model_forward.1} parent=1 // pred_check_branch
      %116 = sbr.rel (0) target = $region33
    $region32: #{lstm_model_forward.1} parent=1 // pred_region
      %s118 = ssub.s32 512, 512
      %119 = vsyncadd [#allocation14], %s118
      %s120 = sshll.u32 [#allocation13], 4
      %s121 = int_to_ptr.vmem [resolvable:$true] %s120
      %126 = dma.hbm_to_vmem [thread:$0]  %s7, 512, %s121, [#allocation14], 128, 128, 8
    $region33: #{lstm_model_forward.1} parent=1 // pred_fallthru
      _
    // Predicated region
    $region34: #{lstm_model_forward.1} parent=1 // pred_check
      _
    $region35: #{lstm_model_forward.1} parent=1 // pred_check_branch
      %128 = sbr.rel (0) target = $region37
    $region36: #{lstm_model_forward.1} parent=1 // pred_region
      %s130 = ssub.s32 512, 512
      %131 = vsyncadd [#allocation14], %s130
      %s132 = sshll.u32 [#allocation15], 4
      %s133 = int_to_ptr.vmem [resolvable:$true] %s132
      %138 = dma.hbm_to_vmem [thread:$0]  %s8, 512, %s133, [#allocation14], 128, 128, 8
    $region37: #{lstm_model_forward.1} parent=1 // pred_fallthru
      _
    // Predicated region
    $region38: #{lstm_model_forward.1} parent=1 // pred_check
      _
    $region39: #{lstm_model_forward.1} parent=1 // pred_check_branch
      %140 = sbr.rel (0) target = $region41
    $region40: #{lstm_model_forward.1} parent=1 // pred_region
      %s142 = ssub.s32 16, 16
      %143 = vsyncadd [#allocation17], %s142
      %s145 = sshll.u32 [#allocation16], 4
      %s146 = int_to_ptr.vmem [resolvable:$true] %s145
      %148 = dma.hbm_to_vmem [thread:$0]  %s9, 16, %s146, [#allocation17]
    $region41: #{lstm_model_forward.1} parent=1 // pred_fallthru
      _
    // Predicated region
    $region42: #{lstm_model_forward.1} parent=1 // pred_check
      _
    $region43: #{lstm_model_forward.1} parent=1 // pred_check_branch
      %150 = sbr.rel (0) target = $region45
    $region44: #{lstm_model_forward.1} parent=1 // pred_region
      %s152 = ssub.s32 512, 512
      %153 = vsyncadd [#allocation17], %s152
      %s154 = sshll.u32 [#allocation18], 4
      %s155 = int_to_ptr.vmem [resolvable:$true] %s154
      %160 = dma.hbm_to_vmem [thread:$0]  %s10, 512, %s155, [#allocation17], 128, 128, 8
    $region45: #{lstm_model_forward.1} parent=1 // pred_fallthru
      _
    // Predicated region
    $region46: #{lstm_model_forward.1} parent=1 // pred_check
      _
    $region47: #{lstm_model_forward.1} parent=1 // pred_check_branch
      %162 = sbr.rel (0) target = $region49
    $region48: #{lstm_model_forward.1} parent=1 // pred_region
      %s164 = ssub.s32 512, 512
      %165 = vsyncadd [#allocation20], %s164
      %s166 = sshll.u32 [#allocation19], 4
      %s167 = int_to_ptr.vmem [resolvable:$true] %s166
      %172 = dma.hbm_to_vmem [thread:$0]  %s11, 512, %s167, [#allocation20], 128, 128, 8
    $region49: #{lstm_model_forward.1} parent=1 // pred_fallthru
      _
    // Predicated region
    $region50: #{lstm_model_forward.1} parent=1 // pred_check
      _
    $region51: #{lstm_model_forward.1} parent=1 // pred_check_branch
      %174 = sbr.rel (0) target = $region53
    $region52: #{lstm_model_forward.1} parent=1 // pred_region
      %s176 = ssub.s32 16, 16
      %177 = vsyncadd [#allocation20], %s176
      %s179 = sshll.u32 [#allocation21], 4
      %s180 = int_to_ptr.vmem [resolvable:$true] %s179
      %182 = dma.hbm_to_vmem [thread:$0]  %s12, 16, %s180, [#allocation20]
    $region53: #{lstm_model_forward.1} parent=1 // pred_fallthru
      _
    // Predicated region
    $region54: #{lstm_model_forward.1} parent=1 // pred_check
      _
    $region55: #{lstm_model_forward.1} parent=1 // pred_check_branch
      %184 = sbr.rel (0) target = $region57
    $region56: #{lstm_model_forward.1} parent=1 // pred_region
      %s186 = ssub.s32 32, 32
      %187 = vsyncadd [#allocation23], %s186
      %s188 = sshll.u32 [#allocation22], 4
      %s189 = int_to_ptr.vmem [resolvable:$true] %s188
      %194 = dma.hbm_to_vmem [thread:$0]  %s13, 32, %s189, [#allocation23], 16, 16, 1
    $region57: #{lstm_model_forward.1} parent=1 // pred_fallthru
      _
    // Predicated region
    $region58: #{lstm_model_forward.1} parent=1 // pred_check
      _
    $region59: #{lstm_model_forward.1} parent=1 // pred_check_branch
      %196 = sbr.rel (0) target = $region61
    $region60: #{lstm_model_forward.1} parent=1 // pred_region
      %s198 = ssub.s32 32, 32
      %199 = vsyncadd [#allocation23], %s198
      %s200 = sshll.u32 [#allocation24], 4
      %s201 = int_to_ptr.vmem [resolvable:$true] %s200
      %206 = dma.hbm_to_vmem [thread:$0]  %s14, 32, %s201, [#allocation23], 16, 16, 1
    $region61: #{lstm_model_forward.1} parent=1 // pred_fallthru
      _
    // Predicated region
    $region62: #{lstm_model_forward.1} parent=1 // pred_check
      _
    $region63: #{lstm_model_forward.1} parent=1 // pred_check_branch
      %208 = sbr.rel (0) target = $region65
    $region64: #{lstm_model_forward.1} parent=1 // pred_region
      %s210 = ssub.s32 512, 512
      %211 = vsyncadd [#allocation26], %s210
      %s212 = sshll.u32 [#allocation25], 4
      %s213 = int_to_ptr.vmem [resolvable:$true] %s212
      %218 = dma.hbm_to_vmem [thread:$0]  %s15, 512, %s213, [#allocation26], 128, 128, 8
    $region65: #{lstm_model_forward.1} parent=1 // pred_fallthru
      _
    // Predicated region
    $region66: #{lstm_model_forward.1} parent=1 // pred_check
      _
    $region67: #{lstm_model_forward.1} parent=1 // pred_check_branch
      %220 = sbr.rel (0) target = $region69
    $region68: #{lstm_model_forward.1} parent=1 // pred_region
      %s222 = ssub.s32 16, 16
      %223 = vsyncadd [#allocation26], %s222
      %s225 = sshll.u32 [#allocation27], 4
      %s226 = int_to_ptr.vmem [resolvable:$true] %s225
      %228 = dma.hbm_to_vmem [thread:$0]  %s16, 16, %s226, [#allocation26]
    $region69: #{lstm_model_forward.1} parent=1 // pred_fallthru
      _
    // Predicated region
    $region70: #{lstm_model_forward.1} parent=1 // pred_check
      _
    $region71: #{lstm_model_forward.1} parent=1 // pred_check_branch
      %230 = sbr.rel (0) target = $region73
    $region72: #{lstm_model_forward.1} parent=1 // pred_region
      _
    $region73: #{lstm_model_forward.1} parent=1 // pred_fallthru
      _
    // Predicated region
    $region74: #{lstm_model_forward.1} parent=1 // pred_check
      _
    $region75: #{lstm_model_forward.1} parent=1 // pred_check_branch
      %232 = sbr.rel (0) target = $region77
    $region76: #{lstm_model_forward.1} parent=1 // pred_region
      _
    $region77: #{lstm_model_forward.1} parent=1 // pred_fallthru
      _
    // Predicated region
    $region78: #{lstm_model_forward.1} parent=1 // pred_check
      _
    $region79: #{lstm_model_forward.1} parent=1 // pred_check_branch
      %234 = sbr.rel (0) target = $region81
    $region80: #{lstm_model_forward.1} parent=1 // pred_region
      _
    $region81: #{lstm_model_forward.1} parent=1 // pred_fallthru
      _
    // Predicated region
    $region82: #{lstm_model_forward.1} parent=1 // pred_check
      _
    $region83: #{lstm_model_forward.1} parent=1 // pred_check_branch
      %236 = sbr.rel (0) target = $region85
    $region84: #{lstm_model_forward.1} parent=1 // pred_region
      _
    $region85: #{lstm_model_forward.1} parent=1 // pred_fallthru
      _
    // Predicated region
    $region86: #{lstm_model_forward.1} parent=1 // pred_check
      _
    $region87: #{lstm_model_forward.1} parent=1 // pred_check_branch
      %238 = sbr.rel (0) target = $region89
    $region88: #{lstm_model_forward.1} parent=1 // pred_region
      %239 = dma.done [#allocation3], 384
    $region89: #{lstm_model_forward.1} parent=1 // pred_fallthru
      _
    // Predicated region
    $region90: #{lstm_model_forward.1} parent=1 // pred_check
      _
    $region91: #{lstm_model_forward.1} parent=1 // pred_check_branch
      %241 = sbr.rel (0) target = $region93
    $region92: #{lstm_model_forward.1} parent=1 // pred_region
      %242 = dma.done [#allocation5], 2048
    $region93: #{lstm_model_forward.1} parent=1 // pred_fallthru
      _
    // Predicated region
    $region94: #{lstm_model_forward.1} parent=1 // pred_check
      _
    $region95: #{lstm_model_forward.1} parent=1 // pred_check_branch
      %244 = sbr.rel (0) target = $region97
    $region96: #{lstm_model_forward.1} parent=1 // pred_region
      %245 = dma.done [#allocation5], 512
    $region97: #{lstm_model_forward.1} parent=1 // pred_fallthru
      _
    // Predicated region
    $region98: #{lstm_model_forward.1} parent=1 // pred_check
      _
    $region99: #{lstm_model_forward.1} parent=1 // pred_check_branch
      %247 = sbr.rel (0) target = $region101
    $region100: #{lstm_model_forward.1} parent=1 // pred_region
      %248 = dma.done [#allocation8], 16
    $region101: #{lstm_model_forward.1} parent=1 // pred_fallthru
      _
    // Predicated region
    $region102: #{lstm_model_forward.1} parent=1 // pred_check
      _
    $region103: #{lstm_model_forward.1} parent=1 // pred_check_branch
      %250 = sbr.rel (0) target = $region105
    $region104: #{lstm_model_forward.1} parent=1 // pred_region
      %251 = dma.done [#allocation8], 512
    $region105: #{lstm_model_forward.1} parent=1 // pred_fallthru
      _
    // Predicated region
    $region106: #{lstm_model_forward.1} parent=1 // pred_check
      _
    $region107: #{lstm_model_forward.1} parent=1 // pred_check_branch
      %253 = sbr.rel (0) target = $region109
    $region108: #{lstm_model_forward.1} parent=1 // pred_region
      %254 = dma.done [#allocation11], 512
    $region109: #{lstm_model_forward.1} parent=1 // pred_fallthru
      _
    // Predicated region
    $region110: #{lstm_model_forward.1} parent=1 // pred_check
      _
    $region111: #{lstm_model_forward.1} parent=1 // pred_check_branch
      %256 = sbr.rel (0) target = $region113
    $region112: #{lstm_model_forward.1} parent=1 // pred_region
      %257 = dma.done [#allocation11], 16
    $region113: #{lstm_model_forward.1} parent=1 // pred_fallthru
      _
    // Predicated region
    $region114: #{lstm_model_forward.1} parent=1 // pred_check
      _
    $region115: #{lstm_model_forward.1} parent=1 // pred_check_branch
      %259 = sbr.rel (0) target = $region117
    $region116: #{lstm_model_forward.1} parent=1 // pred_region
      %260 = dma.done [#allocation14], 512
    $region117: #{lstm_model_forward.1} parent=1 // pred_fallthru
      _
    // Predicated region
    $region118: #{lstm_model_forward.1} parent=1 // pred_check
      _
    $region119: #{lstm_model_forward.1} parent=1 // pred_check_branch
      %262 = sbr.rel (0) target = $region121
    $region120: #{lstm_model_forward.1} parent=1 // pred_region
      %263 = dma.done [#allocation14], 512
    $region121: #{lstm_model_forward.1} parent=1 // pred_fallthru
      _
    // Predicated region
    $region122: #{lstm_model_forward.1} parent=1 // pred_check
      _
    $region123: #{lstm_model_forward.1} parent=1 // pred_check_branch
      %265 = sbr.rel (0) target = $region125
    $region124: #{lstm_model_forward.1} parent=1 // pred_region
      %266 = dma.done [#allocation17], 16
    $region125: #{lstm_model_forward.1} parent=1 // pred_fallthru
      _
    // Predicated region
    $region126: #{lstm_model_forward.1} parent=1 // pred_check
      _
    $region127: #{lstm_model_forward.1} parent=1 // pred_check_branch
      %268 = sbr.rel (0) target = $region129
    $region128: #{lstm_model_forward.1} parent=1 // pred_region
      %269 = dma.done [#allocation17], 512
    $region129: #{lstm_model_forward.1} parent=1 // pred_fallthru
      _
    // Predicated region
    $region130: #{lstm_model_forward.1} parent=1 // pred_check
      _
    $region131: #{lstm_model_forward.1} parent=1 // pred_check_branch
      %271 = sbr.rel (0) target = $region133
    $region132: #{lstm_model_forward.1} parent=1 // pred_region
      %272 = dma.done [#allocation20], 512
    $region133: #{lstm_model_forward.1} parent=1 // pred_fallthru
      _
    // Predicated region
    $region134: #{lstm_model_forward.1} parent=1 // pred_check
      _
    $region135: #{lstm_model_forward.1} parent=1 // pred_check_branch
      %274 = sbr.rel (0) target = $region137
    $region136: #{lstm_model_forward.1} parent=1 // pred_region
      %275 = dma.done [#allocation20], 16
    $region137: #{lstm_model_forward.1} parent=1 // pred_fallthru
      _
    // Predicated region
    $region138: #{lstm_model_forward.1} parent=1 // pred_check
      _
    $region139: #{lstm_model_forward.1} parent=1 // pred_check_branch
      %277 = sbr.rel (0) target = $region141
    $region140: #{lstm_model_forward.1} parent=1 // pred_region
      %278 = dma.done [#allocation23], 32
    $region141: #{lstm_model_forward.1} parent=1 // pred_fallthru
      _
    // Predicated region
    $region142: #{lstm_model_forward.1} parent=1 // pred_check
      _
    $region143: #{lstm_model_forward.1} parent=1 // pred_check_branch
      %280 = sbr.rel (0) target = $region145
    $region144: #{lstm_model_forward.1} parent=1 // pred_region
      %281 = dma.done [#allocation23], 32
    $region145: #{lstm_model_forward.1} parent=1 // pred_fallthru
      _
    // Predicated region
    $region146: #{lstm_model_forward.1} parent=1 // pred_check
      _
    $region147: #{lstm_model_forward.1} parent=1 // pred_check_branch
      %283 = sbr.rel (0) target = $region149
    $region148: #{lstm_model_forward.1} parent=1 // pred_region
      %284 = dma.done [#allocation26], 512
    $region149: #{lstm_model_forward.1} parent=1 // pred_fallthru
      _
    // Predicated region
    $region150: #{lstm_model_forward.1} parent=1 // pred_check
      _
    $region151: #{lstm_model_forward.1} parent=1 // pred_check_branch
      %286 = sbr.rel (0) target = $region153
    $region152: #{lstm_model_forward.1} parent=1 // pred_region
      %287 = dma.done [#allocation26], 16
    $region153: #{lstm_model_forward.1} parent=1 // pred_fallthru
      _
    %v288 = vld [vmem:[#allocation22] sm:$0x1]
    %v289 = vld [vmem:[#allocation22 + $0x1] sm:$0x1]
    %v290 = vld [vmem:[#allocation24] sm:$0x1]
    %v291 = vld [vmem:[#allocation24 + $0x1] sm:$0x1]
    %v292 = vld [vmem:[#allocation2] sm:$0xff]
    %v293 = vld [vmem:[#allocation2 + $0x8] sm:$0xff]
    %v294 = vld [vmem:[#allocation2 + $0x10] sm:$0xff]
    %v295 = vld [vmem:[#allocation4] sm:$0xff]
    %v296 = vld [vmem:[#allocation4 + $0x8] sm:$0xff]
    %v297 = vld [vmem:[#allocation4 + $0x10] sm:$0xff]
    %v298 = vld [vmem:[#allocation4 + $0x18] sm:$0xff]
    %v299 = vld [vmem:[#allocation4 + $0x20] sm:$0xff]
    %v300 = vld [vmem:[#allocation4 + $0x28] sm:$0xff]
    %v301 = vld [vmem:[#allocation4 + $0x30] sm:$0xff]
    %v302 = vld [vmem:[#allocation4 + $0x38] sm:$0xff]
    %v303 = vld [vmem:[#allocation4 + $0x40] sm:$0xff]
    %v304 = vld [vmem:[#allocation4 + $0x48] sm:$0xff]
    %v305 = vld [vmem:[#allocation4 + $0x50] sm:$0xff]
    %v306 = vld [vmem:[#allocation4 + $0x58] sm:$0xff]
    %v307 = vld [vmem:[#allocation4 + $0x60] sm:$0xff]
    %v308 = vld [vmem:[#allocation4 + $0x68] sm:$0xff]
    %v309 = vld [vmem:[#allocation4 + $0x70] sm:$0xff]
    %v310 = vld [vmem:[#allocation4 + $0x78] sm:$0xff]
    %v311 = vld [vmem:[#allocation7] sm:$0x1]
    %v313 = vlaneseq
    %v314 = vshrl.u32 %v313, 7
    %v315 = vsub.s32 0, %v314
    %v316 = vrot.slane %v311, %v315
    %318 = vmatprep.subr.mxu0 0.0
    %319 = vmatpush1.msra.mxu0 %v295
    %320 = vmatprep.subr.mxu0 0.0
    %321 = vmatpush1.msra.mxu0 %v296
    %322 = vmatprep.subr.mxu0 0.0
    %323 = vmatpush1.msra.mxu0 %v297
    %324 = vmatprep.subr.mxu0 0.0
    %325 = vmatpush1.msra.mxu0 %v298
    %326 = vmatprep.subr.mxu0 0.0
    %327 = vmatpush1.msra.mxu0 %v299
    %328 = vmatprep.subr.mxu0 0.0
    %329 = vmatpush1.msra.mxu0 %v300
    %330 = vmatprep.subr.mxu0 0.0
    %331 = vmatpush1.msra.mxu0 %v301
    %332 = vmatprep.subr.mxu0 0.0
    %333 = vmatpush1.msra.mxu0 %v302
    %334 = vmatprep.subr.mxu0 0.0
    %335 = vmatpush1.msra.mxu0 %v303
    %336 = vmatprep.subr.mxu0 0.0
    %337 = vmatpush1.msra.mxu0 %v304
    %338 = vmatprep.subr.mxu0 0.0
    %339 = vmatpush1.msra.mxu0 %v305
    %340 = vmatprep.subr.mxu0 0.0
    %341 = vmatpush1.msra.mxu0 %v306
    %342 = vmatprep.subr.mxu0 0.0
    %343 = vmatpush1.msra.mxu0 %v307
    %344 = vmatprep.subr.mxu0 0.0
    %345 = vmatpush1.msra.mxu0 %v308
    %346 = vmatprep.subr.mxu0 0.0
    %347 = vmatpush1.msra.mxu0 %v309
    %348 = vmatprep.subr.mxu0 0.0
    %349 = vmatpush1.msra.mxu0 %v310
    %350 = vmatprep.subr.mxu0 0.0
    %351 = vmatpush1.msra.mxu0 0.0
    %352 = vmatprep.subr.mxu0 0.0
    %353 = vmatpush1.msra.mxu0 0.0
    %354 = vmatprep.subr.mxu0 0.0
    %355 = vmatpush1.msra.mxu0 0.0
    %356 = vmatprep.subr.mxu0 0.0
    %357 = vmatpush1.msra.mxu0 0.0
    %358 = vmatprep.subr.mxu0 0.0
    %359 = vmatpush1.msra.mxu0 0.0
    %360 = vmatprep.subr.mxu0 0.0
    %361 = vmatpush1.msra.mxu0 0.0
    %362 = vmatprep.subr.mxu0 0.0
    %363 = vmatpush1.msra.mxu0 0.0
    %364 = vmatprep.subr.mxu0 0.0
    %365 = vmatpush1.msra.mxu0 0.0
    %366 = vmatprep.subr.mxu0 0.0
    %367 = vmatpush1.msra.mxu0 0.0
    %368 = vmatprep.subr.mxu0 0.0
    %369 = vmatpush1.msra.mxu0 0.0
    %370 = vmatprep.subr.mxu0 0.0
    %371 = vmatpush1.msra.mxu0 0.0
    %372 = vmatprep.subr.mxu0 0.0
    %373 = vmatpush1.msra.mxu0 0.0
    %374 = vmatprep.subr.mxu0 0.0
    %375 = vmatpush1.msra.mxu0 0.0
    %376 = vmatprep.subr.mxu0 0.0
    %377 = vmatpush1.msra.mxu0 0.0
    %378 = vmatprep.subr.mxu0 0.0
    %379 = vmatpush1.msra.mxu0 0.0
    %380 = vmatprep.subr.mxu0 0.0
    %381 = vmatpush1.msra.mxu0 0.0
    %382 = vmatprep.mubr.f32.mxu0 0.0
    %383 = vmatmul.mubr.f32.gmra.mrb[0].mxu0 %v292
    %v384 = vpop.f32.mrb[0].mxu0
    %v385 = vadd.f32 %v316, %v384
    %v386 = vpop.f32.mrb[0].mxu0
    %387 = vmatprep.mubr.f32.mxu0 0.0
    %388 = vmatmul.mubr.f32.gmra.mrb[0].mxu0 %v293
    %v389 = vpop.f32.mrb[0].mxu0
    %v390 = vadd.f32 %v316, %v389
    %v391 = vpop.f32.mrb[0].mxu0
    %392 = vmatprep.mubr.f32.mxu0 0.0
    %393 = vmatmul.mubr.f32.gmra.mrb[0].mxu0 %v294
    %v394 = vpop.f32.mrb[0].mxu0
    %v395 = vadd.f32 %v316, %v394
    %v396 = vpop.f32.mrb[0].mxu0
    %397 = vdwg.mxu0
    %v399 = vlaneseq
    %v400 = vshrl.u32 %v399, 7
    %v401 = vsub.s32 0, %v400
    %v402 = vrot.slane %v288, %v401
    %v404 = vlaneseq
    %v405 = vshrl.u32 %v404, 7
    %v406 = vsub.s32 0, %v405
    %v407 = vrot.slane %v290, %v406
    %v409 = vlaneseq
    %v410 = vshrl.u32 %v409, 7
    %v411 = vsub.s32 0, %v410
    %v412 = vrot.slane %v289, %v411
    %v414 = vlaneseq
    %v415 = vshrl.u32 %v414, 7
    %v416 = vsub.s32 0, %v415
    %v417 = vrot.slane %v291, %v416
    %v418 = vld [vmem:[#allocation6] sm:$0xff]
    %v419 = vld [vmem:[#allocation6 + $0x8] sm:$0xff]
    %v420 = vld [vmem:[#allocation6 + $0x10] sm:$0xff]
    %v421 = vld [vmem:[#allocation6 + $0x18] sm:$0xff]
    %v422 = vld [vmem:[#allocation9] sm:$0xff]
    %v423 = vld [vmem:[#allocation9 + $0x8] sm:$0xff]
    %v424 = vld [vmem:[#allocation9 + $0x10] sm:$0xff]
    %v425 = vld [vmem:[#allocation9 + $0x18] sm:$0xff]
    %v426 = vld [vmem:[#allocation10] sm:$0xff]
    %v427 = vld [vmem:[#allocation10 + $0x8] sm:$0xff]
    %v428 = vld [vmem:[#allocation10 + $0x10] sm:$0xff]
    %v429 = vld [vmem:[#allocation10 + $0x18] sm:$0xff]
    %v430 = vld [vmem:[#allocation12] sm:$0x1]
    %v432 = vlaneseq
    %v433 = vshrl.u32 %v432, 7
    %v434 = vsub.s32 0, %v433
    %v435 = vrot.slane %v430, %v434
    %v438 = vrot.slane %v390, 3
    %vm440 = vcmask 1040384
    %v441 = vsel %vm440, %v385, %v438
    %vm442 = vcmask 261120
    %v443 = vsel %vm442, %v402, 0
    %445 = vmatprep.subr.mxu0 0.0
    %446 = vmatpush1.msra.mxu0 %v418
    %447 = vmatprep.subr.mxu0 0.0
    %448 = vmatpush1.msra.mxu0 %v419
    %449 = vmatprep.subr.mxu0 0.0
    %450 = vmatpush1.msra.mxu0 %v420
    %451 = vmatprep.subr.mxu0 0.0
    %452 = vmatpush1.msra.mxu0 %v421
    %453 = vmatprep.subr.mxu0 0.0
    %454 = vmatpush1.msra.mxu0 0.0
    %455 = vmatprep.subr.mxu0 0.0
    %456 = vmatpush1.msra.mxu0 0.0
    %457 = vmatprep.subr.mxu0 0.0
    %458 = vmatpush1.msra.mxu0 0.0
    %459 = vmatprep.subr.mxu0 0.0
    %460 = vmatpush1.msra.mxu0 0.0
    %461 = vmatprep.subr.mxu0 0.0
    %462 = vmatpush1.msra.mxu0 0.0
    %463 = vmatprep.subr.mxu0 0.0
    %464 = vmatpush1.msra.mxu0 0.0
    %465 = vmatprep.subr.mxu0 0.0
    %466 = vmatpush1.msra.mxu0 0.0
    %467 = vmatprep.subr.mxu0 0.0
    %468 = vmatpush1.msra.mxu0 0.0
    %469 = vmatprep.subr.mxu0 0.0
    %470 = vmatpush1.msra.mxu0 0.0
    %471 = vmatprep.subr.mxu0 0.0
    %472 = vmatpush1.msra.mxu0 0.0
    %473 = vmatprep.subr.mxu0 0.0
    %474 = vmatpush1.msra.mxu0 0.0
    %475 = vmatprep.subr.mxu0 0.0
    %476 = vmatpush1.msra.mxu0 0.0
    %477 = vmatprep.subr.mxu0 0.0
    %478 = vmatpush1.msra.mxu0 0.0
    %479 = vmatprep.subr.mxu0 0.0
    %480 = vmatpush1.msra.mxu0 0.0
    %481 = vmatprep.subr.mxu0 0.0
    %482 = vmatpush1.msra.mxu0 0.0
    %483 = vmatprep.subr.mxu0 0.0
    %484 = vmatpush1.msra.mxu0 0.0
    %485 = vmatprep.subr.mxu0 0.0
    %486 = vmatpush1.msra.mxu0 0.0
    %487 = vmatprep.subr.mxu0 0.0
    %488 = vmatpush1.msra.mxu0 0.0
    %489 = vmatprep.subr.mxu0 0.0
    %490 = vmatpush1.msra.mxu0 0.0
    %491 = vmatprep.subr.mxu0 0.0
    %492 = vmatpush1.msra.mxu0 0.0
    %493 = vmatprep.subr.mxu0 0.0
    %494 = vmatpush1.msra.mxu0 0.0
    %495 = vmatprep.subr.mxu0 0.0
    %496 = vmatpush1.msra.mxu0 0.0
    %497 = vmatprep.subr.mxu0 0.0
    %498 = vmatpush1.msra.mxu0 0.0
    %499 = vmatprep.subr.mxu0 0.0
    %500 = vmatpush1.msra.mxu0 0.0
    %501 = vmatprep.subr.mxu0 0.0
    %502 = vmatpush1.msra.mxu0 0.0
    %503 = vmatprep.subr.mxu0 0.0
    %504 = vmatpush1.msra.mxu0 0.0
    %505 = vmatprep.subr.mxu0 0.0
    %506 = vmatpush1.msra.mxu0 0.0
    %507 = vmatprep.subr.mxu0 0.0
    %508 = vmatpush1.msra.mxu0 0.0
    %509 = vmatprep.mubr.f32.mxu0 0.0
    %510 = vmatmul.mubr.f32.gmra.mrb[0].mxu0 %v443
    %v511 = vpop.f32.mrb[0].mxu0
    %v512 = vadd.f32 0.0, %v511
    %v513 = vpop.f32.mrb[0].mxu0
    %514 = vdwg.mxu0
    %v515 = vadd.f32 %v441, %v512
    %v516 = vxor.u32 %v515, 2147483648
    %v517 = vmul.f32 %v516, 1.442695
    %v518 = vpow.pop %v517
    %v519 = vadd.f32 %v518, 1.0
    %v520 = vrcp.pop %v519
    %v521 = vmul.f32 1.0, %v520
    %v522 = vtanh.pop %v515
    %523 = vrot.lane.b32.xlu0 %v407, 32
    %v524 = vpop.permute.xlu0 %523
    %v526 = vmul.f32 %v521, %v524
    %528 = vrot.lane.b32.xlu0 %v522, 64
    %v529 = vpop.permute.xlu0 %528
    %v531 = vmul.f32 %v521, %v529
    %533 = vrot.lane.b32.xlu0 %v531, 32
    %v534 = vpop.permute.xlu0 %533
    %v536 = vadd.f32 %v526, %v534
    %v537 = vtanh.pop %v536
    %539 = vrot.lane.b32.xlu0 %v537, 64
    %v540 = vpop.permute.xlu0 %539
    %v542 = vmul.f32 %v521, %v540
    %544 = vrot.lane.b32.xlu0 %v542, 32
    %v545 = vpop.permute.xlu0 %544
    %v546 = vsel %vm442, %v545, 0
    %548 = vmatprep.subr.mxu0 0.0
    %549 = vmatpush1.msra.mxu0 %v422
    %550 = vmatprep.subr.mxu0 0.0
    %551 = vmatpush1.msra.mxu0 %v423
    %552 = vmatprep.subr.mxu0 0.0
    %553 = vmatpush1.msra.mxu0 %v424
    %554 = vmatprep.subr.mxu0 0.0
    %555 = vmatpush1.msra.mxu0 %v425
    %556 = vmatprep.subr.mxu0 0.0
    %557 = vmatpush1.msra.mxu0 0.0
    %558 = vmatprep.subr.mxu0 0.0
    %559 = vmatpush1.msra.mxu0 0.0
    %560 = vmatprep.subr.mxu0 0.0
    %561 = vmatpush1.msra.mxu0 0.0
    %562 = vmatprep.subr.mxu0 0.0
    %563 = vmatpush1.msra.mxu0 0.0
    %564 = vmatprep.subr.mxu0 0.0
    %565 = vmatpush1.msra.mxu0 0.0
    %566 = vmatprep.subr.mxu0 0.0
    %567 = vmatpush1.msra.mxu0 0.0
    %568 = vmatprep.subr.mxu0 0.0
    %569 = vmatpush1.msra.mxu0 0.0
    %570 = vmatprep.subr.mxu0 0.0
    %571 = vmatpush1.msra.mxu0 0.0
    %572 = vmatprep.subr.mxu0 0.0
    %573 = vmatpush1.msra.mxu0 0.0
    %574 = vmatprep.subr.mxu0 0.0
    %575 = vmatpush1.msra.mxu0 0.0
    %576 = vmatprep.subr.mxu0 0.0
    %577 = vmatpush1.msra.mxu0 0.0
    %578 = vmatprep.subr.mxu0 0.0
    %579 = vmatpush1.msra.mxu0 0.0
    %580 = vmatprep.subr.mxu0 0.0
    %581 = vmatpush1.msra.mxu0 0.0
    %582 = vmatprep.subr.mxu0 0.0
    %583 = vmatpush1.msra.mxu0 0.0
    %584 = vmatprep.subr.mxu0 0.0
    %585 = vmatpush1.msra.mxu0 0.0
    %586 = vmatprep.subr.mxu0 0.0
    %587 = vmatpush1.msra.mxu0 0.0
    %588 = vmatprep.subr.mxu0 0.0
    %589 = vmatpush1.msra.mxu0 0.0
    %590 = vmatprep.subr.mxu0 0.0
    %591 = vmatpush1.msra.mxu0 0.0
    %592 = vmatprep.subr.mxu0 0.0
    %593 = vmatpush1.msra.mxu0 0.0
    %594 = vmatprep.subr.mxu0 0.0
    %595 = vmatpush1.msra.mxu0 0.0
    %596 = vmatprep.subr.mxu0 0.0
    %597 = vmatpush1.msra.mxu0 0.0
    %598 = vmatprep.subr.mxu0 0.0
    %599 = vmatpush1.msra.mxu0 0.0
    %600 = vmatprep.subr.mxu0 0.0
    %601 = vmatpush1.msra.mxu0 0.0
    %602 = vmatprep.subr.mxu0 0.0
    %603 = vmatpush1.msra.mxu0 0.0
    %604 = vmatprep.subr.mxu0 0.0
    %605 = vmatpush1.msra.mxu0 0.0
    %606 = vmatprep.subr.mxu0 0.0
    %607 = vmatpush1.msra.mxu0 0.0
    %608 = vmatprep.subr.mxu0 0.0
    %609 = vmatpush1.msra.mxu0 0.0
    %610 = vmatprep.subr.mxu0 0.0
    %611 = vmatpush1.msra.mxu0 0.0
    %612 = vmatprep.mubr.f32.mxu0 0.0
    %613 = vmatmul.mubr.f32.gmra.mrb[0].mxu0 %v546
    %v614 = vpop.f32.mrb[0].mxu0
    %v615 = vadd.f32 %v435, %v614
    %v616 = vpop.f32.mrb[0].mxu0
    %617 = vdwg.mxu0
    %v618 = vsel %vm442, %v412, 0
    %620 = vmatprep.subr.mxu0 0.0
    %621 = vmatpush1.msra.mxu0 %v426
    %622 = vmatprep.subr.mxu0 0.0
    %623 = vmatpush1.msra.mxu0 %v427
    %624 = vmatprep.subr.mxu0 0.0
    %625 = vmatpush1.msra.mxu0 %v428
    %626 = vmatprep.subr.mxu0 0.0
    %627 = vmatpush1.msra.mxu0 %v429
    %628 = vmatprep.subr.mxu0 0.0
    %629 = vmatpush1.msra.mxu0 0.0
    %630 = vmatprep.subr.mxu0 0.0
    %631 = vmatpush1.msra.mxu0 0.0
    %632 = vmatprep.subr.mxu0 0.0
    %633 = vmatpush1.msra.mxu0 0.0
    %634 = vmatprep.subr.mxu0 0.0
    %635 = vmatpush1.msra.mxu0 0.0
    %636 = vmatprep.subr.mxu0 0.0
    %637 = vmatpush1.msra.mxu0 0.0
    %638 = vmatprep.subr.mxu0 0.0
    %639 = vmatpush1.msra.mxu0 0.0
    %640 = vmatprep.subr.mxu0 0.0
    %641 = vmatpush1.msra.mxu0 0.0
    %642 = vmatprep.subr.mxu0 0.0
    %643 = vmatpush1.msra.mxu0 0.0
    %644 = vmatprep.subr.mxu0 0.0
    %645 = vmatpush1.msra.mxu0 0.0
    %646 = vmatprep.subr.mxu0 0.0
    %647 = vmatpush1.msra.mxu0 0.0
    %648 = vmatprep.subr.mxu0 0.0
    %649 = vmatpush1.msra.mxu0 0.0
    %650 = vmatprep.subr.mxu0 0.0
    %651 = vmatpush1.msra.mxu0 0.0
    %652 = vmatprep.subr.mxu0 0.0
    %653 = vmatpush1.msra.mxu0 0.0
    %654 = vmatprep.subr.mxu0 0.0
    %655 = vmatpush1.msra.mxu0 0.0
    %656 = vmatprep.subr.mxu0 0.0
    %657 = vmatpush1.msra.mxu0 0.0
    %658 = vmatprep.subr.mxu0 0.0
    %659 = vmatpush1.msra.mxu0 0.0
    %660 = vmatprep.subr.mxu0 0.0
    %661 = vmatpush1.msra.mxu0 0.0
    %662 = vmatprep.subr.mxu0 0.0
    %663 = vmatpush1.msra.mxu0 0.0
    %664 = vmatprep.subr.mxu0 0.0
    %665 = vmatpush1.msra.mxu0 0.0
    %666 = vmatprep.subr.mxu0 0.0
    %667 = vmatpush1.msra.mxu0 0.0
    %668 = vmatprep.subr.mxu0 0.0
    %669 = vmatpush1.msra.mxu0 0.0
    %670 = vmatprep.subr.mxu0 0.0
    %671 = vmatpush1.msra.mxu0 0.0
    %672 = vmatprep.subr.mxu0 0.0
    %673 = vmatpush1.msra.mxu0 0.0
    %674 = vmatprep.subr.mxu0 0.0
    %675 = vmatpush1.msra.mxu0 0.0
    %676 = vmatprep.subr.mxu0 0.0
    %677 = vmatpush1.msra.mxu0 0.0
    %678 = vmatprep.subr.mxu0 0.0
    %679 = vmatpush1.msra.mxu0 0.0
    %680 = vmatprep.subr.mxu0 0.0
    %681 = vmatpush1.msra.mxu0 0.0
    %682 = vmatprep.subr.mxu0 0.0
    %683 = vmatpush1.msra.mxu0 0.0
    %684 = vmatprep.mubr.f32.mxu0 0.0
    %685 = vmatmul.mubr.f32.gmra.mrb[0].mxu0 %v618
    %v686 = vpop.f32.mrb[0].mxu0
    %v687 = vadd.f32 0.0, %v686
    %v688 = vpop.f32.mrb[0].mxu0
    %689 = vdwg.mxu0
    %v690 = vadd.f32 %v615, %v687
    %v691 = vxor.u32 %v690, 2147483648
    %v692 = vmul.f32 %v691, 1.442695
    %v693 = vpow.pop %v692
    %v694 = vadd.f32 %v693, 1.0
    %v695 = vrcp.pop %v694
    %v696 = vmul.f32 1.0, %v695
    %v697 = vtanh.pop %v690
    %698 = vrot.lane.b32.xlu0 %v417, 32
    %v699 = vpop.permute.xlu0 %698
    %v701 = vmul.f32 %v696, %v699
    %703 = vrot.lane.b32.xlu0 %v697, 64
    %v704 = vpop.permute.xlu0 %703
    %v706 = vmul.f32 %v696, %v704
    %708 = vrot.lane.b32.xlu0 %v706, 32
    %v709 = vpop.permute.xlu0 %708
    %v711 = vadd.f32 %v701, %v709
    %v712 = vtanh.pop %v711
    %714 = vrot.lane.b32.xlu0 %v712, 64
    %v715 = vpop.permute.xlu0 %714
    %v717 = vmul.f32 %v696, %v715
    %v719 = vrot.slane %v385, 1
    %v721 = vrot.slane %v390, 4
    %v723 = vsel %vm440, %v719, %v721
    %724 = vmatprep.subr.mxu0 0.0
    %725 = vmatpush1.msra.mxu0 %v418
    %726 = vmatprep.subr.mxu0 0.0
    %727 = vmatpush1.msra.mxu0 %v419
    %728 = vmatprep.subr.mxu0 0.0
    %729 = vmatpush1.msra.mxu0 %v420
    %730 = vmatprep.subr.mxu0 0.0
    %731 = vmatpush1.msra.mxu0 %v421
    %732 = vmatprep.subr.mxu0 0.0
    %733 = vmatpush1.msra.mxu0 0.0
    %734 = vmatprep.subr.mxu0 0.0
    %735 = vmatpush1.msra.mxu0 0.0
    %736 = vmatprep.subr.mxu0 0.0
    %737 = vmatpush1.msra.mxu0 0.0
    %738 = vmatprep.subr.mxu0 0.0
    %739 = vmatpush1.msra.mxu0 0.0
    %740 = vmatprep.subr.mxu0 0.0
    %741 = vmatpush1.msra.mxu0 0.0
    %742 = vmatprep.subr.mxu0 0.0
    %743 = vmatpush1.msra.mxu0 0.0
    %744 = vmatprep.subr.mxu0 0.0
    %745 = vmatpush1.msra.mxu0 0.0
    %746 = vmatprep.subr.mxu0 0.0
    %747 = vmatpush1.msra.mxu0 0.0
    %748 = vmatprep.subr.mxu0 0.0
    %749 = vmatpush1.msra.mxu0 0.0
    %750 = vmatprep.subr.mxu0 0.0
    %751 = vmatpush1.msra.mxu0 0.0
    %752 = vmatprep.subr.mxu0 0.0
    %753 = vmatpush1.msra.mxu0 0.0
    %754 = vmatprep.subr.mxu0 0.0
    %755 = vmatpush1.msra.mxu0 0.0
    %756 = vmatprep.subr.mxu0 0.0
    %757 = vmatpush1.msra.mxu0 0.0
    %758 = vmatprep.subr.mxu0 0.0
    %759 = vmatpush1.msra.mxu0 0.0
    %760 = vmatprep.subr.mxu0 0.0
    %761 = vmatpush1.msra.mxu0 0.0
    %762 = vmatprep.subr.mxu0 0.0
    %763 = vmatpush1.msra.mxu0 0.0
    %764 = vmatprep.subr.mxu0 0.0
    %765 = vmatpush1.msra.mxu0 0.0
    %766 = vmatprep.subr.mxu0 0.0
    %767 = vmatpush1.msra.mxu0 0.0
    %768 = vmatprep.subr.mxu0 0.0
    %769 = vmatpush1.msra.mxu0 0.0
    %770 = vmatprep.subr.mxu0 0.0
    %771 = vmatpush1.msra.mxu0 0.0
    %772 = vmatprep.subr.mxu0 0.0
    %773 = vmatpush1.msra.mxu0 0.0
    %774 = vmatprep.subr.mxu0 0.0
    %775 = vmatpush1.msra.mxu0 0.0
    %776 = vmatprep.subr.mxu0 0.0
    %777 = vmatpush1.msra.mxu0 0.0
    %778 = vmatprep.subr.mxu0 0.0
    %779 = vmatpush1.msra.mxu0 0.0
    %780 = vmatprep.subr.mxu0 0.0
    %781 = vmatpush1.msra.mxu0 0.0
    %782 = vmatprep.subr.mxu0 0.0
    %783 = vmatpush1.msra.mxu0 0.0
    %784 = vmatprep.subr.mxu0 0.0
    %785 = vmatpush1.msra.mxu0 0.0
    %786 = vmatprep.subr.mxu0 0.0
    %787 = vmatpush1.msra.mxu0 0.0
    %788 = vmatprep.mubr.f32.mxu0 0.0
    %789 = vmatmul.mubr.f32.gmra.mrb[0].mxu0 %v546
    %v790 = vpop.f32.mrb[0].mxu0
    %v791 = vadd.f32 0.0, %v790
    %v792 = vpop.f32.mrb[0].mxu0
    %793 = vdwg.mxu0
    %v794 = vadd.f32 %v723, %v791
    %v795 = vxor.u32 %v794, 2147483648
    %v796 = vmul.f32 %v795, 1.442695
    %v797 = vpow.pop %v796
    %v798 = vadd.f32 %v797, 1.0
    %v799 = vrcp.pop %v798
    %v800 = vmul.f32 1.0, %v799
    %v801 = vtanh.pop %v794
    %v802 = vmul.f32 %v800, %v536
    %804 = vrot.lane.b32.xlu0 %v801, 64
    %v805 = vpop.permute.xlu0 %804
    %v807 = vmul.f32 %v800, %v805
    %809 = vrot.lane.b32.xlu0 %v807, 32
    %v810 = vpop.permute.xlu0 %809
    %v812 = vadd.f32 %v802, %v810
    %v813 = vtanh.pop %v812
    %815 = vrot.lane.b32.xlu0 %v813, 64
    %v816 = vpop.permute.xlu0 %815
    %v818 = vmul.f32 %v800, %v816
    %820 = vrot.lane.b32.xlu0 %v818, 32
    %v821 = vpop.permute.xlu0 %820
    %v822 = vsel %vm442, %v821, 0
    %824 = vmatprep.subr.mxu0 0.0
    %825 = vmatpush1.msra.mxu0 %v422
    %826 = vmatprep.subr.mxu0 0.0
    %827 = vmatpush1.msra.mxu0 %v423
    %828 = vmatprep.subr.mxu0 0.0
    %829 = vmatpush1.msra.mxu0 %v424
    %830 = vmatprep.subr.mxu0 0.0
    %831 = vmatpush1.msra.mxu0 %v425
    %832 = vmatprep.subr.mxu0 0.0
    %833 = vmatpush1.msra.mxu0 0.0
    %834 = vmatprep.subr.mxu0 0.0
    %835 = vmatpush1.msra.mxu0 0.0
    %836 = vmatprep.subr.mxu0 0.0
    %837 = vmatpush1.msra.mxu0 0.0
    %838 = vmatprep.subr.mxu0 0.0
    %839 = vmatpush1.msra.mxu0 0.0
    %840 = vmatprep.subr.mxu0 0.0
    %841 = vmatpush1.msra.mxu0 0.0
    %842 = vmatprep.subr.mxu0 0.0
    %843 = vmatpush1.msra.mxu0 0.0
    %844 = vmatprep.subr.mxu0 0.0
    %845 = vmatpush1.msra.mxu0 0.0
    %846 = vmatprep.subr.mxu0 0.0
    %847 = vmatpush1.msra.mxu0 0.0
    %848 = vmatprep.subr.mxu0 0.0
    %849 = vmatpush1.msra.mxu0 0.0
    %850 = vmatprep.subr.mxu0 0.0
    %851 = vmatpush1.msra.mxu0 0.0
    %852 = vmatprep.subr.mxu0 0.0
    %853 = vmatpush1.msra.mxu0 0.0
    %854 = vmatprep.subr.mxu0 0.0
    %855 = vmatpush1.msra.mxu0 0.0
    %856 = vmatprep.subr.mxu0 0.0
    %857 = vmatpush1.msra.mxu0 0.0
    %858 = vmatprep.subr.mxu0 0.0
    %859 = vmatpush1.msra.mxu0 0.0
    %860 = vmatprep.subr.mxu0 0.0
    %861 = vmatpush1.msra.mxu0 0.0
    %862 = vmatprep.subr.mxu0 0.0
    %863 = vmatpush1.msra.mxu0 0.0
    %864 = vmatprep.subr.mxu0 0.0
    %865 = vmatpush1.msra.mxu0 0.0
    %866 = vmatprep.subr.mxu0 0.0
    %867 = vmatpush1.msra.mxu0 0.0
    %868 = vmatprep.subr.mxu0 0.0
    %869 = vmatpush1.msra.mxu0 0.0
    %870 = vmatprep.subr.mxu0 0.0
    %871 = vmatpush1.msra.mxu0 0.0
    %872 = vmatprep.subr.mxu0 0.0
    %873 = vmatpush1.msra.mxu0 0.0
    %874 = vmatprep.subr.mxu0 0.0
    %875 = vmatpush1.msra.mxu0 0.0
    %876 = vmatprep.subr.mxu0 0.0
    %877 = vmatpush1.msra.mxu0 0.0
    %878 = vmatprep.subr.mxu0 0.0
    %879 = vmatpush1.msra.mxu0 0.0
    %880 = vmatprep.subr.mxu0 0.0
    %881 = vmatpush1.msra.mxu0 0.0
    %882 = vmatprep.subr.mxu0 0.0
    %883 = vmatpush1.msra.mxu0 0.0
    %884 = vmatprep.subr.mxu0 0.0
    %885 = vmatpush1.msra.mxu0 0.0
    %886 = vmatprep.subr.mxu0 0.0
    %887 = vmatpush1.msra.mxu0 0.0
    %888 = vmatprep.mubr.f32.mxu0 0.0
    %889 = vmatmul.mubr.f32.gmra.mrb[0].mxu0 %v822
    %v890 = vpop.f32.mrb[0].mxu0
    %v891 = vadd.f32 %v435, %v890
    %v892 = vpop.f32.mrb[0].mxu0
    %893 = vdwg.mxu0
    %895 = vrot.lane.b32.xlu0 %v717, 32
    %v896 = vpop.permute.xlu0 %895
    %v897 = vsel %vm442, %v896, 0
    %899 = vmatprep.subr.mxu0 0.0
    %900 = vmatpush1.msra.mxu0 %v426
    %901 = vmatprep.subr.mxu0 0.0
    %902 = vmatpush1.msra.mxu0 %v427
    %903 = vmatprep.subr.mxu0 0.0
    %904 = vmatpush1.msra.mxu0 %v428
    %905 = vmatprep.subr.mxu0 0.0
    %906 = vmatpush1.msra.mxu0 %v429
    %907 = vmatprep.subr.mxu0 0.0
    %908 = vmatpush1.msra.mxu0 0.0
    %909 = vmatprep.subr.mxu0 0.0
    %910 = vmatpush1.msra.mxu0 0.0
    %911 = vmatprep.subr.mxu0 0.0
    %912 = vmatpush1.msra.mxu0 0.0
    %913 = vmatprep.subr.mxu0 0.0
    %914 = vmatpush1.msra.mxu0 0.0
    %915 = vmatprep.subr.mxu0 0.0
    %916 = vmatpush1.msra.mxu0 0.0
    %917 = vmatprep.subr.mxu0 0.0
    %918 = vmatpush1.msra.mxu0 0.0
    %919 = vmatprep.subr.mxu0 0.0
    %920 = vmatpush1.msra.mxu0 0.0
    %921 = vmatprep.subr.mxu0 0.0
    %922 = vmatpush1.msra.mxu0 0.0
    %923 = vmatprep.subr.mxu0 0.0
    %924 = vmatpush1.msra.mxu0 0.0
    %925 = vmatprep.subr.mxu0 0.0
    %926 = vmatpush1.msra.mxu0 0.0
    %927 = vmatprep.subr.mxu0 0.0
    %928 = vmatpush1.msra.mxu0 0.0
    %929 = vmatprep.subr.mxu0 0.0
    %930 = vmatpush1.msra.mxu0 0.0
    %931 = vmatprep.subr.mxu0 0.0
    %932 = vmatpush1.msra.mxu0 0.0
    %933 = vmatprep.subr.mxu0 0.0
    %934 = vmatpush1.msra.mxu0 0.0
    %935 = vmatprep.subr.mxu0 0.0
    %936 = vmatpush1.msra.mxu0 0.0
    %937 = vmatprep.subr.mxu0 0.0
    %938 = vmatpush1.msra.mxu0 0.0
    %939 = vmatprep.subr.mxu0 0.0
    %940 = vmatpush1.msra.mxu0 0.0
    %941 = vmatprep.subr.mxu0 0.0
    %942 = vmatpush1.msra.mxu0 0.0
    %943 = vmatprep.subr.mxu0 0.0
    %944 = vmatpush1.msra.mxu0 0.0
    %945 = vmatprep.subr.mxu0 0.0
    %946 = vmatpush1.msra.mxu0 0.0
    %947 = vmatprep.subr.mxu0 0.0
    %948 = vmatpush1.msra.mxu0 0.0
    %949 = vmatprep.subr.mxu0 0.0
    %950 = vmatpush1.msra.mxu0 0.0
    %951 = vmatprep.subr.mxu0 0.0
    %952 = vmatpush1.msra.mxu0 0.0
    %953 = vmatprep.subr.mxu0 0.0
    %954 = vmatpush1.msra.mxu0 0.0
    %955 = vmatprep.subr.mxu0 0.0
    %956 = vmatpush1.msra.mxu0 0.0
    %957 = vmatprep.subr.mxu0 0.0
    %958 = vmatpush1.msra.mxu0 0.0
    %959 = vmatprep.subr.mxu0 0.0
    %960 = vmatpush1.msra.mxu0 0.0
    %961 = vmatprep.subr.mxu0 0.0
    %962 = vmatpush1.msra.mxu0 0.0
    %963 = vmatprep.mubr.f32.mxu0 0.0
    %964 = vmatmul.mubr.f32.gmra.mrb[0].mxu0 %v897
    %v965 = vpop.f32.mrb[0].mxu0
    %v966 = vadd.f32 0.0, %v965
    %v967 = vpop.f32.mrb[0].mxu0
    %968 = vdwg.mxu0
    %v969 = vadd.f32 %v891, %v966
    %v970 = vxor.u32 %v969, 2147483648
    %v971 = vmul.f32 %v970, 1.442695
    %v972 = vpow.pop %v971
    %v973 = vadd.f32 %v972, 1.0
    %v974 = vrcp.pop %v973
    %v975 = vmul.f32 1.0, %v974
    %v976 = vtanh.pop %v969
    %v977 = vmul.f32 %v975, %v711
    %979 = vrot.lane.b32.xlu0 %v976, 64
    %v980 = vpop.permute.xlu0 %979
    %v982 = vmul.f32 %v975, %v980
    %984 = vrot.lane.b32.xlu0 %v982, 32
    %v985 = vpop.permute.xlu0 %984
    %v987 = vadd.f32 %v977, %v985
    %v988 = vtanh.pop %v987
    %990 = vrot.lane.b32.xlu0 %v988, 64
    %v991 = vpop.permute.xlu0 %990
    %v993 = vmul.f32 %v975, %v991
    %v994 = vrot.slane %v385, 2
    %v996 = vrot.slane %v390, 5
    %v998 = vsel %vm440, %v994, %v996
    %999 = vmatprep.subr.mxu0 0.0
    %1000 = vmatpush1.msra.mxu0 %v418
    %1001 = vmatprep.subr.mxu0 0.0
    %1002 = vmatpush1.msra.mxu0 %v419
    %1003 = vmatprep.subr.mxu0 0.0
    %1004 = vmatpush1.msra.mxu0 %v420
    %1005 = vmatprep.subr.mxu0 0.0
    %1006 = vmatpush1.msra.mxu0 %v421
    %1007 = vmatprep.subr.mxu0 0.0
    %1008 = vmatpush1.msra.mxu0 0.0
    %1009 = vmatprep.subr.mxu0 0.0
    %1010 = vmatpush1.msra.mxu0 0.0
    %1011 = vmatprep.subr.mxu0 0.0
    %1012 = vmatpush1.msra.mxu0 0.0
    %1013 = vmatprep.subr.mxu0 0.0
    %1014 = vmatpush1.msra.mxu0 0.0
    %1015 = vmatprep.subr.mxu0 0.0
    %1016 = vmatpush1.msra.mxu0 0.0
    %1017 = vmatprep.subr.mxu0 0.0
    %1018 = vmatpush1.msra.mxu0 0.0
    %1019 = vmatprep.subr.mxu0 0.0
    %1020 = vmatpush1.msra.mxu0 0.0
    %1021 = vmatprep.subr.mxu0 0.0
    %1022 = vmatpush1.msra.mxu0 0.0
    %1023 = vmatprep.subr.mxu0 0.0
    %1024 = vmatpush1.msra.mxu0 0.0
    %1025 = vmatprep.subr.mxu0 0.0
    %1026 = vmatpush1.msra.mxu0 0.0
    %1027 = vmatprep.subr.mxu0 0.0
    %1028 = vmatpush1.msra.mxu0 0.0
    %1029 = vmatprep.subr.mxu0 0.0
    %1030 = vmatpush1.msra.mxu0 0.0
    %1031 = vmatprep.subr.mxu0 0.0
    %1032 = vmatpush1.msra.mxu0 0.0
    %1033 = vmatprep.subr.mxu0 0.0
    %1034 = vmatpush1.msra.mxu0 0.0
    %1035 = vmatprep.subr.mxu0 0.0
    %1036 = vmatpush1.msra.mxu0 0.0
    %1037 = vmatprep.subr.mxu0 0.0
    %1038 = vmatpush1.msra.mxu0 0.0
    %1039 = vmatprep.subr.mxu0 0.0
    %1040 = vmatpush1.msra.mxu0 0.0
    %1041 = vmatprep.subr.mxu0 0.0
    %1042 = vmatpush1.msra.mxu0 0.0
    %1043 = vmatprep.subr.mxu0 0.0
    %1044 = vmatpush1.msra.mxu0 0.0
    %1045 = vmatprep.subr.mxu0 0.0
    %1046 = vmatpush1.msra.mxu0 0.0
    %1047 = vmatprep.subr.mxu0 0.0
    %1048 = vmatpush1.msra.mxu0 0.0
    %1049 = vmatprep.subr.mxu0 0.0
    %1050 = vmatpush1.msra.mxu0 0.0
    %1051 = vmatprep.subr.mxu0 0.0
    %1052 = vmatpush1.msra.mxu0 0.0
    %1053 = vmatprep.subr.mxu0 0.0
    %1054 = vmatpush1.msra.mxu0 0.0
    %1055 = vmatprep.subr.mxu0 0.0
    %1056 = vmatpush1.msra.mxu0 0.0
    %1057 = vmatprep.subr.mxu0 0.0
    %1058 = vmatpush1.msra.mxu0 0.0
    %1059 = vmatprep.subr.mxu0 0.0
    %1060 = vmatpush1.msra.mxu0 0.0
    %1061 = vmatprep.subr.mxu0 0.0
    %1062 = vmatpush1.msra.mxu0 0.0
    %1063 = vmatprep.mubr.f32.mxu0 0.0
    %1064 = vmatmul.mubr.f32.gmra.mrb[0].mxu0 %v822
    %v1065 = vpop.f32.mrb[0].mxu0
    %v1066 = vadd.f32 0.0, %v1065
    %v1067 = vpop.f32.mrb[0].mxu0
    %1068 = vdwg.mxu0
    %v1069 = vadd.f32 %v998, %v1066
    %v1070 = vxor.u32 %v1069, 2147483648
    %v1071 = vmul.f32 %v1070, 1.442695
    %v1072 = vpow.pop %v1071
    %v1073 = vadd.f32 %v1072, 1.0
    %v1074 = vrcp.pop %v1073
    %v1075 = vmul.f32 1.0, %v1074
    %v1076 = vtanh.pop %v1069
    %v1077 = vmul.f32 %v1075, %v812
    %1079 = vrot.lane.b32.xlu0 %v1076, 64
    %v1080 = vpop.permute.xlu0 %1079
    %v1082 = vmul.f32 %v1075, %v1080
    %1084 = vrot.lane.b32.xlu0 %v1082, 32
    %v1085 = vpop.permute.xlu0 %1084
    %v1087 = vadd.f32 %v1077, %v1085
    %v1088 = vtanh.pop %v1087
    %1090 = vrot.lane.b32.xlu0 %v1088, 64
    %v1091 = vpop.permute.xlu0 %1090
    %v1093 = vmul.f32 %v1075, %v1091
    %1095 = vrot.lane.b32.xlu0 %v1093, 32
    %v1096 = vpop.permute.xlu0 %1095
    %v1097 = vsel %vm442, %v1096, 0
    %1099 = vmatprep.subr.mxu0 0.0
    %1100 = vmatpush1.msra.mxu0 %v422
    %1101 = vmatprep.subr.mxu0 0.0
    %1102 = vmatpush1.msra.mxu0 %v423
    %1103 = vmatprep.subr.mxu0 0.0
    %1104 = vmatpush1.msra.mxu0 %v424
    %1105 = vmatprep.subr.mxu0 0.0
    %1106 = vmatpush1.msra.mxu0 %v425
    %1107 = vmatprep.subr.mxu0 0.0
    %1108 = vmatpush1.msra.mxu0 0.0
    %1109 = vmatprep.subr.mxu0 0.0
    %1110 = vmatpush1.msra.mxu0 0.0
    %1111 = vmatprep.subr.mxu0 0.0
    %1112 = vmatpush1.msra.mxu0 0.0
    %1113 = vmatprep.subr.mxu0 0.0
    %1114 = vmatpush1.msra.mxu0 0.0
    %1115 = vmatprep.subr.mxu0 0.0
    %1116 = vmatpush1.msra.mxu0 0.0
    %1117 = vmatprep.subr.mxu0 0.0
    %1118 = vmatpush1.msra.mxu0 0.0
    %1119 = vmatprep.subr.mxu0 0.0
    %1120 = vmatpush1.msra.mxu0 0.0
    %1121 = vmatprep.subr.mxu0 0.0
    %1122 = vmatpush1.msra.mxu0 0.0
    %1123 = vmatprep.subr.mxu0 0.0
    %1124 = vmatpush1.msra.mxu0 0.0
    %1125 = vmatprep.subr.mxu0 0.0
    %1126 = vmatpush1.msra.mxu0 0.0
    %1127 = vmatprep.subr.mxu0 0.0
    %1128 = vmatpush1.msra.mxu0 0.0
    %1129 = vmatprep.subr.mxu0 0.0
    %1130 = vmatpush1.msra.mxu0 0.0
    %1131 = vmatprep.subr.mxu0 0.0
    %1132 = vmatpush1.msra.mxu0 0.0
    %1133 = vmatprep.subr.mxu0 0.0
    %1134 = vmatpush1.msra.mxu0 0.0
    %1135 = vmatprep.subr.mxu0 0.0
    %1136 = vmatpush1.msra.mxu0 0.0
    %1137 = vmatprep.subr.mxu0 0.0
    %1138 = vmatpush1.msra.mxu0 0.0
    %1139 = vmatprep.subr.mxu0 0.0
    %1140 = vmatpush1.msra.mxu0 0.0
    %1141 = vmatprep.subr.mxu0 0.0
    %1142 = vmatpush1.msra.mxu0 0.0
    %1143 = vmatprep.subr.mxu0 0.0
    %1144 = vmatpush1.msra.mxu0 0.0
    %1145 = vmatprep.subr.mxu0 0.0
    %1146 = vmatpush1.msra.mxu0 0.0
    %1147 = vmatprep.subr.mxu0 0.0
    %1148 = vmatpush1.msra.mxu0 0.0
    %1149 = vmatprep.subr.mxu0 0.0
    %1150 = vmatpush1.msra.mxu0 0.0
    %1151 = vmatprep.subr.mxu0 0.0
    %1152 = vmatpush1.msra.mxu0 0.0
    %1153 = vmatprep.subr.mxu0 0.0
    %1154 = vmatpush1.msra.mxu0 0.0
    %1155 = vmatprep.subr.mxu0 0.0
    %1156 = vmatpush1.msra.mxu0 0.0
    %1157 = vmatprep.subr.mxu0 0.0
    %1158 = vmatpush1.msra.mxu0 0.0
    %1159 = vmatprep.subr.mxu0 0.0
    %1160 = vmatpush1.msra.mxu0 0.0
    %1161 = vmatprep.subr.mxu0 0.0
    %1162 = vmatpush1.msra.mxu0 0.0
    %1163 = vmatprep.mubr.f32.mxu0 0.0
    %1164 = vmatmul.mubr.f32.gmra.mrb[0].mxu0 %v1097
    %v1165 = vpop.f32.mrb[0].mxu0
    %v1166 = vadd.f32 %v435, %v1165
    %v1167 = vpop.f32.mrb[0].mxu0
    %1168 = vdwg.mxu0
    %1170 = vrot.lane.b32.xlu0 %v993, 32
    %v1171 = vpop.permute.xlu0 %1170
    %v1172 = vsel %vm442, %v1171, 0
    %1174 = vmatprep.subr.mxu0 0.0
    %1175 = vmatpush1.msra.mxu0 %v426
    %1176 = vmatprep.subr.mxu0 0.0
    %1177 = vmatpush1.msra.mxu0 %v427
    %1178 = vmatprep.subr.mxu0 0.0
    %1179 = vmatpush1.msra.mxu0 %v428
    %1180 = vmatprep.subr.mxu0 0.0
    %1181 = vmatpush1.msra.mxu0 %v429
    %1182 = vmatprep.subr.mxu0 0.0
    %1183 = vmatpush1.msra.mxu0 0.0
    %1184 = vmatprep.subr.mxu0 0.0
    %1185 = vmatpush1.msra.mxu0 0.0
    %1186 = vmatprep.subr.mxu0 0.0
    %1187 = vmatpush1.msra.mxu0 0.0
    %1188 = vmatprep.subr.mxu0 0.0
    %1189 = vmatpush1.msra.mxu0 0.0
    %1190 = vmatprep.subr.mxu0 0.0
    %1191 = vmatpush1.msra.mxu0 0.0
    %1192 = vmatprep.subr.mxu0 0.0
    %1193 = vmatpush1.msra.mxu0 0.0
    %1194 = vmatprep.subr.mxu0 0.0
    %1195 = vmatpush1.msra.mxu0 0.0
    %1196 = vmatprep.subr.mxu0 0.0
    %1197 = vmatpush1.msra.mxu0 0.0
    %1198 = vmatprep.subr.mxu0 0.0
    %1199 = vmatpush1.msra.mxu0 0.0
    %1200 = vmatprep.subr.mxu0 0.0
    %1201 = vmatpush1.msra.mxu0 0.0
    %1202 = vmatprep.subr.mxu0 0.0
    %1203 = vmatpush1.msra.mxu0 0.0
    %1204 = vmatprep.subr.mxu0 0.0
    %1205 = vmatpush1.msra.mxu0 0.0
    %1206 = vmatprep.subr.mxu0 0.0
    %1207 = vmatpush1.msra.mxu0 0.0
    %1208 = vmatprep.subr.mxu0 0.0
    %1209 = vmatpush1.msra.mxu0 0.0
    %1210 = vmatprep.subr.mxu0 0.0
    %1211 = vmatpush1.msra.mxu0 0.0
    %1212 = vmatprep.subr.mxu0 0.0
    %1213 = vmatpush1.msra.mxu0 0.0
    %1214 = vmatprep.subr.mxu0 0.0
    %1215 = vmatpush1.msra.mxu0 0.0
    %1216 = vmatprep.subr.mxu0 0.0
    %1217 = vmatpush1.msra.mxu0 0.0
    %1218 = vmatprep.subr.mxu0 0.0
    %1219 = vmatpush1.msra.mxu0 0.0
    %1220 = vmatprep.subr.mxu0 0.0
    %1221 = vmatpush1.msra.mxu0 0.0
    %1222 = vmatprep.subr.mxu0 0.0
    %1223 = vmatpush1.msra.mxu0 0.0
    %1224 = vmatprep.subr.mxu0 0.0
    %1225 = vmatpush1.msra.mxu0 0.0
    %1226 = vmatprep.subr.mxu0 0.0
    %1227 = vmatpush1.msra.mxu0 0.0
    %1228 = vmatprep.subr.mxu0 0.0
    %1229 = vmatpush1.msra.mxu0 0.0
    %1230 = vmatprep.subr.mxu0 0.0
    %1231 = vmatpush1.msra.mxu0 0.0
    %1232 = vmatprep.subr.mxu0 0.0
    %1233 = vmatpush1.msra.mxu0 0.0
    %1234 = vmatprep.subr.mxu0 0.0
    %1235 = vmatpush1.msra.mxu0 0.0
    %1236 = vmatprep.subr.mxu0 0.0
    %1237 = vmatpush1.msra.mxu0 0.0
    %1238 = vmatprep.mubr.f32.mxu0 0.0
    %1239 = vmatmul.mubr.f32.gmra.mrb[0].mxu0 %v1172
    %v1240 = vpop.f32.mrb[0].mxu0
    %v1241 = vadd.f32 0.0, %v1240
    %v1242 = vpop.f32.mrb[0].mxu0
    %1243 = vdwg.mxu0
    %v1244 = vadd.f32 %v1166, %v1241
    %v1245 = vxor.u32 %v1244, 2147483648
    %v1246 = vmul.f32 %v1245, 1.442695
    %v1247 = vpow.pop %v1246
    %v1248 = vadd.f32 %v1247, 1.0
    %v1249 = vrcp.pop %v1248
    %v1250 = vmul.f32 1.0, %v1249
    %v1251 = vtanh.pop %v1244
    %v1252 = vmul.f32 %v1250, %v987
    %1254 = vrot.lane.b32.xlu0 %v1251, 64
    %v1255 = vpop.permute.xlu0 %1254
    %v1257 = vmul.f32 %v1250, %v1255
    %1259 = vrot.lane.b32.xlu0 %v1257, 32
    %v1260 = vpop.permute.xlu0 %1259
    %v1262 = vadd.f32 %v1252, %v1260
    %v1263 = vtanh.pop %v1262
    %1265 = vrot.lane.b32.xlu0 %v1263, 64
    %v1266 = vpop.permute.xlu0 %1265
    %v1268 = vmul.f32 %v1250, %v1266
    %v1269 = vrot.slane %v385, 3
    %v1271 = vrot.slane %v390, 6
    %v1273 = vsel %vm440, %v1269, %v1271
    %1274 = vmatprep.subr.mxu0 0.0
    %1275 = vmatpush1.msra.mxu0 %v418
    %1276 = vmatprep.subr.mxu0 0.0
    %1277 = vmatpush1.msra.mxu0 %v419
    %1278 = vmatprep.subr.mxu0 0.0
    %1279 = vmatpush1.msra.mxu0 %v420
    %1280 = vmatprep.subr.mxu0 0.0
    %1281 = vmatpush1.msra.mxu0 %v421
    %1282 = vmatprep.subr.mxu0 0.0
    %1283 = vmatpush1.msra.mxu0 0.0
    %1284 = vmatprep.subr.mxu0 0.0
    %1285 = vmatpush1.msra.mxu0 0.0
    %1286 = vmatprep.subr.mxu0 0.0
    %1287 = vmatpush1.msra.mxu0 0.0
    %1288 = vmatprep.subr.mxu0 0.0
    %1289 = vmatpush1.msra.mxu0 0.0
    %1290 = vmatprep.subr.mxu0 0.0
    %1291 = vmatpush1.msra.mxu0 0.0
    %1292 = vmatprep.subr.mxu0 0.0
    %1293 = vmatpush1.msra.mxu0 0.0
    %1294 = vmatprep.subr.mxu0 0.0
    %1295 = vmatpush1.msra.mxu0 0.0
    %1296 = vmatprep.subr.mxu0 0.0
    %1297 = vmatpush1.msra.mxu0 0.0
    %1298 = vmatprep.subr.mxu0 0.0
    %1299 = vmatpush1.msra.mxu0 0.0
    %1300 = vmatprep.subr.mxu0 0.0
    %1301 = vmatpush1.msra.mxu0 0.0
    %1302 = vmatprep.subr.mxu0 0.0
    %1303 = vmatpush1.msra.mxu0 0.0
    %1304 = vmatprep.subr.mxu0 0.0
    %1305 = vmatpush1.msra.mxu0 0.0
    %1306 = vmatprep.subr.mxu0 0.0
    %1307 = vmatpush1.msra.mxu0 0.0
    %1308 = vmatprep.subr.mxu0 0.0
    %1309 = vmatpush1.msra.mxu0 0.0
    %1310 = vmatprep.subr.mxu0 0.0
    %1311 = vmatpush1.msra.mxu0 0.0
    %1312 = vmatprep.subr.mxu0 0.0
    %1313 = vmatpush1.msra.mxu0 0.0
    %1314 = vmatprep.subr.mxu0 0.0
    %1315 = vmatpush1.msra.mxu0 0.0
    %1316 = vmatprep.subr.mxu0 0.0
    %1317 = vmatpush1.msra.mxu0 0.0
    %1318 = vmatprep.subr.mxu0 0.0
    %1319 = vmatpush1.msra.mxu0 0.0
    %1320 = vmatprep.subr.mxu0 0.0
    %1321 = vmatpush1.msra.mxu0 0.0
    %1322 = vmatprep.subr.mxu0 0.0
    %1323 = vmatpush1.msra.mxu0 0.0
    %1324 = vmatprep.subr.mxu0 0.0
    %1325 = vmatpush1.msra.mxu0 0.0
    %1326 = vmatprep.subr.mxu0 0.0
    %1327 = vmatpush1.msra.mxu0 0.0
    %1328 = vmatprep.subr.mxu0 0.0
    %1329 = vmatpush1.msra.mxu0 0.0
    %1330 = vmatprep.subr.mxu0 0.0
    %1331 = vmatpush1.msra.mxu0 0.0
    %1332 = vmatprep.subr.mxu0 0.0
    %1333 = vmatpush1.msra.mxu0 0.0
    %1334 = vmatprep.subr.mxu0 0.0
    %1335 = vmatpush1.msra.mxu0 0.0
    %1336 = vmatprep.subr.mxu0 0.0
    %1337 = vmatpush1.msra.mxu0 0.0
    %1338 = vmatprep.mubr.f32.mxu0 0.0
    %1339 = vmatmul.mubr.f32.gmra.mrb[0].mxu0 %v1097
    %v1340 = vpop.f32.mrb[0].mxu0
    %v1341 = vadd.f32 0.0, %v1340
    %v1342 = vpop.f32.mrb[0].mxu0
    %1343 = vdwg.mxu0
    %v1344 = vadd.f32 %v1273, %v1341
    %v1345 = vxor.u32 %v1344, 2147483648
    %v1346 = vmul.f32 %v1345, 1.442695
    %v1347 = vpow.pop %v1346
    %v1348 = vadd.f32 %v1347, 1.0
    %v1349 = vrcp.pop %v1348
    %v1350 = vmul.f32 1.0, %v1349
    %v1351 = vtanh.pop %v1344
    %v1352 = vmul.f32 %v1350, %v1087
    %1354 = vrot.lane.b32.xlu0 %v1351, 64
    %v1355 = vpop.permute.xlu0 %1354
    %v1357 = vmul.f32 %v1350, %v1355
    %1359 = vrot.lane.b32.xlu0 %v1357, 32
    %v1360 = vpop.permute.xlu0 %1359
    %v1362 = vadd.f32 %v1352, %v1360
    %v1363 = vtanh.pop %v1362
    %1365 = vrot.lane.b32.xlu0 %v1363, 64
    %v1366 = vpop.permute.xlu0 %1365
    %v1368 = vmul.f32 %v1350, %v1366
    %1370 = vrot.lane.b32.xlu0 %v1368, 32
    %v1371 = vpop.permute.xlu0 %1370
    %v1372 = vsel %vm442, %v1371, 0
    %1374 = vmatprep.subr.mxu0 0.0
    %1375 = vmatpush1.msra.mxu0 %v422
    %1376 = vmatprep.subr.mxu0 0.0
    %1377 = vmatpush1.msra.mxu0 %v423
    %1378 = vmatprep.subr.mxu0 0.0
    %1379 = vmatpush1.msra.mxu0 %v424
    %1380 = vmatprep.subr.mxu0 0.0
    %1381 = vmatpush1.msra.mxu0 %v425
    %1382 = vmatprep.subr.mxu0 0.0
    %1383 = vmatpush1.msra.mxu0 0.0
    %1384 = vmatprep.subr.mxu0 0.0
    %1385 = vmatpush1.msra.mxu0 0.0
    %1386 = vmatprep.subr.mxu0 0.0
    %1387 = vmatpush1.msra.mxu0 0.0
    %1388 = vmatprep.subr.mxu0 0.0
    %1389 = vmatpush1.msra.mxu0 0.0
    %1390 = vmatprep.subr.mxu0 0.0
    %1391 = vmatpush1.msra.mxu0 0.0
    %1392 = vmatprep.subr.mxu0 0.0
    %1393 = vmatpush1.msra.mxu0 0.0
    %1394 = vmatprep.subr.mxu0 0.0
    %1395 = vmatpush1.msra.mxu0 0.0
    %1396 = vmatprep.subr.mxu0 0.0
    %1397 = vmatpush1.msra.mxu0 0.0
    %1398 = vmatprep.subr.mxu0 0.0
    %1399 = vmatpush1.msra.mxu0 0.0
    %1400 = vmatprep.subr.mxu0 0.0
    %1401 = vmatpush1.msra.mxu0 0.0
    %1402 = vmatprep.subr.mxu0 0.0
    %1403 = vmatpush1.msra.mxu0 0.0
    %1404 = vmatprep.subr.mxu0 0.0
    %1405 = vmatpush1.msra.mxu0 0.0
    %1406 = vmatprep.subr.mxu0 0.0
    %1407 = vmatpush1.msra.mxu0 0.0
    %1408 = vmatprep.subr.mxu0 0.0
    %1409 = vmatpush1.msra.mxu0 0.0
    %1410 = vmatprep.subr.mxu0 0.0
    %1411 = vmatpush1.msra.mxu0 0.0
    %1412 = vmatprep.subr.mxu0 0.0
    %1413 = vmatpush1.msra.mxu0 0.0
    %1414 = vmatprep.subr.mxu0 0.0
    %1415 = vmatpush1.msra.mxu0 0.0
    %1416 = vmatprep.subr.mxu0 0.0
    %1417 = vmatpush1.msra.mxu0 0.0
    %1418 = vmatprep.subr.mxu0 0.0
    %1419 = vmatpush1.msra.mxu0 0.0
    %1420 = vmatprep.subr.mxu0 0.0
    %1421 = vmatpush1.msra.mxu0 0.0
    %1422 = vmatprep.subr.mxu0 0.0
    %1423 = vmatpush1.msra.mxu0 0.0
    %1424 = vmatprep.subr.mxu0 0.0
    %1425 = vmatpush1.msra.mxu0 0.0
    %1426 = vmatprep.subr.mxu0 0.0
    %1427 = vmatpush1.msra.mxu0 0.0
    %1428 = vmatprep.subr.mxu0 0.0
    %1429 = vmatpush1.msra.mxu0 0.0
    %1430 = vmatprep.subr.mxu0 0.0
    %1431 = vmatpush1.msra.mxu0 0.0
    %1432 = vmatprep.subr.mxu0 0.0
    %1433 = vmatpush1.msra.mxu0 0.0
    %1434 = vmatprep.subr.mxu0 0.0
    %1435 = vmatpush1.msra.mxu0 0.0
    %1436 = vmatprep.subr.mxu0 0.0
    %1437 = vmatpush1.msra.mxu0 0.0
    %1438 = vmatprep.mubr.f32.mxu0 0.0
    %1439 = vmatmul.mubr.f32.gmra.mrb[0].mxu0 %v1372
    %v1440 = vpop.f32.mrb[0].mxu0
    %v1441 = vadd.f32 %v435, %v1440
    %v1442 = vpop.f32.mrb[0].mxu0
    %1443 = vdwg.mxu0
    %1445 = vrot.lane.b32.xlu0 %v1268, 32
    %v1446 = vpop.permute.xlu0 %1445
    %v1447 = vsel %vm442, %v1446, 0
    %1449 = vmatprep.subr.mxu0 0.0
    %1450 = vmatpush1.msra.mxu0 %v426
    %1451 = vmatprep.subr.mxu0 0.0
    %1452 = vmatpush1.msra.mxu0 %v427
    %1453 = vmatprep.subr.mxu0 0.0
    %1454 = vmatpush1.msra.mxu0 %v428
    %1455 = vmatprep.subr.mxu0 0.0
    %1456 = vmatpush1.msra.mxu0 %v429
    %1457 = vmatprep.subr.mxu0 0.0
    %1458 = vmatpush1.msra.mxu0 0.0
    %1459 = vmatprep.subr.mxu0 0.0
    %1460 = vmatpush1.msra.mxu0 0.0
    %1461 = vmatprep.subr.mxu0 0.0
    %1462 = vmatpush1.msra.mxu0 0.0
    %1463 = vmatprep.subr.mxu0 0.0
    %1464 = vmatpush1.msra.mxu0 0.0
    %1465 = vmatprep.subr.mxu0 0.0
    %1466 = vmatpush1.msra.mxu0 0.0
    %1467 = vmatprep.subr.mxu0 0.0
    %1468 = vmatpush1.msra.mxu0 0.0
    %1469 = vmatprep.subr.mxu0 0.0
    %1470 = vmatpush1.msra.mxu0 0.0
    %1471 = vmatprep.subr.mxu0 0.0
    %1472 = vmatpush1.msra.mxu0 0.0
    %1473 = vmatprep.subr.mxu0 0.0
    %1474 = vmatpush1.msra.mxu0 0.0
    %1475 = vmatprep.subr.mxu0 0.0
    %1476 = vmatpush1.msra.mxu0 0.0
    %1477 = vmatprep.subr.mxu0 0.0
    %1478 = vmatpush1.msra.mxu0 0.0
    %1479 = vmatprep.subr.mxu0 0.0
    %1480 = vmatpush1.msra.mxu0 0.0
    %1481 = vmatprep.subr.mxu0 0.0
    %1482 = vmatpush1.msra.mxu0 0.0
    %1483 = vmatprep.subr.mxu0 0.0
    %1484 = vmatpush1.msra.mxu0 0.0
    %1485 = vmatprep.subr.mxu0 0.0
    %1486 = vmatpush1.msra.mxu0 0.0
    %1487 = vmatprep.subr.mxu0 0.0
    %1488 = vmatpush1.msra.mxu0 0.0
    %1489 = vmatprep.subr.mxu0 0.0
    %1490 = vmatpush1.msra.mxu0 0.0
    %1491 = vmatprep.subr.mxu0 0.0
    %1492 = vmatpush1.msra.mxu0 0.0
    %1493 = vmatprep.subr.mxu0 0.0
    %1494 = vmatpush1.msra.mxu0 0.0
    %1495 = vmatprep.subr.mxu0 0.0
    %1496 = vmatpush1.msra.mxu0 0.0
    %1497 = vmatprep.subr.mxu0 0.0
    %1498 = vmatpush1.msra.mxu0 0.0
    %1499 = vmatprep.subr.mxu0 0.0
    %1500 = vmatpush1.msra.mxu0 0.0
    %1501 = vmatprep.subr.mxu0 0.0
    %1502 = vmatpush1.msra.mxu0 0.0
    %1503 = vmatprep.subr.mxu0 0.0
    %1504 = vmatpush1.msra.mxu0 0.0
    %1505 = vmatprep.subr.mxu0 0.0
    %1506 = vmatpush1.msra.mxu0 0.0
    %1507 = vmatprep.subr.mxu0 0.0
    %1508 = vmatpush1.msra.mxu0 0.0
    %1509 = vmatprep.subr.mxu0 0.0
    %1510 = vmatpush1.msra.mxu0 0.0
    %1511 = vmatprep.subr.mxu0 0.0
    %1512 = vmatpush1.msra.mxu0 0.0
    %1513 = vmatprep.mubr.f32.mxu0 0.0
    %1514 = vmatmul.mubr.f32.gmra.mrb[0].mxu0 %v1447
    %v1515 = vpop.f32.mrb[0].mxu0
    %v1516 = vadd.f32 0.0, %v1515
    %v1517 = vpop.f32.mrb[0].mxu0
    %1518 = vdwg.mxu0
    %v1519 = vadd.f32 %v1441, %v1516
    %v1520 = vxor.u32 %v1519, 2147483648
    %v1521 = vmul.f32 %v1520, 1.442695
    %v1522 = vpow.pop %v1521
    %v1523 = vadd.f32 %v1522, 1.0
    %v1524 = vrcp.pop %v1523
    %v1525 = vmul.f32 1.0, %v1524
    %v1526 = vtanh.pop %v1519
    %v1527 = vmul.f32 %v1525, %v1262
    %1529 = vrot.lane.b32.xlu0 %v1526, 64
    %v1530 = vpop.permute.xlu0 %1529
    %v1532 = vmul.f32 %v1525, %v1530
    %1534 = vrot.lane.b32.xlu0 %v1532, 32
    %v1535 = vpop.permute.xlu0 %1534
    %v1537 = vadd.f32 %v1527, %v1535
    %v1538 = vtanh.pop %v1537
    %1540 = vrot.lane.b32.xlu0 %v1538, 64
    %v1541 = vpop.permute.xlu0 %1540
    %v1543 = vmul.f32 %v1525, %v1541
    %v1544 = vrot.slane %v385, 4
    %v1547 = vrot.slane %v395, 7
    %v1549 = vsel %vm440, %v1544, %v1547
    %1550 = vmatprep.subr.mxu0 0.0
    %1551 = vmatpush1.msra.mxu0 %v418
    %1552 = vmatprep.subr.mxu0 0.0
    %1553 = vmatpush1.msra.mxu0 %v419
    %1554 = vmatprep.subr.mxu0 0.0
    %1555 = vmatpush1.msra.mxu0 %v420
    %1556 = vmatprep.subr.mxu0 0.0
    %1557 = vmatpush1.msra.mxu0 %v421
    %1558 = vmatprep.subr.mxu0 0.0
    %1559 = vmatpush1.msra.mxu0 0.0
    %1560 = vmatprep.subr.mxu0 0.0
    %1561 = vmatpush1.msra.mxu0 0.0
    %1562 = vmatprep.subr.mxu0 0.0
    %1563 = vmatpush1.msra.mxu0 0.0
    %1564 = vmatprep.subr.mxu0 0.0
    %1565 = vmatpush1.msra.mxu0 0.0
    %1566 = vmatprep.subr.mxu0 0.0
    %1567 = vmatpush1.msra.mxu0 0.0
    %1568 = vmatprep.subr.mxu0 0.0
    %1569 = vmatpush1.msra.mxu0 0.0
    %1570 = vmatprep.subr.mxu0 0.0
    %1571 = vmatpush1.msra.mxu0 0.0
    %1572 = vmatprep.subr.mxu0 0.0
    %1573 = vmatpush1.msra.mxu0 0.0
    %1574 = vmatprep.subr.mxu0 0.0
    %1575 = vmatpush1.msra.mxu0 0.0
    %1576 = vmatprep.subr.mxu0 0.0
    %1577 = vmatpush1.msra.mxu0 0.0
    %1578 = vmatprep.subr.mxu0 0.0
    %1579 = vmatpush1.msra.mxu0 0.0
    %1580 = vmatprep.subr.mxu0 0.0
    %1581 = vmatpush1.msra.mxu0 0.0
    %1582 = vmatprep.subr.mxu0 0.0
    %1583 = vmatpush1.msra.mxu0 0.0
    %1584 = vmatprep.subr.mxu0 0.0
    %1585 = vmatpush1.msra.mxu0 0.0
    %1586 = vmatprep.subr.mxu0 0.0
    %1587 = vmatpush1.msra.mxu0 0.0
    %1588 = vmatprep.subr.mxu0 0.0
    %1589 = vmatpush1.msra.mxu0 0.0
    %1590 = vmatprep.subr.mxu0 0.0
    %1591 = vmatpush1.msra.mxu0 0.0
    %1592 = vmatprep.subr.mxu0 0.0
    %1593 = vmatpush1.msra.mxu0 0.0
    %1594 = vmatprep.subr.mxu0 0.0
    %1595 = vmatpush1.msra.mxu0 0.0
    %1596 = vmatprep.subr.mxu0 0.0
    %1597 = vmatpush1.msra.mxu0 0.0
    %1598 = vmatprep.subr.mxu0 0.0
    %1599 = vmatpush1.msra.mxu0 0.0
    %1600 = vmatprep.subr.mxu0 0.0
    %1601 = vmatpush1.msra.mxu0 0.0
    %1602 = vmatprep.subr.mxu0 0.0
    %1603 = vmatpush1.msra.mxu0 0.0
    %1604 = vmatprep.subr.mxu0 0.0
    %1605 = vmatpush1.msra.mxu0 0.0
    %1606 = vmatprep.subr.mxu0 0.0
    %1607 = vmatpush1.msra.mxu0 0.0
    %1608 = vmatprep.subr.mxu0 0.0
    %1609 = vmatpush1.msra.mxu0 0.0
    %1610 = vmatprep.subr.mxu0 0.0
    %1611 = vmatpush1.msra.mxu0 0.0
    %1612 = vmatprep.subr.mxu0 0.0
    %1613 = vmatpush1.msra.mxu0 0.0
    %1614 = vmatprep.mubr.f32.mxu0 0.0
    %1615 = vmatmul.mubr.f32.gmra.mrb[0].mxu0 %v1372
    %v1616 = vpop.f32.mrb[0].mxu0
    %v1617 = vadd.f32 0.0, %v1616
    %v1618 = vpop.f32.mrb[0].mxu0
    %1619 = vdwg.mxu0
    %v1620 = vadd.f32 %v1549, %v1617
    %v1621 = vxor.u32 %v1620, 2147483648
    %v1622 = vmul.f32 %v1621, 1.442695
    %v1623 = vpow.pop %v1622
    %v1624 = vadd.f32 %v1623, 1.0
    %v1625 = vrcp.pop %v1624
    %v1626 = vmul.f32 1.0, %v1625
    %v1627 = vtanh.pop %v1620
    %v1628 = vmul.f32 %v1626, %v1362
    %1630 = vrot.lane.b32.xlu0 %v1627, 64
    %v1631 = vpop.permute.xlu0 %1630
    %v1633 = vmul.f32 %v1626, %v1631
    %1635 = vrot.lane.b32.xlu0 %v1633, 32
    %v1636 = vpop.permute.xlu0 %1635
    %v1638 = vadd.f32 %v1628, %v1636
    %v1639 = vtanh.pop %v1638
    %1641 = vrot.lane.b32.xlu0 %v1639, 64
    %v1642 = vpop.permute.xlu0 %1641
    %v1644 = vmul.f32 %v1626, %v1642
    %1646 = vrot.lane.b32.xlu0 %v1644, 32
    %v1647 = vpop.permute.xlu0 %1646
    %v1648 = vsel %vm442, %v1647, 0
    %1650 = vmatprep.subr.mxu0 0.0
    %1651 = vmatpush1.msra.mxu0 %v422
    %1652 = vmatprep.subr.mxu0 0.0
    %1653 = vmatpush1.msra.mxu0 %v423
    %1654 = vmatprep.subr.mxu0 0.0
    %1655 = vmatpush1.msra.mxu0 %v424
    %1656 = vmatprep.subr.mxu0 0.0
    %1657 = vmatpush1.msra.mxu0 %v425
    %1658 = vmatprep.subr.mxu0 0.0
    %1659 = vmatpush1.msra.mxu0 0.0
    %1660 = vmatprep.subr.mxu0 0.0
    %1661 = vmatpush1.msra.mxu0 0.0
    %1662 = vmatprep.subr.mxu0 0.0
    %1663 = vmatpush1.msra.mxu0 0.0
    %1664 = vmatprep.subr.mxu0 0.0
    %1665 = vmatpush1.msra.mxu0 0.0
    %1666 = vmatprep.subr.mxu0 0.0
    %1667 = vmatpush1.msra.mxu0 0.0
    %1668 = vmatprep.subr.mxu0 0.0
    %1669 = vmatpush1.msra.mxu0 0.0
    %1670 = vmatprep.subr.mxu0 0.0
    %1671 = vmatpush1.msra.mxu0 0.0
    %1672 = vmatprep.subr.mxu0 0.0
    %1673 = vmatpush1.msra.mxu0 0.0
    %1674 = vmatprep.subr.mxu0 0.0
    %1675 = vmatpush1.msra.mxu0 0.0
    %1676 = vmatprep.subr.mxu0 0.0
    %1677 = vmatpush1.msra.mxu0 0.0
    %1678 = vmatprep.subr.mxu0 0.0
    %1679 = vmatpush1.msra.mxu0 0.0
    %1680 = vmatprep.subr.mxu0 0.0
    %1681 = vmatpush1.msra.mxu0 0.0
    %1682 = vmatprep.subr.mxu0 0.0
    %1683 = vmatpush1.msra.mxu0 0.0
    %1684 = vmatprep.subr.mxu0 0.0
    %1685 = vmatpush1.msra.mxu0 0.0
    %1686 = vmatprep.subr.mxu0 0.0
    %1687 = vmatpush1.msra.mxu0 0.0
    %1688 = vmatprep.subr.mxu0 0.0
    %1689 = vmatpush1.msra.mxu0 0.0
    %1690 = vmatprep.subr.mxu0 0.0
    %1691 = vmatpush1.msra.mxu0 0.0
    %1692 = vmatprep.subr.mxu0 0.0
    %1693 = vmatpush1.msra.mxu0 0.0
    %1694 = vmatprep.subr.mxu0 0.0
    %1695 = vmatpush1.msra.mxu0 0.0
    %1696 = vmatprep.subr.mxu0 0.0
    %1697 = vmatpush1.msra.mxu0 0.0
    %1698 = vmatprep.subr.mxu0 0.0
    %1699 = vmatpush1.msra.mxu0 0.0
    %1700 = vmatprep.subr.mxu0 0.0
    %1701 = vmatpush1.msra.mxu0 0.0
    %1702 = vmatprep.subr.mxu0 0.0
    %1703 = vmatpush1.msra.mxu0 0.0
    %1704 = vmatprep.subr.mxu0 0.0
    %1705 = vmatpush1.msra.mxu0 0.0
    %1706 = vmatprep.subr.mxu0 0.0
    %1707 = vmatpush1.msra.mxu0 0.0
    %1708 = vmatprep.subr.mxu0 0.0
    %1709 = vmatpush1.msra.mxu0 0.0
    %1710 = vmatprep.subr.mxu0 0.0
    %1711 = vmatpush1.msra.mxu0 0.0
    %1712 = vmatprep.subr.mxu0 0.0
    %1713 = vmatpush1.msra.mxu0 0.0
    %1714 = vmatprep.mubr.f32.mxu0 0.0
    %1715 = vmatmul.mubr.f32.gmra.mrb[0].mxu0 %v1648
    %v1716 = vpop.f32.mrb[0].mxu0
    %v1717 = vadd.f32 %v435, %v1716
    %v1718 = vpop.f32.mrb[0].mxu0
    %1719 = vdwg.mxu0
    %1721 = vrot.lane.b32.xlu0 %v1543, 32
    %v1722 = vpop.permute.xlu0 %1721
    %v1723 = vsel %vm442, %v1722, 0
    %1725 = vmatprep.subr.mxu0 0.0
    %1726 = vmatpush1.msra.mxu0 %v426
    %1727 = vmatprep.subr.mxu0 0.0
    %1728 = vmatpush1.msra.mxu0 %v427
    %1729 = vmatprep.subr.mxu0 0.0
    %1730 = vmatpush1.msra.mxu0 %v428
    %1731 = vmatprep.subr.mxu0 0.0
    %1732 = vmatpush1.msra.mxu0 %v429
    %1733 = vmatprep.subr.mxu0 0.0
    %1734 = vmatpush1.msra.mxu0 0.0
    %1735 = vmatprep.subr.mxu0 0.0
    %1736 = vmatpush1.msra.mxu0 0.0
    %1737 = vmatprep.subr.mxu0 0.0
    %1738 = vmatpush1.msra.mxu0 0.0
    %1739 = vmatprep.subr.mxu0 0.0
    %1740 = vmatpush1.msra.mxu0 0.0
    %1741 = vmatprep.subr.mxu0 0.0
    %1742 = vmatpush1.msra.mxu0 0.0
    %1743 = vmatprep.subr.mxu0 0.0
    %1744 = vmatpush1.msra.mxu0 0.0
    %1745 = vmatprep.subr.mxu0 0.0
    %1746 = vmatpush1.msra.mxu0 0.0
    %1747 = vmatprep.subr.mxu0 0.0
    %1748 = vmatpush1.msra.mxu0 0.0
    %1749 = vmatprep.subr.mxu0 0.0
    %1750 = vmatpush1.msra.mxu0 0.0
    %1751 = vmatprep.subr.mxu0 0.0
    %1752 = vmatpush1.msra.mxu0 0.0
    %1753 = vmatprep.subr.mxu0 0.0
    %1754 = vmatpush1.msra.mxu0 0.0
    %1755 = vmatprep.subr.mxu0 0.0
    %1756 = vmatpush1.msra.mxu0 0.0
    %1757 = vmatprep.subr.mxu0 0.0
    %1758 = vmatpush1.msra.mxu0 0.0
    %1759 = vmatprep.subr.mxu0 0.0
    %1760 = vmatpush1.msra.mxu0 0.0
    %1761 = vmatprep.subr.mxu0 0.0
    %1762 = vmatpush1.msra.mxu0 0.0
    %1763 = vmatprep.subr.mxu0 0.0
    %1764 = vmatpush1.msra.mxu0 0.0
    %1765 = vmatprep.subr.mxu0 0.0
    %1766 = vmatpush1.msra.mxu0 0.0
    %1767 = vmatprep.subr.mxu0 0.0
    %1768 = vmatpush1.msra.mxu0 0.0
    %1769 = vmatprep.subr.mxu0 0.0
    %1770 = vmatpush1.msra.mxu0 0.0
    %1771 = vmatprep.subr.mxu0 0.0
    %1772 = vmatpush1.msra.mxu0 0.0
    %1773 = vmatprep.subr.mxu0 0.0
    %1774 = vmatpush1.msra.mxu0 0.0
    %1775 = vmatprep.subr.mxu0 0.0
    %1776 = vmatpush1.msra.mxu0 0.0
    %1777 = vmatprep.subr.mxu0 0.0
    %1778 = vmatpush1.msra.mxu0 0.0
    %1779 = vmatprep.subr.mxu0 0.0
    %1780 = vmatpush1.msra.mxu0 0.0
    %1781 = vmatprep.subr.mxu0 0.0
    %1782 = vmatpush1.msra.mxu0 0.0
    %1783 = vmatprep.subr.mxu0 0.0
    %1784 = vmatpush1.msra.mxu0 0.0
    %1785 = vmatprep.subr.mxu0 0.0
    %1786 = vmatpush1.msra.mxu0 0.0
    %1787 = vmatprep.subr.mxu0 0.0
    %1788 = vmatpush1.msra.mxu0 0.0
    %1789 = vmatprep.mubr.f32.mxu0 0.0
    %1790 = vmatmul.mubr.f32.gmra.mrb[0].mxu0 %v1723
    %v1791 = vpop.f32.mrb[0].mxu0
    %v1792 = vadd.f32 0.0, %v1791
    %v1793 = vpop.f32.mrb[0].mxu0
    %1794 = vdwg.mxu0
    %v1795 = vadd.f32 %v1717, %v1792
    %v1796 = vxor.u32 %v1795, 2147483648
    %v1797 = vmul.f32 %v1796, 1.442695
    %v1798 = vpow.pop %v1797
    %v1799 = vadd.f32 %v1798, 1.0
    %v1800 = vrcp.pop %v1799
    %v1801 = vmul.f32 1.0, %v1800
    %v1802 = vtanh.pop %v1795
    %v1803 = vmul.f32 %v1801, %v1537
    %1805 = vrot.lane.b32.xlu0 %v1802, 64
    %v1806 = vpop.permute.xlu0 %1805
    %v1808 = vmul.f32 %v1801, %v1806
    %1810 = vrot.lane.b32.xlu0 %v1808, 32
    %v1811 = vpop.permute.xlu0 %1810
    %v1813 = vadd.f32 %v1803, %v1811
    %v1814 = vtanh.pop %v1813
    %1816 = vrot.lane.b32.xlu0 %v1814, 64
    %v1817 = vpop.permute.xlu0 %1816
    %v1819 = vmul.f32 %v1801, %v1817
    %v1820 = vrot.slane %v385, 5
    %v1822 = vsel %vm440, %v1820, %v395
    %1823 = vmatprep.subr.mxu0 0.0
    %1824 = vmatpush1.msra.mxu0 %v418
    %1825 = vmatprep.subr.mxu0 0.0
    %1826 = vmatpush1.msra.mxu0 %v419
    %1827 = vmatprep.subr.mxu0 0.0
    %1828 = vmatpush1.msra.mxu0 %v420
    %1829 = vmatprep.subr.mxu0 0.0
    %1830 = vmatpush1.msra.mxu0 %v421
    %1831 = vmatprep.subr.mxu0 0.0
    %1832 = vmatpush1.msra.mxu0 0.0
    %1833 = vmatprep.subr.mxu0 0.0
    %1834 = vmatpush1.msra.mxu0 0.0
    %1835 = vmatprep.subr.mxu0 0.0
    %1836 = vmatpush1.msra.mxu0 0.0
    %1837 = vmatprep.subr.mxu0 0.0
    %1838 = vmatpush1.msra.mxu0 0.0
    %1839 = vmatprep.subr.mxu0 0.0
    %1840 = vmatpush1.msra.mxu0 0.0
    %1841 = vmatprep.subr.mxu0 0.0
    %1842 = vmatpush1.msra.mxu0 0.0
    %1843 = vmatprep.subr.mxu0 0.0
    %1844 = vmatpush1.msra.mxu0 0.0
    %1845 = vmatprep.subr.mxu0 0.0
    %1846 = vmatpush1.msra.mxu0 0.0
    %1847 = vmatprep.subr.mxu0 0.0
    %1848 = vmatpush1.msra.mxu0 0.0
    %1849 = vmatprep.subr.mxu0 0.0
    %1850 = vmatpush1.msra.mxu0 0.0
    %1851 = vmatprep.subr.mxu0 0.0
    %1852 = vmatpush1.msra.mxu0 0.0
    %1853 = vmatprep.subr.mxu0 0.0
    %1854 = vmatpush1.msra.mxu0 0.0
    %1855 = vmatprep.subr.mxu0 0.0
    %1856 = vmatpush1.msra.mxu0 0.0
    %1857 = vmatprep.subr.mxu0 0.0
    %1858 = vmatpush1.msra.mxu0 0.0
    %1859 = vmatprep.subr.mxu0 0.0
    %1860 = vmatpush1.msra.mxu0 0.0
    %1861 = vmatprep.subr.mxu0 0.0
    %1862 = vmatpush1.msra.mxu0 0.0
    %1863 = vmatprep.subr.mxu0 0.0
    %1864 = vmatpush1.msra.mxu0 0.0
    %1865 = vmatprep.subr.mxu0 0.0
    %1866 = vmatpush1.msra.mxu0 0.0
    %1867 = vmatprep.subr.mxu0 0.0
    %1868 = vmatpush1.msra.mxu0 0.0
    %1869 = vmatprep.subr.mxu0 0.0
    %1870 = vmatpush1.msra.mxu0 0.0
    %1871 = vmatprep.subr.mxu0 0.0
    %1872 = vmatpush1.msra.mxu0 0.0
    %1873 = vmatprep.subr.mxu0 0.0
    %1874 = vmatpush1.msra.mxu0 0.0
    %1875 = vmatprep.subr.mxu0 0.0
    %1876 = vmatpush1.msra.mxu0 0.0
    %1877 = vmatprep.subr.mxu0 0.0
    %1878 = vmatpush1.msra.mxu0 0.0
    %1879 = vmatprep.subr.mxu0 0.0
    %1880 = vmatpush1.msra.mxu0 0.0
    %1881 = vmatprep.subr.mxu0 0.0
    %1882 = vmatpush1.msra.mxu0 0.0
    %1883 = vmatprep.subr.mxu0 0.0
    %1884 = vmatpush1.msra.mxu0 0.0
    %1885 = vmatprep.subr.mxu0 0.0
    %1886 = vmatpush1.msra.mxu0 0.0
    %1887 = vmatprep.mubr.f32.mxu0 0.0
    %1888 = vmatmul.mubr.f32.gmra.mrb[0].mxu0 %v1648
    %v1889 = vpop.f32.mrb[0].mxu0
    %v1890 = vadd.f32 0.0, %v1889
    %v1891 = vpop.f32.mrb[0].mxu0
    %1892 = vdwg.mxu0
    %v1893 = vadd.f32 %v1822, %v1890
    %v1894 = vxor.u32 %v1893, 2147483648
    %v1895 = vmul.f32 %v1894, 1.442695
    %v1896 = vpow.pop %v1895
    %v1897 = vadd.f32 %v1896, 1.0
    %v1898 = vrcp.pop %v1897
    %v1899 = vmul.f32 1.0, %v1898
    %v1900 = vtanh.pop %v1893
    %v1901 = vmul.f32 %v1899, %v1638
    %1903 = vrot.lane.b32.xlu0 %v1900, 64
    %v1904 = vpop.permute.xlu0 %1903
    %v1906 = vmul.f32 %v1899, %v1904
    %1908 = vrot.lane.b32.xlu0 %v1906, 32
    %v1909 = vpop.permute.xlu0 %1908
    %v1911 = vadd.f32 %v1901, %v1909
    %v1912 = vtanh.pop %v1911
    %1914 = vrot.lane.b32.xlu0 %v1912, 64
    %v1915 = vpop.permute.xlu0 %1914
    %v1917 = vmul.f32 %v1899, %v1915
    %1919 = vrot.lane.b32.xlu0 %v1917, 32
    %v1920 = vpop.permute.xlu0 %1919
    %v1921 = vsel %vm442, %v1920, 0
    %1923 = vmatprep.subr.mxu0 0.0
    %1924 = vmatpush1.msra.mxu0 %v422
    %1925 = vmatprep.subr.mxu0 0.0
    %1926 = vmatpush1.msra.mxu0 %v423
    %1927 = vmatprep.subr.mxu0 0.0
    %1928 = vmatpush1.msra.mxu0 %v424
    %1929 = vmatprep.subr.mxu0 0.0
    %1930 = vmatpush1.msra.mxu0 %v425
    %1931 = vmatprep.subr.mxu0 0.0
    %1932 = vmatpush1.msra.mxu0 0.0
    %1933 = vmatprep.subr.mxu0 0.0
    %1934 = vmatpush1.msra.mxu0 0.0
    %1935 = vmatprep.subr.mxu0 0.0
    %1936 = vmatpush1.msra.mxu0 0.0
    %1937 = vmatprep.subr.mxu0 0.0
    %1938 = vmatpush1.msra.mxu0 0.0
    %1939 = vmatprep.subr.mxu0 0.0
    %1940 = vmatpush1.msra.mxu0 0.0
    %1941 = vmatprep.subr.mxu0 0.0
    %1942 = vmatpush1.msra.mxu0 0.0
    %1943 = vmatprep.subr.mxu0 0.0
    %1944 = vmatpush1.msra.mxu0 0.0
    %1945 = vmatprep.subr.mxu0 0.0
    %1946 = vmatpush1.msra.mxu0 0.0
    %1947 = vmatprep.subr.mxu0 0.0
    %1948 = vmatpush1.msra.mxu0 0.0
    %1949 = vmatprep.subr.mxu0 0.0
    %1950 = vmatpush1.msra.mxu0 0.0
    %1951 = vmatprep.subr.mxu0 0.0
    %1952 = vmatpush1.msra.mxu0 0.0
    %1953 = vmatprep.subr.mxu0 0.0
    %1954 = vmatpush1.msra.mxu0 0.0
    %1955 = vmatprep.subr.mxu0 0.0
    %1956 = vmatpush1.msra.mxu0 0.0
    %1957 = vmatprep.subr.mxu0 0.0
    %1958 = vmatpush1.msra.mxu0 0.0
    %1959 = vmatprep.subr.mxu0 0.0
    %1960 = vmatpush1.msra.mxu0 0.0
    %1961 = vmatprep.subr.mxu0 0.0
    %1962 = vmatpush1.msra.mxu0 0.0
    %1963 = vmatprep.subr.mxu0 0.0
    %1964 = vmatpush1.msra.mxu0 0.0
    %1965 = vmatprep.subr.mxu0 0.0
    %1966 = vmatpush1.msra.mxu0 0.0
    %1967 = vmatprep.subr.mxu0 0.0
    %1968 = vmatpush1.msra.mxu0 0.0
    %1969 = vmatprep.subr.mxu0 0.0
    %1970 = vmatpush1.msra.mxu0 0.0
    %1971 = vmatprep.subr.mxu0 0.0
    %1972 = vmatpush1.msra.mxu0 0.0
    %1973 = vmatprep.subr.mxu0 0.0
    %1974 = vmatpush1.msra.mxu0 0.0
    %1975 = vmatprep.subr.mxu0 0.0
    %1976 = vmatpush1.msra.mxu0 0.0
    %1977 = vmatprep.subr.mxu0 0.0
    %1978 = vmatpush1.msra.mxu0 0.0
    %1979 = vmatprep.subr.mxu0 0.0
    %1980 = vmatpush1.msra.mxu0 0.0
    %1981 = vmatprep.subr.mxu0 0.0
    %1982 = vmatpush1.msra.mxu0 0.0
    %1983 = vmatprep.subr.mxu0 0.0
    %1984 = vmatpush1.msra.mxu0 0.0
    %1985 = vmatprep.subr.mxu0 0.0
    %1986 = vmatpush1.msra.mxu0 0.0
    %1987 = vmatprep.mubr.f32.mxu0 0.0
    %1988 = vmatmul.mubr.f32.gmra.mrb[0].mxu0 %v1921
    %v1989 = vpop.f32.mrb[0].mxu0
    %v1990 = vadd.f32 %v435, %v1989
    %v1991 = vpop.f32.mrb[0].mxu0
    %1992 = vdwg.mxu0
    %1994 = vrot.lane.b32.xlu0 %v1819, 32
    %v1995 = vpop.permute.xlu0 %1994
    %v1996 = vsel %vm442, %v1995, 0
    %1998 = vmatprep.subr.mxu0 0.0
    %1999 = vmatpush1.msra.mxu0 %v426
    %2000 = vmatprep.subr.mxu0 0.0
    %2001 = vmatpush1.msra.mxu0 %v427
    %2002 = vmatprep.subr.mxu0 0.0
    %2003 = vmatpush1.msra.mxu0 %v428
    %2004 = vmatprep.subr.mxu0 0.0
    %2005 = vmatpush1.msra.mxu0 %v429
    %2006 = vmatprep.subr.mxu0 0.0
    %2007 = vmatpush1.msra.mxu0 0.0
    %2008 = vmatprep.subr.mxu0 0.0
    %2009 = vmatpush1.msra.mxu0 0.0
    %2010 = vmatprep.subr.mxu0 0.0
    %2011 = vmatpush1.msra.mxu0 0.0
    %2012 = vmatprep.subr.mxu0 0.0
    %2013 = vmatpush1.msra.mxu0 0.0
    %2014 = vmatprep.subr.mxu0 0.0
    %2015 = vmatpush1.msra.mxu0 0.0
    %2016 = vmatprep.subr.mxu0 0.0
    %2017 = vmatpush1.msra.mxu0 0.0
    %2018 = vmatprep.subr.mxu0 0.0
    %2019 = vmatpush1.msra.mxu0 0.0
    %2020 = vmatprep.subr.mxu0 0.0
    %2021 = vmatpush1.msra.mxu0 0.0
    %2022 = vmatprep.subr.mxu0 0.0
    %2023 = vmatpush1.msra.mxu0 0.0
    %2024 = vmatprep.subr.mxu0 0.0
    %2025 = vmatpush1.msra.mxu0 0.0
    %2026 = vmatprep.subr.mxu0 0.0
    %2027 = vmatpush1.msra.mxu0 0.0
    %2028 = vmatprep.subr.mxu0 0.0
    %2029 = vmatpush1.msra.mxu0 0.0
    %2030 = vmatprep.subr.mxu0 0.0
    %2031 = vmatpush1.msra.mxu0 0.0
    %2032 = vmatprep.subr.mxu0 0.0
    %2033 = vmatpush1.msra.mxu0 0.0
    %2034 = vmatprep.subr.mxu0 0.0
    %2035 = vmatpush1.msra.mxu0 0.0
    %2036 = vmatprep.subr.mxu0 0.0
    %2037 = vmatpush1.msra.mxu0 0.0
    %2038 = vmatprep.subr.mxu0 0.0
    %2039 = vmatpush1.msra.mxu0 0.0
    %2040 = vmatprep.subr.mxu0 0.0
    %2041 = vmatpush1.msra.mxu0 0.0
    %2042 = vmatprep.subr.mxu0 0.0
    %2043 = vmatpush1.msra.mxu0 0.0
    %2044 = vmatprep.subr.mxu0 0.0
    %2045 = vmatpush1.msra.mxu0 0.0
    %2046 = vmatprep.subr.mxu0 0.0
    %2047 = vmatpush1.msra.mxu0 0.0
    %2048 = vmatprep.subr.mxu0 0.0
    %2049 = vmatpush1.msra.mxu0 0.0
    %2050 = vmatprep.subr.mxu0 0.0
    %2051 = vmatpush1.msra.mxu0 0.0
    %2052 = vmatprep.subr.mxu0 0.0
    %2053 = vmatpush1.msra.mxu0 0.0
    %2054 = vmatprep.subr.mxu0 0.0
    %2055 = vmatpush1.msra.mxu0 0.0
    %2056 = vmatprep.subr.mxu0 0.0
    %2057 = vmatpush1.msra.mxu0 0.0
    %2058 = vmatprep.subr.mxu0 0.0
    %2059 = vmatpush1.msra.mxu0 0.0
    %2060 = vmatprep.subr.mxu0 0.0
    %2061 = vmatpush1.msra.mxu0 0.0
    %2062 = vmatprep.mubr.f32.mxu0 0.0
    %2063 = vmatmul.mubr.f32.gmra.mrb[0].mxu0 %v1996
    %v2064 = vpop.f32.mrb[0].mxu0
    %v2065 = vadd.f32 0.0, %v2064
    %v2066 = vpop.f32.mrb[0].mxu0
    %2067 = vdwg.mxu0
    %v2068 = vadd.f32 %v1990, %v2065
    %v2069 = vxor.u32 %v2068, 2147483648
    %v2070 = vmul.f32 %v2069, 1.442695
    %v2071 = vpow.pop %v2070
    %v2072 = vadd.f32 %v2071, 1.0
    %v2073 = vrcp.pop %v2072
    %v2074 = vmul.f32 1.0, %v2073
    %v2075 = vtanh.pop %v2068
    %v2076 = vmul.f32 %v2074, %v1813
    %2078 = vrot.lane.b32.xlu0 %v2075, 64
    %v2079 = vpop.permute.xlu0 %2078
    %v2081 = vmul.f32 %v2074, %v2079
    %2083 = vrot.lane.b32.xlu0 %v2081, 32
    %v2084 = vpop.permute.xlu0 %2083
    %v2086 = vadd.f32 %v2076, %v2084
    %v2087 = vtanh.pop %v2086
    %2089 = vrot.lane.b32.xlu0 %v2087, 64
    %v2090 = vpop.permute.xlu0 %2089
    %v2092 = vmul.f32 %v2074, %v2090
    %v2093 = vrot.slane %v385, 6
    %v2095 = vrot.slane %v395, 1
    %v2097 = vsel %vm440, %v2093, %v2095
    %2098 = vmatprep.subr.mxu0 0.0
    %2099 = vmatpush1.msra.mxu0 %v418
    %2100 = vmatprep.subr.mxu0 0.0
    %2101 = vmatpush1.msra.mxu0 %v419
    %2102 = vmatprep.subr.mxu0 0.0
    %2103 = vmatpush1.msra.mxu0 %v420
    %2104 = vmatprep.subr.mxu0 0.0
    %2105 = vmatpush1.msra.mxu0 %v421
    %2106 = vmatprep.subr.mxu0 0.0
    %2107 = vmatpush1.msra.mxu0 0.0
    %2108 = vmatprep.subr.mxu0 0.0
    %2109 = vmatpush1.msra.mxu0 0.0
    %2110 = vmatprep.subr.mxu0 0.0
    %2111 = vmatpush1.msra.mxu0 0.0
    %2112 = vmatprep.subr.mxu0 0.0
    %2113 = vmatpush1.msra.mxu0 0.0
    %2114 = vmatprep.subr.mxu0 0.0
    %2115 = vmatpush1.msra.mxu0 0.0
    %2116 = vmatprep.subr.mxu0 0.0
    %2117 = vmatpush1.msra.mxu0 0.0
    %2118 = vmatprep.subr.mxu0 0.0
    %2119 = vmatpush1.msra.mxu0 0.0
    %2120 = vmatprep.subr.mxu0 0.0
    %2121 = vmatpush1.msra.mxu0 0.0
    %2122 = vmatprep.subr.mxu0 0.0
    %2123 = vmatpush1.msra.mxu0 0.0
    %2124 = vmatprep.subr.mxu0 0.0
    %2125 = vmatpush1.msra.mxu0 0.0
    %2126 = vmatprep.subr.mxu0 0.0
    %2127 = vmatpush1.msra.mxu0 0.0
    %2128 = vmatprep.subr.mxu0 0.0
    %2129 = vmatpush1.msra.mxu0 0.0
    %2130 = vmatprep.subr.mxu0 0.0
    %2131 = vmatpush1.msra.mxu0 0.0
    %2132 = vmatprep.subr.mxu0 0.0
    %2133 = vmatpush1.msra.mxu0 0.0
    %2134 = vmatprep.subr.mxu0 0.0
    %2135 = vmatpush1.msra.mxu0 0.0
    %2136 = vmatprep.subr.mxu0 0.0
    %2137 = vmatpush1.msra.mxu0 0.0
    %2138 = vmatprep.subr.mxu0 0.0
    %2139 = vmatpush1.msra.mxu0 0.0
    %2140 = vmatprep.subr.mxu0 0.0
    %2141 = vmatpush1.msra.mxu0 0.0
    %2142 = vmatprep.subr.mxu0 0.0
    %2143 = vmatpush1.msra.mxu0 0.0
    %2144 = vmatprep.subr.mxu0 0.0
    %2145 = vmatpush1.msra.mxu0 0.0
    %2146 = vmatprep.subr.mxu0 0.0
    %2147 = vmatpush1.msra.mxu0 0.0
    %2148 = vmatprep.subr.mxu0 0.0
    %2149 = vmatpush1.msra.mxu0 0.0
    %2150 = vmatprep.subr.mxu0 0.0
    %2151 = vmatpush1.msra.mxu0 0.0
    %2152 = vmatprep.subr.mxu0 0.0
    %2153 = vmatpush1.msra.mxu0 0.0
    %2154 = vmatprep.subr.mxu0 0.0
    %2155 = vmatpush1.msra.mxu0 0.0
    %2156 = vmatprep.subr.mxu0 0.0
    %2157 = vmatpush1.msra.mxu0 0.0
    %2158 = vmatprep.subr.mxu0 0.0
    %2159 = vmatpush1.msra.mxu0 0.0
    %2160 = vmatprep.subr.mxu0 0.0
    %2161 = vmatpush1.msra.mxu0 0.0
    %2162 = vmatprep.mubr.f32.mxu0 0.0
    %2163 = vmatmul.mubr.f32.gmra.mrb[0].mxu0 %v1921
    %v2164 = vpop.f32.mrb[0].mxu0
    %v2165 = vadd.f32 0.0, %v2164
    %v2166 = vpop.f32.mrb[0].mxu0
    %2167 = vdwg.mxu0
    %v2168 = vadd.f32 %v2097, %v2165
    %v2169 = vxor.u32 %v2168, 2147483648
    %v2170 = vmul.f32 %v2169, 1.442695
    %v2171 = vpow.pop %v2170
    %v2172 = vadd.f32 %v2171, 1.0
    %v2173 = vrcp.pop %v2172
    %v2174 = vmul.f32 1.0, %v2173
    %v2175 = vtanh.pop %v2168
    %v2176 = vmul.f32 %v2174, %v1911
    %2178 = vrot.lane.b32.xlu0 %v2175, 64
    %v2179 = vpop.permute.xlu0 %2178
    %v2181 = vmul.f32 %v2174, %v2179
    %2183 = vrot.lane.b32.xlu0 %v2181, 32
    %v2184 = vpop.permute.xlu0 %2183
    %v2186 = vadd.f32 %v2176, %v2184
    %v2187 = vtanh.pop %v2186
    %2189 = vrot.lane.b32.xlu0 %v2187, 64
    %v2190 = vpop.permute.xlu0 %2189
    %v2192 = vmul.f32 %v2174, %v2190
    %2194 = vrot.lane.b32.xlu0 %v2192, 32
    %v2195 = vpop.permute.xlu0 %2194
    %v2196 = vsel %vm442, %v2195, 0
    %2198 = vmatprep.subr.mxu0 0.0
    %2199 = vmatpush1.msra.mxu0 %v422
    %2200 = vmatprep.subr.mxu0 0.0
    %2201 = vmatpush1.msra.mxu0 %v423
    %2202 = vmatprep.subr.mxu0 0.0
    %2203 = vmatpush1.msra.mxu0 %v424
    %2204 = vmatprep.subr.mxu0 0.0
    %2205 = vmatpush1.msra.mxu0 %v425
    %2206 = vmatprep.subr.mxu0 0.0
    %2207 = vmatpush1.msra.mxu0 0.0
    %2208 = vmatprep.subr.mxu0 0.0
    %2209 = vmatpush1.msra.mxu0 0.0
    %2210 = vmatprep.subr.mxu0 0.0
    %2211 = vmatpush1.msra.mxu0 0.0
    %2212 = vmatprep.subr.mxu0 0.0
    %2213 = vmatpush1.msra.mxu0 0.0
    %2214 = vmatprep.subr.mxu0 0.0
    %2215 = vmatpush1.msra.mxu0 0.0
    %2216 = vmatprep.subr.mxu0 0.0
    %2217 = vmatpush1.msra.mxu0 0.0
    %2218 = vmatprep.subr.mxu0 0.0
    %2219 = vmatpush1.msra.mxu0 0.0
    %2220 = vmatprep.subr.mxu0 0.0
    %2221 = vmatpush1.msra.mxu0 0.0
    %2222 = vmatprep.subr.mxu0 0.0
    %2223 = vmatpush1.msra.mxu0 0.0
    %2224 = vmatprep.subr.mxu0 0.0
    %2225 = vmatpush1.msra.mxu0 0.0
    %2226 = vmatprep.subr.mxu0 0.0
    %2227 = vmatpush1.msra.mxu0 0.0
    %2228 = vmatprep.subr.mxu0 0.0
    %2229 = vmatpush1.msra.mxu0 0.0
    %2230 = vmatprep.subr.mxu0 0.0
    %2231 = vmatpush1.msra.mxu0 0.0
    %2232 = vmatprep.subr.mxu0 0.0
    %2233 = vmatpush1.msra.mxu0 0.0
    %2234 = vmatprep.subr.mxu0 0.0
    %2235 = vmatpush1.msra.mxu0 0.0
    %2236 = vmatprep.subr.mxu0 0.0
    %2237 = vmatpush1.msra.mxu0 0.0
    %2238 = vmatprep.subr.mxu0 0.0
    %2239 = vmatpush1.msra.mxu0 0.0
    %2240 = vmatprep.subr.mxu0 0.0
    %2241 = vmatpush1.msra.mxu0 0.0
    %2242 = vmatprep.subr.mxu0 0.0
    %2243 = vmatpush1.msra.mxu0 0.0
    %2244 = vmatprep.subr.mxu0 0.0
    %2245 = vmatpush1.msra.mxu0 0.0
    %2246 = vmatprep.subr.mxu0 0.0
    %2247 = vmatpush1.msra.mxu0 0.0
    %2248 = vmatprep.subr.mxu0 0.0
    %2249 = vmatpush1.msra.mxu0 0.0
    %2250 = vmatprep.subr.mxu0 0.0
    %2251 = vmatpush1.msra.mxu0 0.0
    %2252 = vmatprep.subr.mxu0 0.0
    %2253 = vmatpush1.msra.mxu0 0.0
    %2254 = vmatprep.subr.mxu0 0.0
    %2255 = vmatpush1.msra.mxu0 0.0
    %2256 = vmatprep.subr.mxu0 0.0
    %2257 = vmatpush1.msra.mxu0 0.0
    %2258 = vmatprep.subr.mxu0 0.0
    %2259 = vmatpush1.msra.mxu0 0.0
    %2260 = vmatprep.subr.mxu0 0.0
    %2261 = vmatpush1.msra.mxu0 0.0
    %2262 = vmatprep.mubr.f32.mxu0 0.0
    %2263 = vmatmul.mubr.f32.gmra.mrb[0].mxu0 %v2196
    %v2264 = vpop.f32.mrb[0].mxu0
    %v2265 = vadd.f32 %v435, %v2264
    %v2266 = vpop.f32.mrb[0].mxu0
    %2267 = vdwg.mxu0
    %2269 = vrot.lane.b32.xlu0 %v2092, 32
    %v2270 = vpop.permute.xlu0 %2269
    %v2271 = vsel %vm442, %v2270, 0
    %2273 = vmatprep.subr.mxu0 0.0
    %2274 = vmatpush1.msra.mxu0 %v426
    %2275 = vmatprep.subr.mxu0 0.0
    %2276 = vmatpush1.msra.mxu0 %v427
    %2277 = vmatprep.subr.mxu0 0.0
    %2278 = vmatpush1.msra.mxu0 %v428
    %2279 = vmatprep.subr.mxu0 0.0
    %2280 = vmatpush1.msra.mxu0 %v429
    %2281 = vmatprep.subr.mxu0 0.0
    %2282 = vmatpush1.msra.mxu0 0.0
    %2283 = vmatprep.subr.mxu0 0.0
    %2284 = vmatpush1.msra.mxu0 0.0
    %2285 = vmatprep.subr.mxu0 0.0
    %2286 = vmatpush1.msra.mxu0 0.0
    %2287 = vmatprep.subr.mxu0 0.0
    %2288 = vmatpush1.msra.mxu0 0.0
    %2289 = vmatprep.subr.mxu0 0.0
    %2290 = vmatpush1.msra.mxu0 0.0
    %2291 = vmatprep.subr.mxu0 0.0
    %2292 = vmatpush1.msra.mxu0 0.0
    %2293 = vmatprep.subr.mxu0 0.0
    %2294 = vmatpush1.msra.mxu0 0.0
    %2295 = vmatprep.subr.mxu0 0.0
    %2296 = vmatpush1.msra.mxu0 0.0
    %2297 = vmatprep.subr.mxu0 0.0
    %2298 = vmatpush1.msra.mxu0 0.0
    %2299 = vmatprep.subr.mxu0 0.0
    %2300 = vmatpush1.msra.mxu0 0.0
    %2301 = vmatprep.subr.mxu0 0.0
    %2302 = vmatpush1.msra.mxu0 0.0
    %2303 = vmatprep.subr.mxu0 0.0
    %2304 = vmatpush1.msra.mxu0 0.0
    %2305 = vmatprep.subr.mxu0 0.0
    %2306 = vmatpush1.msra.mxu0 0.0
    %2307 = vmatprep.subr.mxu0 0.0
    %2308 = vmatpush1.msra.mxu0 0.0
    %2309 = vmatprep.subr.mxu0 0.0
    %2310 = vmatpush1.msra.mxu0 0.0
    %2311 = vmatprep.subr.mxu0 0.0
    %2312 = vmatpush1.msra.mxu0 0.0
    %2313 = vmatprep.subr.mxu0 0.0
    %2314 = vmatpush1.msra.mxu0 0.0
    %2315 = vmatprep.subr.mxu0 0.0
    %2316 = vmatpush1.msra.mxu0 0.0
    %2317 = vmatprep.subr.mxu0 0.0
    %2318 = vmatpush1.msra.mxu0 0.0
    %2319 = vmatprep.subr.mxu0 0.0
    %2320 = vmatpush1.msra.mxu0 0.0
    %2321 = vmatprep.subr.mxu0 0.0
    %2322 = vmatpush1.msra.mxu0 0.0
    %2323 = vmatprep.subr.mxu0 0.0
    %2324 = vmatpush1.msra.mxu0 0.0
    %2325 = vmatprep.subr.mxu0 0.0
    %2326 = vmatpush1.msra.mxu0 0.0
    %2327 = vmatprep.subr.mxu0 0.0
    %2328 = vmatpush1.msra.mxu0 0.0
    %2329 = vmatprep.subr.mxu0 0.0
    %2330 = vmatpush1.msra.mxu0 0.0
    %2331 = vmatprep.subr.mxu0 0.0
    %2332 = vmatpush1.msra.mxu0 0.0
    %2333 = vmatprep.subr.mxu0 0.0
    %2334 = vmatpush1.msra.mxu0 0.0
    %2335 = vmatprep.subr.mxu0 0.0
    %2336 = vmatpush1.msra.mxu0 0.0
    %2337 = vmatprep.mubr.f32.mxu0 0.0
    %2338 = vmatmul.mubr.f32.gmra.mrb[0].mxu0 %v2271
    %v2339 = vpop.f32.mrb[0].mxu0
    %v2340 = vadd.f32 0.0, %v2339
    %v2341 = vpop.f32.mrb[0].mxu0
    %2342 = vdwg.mxu0
    %v2343 = vadd.f32 %v2265, %v2340
    %v2344 = vxor.u32 %v2343, 2147483648
    %v2345 = vmul.f32 %v2344, 1.442695
    %v2346 = vpow.pop %v2345
    %v2347 = vadd.f32 %v2346, 1.0
    %v2348 = vrcp.pop %v2347
    %v2349 = vmul.f32 1.0, %v2348
    %v2350 = vtanh.pop %v2343
    %v2351 = vmul.f32 %v2349, %v2086
    %2353 = vrot.lane.b32.xlu0 %v2350, 64
    %v2354 = vpop.permute.xlu0 %2353
    %v2356 = vmul.f32 %v2349, %v2354
    %2358 = vrot.lane.b32.xlu0 %v2356, 32
    %v2359 = vpop.permute.xlu0 %2358
    %v2361 = vadd.f32 %v2351, %v2359
    %v2362 = vtanh.pop %v2361
    %2364 = vrot.lane.b32.xlu0 %v2362, 64
    %v2365 = vpop.permute.xlu0 %2364
    %v2367 = vmul.f32 %v2349, %v2365
    %v2368 = vrot.slane %v385, 7
    %v2370 = vrot.slane %v395, 2
    %v2372 = vsel %vm440, %v2368, %v2370
    %2373 = vmatprep.subr.mxu0 0.0
    %2374 = vmatpush1.msra.mxu0 %v418
    %2375 = vmatprep.subr.mxu0 0.0
    %2376 = vmatpush1.msra.mxu0 %v419
    %2377 = vmatprep.subr.mxu0 0.0
    %2378 = vmatpush1.msra.mxu0 %v420
    %2379 = vmatprep.subr.mxu0 0.0
    %2380 = vmatpush1.msra.mxu0 %v421
    %2381 = vmatprep.subr.mxu0 0.0
    %2382 = vmatpush1.msra.mxu0 0.0
    %2383 = vmatprep.subr.mxu0 0.0
    %2384 = vmatpush1.msra.mxu0 0.0
    %2385 = vmatprep.subr.mxu0 0.0
    %2386 = vmatpush1.msra.mxu0 0.0
    %2387 = vmatprep.subr.mxu0 0.0
    %2388 = vmatpush1.msra.mxu0 0.0
    %2389 = vmatprep.subr.mxu0 0.0
    %2390 = vmatpush1.msra.mxu0 0.0
    %2391 = vmatprep.subr.mxu0 0.0
    %2392 = vmatpush1.msra.mxu0 0.0
    %2393 = vmatprep.subr.mxu0 0.0
    %2394 = vmatpush1.msra.mxu0 0.0
    %2395 = vmatprep.subr.mxu0 0.0
    %2396 = vmatpush1.msra.mxu0 0.0
    %2397 = vmatprep.subr.mxu0 0.0
    %2398 = vmatpush1.msra.mxu0 0.0
    %2399 = vmatprep.subr.mxu0 0.0
    %2400 = vmatpush1.msra.mxu0 0.0
    %2401 = vmatprep.subr.mxu0 0.0
    %2402 = vmatpush1.msra.mxu0 0.0
    %2403 = vmatprep.subr.mxu0 0.0
    %2404 = vmatpush1.msra.mxu0 0.0
    %2405 = vmatprep.subr.mxu0 0.0
    %2406 = vmatpush1.msra.mxu0 0.0
    %2407 = vmatprep.subr.mxu0 0.0
    %2408 = vmatpush1.msra.mxu0 0.0
    %2409 = vmatprep.subr.mxu0 0.0
    %2410 = vmatpush1.msra.mxu0 0.0
    %2411 = vmatprep.subr.mxu0 0.0
    %2412 = vmatpush1.msra.mxu0 0.0
    %2413 = vmatprep.subr.mxu0 0.0
    %2414 = vmatpush1.msra.mxu0 0.0
    %2415 = vmatprep.subr.mxu0 0.0
    %2416 = vmatpush1.msra.mxu0 0.0
    %2417 = vmatprep.subr.mxu0 0.0
    %2418 = vmatpush1.msra.mxu0 0.0
    %2419 = vmatprep.subr.mxu0 0.0
    %2420 = vmatpush1.msra.mxu0 0.0
    %2421 = vmatprep.subr.mxu0 0.0
    %2422 = vmatpush1.msra.mxu0 0.0
    %2423 = vmatprep.subr.mxu0 0.0
    %2424 = vmatpush1.msra.mxu0 0.0
    %2425 = vmatprep.subr.mxu0 0.0
    %2426 = vmatpush1.msra.mxu0 0.0
    %2427 = vmatprep.subr.mxu0 0.0
    %2428 = vmatpush1.msra.mxu0 0.0
    %2429 = vmatprep.subr.mxu0 0.0
    %2430 = vmatpush1.msra.mxu0 0.0
    %2431 = vmatprep.subr.mxu0 0.0
    %2432 = vmatpush1.msra.mxu0 0.0
    %2433 = vmatprep.subr.mxu0 0.0
    %2434 = vmatpush1.msra.mxu0 0.0
    %2435 = vmatprep.subr.mxu0 0.0
    %2436 = vmatpush1.msra.mxu0 0.0
    %2437 = vmatprep.mubr.f32.mxu0 0.0
    %2438 = vmatmul.mubr.f32.gmra.mrb[0].mxu0 %v2196
    %v2439 = vpop.f32.mrb[0].mxu0
    %v2440 = vadd.f32 0.0, %v2439
    %v2441 = vpop.f32.mrb[0].mxu0
    %2442 = vdwg.mxu0
    %v2443 = vadd.f32 %v2372, %v2440
    %v2444 = vxor.u32 %v2443, 2147483648
    %v2445 = vmul.f32 %v2444, 1.442695
    %v2446 = vpow.pop %v2445
    %v2447 = vadd.f32 %v2446, 1.0
    %v2448 = vrcp.pop %v2447
    %v2449 = vmul.f32 1.0, %v2448
    %v2450 = vtanh.pop %v2443
    %v2451 = vmul.f32 %v2449, %v2186
    %2453 = vrot.lane.b32.xlu0 %v2450, 64
    %v2454 = vpop.permute.xlu0 %2453
    %v2456 = vmul.f32 %v2449, %v2454
    %2458 = vrot.lane.b32.xlu0 %v2456, 32
    %v2459 = vpop.permute.xlu0 %2458
    %v2461 = vadd.f32 %v2451, %v2459
    %v2462 = vtanh.pop %v2461
    %2464 = vrot.lane.b32.xlu0 %v2462, 64
    %v2465 = vpop.permute.xlu0 %2464
    %v2467 = vmul.f32 %v2449, %v2465
    %2469 = vrot.lane.b32.xlu0 %v2467, 32
    %v2470 = vpop.permute.xlu0 %2469
    %v2471 = vsel %vm442, %v2470, 0
    %2473 = vmatprep.subr.mxu0 0.0
    %2474 = vmatpush1.msra.mxu0 %v422
    %2475 = vmatprep.subr.mxu0 0.0
    %2476 = vmatpush1.msra.mxu0 %v423
    %2477 = vmatprep.subr.mxu0 0.0
    %2478 = vmatpush1.msra.mxu0 %v424
    %2479 = vmatprep.subr.mxu0 0.0
    %2480 = vmatpush1.msra.mxu0 %v425
    %2481 = vmatprep.subr.mxu0 0.0
    %2482 = vmatpush1.msra.mxu0 0.0
    %2483 = vmatprep.subr.mxu0 0.0
    %2484 = vmatpush1.msra.mxu0 0.0
    %2485 = vmatprep.subr.mxu0 0.0
    %2486 = vmatpush1.msra.mxu0 0.0
    %2487 = vmatprep.subr.mxu0 0.0
    %2488 = vmatpush1.msra.mxu0 0.0
    %2489 = vmatprep.subr.mxu0 0.0
    %2490 = vmatpush1.msra.mxu0 0.0
    %2491 = vmatprep.subr.mxu0 0.0
    %2492 = vmatpush1.msra.mxu0 0.0
    %2493 = vmatprep.subr.mxu0 0.0
    %2494 = vmatpush1.msra.mxu0 0.0
    %2495 = vmatprep.subr.mxu0 0.0
    %2496 = vmatpush1.msra.mxu0 0.0
    %2497 = vmatprep.subr.mxu0 0.0
    %2498 = vmatpush1.msra.mxu0 0.0
    %2499 = vmatprep.subr.mxu0 0.0
    %2500 = vmatpush1.msra.mxu0 0.0
    %2501 = vmatprep.subr.mxu0 0.0
    %2502 = vmatpush1.msra.mxu0 0.0
    %2503 = vmatprep.subr.mxu0 0.0
    %2504 = vmatpush1.msra.mxu0 0.0
    %2505 = vmatprep.subr.mxu0 0.0
    %2506 = vmatpush1.msra.mxu0 0.0
    %2507 = vmatprep.subr.mxu0 0.0
    %2508 = vmatpush1.msra.mxu0 0.0
    %2509 = vmatprep.subr.mxu0 0.0
    %2510 = vmatpush1.msra.mxu0 0.0
    %2511 = vmatprep.subr.mxu0 0.0
    %2512 = vmatpush1.msra.mxu0 0.0
    %2513 = vmatprep.subr.mxu0 0.0
    %2514 = vmatpush1.msra.mxu0 0.0
    %2515 = vmatprep.subr.mxu0 0.0
    %2516 = vmatpush1.msra.mxu0 0.0
    %2517 = vmatprep.subr.mxu0 0.0
    %2518 = vmatpush1.msra.mxu0 0.0
    %2519 = vmatprep.subr.mxu0 0.0
    %2520 = vmatpush1.msra.mxu0 0.0
    %2521 = vmatprep.subr.mxu0 0.0
    %2522 = vmatpush1.msra.mxu0 0.0
    %2523 = vmatprep.subr.mxu0 0.0
    %2524 = vmatpush1.msra.mxu0 0.0
    %2525 = vmatprep.subr.mxu0 0.0
    %2526 = vmatpush1.msra.mxu0 0.0
    %2527 = vmatprep.subr.mxu0 0.0
    %2528 = vmatpush1.msra.mxu0 0.0
    %2529 = vmatprep.subr.mxu0 0.0
    %2530 = vmatpush1.msra.mxu0 0.0
    %2531 = vmatprep.subr.mxu0 0.0
    %2532 = vmatpush1.msra.mxu0 0.0
    %2533 = vmatprep.subr.mxu0 0.0
    %2534 = vmatpush1.msra.mxu0 0.0
    %2535 = vmatprep.subr.mxu0 0.0
    %2536 = vmatpush1.msra.mxu0 0.0
    %2537 = vmatprep.mubr.f32.mxu0 0.0
    %2538 = vmatmul.mubr.f32.gmra.mrb[0].mxu0 %v2471
    %v2539 = vpop.f32.mrb[0].mxu0
    %v2540 = vadd.f32 %v435, %v2539
    %v2541 = vpop.f32.mrb[0].mxu0
    %2542 = vdwg.mxu0
    %2544 = vrot.lane.b32.xlu0 %v2367, 32
    %v2545 = vpop.permute.xlu0 %2544
    %v2546 = vsel %vm442, %v2545, 0
    %2548 = vmatprep.subr.mxu0 0.0
    %2549 = vmatpush1.msra.mxu0 %v426
    %2550 = vmatprep.subr.mxu0 0.0
    %2551 = vmatpush1.msra.mxu0 %v427
    %2552 = vmatprep.subr.mxu0 0.0
    %2553 = vmatpush1.msra.mxu0 %v428
    %2554 = vmatprep.subr.mxu0 0.0
    %2555 = vmatpush1.msra.mxu0 %v429
    %2556 = vmatprep.subr.mxu0 0.0
    %2557 = vmatpush1.msra.mxu0 0.0
    %2558 = vmatprep.subr.mxu0 0.0
    %2559 = vmatpush1.msra.mxu0 0.0
    %2560 = vmatprep.subr.mxu0 0.0
    %2561 = vmatpush1.msra.mxu0 0.0
    %2562 = vmatprep.subr.mxu0 0.0
    %2563 = vmatpush1.msra.mxu0 0.0
    %2564 = vmatprep.subr.mxu0 0.0
    %2565 = vmatpush1.msra.mxu0 0.0
    %2566 = vmatprep.subr.mxu0 0.0
    %2567 = vmatpush1.msra.mxu0 0.0
    %2568 = vmatprep.subr.mxu0 0.0
    %2569 = vmatpush1.msra.mxu0 0.0
    %2570 = vmatprep.subr.mxu0 0.0
    %2571 = vmatpush1.msra.mxu0 0.0
    %2572 = vmatprep.subr.mxu0 0.0
    %2573 = vmatpush1.msra.mxu0 0.0
    %2574 = vmatprep.subr.mxu0 0.0
    %2575 = vmatpush1.msra.mxu0 0.0
    %2576 = vmatprep.subr.mxu0 0.0
    %2577 = vmatpush1.msra.mxu0 0.0
    %2578 = vmatprep.subr.mxu0 0.0
    %2579 = vmatpush1.msra.mxu0 0.0
    %2580 = vmatprep.subr.mxu0 0.0
    %2581 = vmatpush1.msra.mxu0 0.0
    %2582 = vmatprep.subr.mxu0 0.0
    %2583 = vmatpush1.msra.mxu0 0.0
    %2584 = vmatprep.subr.mxu0 0.0
    %2585 = vmatpush1.msra.mxu0 0.0
    %2586 = vmatprep.subr.mxu0 0.0
    %2587 = vmatpush1.msra.mxu0 0.0
    %2588 = vmatprep.subr.mxu0 0.0
    %2589 = vmatpush1.msra.mxu0 0.0
    %2590 = vmatprep.subr.mxu0 0.0
    %2591 = vmatpush1.msra.mxu0 0.0
    %2592 = vmatprep.subr.mxu0 0.0
    %2593 = vmatpush1.msra.mxu0 0.0
    %2594 = vmatprep.subr.mxu0 0.0
    %2595 = vmatpush1.msra.mxu0 0.0
    %2596 = vmatprep.subr.mxu0 0.0
    %2597 = vmatpush1.msra.mxu0 0.0
    %2598 = vmatprep.subr.mxu0 0.0
    %2599 = vmatpush1.msra.mxu0 0.0
    %2600 = vmatprep.subr.mxu0 0.0
    %2601 = vmatpush1.msra.mxu0 0.0
    %2602 = vmatprep.subr.mxu0 0.0
    %2603 = vmatpush1.msra.mxu0 0.0
    %2604 = vmatprep.subr.mxu0 0.0
    %2605 = vmatpush1.msra.mxu0 0.0
    %2606 = vmatprep.subr.mxu0 0.0
    %2607 = vmatpush1.msra.mxu0 0.0
    %2608 = vmatprep.subr.mxu0 0.0
    %2609 = vmatpush1.msra.mxu0 0.0
    %2610 = vmatprep.subr.mxu0 0.0
    %2611 = vmatpush1.msra.mxu0 0.0
    %2612 = vmatprep.mubr.f32.mxu0 0.0
    %2613 = vmatmul.mubr.f32.gmra.mrb[0].mxu0 %v2546
    %v2614 = vpop.f32.mrb[0].mxu0
    %v2615 = vadd.f32 0.0, %v2614
    %v2616 = vpop.f32.mrb[0].mxu0
    %2617 = vdwg.mxu0
    %v2618 = vadd.f32 %v2540, %v2615
    %v2619 = vxor.u32 %v2618, 2147483648
    %v2620 = vmul.f32 %v2619, 1.442695
    %v2621 = vpow.pop %v2620
    %v2622 = vadd.f32 %v2621, 1.0
    %v2623 = vrcp.pop %v2622
    %v2624 = vmul.f32 1.0, %v2623
    %v2625 = vtanh.pop %v2618
    %v2626 = vmul.f32 %v2624, %v2361
    %2628 = vrot.lane.b32.xlu0 %v2625, 64
    %v2629 = vpop.permute.xlu0 %2628
    %v2631 = vmul.f32 %v2624, %v2629
    %2633 = vrot.lane.b32.xlu0 %v2631, 32
    %v2634 = vpop.permute.xlu0 %2633
    %v2636 = vadd.f32 %v2626, %v2634
    %v2637 = vtanh.pop %v2636
    %2639 = vrot.lane.b32.xlu0 %v2637, 64
    %v2640 = vpop.permute.xlu0 %2639
    %v2642 = vmul.f32 %v2624, %v2640
    %v2643 = vrot.slane %v395, 3
    %v2645 = vsel %vm440, %v390, %v2643
    %2646 = vmatprep.subr.mxu0 0.0
    %2647 = vmatpush1.msra.mxu0 %v418
    %2648 = vmatprep.subr.mxu0 0.0
    %2649 = vmatpush1.msra.mxu0 %v419
    %2650 = vmatprep.subr.mxu0 0.0
    %2651 = vmatpush1.msra.mxu0 %v420
    %2652 = vmatprep.subr.mxu0 0.0
    %2653 = vmatpush1.msra.mxu0 %v421
    %2654 = vmatprep.subr.mxu0 0.0
    %2655 = vmatpush1.msra.mxu0 0.0
    %2656 = vmatprep.subr.mxu0 0.0
    %2657 = vmatpush1.msra.mxu0 0.0
    %2658 = vmatprep.subr.mxu0 0.0
    %2659 = vmatpush1.msra.mxu0 0.0
    %2660 = vmatprep.subr.mxu0 0.0
    %2661 = vmatpush1.msra.mxu0 0.0
    %2662 = vmatprep.subr.mxu0 0.0
    %2663 = vmatpush1.msra.mxu0 0.0
    %2664 = vmatprep.subr.mxu0 0.0
    %2665 = vmatpush1.msra.mxu0 0.0
    %2666 = vmatprep.subr.mxu0 0.0
    %2667 = vmatpush1.msra.mxu0 0.0
    %2668 = vmatprep.subr.mxu0 0.0
    %2669 = vmatpush1.msra.mxu0 0.0
    %2670 = vmatprep.subr.mxu0 0.0
    %2671 = vmatpush1.msra.mxu0 0.0
    %2672 = vmatprep.subr.mxu0 0.0
    %2673 = vmatpush1.msra.mxu0 0.0
    %2674 = vmatprep.subr.mxu0 0.0
    %2675 = vmatpush1.msra.mxu0 0.0
    %2676 = vmatprep.subr.mxu0 0.0
    %2677 = vmatpush1.msra.mxu0 0.0
    %2678 = vmatprep.subr.mxu0 0.0
    %2679 = vmatpush1.msra.mxu0 0.0
    %2680 = vmatprep.subr.mxu0 0.0
    %2681 = vmatpush1.msra.mxu0 0.0
    %2682 = vmatprep.subr.mxu0 0.0
    %2683 = vmatpush1.msra.mxu0 0.0
    %2684 = vmatprep.subr.mxu0 0.0
    %2685 = vmatpush1.msra.mxu0 0.0
    %2686 = vmatprep.subr.mxu0 0.0
    %2687 = vmatpush1.msra.mxu0 0.0
    %2688 = vmatprep.subr.mxu0 0.0
    %2689 = vmatpush1.msra.mxu0 0.0
    %2690 = vmatprep.subr.mxu0 0.0
    %2691 = vmatpush1.msra.mxu0 0.0
    %2692 = vmatprep.subr.mxu0 0.0
    %2693 = vmatpush1.msra.mxu0 0.0
    %2694 = vmatprep.subr.mxu0 0.0
    %2695 = vmatpush1.msra.mxu0 0.0
    %2696 = vmatprep.subr.mxu0 0.0
    %2697 = vmatpush1.msra.mxu0 0.0
    %2698 = vmatprep.subr.mxu0 0.0
    %2699 = vmatpush1.msra.mxu0 0.0
    %2700 = vmatprep.subr.mxu0 0.0
    %2701 = vmatpush1.msra.mxu0 0.0
    %2702 = vmatprep.subr.mxu0 0.0
    %2703 = vmatpush1.msra.mxu0 0.0
    %2704 = vmatprep.subr.mxu0 0.0
    %2705 = vmatpush1.msra.mxu0 0.0
    %2706 = vmatprep.subr.mxu0 0.0
    %2707 = vmatpush1.msra.mxu0 0.0
    %2708 = vmatprep.subr.mxu0 0.0
    %2709 = vmatpush1.msra.mxu0 0.0
    %2710 = vmatprep.mubr.f32.mxu0 0.0
    %2711 = vmatmul.mubr.f32.gmra.mrb[0].mxu0 %v2471
    %v2712 = vpop.f32.mrb[0].mxu0
    %v2713 = vadd.f32 0.0, %v2712
    %v2714 = vpop.f32.mrb[0].mxu0
    %2715 = vdwg.mxu0
    %v2716 = vadd.f32 %v2645, %v2713
    %v2717 = vxor.u32 %v2716, 2147483648
    %v2718 = vmul.f32 %v2717, 1.442695
    %v2719 = vpow.pop %v2718
    %v2720 = vadd.f32 %v2719, 1.0
    %v2721 = vrcp.pop %v2720
    %v2722 = vmul.f32 1.0, %v2721
    %v2723 = vtanh.pop %v2716
    %v2724 = vmul.f32 %v2722, %v2461
    %2726 = vrot.lane.b32.xlu0 %v2723, 64
    %v2727 = vpop.permute.xlu0 %2726
    %v2729 = vmul.f32 %v2722, %v2727
    %2731 = vrot.lane.b32.xlu0 %v2729, 32
    %v2732 = vpop.permute.xlu0 %2731
    %v2734 = vadd.f32 %v2724, %v2732
    %v2735 = vtanh.pop %v2734
    %2737 = vrot.lane.b32.xlu0 %v2735, 64
    %v2738 = vpop.permute.xlu0 %2737
    %v2740 = vmul.f32 %v2722, %v2738
    %2742 = vrot.lane.b32.xlu0 %v2740, 32
    %v2743 = vpop.permute.xlu0 %2742
    %v2744 = vsel %vm442, %v2743, 0
    %2746 = vmatprep.subr.mxu0 0.0
    %2747 = vmatpush1.msra.mxu0 %v422
    %2748 = vmatprep.subr.mxu0 0.0
    %2749 = vmatpush1.msra.mxu0 %v423
    %2750 = vmatprep.subr.mxu0 0.0
    %2751 = vmatpush1.msra.mxu0 %v424
    %2752 = vmatprep.subr.mxu0 0.0
    %2753 = vmatpush1.msra.mxu0 %v425
    %2754 = vmatprep.subr.mxu0 0.0
    %2755 = vmatpush1.msra.mxu0 0.0
    %2756 = vmatprep.subr.mxu0 0.0
    %2757 = vmatpush1.msra.mxu0 0.0
    %2758 = vmatprep.subr.mxu0 0.0
    %2759 = vmatpush1.msra.mxu0 0.0
    %2760 = vmatprep.subr.mxu0 0.0
    %2761 = vmatpush1.msra.mxu0 0.0
    %2762 = vmatprep.subr.mxu0 0.0
    %2763 = vmatpush1.msra.mxu0 0.0
    %2764 = vmatprep.subr.mxu0 0.0
    %2765 = vmatpush1.msra.mxu0 0.0
    %2766 = vmatprep.subr.mxu0 0.0
    %2767 = vmatpush1.msra.mxu0 0.0
    %2768 = vmatprep.subr.mxu0 0.0
    %2769 = vmatpush1.msra.mxu0 0.0
    %2770 = vmatprep.subr.mxu0 0.0
    %2771 = vmatpush1.msra.mxu0 0.0
    %2772 = vmatprep.subr.mxu0 0.0
    %2773 = vmatpush1.msra.mxu0 0.0
    %2774 = vmatprep.subr.mxu0 0.0
    %2775 = vmatpush1.msra.mxu0 0.0
    %2776 = vmatprep.subr.mxu0 0.0
    %2777 = vmatpush1.msra.mxu0 0.0
    %2778 = vmatprep.subr.mxu0 0.0
    %2779 = vmatpush1.msra.mxu0 0.0
    %2780 = vmatprep.subr.mxu0 0.0
    %2781 = vmatpush1.msra.mxu0 0.0
    %2782 = vmatprep.subr.mxu0 0.0
    %2783 = vmatpush1.msra.mxu0 0.0
    %2784 = vmatprep.subr.mxu0 0.0
    %2785 = vmatpush1.msra.mxu0 0.0
    %2786 = vmatprep.subr.mxu0 0.0
    %2787 = vmatpush1.msra.mxu0 0.0
    %2788 = vmatprep.subr.mxu0 0.0
    %2789 = vmatpush1.msra.mxu0 0.0
    %2790 = vmatprep.subr.mxu0 0.0
    %2791 = vmatpush1.msra.mxu0 0.0
    %2792 = vmatprep.subr.mxu0 0.0
    %2793 = vmatpush1.msra.mxu0 0.0
    %2794 = vmatprep.subr.mxu0 0.0
    %2795 = vmatpush1.msra.mxu0 0.0
    %2796 = vmatprep.subr.mxu0 0.0
    %2797 = vmatpush1.msra.mxu0 0.0
    %2798 = vmatprep.subr.mxu0 0.0
    %2799 = vmatpush1.msra.mxu0 0.0
    %2800 = vmatprep.subr.mxu0 0.0
    %2801 = vmatpush1.msra.mxu0 0.0
    %2802 = vmatprep.subr.mxu0 0.0
    %2803 = vmatpush1.msra.mxu0 0.0
    %2804 = vmatprep.subr.mxu0 0.0
    %2805 = vmatpush1.msra.mxu0 0.0
    %2806 = vmatprep.subr.mxu0 0.0
    %2807 = vmatpush1.msra.mxu0 0.0
    %2808 = vmatprep.subr.mxu0 0.0
    %2809 = vmatpush1.msra.mxu0 0.0
    %2810 = vmatprep.mubr.f32.mxu0 0.0
    %2811 = vmatmul.mubr.f32.gmra.mrb[0].mxu0 %v2744
    %v2812 = vpop.f32.mrb[0].mxu0
    %v2813 = vadd.f32 %v435, %v2812
    %v2814 = vpop.f32.mrb[0].mxu0
    %2815 = vdwg.mxu0
    %2817 = vrot.lane.b32.xlu0 %v2642, 32
    %v2818 = vpop.permute.xlu0 %2817
    %v2819 = vsel %vm442, %v2818, 0
    %2821 = vmatprep.subr.mxu0 0.0
    %2822 = vmatpush1.msra.mxu0 %v426
    %2823 = vmatprep.subr.mxu0 0.0
    %2824 = vmatpush1.msra.mxu0 %v427
    %2825 = vmatprep.subr.mxu0 0.0
    %2826 = vmatpush1.msra.mxu0 %v428
    %2827 = vmatprep.subr.mxu0 0.0
    %2828 = vmatpush1.msra.mxu0 %v429
    %2829 = vmatprep.subr.mxu0 0.0
    %2830 = vmatpush1.msra.mxu0 0.0
    %2831 = vmatprep.subr.mxu0 0.0
    %2832 = vmatpush1.msra.mxu0 0.0
    %2833 = vmatprep.subr.mxu0 0.0
    %2834 = vmatpush1.msra.mxu0 0.0
    %2835 = vmatprep.subr.mxu0 0.0
    %2836 = vmatpush1.msra.mxu0 0.0
    %2837 = vmatprep.subr.mxu0 0.0
    %2838 = vmatpush1.msra.mxu0 0.0
    %2839 = vmatprep.subr.mxu0 0.0
    %2840 = vmatpush1.msra.mxu0 0.0
    %2841 = vmatprep.subr.mxu0 0.0
    %2842 = vmatpush1.msra.mxu0 0.0
    %2843 = vmatprep.subr.mxu0 0.0
    %2844 = vmatpush1.msra.mxu0 0.0
    %2845 = vmatprep.subr.mxu0 0.0
    %2846 = vmatpush1.msra.mxu0 0.0
    %2847 = vmatprep.subr.mxu0 0.0
    %2848 = vmatpush1.msra.mxu0 0.0
    %2849 = vmatprep.subr.mxu0 0.0
    %2850 = vmatpush1.msra.mxu0 0.0
    %2851 = vmatprep.subr.mxu0 0.0
    %2852 = vmatpush1.msra.mxu0 0.0
    %2853 = vmatprep.subr.mxu0 0.0
    %2854 = vmatpush1.msra.mxu0 0.0
    %2855 = vmatprep.subr.mxu0 0.0
    %2856 = vmatpush1.msra.mxu0 0.0
    %2857 = vmatprep.subr.mxu0 0.0
    %2858 = vmatpush1.msra.mxu0 0.0
    %2859 = vmatprep.subr.mxu0 0.0
    %2860 = vmatpush1.msra.mxu0 0.0
    %2861 = vmatprep.subr.mxu0 0.0
    %2862 = vmatpush1.msra.mxu0 0.0
    %2863 = vmatprep.subr.mxu0 0.0
    %2864 = vmatpush1.msra.mxu0 0.0
    %2865 = vmatprep.subr.mxu0 0.0
    %2866 = vmatpush1.msra.mxu0 0.0
    %2867 = vmatprep.subr.mxu0 0.0
    %2868 = vmatpush1.msra.mxu0 0.0
    %2869 = vmatprep.subr.mxu0 0.0
    %2870 = vmatpush1.msra.mxu0 0.0
    %2871 = vmatprep.subr.mxu0 0.0
    %2872 = vmatpush1.msra.mxu0 0.0
    %2873 = vmatprep.subr.mxu0 0.0
    %2874 = vmatpush1.msra.mxu0 0.0
    %2875 = vmatprep.subr.mxu0 0.0
    %2876 = vmatpush1.msra.mxu0 0.0
    %2877 = vmatprep.subr.mxu0 0.0
    %2878 = vmatpush1.msra.mxu0 0.0
    %2879 = vmatprep.subr.mxu0 0.0
    %2880 = vmatpush1.msra.mxu0 0.0
    %2881 = vmatprep.subr.mxu0 0.0
    %2882 = vmatpush1.msra.mxu0 0.0
    %2883 = vmatprep.subr.mxu0 0.0
    %2884 = vmatpush1.msra.mxu0 0.0
    %2885 = vmatprep.mubr.f32.mxu0 0.0
    %2886 = vmatmul.mubr.f32.gmra.mrb[0].mxu0 %v2819
    %v2887 = vpop.f32.mrb[0].mxu0
    %v2888 = vadd.f32 0.0, %v2887
    %v2889 = vpop.f32.mrb[0].mxu0
    %2890 = vdwg.mxu0
    %v2891 = vadd.f32 %v2813, %v2888
    %v2892 = vxor.u32 %v2891, 2147483648
    %v2893 = vmul.f32 %v2892, 1.442695
    %v2894 = vpow.pop %v2893
    %v2895 = vadd.f32 %v2894, 1.0
    %v2896 = vrcp.pop %v2895
    %v2897 = vmul.f32 1.0, %v2896
    %v2898 = vtanh.pop %v2891
    %v2899 = vmul.f32 %v2897, %v2636
    %2901 = vrot.lane.b32.xlu0 %v2898, 64
    %v2902 = vpop.permute.xlu0 %2901
    %v2904 = vmul.f32 %v2897, %v2902
    %2906 = vrot.lane.b32.xlu0 %v2904, 32
    %v2907 = vpop.permute.xlu0 %2906
    %v2909 = vadd.f32 %v2899, %v2907
    %v2910 = vtanh.pop %v2909
    %2912 = vrot.lane.b32.xlu0 %v2910, 64
    %v2913 = vpop.permute.xlu0 %2912
    %v2915 = vmul.f32 %v2897, %v2913
    %v2916 = vrot.slane %v390, 1
    %v2918 = vrot.slane %v395, 4
    %v2920 = vsel %vm440, %v2916, %v2918
    %2921 = vmatprep.subr.mxu0 0.0
    %2922 = vmatpush1.msra.mxu0 %v418
    %2923 = vmatprep.subr.mxu0 0.0
    %2924 = vmatpush1.msra.mxu0 %v419
    %2925 = vmatprep.subr.mxu0 0.0
    %2926 = vmatpush1.msra.mxu0 %v420
    %2927 = vmatprep.subr.mxu0 0.0
    %2928 = vmatpush1.msra.mxu0 %v421
    %2929 = vmatprep.subr.mxu0 0.0
    %2930 = vmatpush1.msra.mxu0 0.0
    %2931 = vmatprep.subr.mxu0 0.0
    %2932 = vmatpush1.msra.mxu0 0.0
    %2933 = vmatprep.subr.mxu0 0.0
    %2934 = vmatpush1.msra.mxu0 0.0
    %2935 = vmatprep.subr.mxu0 0.0
    %2936 = vmatpush1.msra.mxu0 0.0
    %2937 = vmatprep.subr.mxu0 0.0
    %2938 = vmatpush1.msra.mxu0 0.0
    %2939 = vmatprep.subr.mxu0 0.0
    %2940 = vmatpush1.msra.mxu0 0.0
    %2941 = vmatprep.subr.mxu0 0.0
    %2942 = vmatpush1.msra.mxu0 0.0
    %2943 = vmatprep.subr.mxu0 0.0
    %2944 = vmatpush1.msra.mxu0 0.0
    %2945 = vmatprep.subr.mxu0 0.0
    %2946 = vmatpush1.msra.mxu0 0.0
    %2947 = vmatprep.subr.mxu0 0.0
    %2948 = vmatpush1.msra.mxu0 0.0
    %2949 = vmatprep.subr.mxu0 0.0
    %2950 = vmatpush1.msra.mxu0 0.0
    %2951 = vmatprep.subr.mxu0 0.0
    %2952 = vmatpush1.msra.mxu0 0.0
    %2953 = vmatprep.subr.mxu0 0.0
    %2954 = vmatpush1.msra.mxu0 0.0
    %2955 = vmatprep.subr.mxu0 0.0
    %2956 = vmatpush1.msra.mxu0 0.0
    %2957 = vmatprep.subr.mxu0 0.0
    %2958 = vmatpush1.msra.mxu0 0.0
    %2959 = vmatprep.subr.mxu0 0.0
    %2960 = vmatpush1.msra.mxu0 0.0
    %2961 = vmatprep.subr.mxu0 0.0
    %2962 = vmatpush1.msra.mxu0 0.0
    %2963 = vmatprep.subr.mxu0 0.0
    %2964 = vmatpush1.msra.mxu0 0.0
    %2965 = vmatprep.subr.mxu0 0.0
    %2966 = vmatpush1.msra.mxu0 0.0
    %2967 = vmatprep.subr.mxu0 0.0
    %2968 = vmatpush1.msra.mxu0 0.0
    %2969 = vmatprep.subr.mxu0 0.0
    %2970 = vmatpush1.msra.mxu0 0.0
    %2971 = vmatprep.subr.mxu0 0.0
    %2972 = vmatpush1.msra.mxu0 0.0
    %2973 = vmatprep.subr.mxu0 0.0
    %2974 = vmatpush1.msra.mxu0 0.0
    %2975 = vmatprep.subr.mxu0 0.0
    %2976 = vmatpush1.msra.mxu0 0.0
    %2977 = vmatprep.subr.mxu0 0.0
    %2978 = vmatpush1.msra.mxu0 0.0
    %2979 = vmatprep.subr.mxu0 0.0
    %2980 = vmatpush1.msra.mxu0 0.0
    %2981 = vmatprep.subr.mxu0 0.0
    %2982 = vmatpush1.msra.mxu0 0.0
    %2983 = vmatprep.subr.mxu0 0.0
    %2984 = vmatpush1.msra.mxu0 0.0
    %2985 = vmatprep.mubr.f32.mxu0 0.0
    %2986 = vmatmul.mubr.f32.gmra.mrb[0].mxu0 %v2744
    %v2987 = vpop.f32.mrb[0].mxu0
    %v2988 = vadd.f32 0.0, %v2987
    %v2989 = vpop.f32.mrb[0].mxu0
    %2990 = vdwg.mxu0
    %v2991 = vadd.f32 %v2920, %v2988
    %v2992 = vxor.u32 %v2991, 2147483648
    %v2993 = vmul.f32 %v2992, 1.442695
    %v2994 = vpow.pop %v2993
    %v2995 = vadd.f32 %v2994, 1.0
    %v2996 = vrcp.pop %v2995
    %v2997 = vmul.f32 1.0, %v2996
    %v2998 = vtanh.pop %v2991
    %v2999 = vmul.f32 %v2997, %v2734
    %3001 = vrot.lane.b32.xlu0 %v2998, 64
    %v3002 = vpop.permute.xlu0 %3001
    %v3004 = vmul.f32 %v2997, %v3002
    %3006 = vrot.lane.b32.xlu0 %v3004, 32
    %v3007 = vpop.permute.xlu0 %3006
    %v3009 = vadd.f32 %v2999, %v3007
    %v3010 = vtanh.pop %v3009
    %3012 = vrot.lane.b32.xlu0 %v3010, 64
    %v3013 = vpop.permute.xlu0 %3012
    %v3015 = vmul.f32 %v2997, %v3013
    %3017 = vrot.lane.b32.xlu0 %v3015, 32
    %v3018 = vpop.permute.xlu0 %3017
    %v3019 = vsel %vm442, %v3018, 0
    %3021 = vmatprep.subr.mxu0 0.0
    %3022 = vmatpush1.msra.mxu0 %v422
    %3023 = vmatprep.subr.mxu0 0.0
    %3024 = vmatpush1.msra.mxu0 %v423
    %3025 = vmatprep.subr.mxu0 0.0
    %3026 = vmatpush1.msra.mxu0 %v424
    %3027 = vmatprep.subr.mxu0 0.0
    %3028 = vmatpush1.msra.mxu0 %v425
    %3029 = vmatprep.subr.mxu0 0.0
    %3030 = vmatpush1.msra.mxu0 0.0
    %3031 = vmatprep.subr.mxu0 0.0
    %3032 = vmatpush1.msra.mxu0 0.0
    %3033 = vmatprep.subr.mxu0 0.0
    %3034 = vmatpush1.msra.mxu0 0.0
    %3035 = vmatprep.subr.mxu0 0.0
    %3036 = vmatpush1.msra.mxu0 0.0
    %3037 = vmatprep.subr.mxu0 0.0
    %3038 = vmatpush1.msra.mxu0 0.0
    %3039 = vmatprep.subr.mxu0 0.0
    %3040 = vmatpush1.msra.mxu0 0.0
    %3041 = vmatprep.subr.mxu0 0.0
    %3042 = vmatpush1.msra.mxu0 0.0
    %3043 = vmatprep.subr.mxu0 0.0
    %3044 = vmatpush1.msra.mxu0 0.0
    %3045 = vmatprep.subr.mxu0 0.0
    %3046 = vmatpush1.msra.mxu0 0.0
    %3047 = vmatprep.subr.mxu0 0.0
    %3048 = vmatpush1.msra.mxu0 0.0
    %3049 = vmatprep.subr.mxu0 0.0
    %3050 = vmatpush1.msra.mxu0 0.0
    %3051 = vmatprep.subr.mxu0 0.0
    %3052 = vmatpush1.msra.mxu0 0.0
    %3053 = vmatprep.subr.mxu0 0.0
    %3054 = vmatpush1.msra.mxu0 0.0
    %3055 = vmatprep.subr.mxu0 0.0
    %3056 = vmatpush1.msra.mxu0 0.0
    %3057 = vmatprep.subr.mxu0 0.0
    %3058 = vmatpush1.msra.mxu0 0.0
    %3059 = vmatprep.subr.mxu0 0.0
    %3060 = vmatpush1.msra.mxu0 0.0
    %3061 = vmatprep.subr.mxu0 0.0
    %3062 = vmatpush1.msra.mxu0 0.0
    %3063 = vmatprep.subr.mxu0 0.0
    %3064 = vmatpush1.msra.mxu0 0.0
    %3065 = vmatprep.subr.mxu0 0.0
    %3066 = vmatpush1.msra.mxu0 0.0
    %3067 = vmatprep.subr.mxu0 0.0
    %3068 = vmatpush1.msra.mxu0 0.0
    %3069 = vmatprep.subr.mxu0 0.0
    %3070 = vmatpush1.msra.mxu0 0.0
    %3071 = vmatprep.subr.mxu0 0.0
    %3072 = vmatpush1.msra.mxu0 0.0
    %3073 = vmatprep.subr.mxu0 0.0
    %3074 = vmatpush1.msra.mxu0 0.0
    %3075 = vmatprep.subr.mxu0 0.0
    %3076 = vmatpush1.msra.mxu0 0.0
    %3077 = vmatprep.subr.mxu0 0.0
    %3078 = vmatpush1.msra.mxu0 0.0
    %3079 = vmatprep.subr.mxu0 0.0
    %3080 = vmatpush1.msra.mxu0 0.0
    %3081 = vmatprep.subr.mxu0 0.0
    %3082 = vmatpush1.msra.mxu0 0.0
    %3083 = vmatprep.subr.mxu0 0.0
    %3084 = vmatpush1.msra.mxu0 0.0
    %3085 = vmatprep.mubr.f32.mxu0 0.0
    %3086 = vmatmul.mubr.f32.gmra.mrb[0].mxu0 %v3019
    %v3087 = vpop.f32.mrb[0].mxu0
    %v3088 = vadd.f32 %v435, %v3087
    %v3089 = vpop.f32.mrb[0].mxu0
    %3090 = vdwg.mxu0
    %3092 = vrot.lane.b32.xlu0 %v2915, 32
    %v3093 = vpop.permute.xlu0 %3092
    %v3094 = vsel %vm442, %v3093, 0
    %3096 = vmatprep.subr.mxu0 0.0
    %3097 = vmatpush1.msra.mxu0 %v426
    %3098 = vmatprep.subr.mxu0 0.0
    %3099 = vmatpush1.msra.mxu0 %v427
    %3100 = vmatprep.subr.mxu0 0.0
    %3101 = vmatpush1.msra.mxu0 %v428
    %3102 = vmatprep.subr.mxu0 0.0
    %3103 = vmatpush1.msra.mxu0 %v429
    %3104 = vmatprep.subr.mxu0 0.0
    %3105 = vmatpush1.msra.mxu0 0.0
    %3106 = vmatprep.subr.mxu0 0.0
    %3107 = vmatpush1.msra.mxu0 0.0
    %3108 = vmatprep.subr.mxu0 0.0
    %3109 = vmatpush1.msra.mxu0 0.0
    %3110 = vmatprep.subr.mxu0 0.0
    %3111 = vmatpush1.msra.mxu0 0.0
    %3112 = vmatprep.subr.mxu0 0.0
    %3113 = vmatpush1.msra.mxu0 0.0
    %3114 = vmatprep.subr.mxu0 0.0
    %3115 = vmatpush1.msra.mxu0 0.0
    %3116 = vmatprep.subr.mxu0 0.0
    %3117 = vmatpush1.msra.mxu0 0.0
    %3118 = vmatprep.subr.mxu0 0.0
    %3119 = vmatpush1.msra.mxu0 0.0
    %3120 = vmatprep.subr.mxu0 0.0
    %3121 = vmatpush1.msra.mxu0 0.0
    %3122 = vmatprep.subr.mxu0 0.0
    %3123 = vmatpush1.msra.mxu0 0.0
    %3124 = vmatprep.subr.mxu0 0.0
    %3125 = vmatpush1.msra.mxu0 0.0
    %3126 = vmatprep.subr.mxu0 0.0
    %3127 = vmatpush1.msra.mxu0 0.0
    %3128 = vmatprep.subr.mxu0 0.0
    %3129 = vmatpush1.msra.mxu0 0.0
    %3130 = vmatprep.subr.mxu0 0.0
    %3131 = vmatpush1.msra.mxu0 0.0
    %3132 = vmatprep.subr.mxu0 0.0
    %3133 = vmatpush1.msra.mxu0 0.0
    %3134 = vmatprep.subr.mxu0 0.0
    %3135 = vmatpush1.msra.mxu0 0.0
    %3136 = vmatprep.subr.mxu0 0.0
    %3137 = vmatpush1.msra.mxu0 0.0
    %3138 = vmatprep.subr.mxu0 0.0
    %3139 = vmatpush1.msra.mxu0 0.0
    %3140 = vmatprep.subr.mxu0 0.0
    %3141 = vmatpush1.msra.mxu0 0.0
    %3142 = vmatprep.subr.mxu0 0.0
    %3143 = vmatpush1.msra.mxu0 0.0
    %3144 = vmatprep.subr.mxu0 0.0
    %3145 = vmatpush1.msra.mxu0 0.0
    %3146 = vmatprep.subr.mxu0 0.0
    %3147 = vmatpush1.msra.mxu0 0.0
    %3148 = vmatprep.subr.mxu0 0.0
    %3149 = vmatpush1.msra.mxu0 0.0
    %3150 = vmatprep.subr.mxu0 0.0
    %3151 = vmatpush1.msra.mxu0 0.0
    %3152 = vmatprep.subr.mxu0 0.0
    %3153 = vmatpush1.msra.mxu0 0.0
    %3154 = vmatprep.subr.mxu0 0.0
    %3155 = vmatpush1.msra.mxu0 0.0
    %3156 = vmatprep.subr.mxu0 0.0
    %3157 = vmatpush1.msra.mxu0 0.0
    %3158 = vmatprep.subr.mxu0 0.0
    %3159 = vmatpush1.msra.mxu0 0.0
    %3160 = vmatprep.mubr.f32.mxu0 0.0
    %3161 = vmatmul.mubr.f32.gmra.mrb[0].mxu0 %v3094
    %v3162 = vpop.f32.mrb[0].mxu0
    %v3163 = vadd.f32 0.0, %v3162
    %v3164 = vpop.f32.mrb[0].mxu0
    %3165 = vdwg.mxu0
    %v3166 = vadd.f32 %v3088, %v3163
    %v3167 = vxor.u32 %v3166, 2147483648
    %v3168 = vmul.f32 %v3167, 1.442695
    %v3169 = vpow.pop %v3168
    %v3170 = vadd.f32 %v3169, 1.0
    %v3171 = vrcp.pop %v3170
    %v3172 = vmul.f32 1.0, %v3171
    %v3173 = vtanh.pop %v3166
    %v3174 = vmul.f32 %v3172, %v2909
    %3176 = vrot.lane.b32.xlu0 %v3173, 64
    %v3177 = vpop.permute.xlu0 %3176
    %v3179 = vmul.f32 %v3172, %v3177
    %3181 = vrot.lane.b32.xlu0 %v3179, 32
    %v3182 = vpop.permute.xlu0 %3181
    %v3184 = vadd.f32 %v3174, %v3182
    %v3185 = vtanh.pop %v3184
    %3187 = vrot.lane.b32.xlu0 %v3185, 64
    %v3188 = vpop.permute.xlu0 %3187
    %v3190 = vmul.f32 %v3172, %v3188
    %v3191 = vrot.slane %v390, 2
    %v3193 = vrot.slane %v395, 5
    %v3195 = vsel %vm440, %v3191, %v3193
    %3196 = vmatprep.subr.mxu0 0.0
    %3197 = vmatpush1.msra.mxu0 %v418
    %3198 = vmatprep.subr.mxu0 0.0
    %3199 = vmatpush1.msra.mxu0 %v419
    %3200 = vmatprep.subr.mxu0 0.0
    %3201 = vmatpush1.msra.mxu0 %v420
    %3202 = vmatprep.subr.mxu0 0.0
    %3203 = vmatpush1.msra.mxu0 %v421
    %3204 = vmatprep.subr.mxu0 0.0
    %3205 = vmatpush1.msra.mxu0 0.0
    %3206 = vmatprep.subr.mxu0 0.0
    %3207 = vmatpush1.msra.mxu0 0.0
    %3208 = vmatprep.subr.mxu0 0.0
    %3209 = vmatpush1.msra.mxu0 0.0
    %3210 = vmatprep.subr.mxu0 0.0
    %3211 = vmatpush1.msra.mxu0 0.0
    %3212 = vmatprep.subr.mxu0 0.0
    %3213 = vmatpush1.msra.mxu0 0.0
    %3214 = vmatprep.subr.mxu0 0.0
    %3215 = vmatpush1.msra.mxu0 0.0
    %3216 = vmatprep.subr.mxu0 0.0
    %3217 = vmatpush1.msra.mxu0 0.0
    %3218 = vmatprep.subr.mxu0 0.0
    %3219 = vmatpush1.msra.mxu0 0.0
    %3220 = vmatprep.subr.mxu0 0.0
    %3221 = vmatpush1.msra.mxu0 0.0
    %3222 = vmatprep.subr.mxu0 0.0
    %3223 = vmatpush1.msra.mxu0 0.0
    %3224 = vmatprep.subr.mxu0 0.0
    %3225 = vmatpush1.msra.mxu0 0.0
    %3226 = vmatprep.subr.mxu0 0.0
    %3227 = vmatpush1.msra.mxu0 0.0
    %3228 = vmatprep.subr.mxu0 0.0
    %3229 = vmatpush1.msra.mxu0 0.0
    %3230 = vmatprep.subr.mxu0 0.0
    %3231 = vmatpush1.msra.mxu0 0.0
    %3232 = vmatprep.subr.mxu0 0.0
    %3233 = vmatpush1.msra.mxu0 0.0
    %3234 = vmatprep.subr.mxu0 0.0
    %3235 = vmatpush1.msra.mxu0 0.0
    %3236 = vmatprep.subr.mxu0 0.0
    %3237 = vmatpush1.msra.mxu0 0.0
    %3238 = vmatprep.subr.mxu0 0.0
    %3239 = vmatpush1.msra.mxu0 0.0
    %3240 = vmatprep.subr.mxu0 0.0
    %3241 = vmatpush1.msra.mxu0 0.0
    %3242 = vmatprep.subr.mxu0 0.0
    %3243 = vmatpush1.msra.mxu0 0.0
    %3244 = vmatprep.subr.mxu0 0.0
    %3245 = vmatpush1.msra.mxu0 0.0
    %3246 = vmatprep.subr.mxu0 0.0
    %3247 = vmatpush1.msra.mxu0 0.0
    %3248 = vmatprep.subr.mxu0 0.0
    %3249 = vmatpush1.msra.mxu0 0.0
    %3250 = vmatprep.subr.mxu0 0.0
    %3251 = vmatpush1.msra.mxu0 0.0
    %3252 = vmatprep.subr.mxu0 0.0
    %3253 = vmatpush1.msra.mxu0 0.0
    %3254 = vmatprep.subr.mxu0 0.0
    %3255 = vmatpush1.msra.mxu0 0.0
    %3256 = vmatprep.subr.mxu0 0.0
    %3257 = vmatpush1.msra.mxu0 0.0
    %3258 = vmatprep.subr.mxu0 0.0
    %3259 = vmatpush1.msra.mxu0 0.0
    %3260 = vmatprep.mubr.f32.mxu0 0.0
    %3261 = vmatmul.mubr.f32.gmra.mrb[0].mxu0 %v3019
    %v3262 = vpop.f32.mrb[0].mxu0
    %v3263 = vadd.f32 0.0, %v3262
    %v3264 = vpop.f32.mrb[0].mxu0
    %3265 = vdwg.mxu0
    %v3266 = vadd.f32 %v3195, %v3263
    %v3267 = vxor.u32 %v3266, 2147483648
    %v3268 = vmul.f32 %v3267, 1.442695
    %v3269 = vpow.pop %v3268
    %v3270 = vadd.f32 %v3269, 1.0
    %v3271 = vrcp.pop %v3270
    %v3272 = vmul.f32 1.0, %v3271
    %v3273 = vtanh.pop %v3266
    %v3274 = vmul.f32 %v3272, %v3009
    %3276 = vrot.lane.b32.xlu0 %v3273, 64
    %v3277 = vpop.permute.xlu0 %3276
    %v3279 = vmul.f32 %v3272, %v3277
    %3281 = vrot.lane.b32.xlu0 %v3279, 32
    %v3282 = vpop.permute.xlu0 %3281
    %v3284 = vadd.f32 %v3274, %v3282
    %v3285 = vtanh.pop %v3284
    %3287 = vrot.lane.b32.xlu0 %v3285, 64
    %v3288 = vpop.permute.xlu0 %3287
    %v3290 = vmul.f32 %v3272, %v3288
    %3292 = vrot.lane.b32.xlu0 %v3290, 32
    %v3293 = vpop.permute.xlu0 %3292
    %v3294 = vsel %vm442, %v3293, 0
    %3296 = vmatprep.subr.mxu0 0.0
    %3297 = vmatpush1.msra.mxu0 %v422
    %3298 = vmatprep.subr.mxu0 0.0
    %3299 = vmatpush1.msra.mxu0 %v423
    %3300 = vmatprep.subr.mxu0 0.0
    %3301 = vmatpush1.msra.mxu0 %v424
    %3302 = vmatprep.subr.mxu0 0.0
    %3303 = vmatpush1.msra.mxu0 %v425
    %3304 = vmatprep.subr.mxu0 0.0
    %3305 = vmatpush1.msra.mxu0 0.0
    %3306 = vmatprep.subr.mxu0 0.0
    %3307 = vmatpush1.msra.mxu0 0.0
    %3308 = vmatprep.subr.mxu0 0.0
    %3309 = vmatpush1.msra.mxu0 0.0
    %3310 = vmatprep.subr.mxu0 0.0
    %3311 = vmatpush1.msra.mxu0 0.0
    %3312 = vmatprep.subr.mxu0 0.0
    %3313 = vmatpush1.msra.mxu0 0.0
    %3314 = vmatprep.subr.mxu0 0.0
    %3315 = vmatpush1.msra.mxu0 0.0
    %3316 = vmatprep.subr.mxu0 0.0
    %3317 = vmatpush1.msra.mxu0 0.0
    %3318 = vmatprep.subr.mxu0 0.0
    %3319 = vmatpush1.msra.mxu0 0.0
    %3320 = vmatprep.subr.mxu0 0.0
    %3321 = vmatpush1.msra.mxu0 0.0
    %3322 = vmatprep.subr.mxu0 0.0
    %3323 = vmatpush1.msra.mxu0 0.0
    %3324 = vmatprep.subr.mxu0 0.0
    %3325 = vmatpush1.msra.mxu0 0.0
    %3326 = vmatprep.subr.mxu0 0.0
    %3327 = vmatpush1.msra.mxu0 0.0
    %3328 = vmatprep.subr.mxu0 0.0
    %3329 = vmatpush1.msra.mxu0 0.0
    %3330 = vmatprep.subr.mxu0 0.0
    %3331 = vmatpush1.msra.mxu0 0.0
    %3332 = vmatprep.subr.mxu0 0.0
    %3333 = vmatpush1.msra.mxu0 0.0
    %3334 = vmatprep.subr.mxu0 0.0
    %3335 = vmatpush1.msra.mxu0 0.0
    %3336 = vmatprep.subr.mxu0 0.0
    %3337 = vmatpush1.msra.mxu0 0.0
    %3338 = vmatprep.subr.mxu0 0.0
    %3339 = vmatpush1.msra.mxu0 0.0
    %3340 = vmatprep.subr.mxu0 0.0
    %3341 = vmatpush1.msra.mxu0 0.0
    %3342 = vmatprep.subr.mxu0 0.0
    %3343 = vmatpush1.msra.mxu0 0.0
    %3344 = vmatprep.subr.mxu0 0.0
    %3345 = vmatpush1.msra.mxu0 0.0
    %3346 = vmatprep.subr.mxu0 0.0
    %3347 = vmatpush1.msra.mxu0 0.0
    %3348 = vmatprep.subr.mxu0 0.0
    %3349 = vmatpush1.msra.mxu0 0.0
    %3350 = vmatprep.subr.mxu0 0.0
    %3351 = vmatpush1.msra.mxu0 0.0
    %3352 = vmatprep.subr.mxu0 0.0
    %3353 = vmatpush1.msra.mxu0 0.0
    %3354 = vmatprep.subr.mxu0 0.0
    %3355 = vmatpush1.msra.mxu0 0.0
    %3356 = vmatprep.subr.mxu0 0.0
    %3357 = vmatpush1.msra.mxu0 0.0
    %3358 = vmatprep.subr.mxu0 0.0
    %3359 = vmatpush1.msra.mxu0 0.0
    %3360 = vmatprep.mubr.f32.mxu0 0.0
    %3361 = vmatmul.mubr.f32.gmra.mrb[0].mxu0 %v3294
    %v3362 = vpop.f32.mrb[0].mxu0
    %v3363 = vadd.f32 %v435, %v3362
    %v3364 = vpop.f32.mrb[0].mxu0
    %3365 = vdwg.mxu0
    %3367 = vrot.lane.b32.xlu0 %v3190, 32
    %v3368 = vpop.permute.xlu0 %3367
    %v3369 = vsel %vm442, %v3368, 0
    %3371 = vmatprep.subr.mxu0 0.0
    %3372 = vmatpush1.msra.mxu0 %v426
    %3373 = vmatprep.subr.mxu0 0.0
    %3374 = vmatpush1.msra.mxu0 %v427
    %3375 = vmatprep.subr.mxu0 0.0
    %3376 = vmatpush1.msra.mxu0 %v428
    %3377 = vmatprep.subr.mxu0 0.0
    %3378 = vmatpush1.msra.mxu0 %v429
    %3379 = vmatprep.subr.mxu0 0.0
    %3380 = vmatpush1.msra.mxu0 0.0
    %3381 = vmatprep.subr.mxu0 0.0
    %3382 = vmatpush1.msra.mxu0 0.0
    %3383 = vmatprep.subr.mxu0 0.0
    %3384 = vmatpush1.msra.mxu0 0.0
    %3385 = vmatprep.subr.mxu0 0.0
    %3386 = vmatpush1.msra.mxu0 0.0
    %3387 = vmatprep.subr.mxu0 0.0
    %3388 = vmatpush1.msra.mxu0 0.0
    %3389 = vmatprep.subr.mxu0 0.0
    %3390 = vmatpush1.msra.mxu0 0.0
    %3391 = vmatprep.subr.mxu0 0.0
    %3392 = vmatpush1.msra.mxu0 0.0
    %3393 = vmatprep.subr.mxu0 0.0
    %3394 = vmatpush1.msra.mxu0 0.0
    %3395 = vmatprep.subr.mxu0 0.0
    %3396 = vmatpush1.msra.mxu0 0.0
    %3397 = vmatprep.subr.mxu0 0.0
    %3398 = vmatpush1.msra.mxu0 0.0
    %3399 = vmatprep.subr.mxu0 0.0
    %3400 = vmatpush1.msra.mxu0 0.0
    %3401 = vmatprep.subr.mxu0 0.0
    %3402 = vmatpush1.msra.mxu0 0.0
    %3403 = vmatprep.subr.mxu0 0.0
    %3404 = vmatpush1.msra.mxu0 0.0
    %3405 = vmatprep.subr.mxu0 0.0
    %3406 = vmatpush1.msra.mxu0 0.0
    %3407 = vmatprep.subr.mxu0 0.0
    %3408 = vmatpush1.msra.mxu0 0.0
    %3409 = vmatprep.subr.mxu0 0.0
    %3410 = vmatpush1.msra.mxu0 0.0
    %3411 = vmatprep.subr.mxu0 0.0
    %3412 = vmatpush1.msra.mxu0 0.0
    %3413 = vmatprep.subr.mxu0 0.0
    %3414 = vmatpush1.msra.mxu0 0.0
    %3415 = vmatprep.subr.mxu0 0.0
    %3416 = vmatpush1.msra.mxu0 0.0
    %3417 = vmatprep.subr.mxu0 0.0
    %3418 = vmatpush1.msra.mxu0 0.0
    %3419 = vmatprep.subr.mxu0 0.0
    %3420 = vmatpush1.msra.mxu0 0.0
    %3421 = vmatprep.subr.mxu0 0.0
    %3422 = vmatpush1.msra.mxu0 0.0
    %3423 = vmatprep.subr.mxu0 0.0
    %3424 = vmatpush1.msra.mxu0 0.0
    %3425 = vmatprep.subr.mxu0 0.0
    %3426 = vmatpush1.msra.mxu0 0.0
    %3427 = vmatprep.subr.mxu0 0.0
    %3428 = vmatpush1.msra.mxu0 0.0
    %3429 = vmatprep.subr.mxu0 0.0
    %3430 = vmatpush1.msra.mxu0 0.0
    %3431 = vmatprep.subr.mxu0 0.0
    %3432 = vmatpush1.msra.mxu0 0.0
    %3433 = vmatprep.subr.mxu0 0.0
    %3434 = vmatpush1.msra.mxu0 0.0
    %3435 = vmatprep.mubr.f32.mxu0 0.0
    %3436 = vmatmul.mubr.f32.gmra.mrb[0].mxu0 %v3369
    %v3437 = vpop.f32.mrb[0].mxu0
    %v3438 = vadd.f32 0.0, %v3437
    %v3439 = vpop.f32.mrb[0].mxu0
    %3440 = vdwg.mxu0
    %v3441 = vadd.f32 %v3363, %v3438
    %v3442 = vxor.u32 %v3441, 2147483648
    %v3443 = vmul.f32 %v3442, 1.442695
    %v3444 = vpow.pop %v3443
    %v3445 = vadd.f32 %v3444, 1.0
    %v3446 = vrcp.pop %v3445
    %v3447 = vmul.f32 1.0, %v3446
    %v3448 = vtanh.pop %v3441
    %v3449 = vmul.f32 %v3447, %v3184
    %3451 = vrot.lane.b32.xlu0 %v3448, 64
    %v3452 = vpop.permute.xlu0 %3451
    %v3454 = vmul.f32 %v3447, %v3452
    %3456 = vrot.lane.b32.xlu0 %v3454, 32
    %v3457 = vpop.permute.xlu0 %3456
    %v3459 = vadd.f32 %v3449, %v3457
    %v3460 = vtanh.pop %v3459
    %3462 = vrot.lane.b32.xlu0 %v3460, 64
    %v3463 = vpop.permute.xlu0 %3462
    %v3465 = vmul.f32 %v3447, %v3463
    %v3466 = vrot.slane %v395, 6
    %v3468 = vsel %vm440, %v438, %v3466
    %3469 = vmatprep.subr.mxu0 0.0
    %3470 = vmatpush1.msra.mxu0 %v418
    %3471 = vmatprep.subr.mxu0 0.0
    %3472 = vmatpush1.msra.mxu0 %v419
    %3473 = vmatprep.subr.mxu0 0.0
    %3474 = vmatpush1.msra.mxu0 %v420
    %3475 = vmatprep.subr.mxu0 0.0
    %3476 = vmatpush1.msra.mxu0 %v421
    %3477 = vmatprep.subr.mxu0 0.0
    %3478 = vmatpush1.msra.mxu0 0.0
    %3479 = vmatprep.subr.mxu0 0.0
    %3480 = vmatpush1.msra.mxu0 0.0
    %3481 = vmatprep.subr.mxu0 0.0
    %3482 = vmatpush1.msra.mxu0 0.0
    %3483 = vmatprep.subr.mxu0 0.0
    %3484 = vmatpush1.msra.mxu0 0.0
    %3485 = vmatprep.subr.mxu0 0.0
    %3486 = vmatpush1.msra.mxu0 0.0
    %3487 = vmatprep.subr.mxu0 0.0
    %3488 = vmatpush1.msra.mxu0 0.0
    %3489 = vmatprep.subr.mxu0 0.0
    %3490 = vmatpush1.msra.mxu0 0.0
    %3491 = vmatprep.subr.mxu0 0.0
    %3492 = vmatpush1.msra.mxu0 0.0
    %3493 = vmatprep.subr.mxu0 0.0
    %3494 = vmatpush1.msra.mxu0 0.0
    %3495 = vmatprep.subr.mxu0 0.0
    %3496 = vmatpush1.msra.mxu0 0.0
    %3497 = vmatprep.subr.mxu0 0.0
    %3498 = vmatpush1.msra.mxu0 0.0
    %3499 = vmatprep.subr.mxu0 0.0
    %3500 = vmatpush1.msra.mxu0 0.0
    %3501 = vmatprep.subr.mxu0 0.0
    %3502 = vmatpush1.msra.mxu0 0.0
    %3503 = vmatprep.subr.mxu0 0.0
    %3504 = vmatpush1.msra.mxu0 0.0
    %3505 = vmatprep.subr.mxu0 0.0
    %3506 = vmatpush1.msra.mxu0 0.0
    %3507 = vmatprep.subr.mxu0 0.0
    %3508 = vmatpush1.msra.mxu0 0.0
    %3509 = vmatprep.subr.mxu0 0.0
    %3510 = vmatpush1.msra.mxu0 0.0
    %3511 = vmatprep.subr.mxu0 0.0
    %3512 = vmatpush1.msra.mxu0 0.0
    %3513 = vmatprep.subr.mxu0 0.0
    %3514 = vmatpush1.msra.mxu0 0.0
    %3515 = vmatprep.subr.mxu0 0.0
    %3516 = vmatpush1.msra.mxu0 0.0
    %3517 = vmatprep.subr.mxu0 0.0
    %3518 = vmatpush1.msra.mxu0 0.0
    %3519 = vmatprep.subr.mxu0 0.0
    %3520 = vmatpush1.msra.mxu0 0.0
    %3521 = vmatprep.subr.mxu0 0.0
    %3522 = vmatpush1.msra.mxu0 0.0
    %3523 = vmatprep.subr.mxu0 0.0
    %3524 = vmatpush1.msra.mxu0 0.0
    %3525 = vmatprep.subr.mxu0 0.0
    %3526 = vmatpush1.msra.mxu0 0.0
    %3527 = vmatprep.subr.mxu0 0.0
    %3528 = vmatpush1.msra.mxu0 0.0
    %3529 = vmatprep.subr.mxu0 0.0
    %3530 = vmatpush1.msra.mxu0 0.0
    %3531 = vmatprep.subr.mxu0 0.0
    %3532 = vmatpush1.msra.mxu0 0.0
    %3533 = vmatprep.mubr.f32.mxu0 0.0
    %3534 = vmatmul.mubr.f32.gmra.mrb[0].mxu0 %v3294
    %v3535 = vpop.f32.mrb[0].mxu0
    %v3536 = vadd.f32 0.0, %v3535
    %v3537 = vpop.f32.mrb[0].mxu0
    %3538 = vdwg.mxu0
    %v3539 = vadd.f32 %v3468, %v3536
    %v3540 = vxor.u32 %v3539, 2147483648
    %v3541 = vmul.f32 %v3540, 1.442695
    %v3542 = vpow.pop %v3541
    %v3543 = vadd.f32 %v3542, 1.0
    %v3544 = vrcp.pop %v3543
    %v3545 = vmul.f32 1.0, %v3544
    %v3546 = vtanh.pop %v3539
    %v3547 = vmul.f32 %v3545, %v3284
    %3549 = vrot.lane.b32.xlu0 %v3546, 64
    %v3550 = vpop.permute.xlu0 %3549
    %v3552 = vmul.f32 %v3545, %v3550
    %3554 = vrot.lane.b32.xlu0 %v3552, 32
    %v3555 = vpop.permute.xlu0 %3554
    %v3557 = vadd.f32 %v3547, %v3555
    %v3558 = vtanh.pop %v3557
    %3560 = vrot.lane.b32.xlu0 %v3558, 64
    %v3561 = vpop.permute.xlu0 %3560
    %v3563 = vmul.f32 %v3545, %v3561
    %3565 = vrot.lane.b32.xlu0 %v3563, 32
    %v3566 = vpop.permute.xlu0 %3565
    %v3567 = vsel %vm442, %v3566, 0
    %3569 = vmatprep.subr.mxu0 0.0
    %3570 = vmatpush1.msra.mxu0 %v422
    %3571 = vmatprep.subr.mxu0 0.0
    %3572 = vmatpush1.msra.mxu0 %v423
    %3573 = vmatprep.subr.mxu0 0.0
    %3574 = vmatpush1.msra.mxu0 %v424
    %3575 = vmatprep.subr.mxu0 0.0
    %3576 = vmatpush1.msra.mxu0 %v425
    %3577 = vmatprep.subr.mxu0 0.0
    %3578 = vmatpush1.msra.mxu0 0.0
    %3579 = vmatprep.subr.mxu0 0.0
    %3580 = vmatpush1.msra.mxu0 0.0
    %3581 = vmatprep.subr.mxu0 0.0
    %3582 = vmatpush1.msra.mxu0 0.0
    %3583 = vmatprep.subr.mxu0 0.0
    %3584 = vmatpush1.msra.mxu0 0.0
    %3585 = vmatprep.subr.mxu0 0.0
    %3586 = vmatpush1.msra.mxu0 0.0
    %3587 = vmatprep.subr.mxu0 0.0
    %3588 = vmatpush1.msra.mxu0 0.0
    %3589 = vmatprep.subr.mxu0 0.0
    %3590 = vmatpush1.msra.mxu0 0.0
    %3591 = vmatprep.subr.mxu0 0.0
    %3592 = vmatpush1.msra.mxu0 0.0
    %3593 = vmatprep.subr.mxu0 0.0
    %3594 = vmatpush1.msra.mxu0 0.0
    %3595 = vmatprep.subr.mxu0 0.0
    %3596 = vmatpush1.msra.mxu0 0.0
    %3597 = vmatprep.subr.mxu0 0.0
    %3598 = vmatpush1.msra.mxu0 0.0
    %3599 = vmatprep.subr.mxu0 0.0
    %3600 = vmatpush1.msra.mxu0 0.0
    %3601 = vmatprep.subr.mxu0 0.0
    %3602 = vmatpush1.msra.mxu0 0.0
    %3603 = vmatprep.subr.mxu0 0.0
    %3604 = vmatpush1.msra.mxu0 0.0
    %3605 = vmatprep.subr.mxu0 0.0
    %3606 = vmatpush1.msra.mxu0 0.0
    %3607 = vmatprep.subr.mxu0 0.0
    %3608 = vmatpush1.msra.mxu0 0.0
    %3609 = vmatprep.subr.mxu0 0.0
    %3610 = vmatpush1.msra.mxu0 0.0
    %3611 = vmatprep.subr.mxu0 0.0
    %3612 = vmatpush1.msra.mxu0 0.0
    %3613 = vmatprep.subr.mxu0 0.0
    %3614 = vmatpush1.msra.mxu0 0.0
    %3615 = vmatprep.subr.mxu0 0.0
    %3616 = vmatpush1.msra.mxu0 0.0
    %3617 = vmatprep.subr.mxu0 0.0
    %3618 = vmatpush1.msra.mxu0 0.0
    %3619 = vmatprep.subr.mxu0 0.0
    %3620 = vmatpush1.msra.mxu0 0.0
    %3621 = vmatprep.subr.mxu0 0.0
    %3622 = vmatpush1.msra.mxu0 0.0
    %3623 = vmatprep.subr.mxu0 0.0
    %3624 = vmatpush1.msra.mxu0 0.0
    %3625 = vmatprep.subr.mxu0 0.0
    %3626 = vmatpush1.msra.mxu0 0.0
    %3627 = vmatprep.subr.mxu0 0.0
    %3628 = vmatpush1.msra.mxu0 0.0
    %3629 = vmatprep.subr.mxu0 0.0
    %3630 = vmatpush1.msra.mxu0 0.0
    %3631 = vmatprep.subr.mxu0 0.0
    %3632 = vmatpush1.msra.mxu0 0.0
    %3633 = vmatprep.mubr.f32.mxu0 0.0
    %3634 = vmatmul.mubr.f32.gmra.mrb[0].mxu0 %v3567
    %v3635 = vpop.f32.mrb[0].mxu0
    %v3636 = vadd.f32 %v435, %v3635
    %v3637 = vpop.f32.mrb[0].mxu0
    %3638 = vdwg.mxu0
    %3640 = vrot.lane.b32.xlu0 %v3465, 32
    %v3641 = vpop.permute.xlu0 %3640
    %v3642 = vsel %vm442, %v3641, 0
    %3644 = vmatprep.subr.mxu0 0.0
    %3645 = vmatpush1.msra.mxu0 %v426
    %3646 = vmatprep.subr.mxu0 0.0
    %3647 = vmatpush1.msra.mxu0 %v427
    %3648 = vmatprep.subr.mxu0 0.0
    %3649 = vmatpush1.msra.mxu0 %v428
    %3650 = vmatprep.subr.mxu0 0.0
    %3651 = vmatpush1.msra.mxu0 %v429
    %3652 = vmatprep.subr.mxu0 0.0
    %3653 = vmatpush1.msra.mxu0 0.0
    %3654 = vmatprep.subr.mxu0 0.0
    %3655 = vmatpush1.msra.mxu0 0.0
    %3656 = vmatprep.subr.mxu0 0.0
    %3657 = vmatpush1.msra.mxu0 0.0
    %3658 = vmatprep.subr.mxu0 0.0
    %3659 = vmatpush1.msra.mxu0 0.0
    %3660 = vmatprep.subr.mxu0 0.0
    %3661 = vmatpush1.msra.mxu0 0.0
    %3662 = vmatprep.subr.mxu0 0.0
    %3663 = vmatpush1.msra.mxu0 0.0
    %3664 = vmatprep.subr.mxu0 0.0
    %3665 = vmatpush1.msra.mxu0 0.0
    %3666 = vmatprep.subr.mxu0 0.0
    %3667 = vmatpush1.msra.mxu0 0.0
    %3668 = vmatprep.subr.mxu0 0.0
    %3669 = vmatpush1.msra.mxu0 0.0
    %3670 = vmatprep.subr.mxu0 0.0
    %3671 = vmatpush1.msra.mxu0 0.0
    %3672 = vmatprep.subr.mxu0 0.0
    %3673 = vmatpush1.msra.mxu0 0.0
    %3674 = vmatprep.subr.mxu0 0.0
    %3675 = vmatpush1.msra.mxu0 0.0
    %3676 = vmatprep.subr.mxu0 0.0
    %3677 = vmatpush1.msra.mxu0 0.0
    %3678 = vmatprep.subr.mxu0 0.0
    %3679 = vmatpush1.msra.mxu0 0.0
    %3680 = vmatprep.subr.mxu0 0.0
    %3681 = vmatpush1.msra.mxu0 0.0
    %3682 = vmatprep.subr.mxu0 0.0
    %3683 = vmatpush1.msra.mxu0 0.0
    %3684 = vmatprep.subr.mxu0 0.0
    %3685 = vmatpush1.msra.mxu0 0.0
    %3686 = vmatprep.subr.mxu0 0.0
    %3687 = vmatpush1.msra.mxu0 0.0
    %3688 = vmatprep.subr.mxu0 0.0
    %3689 = vmatpush1.msra.mxu0 0.0
    %3690 = vmatprep.subr.mxu0 0.0
    %3691 = vmatpush1.msra.mxu0 0.0
    %3692 = vmatprep.subr.mxu0 0.0
    %3693 = vmatpush1.msra.mxu0 0.0
    %3694 = vmatprep.subr.mxu0 0.0
    %3695 = vmatpush1.msra.mxu0 0.0
    %3696 = vmatprep.subr.mxu0 0.0
    %3697 = vmatpush1.msra.mxu0 0.0
    %3698 = vmatprep.subr.mxu0 0.0
    %3699 = vmatpush1.msra.mxu0 0.0
    %3700 = vmatprep.subr.mxu0 0.0
    %3701 = vmatpush1.msra.mxu0 0.0
    %3702 = vmatprep.subr.mxu0 0.0
    %3703 = vmatpush1.msra.mxu0 0.0
    %3704 = vmatprep.subr.mxu0 0.0
    %3705 = vmatpush1.msra.mxu0 0.0
    %3706 = vmatprep.subr.mxu0 0.0
    %3707 = vmatpush1.msra.mxu0 0.0
    %3708 = vmatprep.mubr.f32.mxu0 0.0
    %3709 = vmatmul.mubr.f32.gmra.mrb[0].mxu0 %v3642
    %v3710 = vpop.f32.mrb[0].mxu0
    %v3711 = vadd.f32 0.0, %v3710
    %v3712 = vpop.f32.mrb[0].mxu0
    %3713 = vdwg.mxu0
    %v3714 = vadd.f32 %v3636, %v3711
    %v3715 = vxor.u32 %v3714, 2147483648
    %v3716 = vmul.f32 %v3715, 1.442695
    %v3717 = vpow.pop %v3716
    %v3718 = vadd.f32 %v3717, 1.0
    %v3719 = vrcp.pop %v3718
    %v3720 = vmul.f32 1.0, %v3719
    %v3721 = vtanh.pop %v3714
    %v3722 = vmul.f32 %v3720, %v3459
    %3724 = vrot.lane.b32.xlu0 %v3721, 64
    %v3725 = vpop.permute.xlu0 %3724
    %v3727 = vmul.f32 %v3720, %v3725
    %3729 = vrot.lane.b32.xlu0 %v3727, 32
    %v3730 = vpop.permute.xlu0 %3729
    %v3732 = vadd.f32 %v3722, %v3730
    %v3733 = vtanh.pop %v3732
    %3735 = vrot.lane.b32.xlu0 %v3733, 64
    %v3736 = vpop.permute.xlu0 %3735
    %v3738 = vmul.f32 %v3720, %v3736
    %v3739 = vrot.slane %v993, 6
    %v3741 = vrot.slane %v1268, 4
    %v3743 = vrot.slane %v1543, 2
    %v3745 = vrot.slane %v2092, 6
    %v3747 = vrot.slane %v2367, 4
    %v3749 = vrot.slane %v2642, 2
    %v3751 = vrot.slane %v3190, 6
    %v3753 = vrot.slane %v3465, 4
    %v3756 = vrot.slane %v3738, 2
    %vm3758 = vcmask 1041408
    %v3759 = vsel %vm3758, %v717, %v3739
    %vm3760 = vcmask 1043456
    %v3761 = vsel %vm3760, %v3759, %v3741
    %vm3762 = vcmask 1045504
    %v3763 = vsel %vm3762, %v3761, %v3743
    %v3764 = vsel %vm3758, %v1819, %v3745
    %v3765 = vsel %vm3760, %v3764, %v3747
    %v3766 = vsel %vm3762, %v3765, %v3749
    %v3767 = vsel %vm3758, %v2915, %v3751
    %v3768 = vsel %vm3760, %v3767, %v3753
    %v3769 = vsel %vm3762, %v3768, %v3756
    %v3770 = vld [vmem:[#allocation25] sm:$0xff]
    %v3771 = vld [vmem:[#allocation25 + $0x8] sm:$0xff]
    %v3772 = vld [vmem:[#allocation25 + $0x10] sm:$0xff]
    %v3773 = vld [vmem:[#allocation25 + $0x18] sm:$0xff]
    %v3774 = vld [vmem:[#allocation27] sm:$0x1]
    %v3776 = vlaneseq
    %v3777 = vshrl.u32 %v3776, 7
    %v3778 = vsub.s32 0, %v3777
    %v3779 = vrot.slane %v3774, %v3778
    %3784 = vrot.lane.b32.xlu0 %v3763, 32
    %v3785 = vpop.permute.xlu0 %3784
    %3786 = vrot.lane.b32.xlu0 %v3766, 32
    %v3787 = vpop.permute.xlu0 %3786
    %3788 = vrot.lane.b32.xlu0 %v3769, 32
    %v3789 = vpop.permute.xlu0 %3788
    %v3790 = vsel %vm442, %v3785, 0
    %v3792 = vsel %vm442, %v3787, 0
    %v3794 = vsel %vm442, %v3789, 0
    %3796 = vmatprep.subr.mxu0 0.0
    %3797 = vmatpush1.msra.mxu0 %v3770
    %3798 = vmatprep.subr.mxu0 0.0
    %3799 = vmatpush1.msra.mxu0 %v3771
    %3800 = vmatprep.subr.mxu0 0.0
    %3801 = vmatpush1.msra.mxu0 %v3772
    %3802 = vmatprep.subr.mxu0 0.0
    %3803 = vmatpush1.msra.mxu0 %v3773
    %3804 = vmatprep.subr.mxu0 0.0
    %3805 = vmatpush1.msra.mxu0 0.0
    %3806 = vmatprep.subr.mxu0 0.0
    %3807 = vmatpush1.msra.mxu0 0.0
    %3808 = vmatprep.subr.mxu0 0.0
    %3809 = vmatpush1.msra.mxu0 0.0
    %3810 = vmatprep.subr.mxu0 0.0
    %3811 = vmatpush1.msra.mxu0 0.0
    %3812 = vmatprep.subr.mxu0 0.0
    %3813 = vmatpush1.msra.mxu0 0.0
    %3814 = vmatprep.subr.mxu0 0.0
    %3815 = vmatpush1.msra.mxu0 0.0
    %3816 = vmatprep.subr.mxu0 0.0
    %3817 = vmatpush1.msra.mxu0 0.0
    %3818 = vmatprep.subr.mxu0 0.0
    %3819 = vmatpush1.msra.mxu0 0.0
    %3820 = vmatprep.subr.mxu0 0.0
    %3821 = vmatpush1.msra.mxu0 0.0
    %3822 = vmatprep.subr.mxu0 0.0
    %3823 = vmatpush1.msra.mxu0 0.0
    %3824 = vmatprep.subr.mxu0 0.0
    %3825 = vmatpush1.msra.mxu0 0.0
    %3826 = vmatprep.subr.mxu0 0.0
    %3827 = vmatpush1.msra.mxu0 0.0
    %3828 = vmatprep.subr.mxu0 0.0
    %3829 = vmatpush1.msra.mxu0 0.0
    %3830 = vmatprep.subr.mxu0 0.0
    %3831 = vmatpush1.msra.mxu0 0.0
    %3832 = vmatprep.subr.mxu0 0.0
    %3833 = vmatpush1.msra.mxu0 0.0
    %3834 = vmatprep.subr.mxu0 0.0
    %3835 = vmatpush1.msra.mxu0 0.0
    %3836 = vmatprep.subr.mxu0 0.0
    %3837 = vmatpush1.msra.mxu0 0.0
    %3838 = vmatprep.subr.mxu0 0.0
    %3839 = vmatpush1.msra.mxu0 0.0
    %3840 = vmatprep.subr.mxu0 0.0
    %3841 = vmatpush1.msra.mxu0 0.0
    %3842 = vmatprep.subr.mxu0 0.0
    %3843 = vmatpush1.msra.mxu0 0.0
    %3844 = vmatprep.subr.mxu0 0.0
    %3845 = vmatpush1.msra.mxu0 0.0
    %3846 = vmatprep.subr.mxu0 0.0
    %3847 = vmatpush1.msra.mxu0 0.0
    %3848 = vmatprep.subr.mxu0 0.0
    %3849 = vmatpush1.msra.mxu0 0.0
    %3850 = vmatprep.subr.mxu0 0.0
    %3851 = vmatpush1.msra.mxu0 0.0
    %3852 = vmatprep.subr.mxu0 0.0
    %3853 = vmatpush1.msra.mxu0 0.0
    %3854 = vmatprep.subr.mxu0 0.0
    %3855 = vmatpush1.msra.mxu0 0.0
    %3856 = vmatprep.subr.mxu0 0.0
    %3857 = vmatpush1.msra.mxu0 0.0
    %3858 = vmatprep.subr.mxu0 0.0
    %3859 = vmatpush1.msra.mxu0 0.0
    %3860 = vmatprep.mubr.f32.mxu0 0.0
    %3861 = vmatmul.mubr.f32.gmra.mrb[0].mxu0 %v3790
    %v3862 = vpop.f32.mrb[0].mxu0
    %v3863 = vadd.f32 %v3779, %v3862
    %v3864 = vpop.f32.mrb[0].mxu0
    %3865 = vmatprep.mubr.f32.mxu0 0.0
    %3866 = vmatmul.mubr.f32.gmra.mrb[0].mxu0 %v3792
    %v3867 = vpop.f32.mrb[0].mxu0
    %v3868 = vadd.f32 %v3779, %v3867
    %v3869 = vpop.f32.mrb[0].mxu0
    %3870 = vmatprep.mubr.f32.mxu0 0.0
    %3871 = vmatmul.mubr.f32.gmra.mrb[0].mxu0 %v3794
    %v3872 = vpop.f32.mrb[0].mxu0
    %v3873 = vadd.f32 %v3779, %v3872
    %v3874 = vpop.f32.mrb[0].mxu0
    %3875 = vdwg.mxu0
    %v3876 = vmax.f32 %v3863, 0.0
    %v3877 = vmax.f32 %v3868, 0.0
    %v3878 = vmax.f32 %v3873, 0.0
    %v3879 = vld [vmem:[#allocation13] sm:$0xff]
    %v3880 = vld [vmem:[#allocation13 + $0x8] sm:$0xff]
    %v3881 = vld [vmem:[#allocation13 + $0x10] sm:$0xff]
    %v3882 = vld [vmem:[#allocation13 + $0x18] sm:$0xff]
    %v3883 = vld [vmem:[#allocation16] sm:$0x1]
    %v3885 = vlaneseq
    %v3886 = vshrl.u32 %v3885, 7
    %v3887 = vsub.s32 0, %v3886
    %v3888 = vrot.slane %v3883, %v3887
    %v3891 = vsel %vm442, %v3876, 0
    %v3894 = vsel %vm442, %v3877, 0
    %v3897 = vsel %vm442, %v3878, 0
    %3899 = vmatprep.subr.mxu0 0.0
    %3900 = vmatpush1.msra.mxu0 %v3879
    %3901 = vmatprep.subr.mxu0 0.0
    %3902 = vmatpush1.msra.mxu0 %v3880
    %3903 = vmatprep.subr.mxu0 0.0
    %3904 = vmatpush1.msra.mxu0 %v3881
    %3905 = vmatprep.subr.mxu0 0.0
    %3906 = vmatpush1.msra.mxu0 %v3882
    %3907 = vmatprep.subr.mxu0 0.0
    %3908 = vmatpush1.msra.mxu0 0.0
    %3909 = vmatprep.subr.mxu0 0.0
    %3910 = vmatpush1.msra.mxu0 0.0
    %3911 = vmatprep.subr.mxu0 0.0
    %3912 = vmatpush1.msra.mxu0 0.0
    %3913 = vmatprep.subr.mxu0 0.0
    %3914 = vmatpush1.msra.mxu0 0.0
    %3915 = vmatprep.subr.mxu0 0.0
    %3916 = vmatpush1.msra.mxu0 0.0
    %3917 = vmatprep.subr.mxu0 0.0
    %3918 = vmatpush1.msra.mxu0 0.0
    %3919 = vmatprep.subr.mxu0 0.0
    %3920 = vmatpush1.msra.mxu0 0.0
    %3921 = vmatprep.subr.mxu0 0.0
    %3922 = vmatpush1.msra.mxu0 0.0
    %3923 = vmatprep.subr.mxu0 0.0
    %3924 = vmatpush1.msra.mxu0 0.0
    %3925 = vmatprep.subr.mxu0 0.0
    %3926 = vmatpush1.msra.mxu0 0.0
    %3927 = vmatprep.subr.mxu0 0.0
    %3928 = vmatpush1.msra.mxu0 0.0
    %3929 = vmatprep.subr.mxu0 0.0
    %3930 = vmatpush1.msra.mxu0 0.0
    %3931 = vmatprep.subr.mxu0 0.0
    %3932 = vmatpush1.msra.mxu0 0.0
    %3933 = vmatprep.subr.mxu0 0.0
    %3934 = vmatpush1.msra.mxu0 0.0
    %3935 = vmatprep.subr.mxu0 0.0
    %3936 = vmatpush1.msra.mxu0 0.0
    %3937 = vmatprep.subr.mxu0 0.0
    %3938 = vmatpush1.msra.mxu0 0.0
    %3939 = vmatprep.subr.mxu0 0.0
    %3940 = vmatpush1.msra.mxu0 0.0
    %3941 = vmatprep.subr.mxu0 0.0
    %3942 = vmatpush1.msra.mxu0 0.0
    %3943 = vmatprep.subr.mxu0 0.0
    %3944 = vmatpush1.msra.mxu0 0.0
    %3945 = vmatprep.subr.mxu0 0.0
    %3946 = vmatpush1.msra.mxu0 0.0
    %3947 = vmatprep.subr.mxu0 0.0
    %3948 = vmatpush1.msra.mxu0 0.0
    %3949 = vmatprep.subr.mxu0 0.0
    %3950 = vmatpush1.msra.mxu0 0.0
    %3951 = vmatprep.subr.mxu0 0.0
    %3952 = vmatpush1.msra.mxu0 0.0
    %3953 = vmatprep.subr.mxu0 0.0
    %3954 = vmatpush1.msra.mxu0 0.0
    %3955 = vmatprep.subr.mxu0 0.0
    %3956 = vmatpush1.msra.mxu0 0.0
    %3957 = vmatprep.subr.mxu0 0.0
    %3958 = vmatpush1.msra.mxu0 0.0
    %3959 = vmatprep.subr.mxu0 0.0
    %3960 = vmatpush1.msra.mxu0 0.0
    %3961 = vmatprep.subr.mxu0 0.0
    %3962 = vmatpush1.msra.mxu0 0.0
    %3963 = vmatprep.mubr.f32.mxu0 0.0
    %3964 = vmatmul.mubr.f32.gmra.mrb[0].mxu0 %v3891
    %v3965 = vpop.f32.mrb[0].mxu0
    %v3966 = vadd.f32 %v3888, %v3965
    %v3967 = vpop.f32.mrb[0].mxu0
    %3968 = vmatprep.mubr.f32.mxu0 0.0
    %3969 = vmatmul.mubr.f32.gmra.mrb[0].mxu0 %v3894
    %v3970 = vpop.f32.mrb[0].mxu0
    %v3971 = vadd.f32 %v3888, %v3970
    %v3972 = vpop.f32.mrb[0].mxu0
    %3973 = vmatprep.mubr.f32.mxu0 0.0
    %3974 = vmatmul.mubr.f32.gmra.mrb[0].mxu0 %v3897
    %v3975 = vpop.f32.mrb[0].mxu0
    %v3976 = vadd.f32 %v3888, %v3975
    %v3977 = vpop.f32.mrb[0].mxu0
    %3978 = vdwg.mxu0
    %v3979 = vld [vmem:[#allocation15] sm:$0xff]
    %v3980 = vld [vmem:[#allocation15 + $0x8] sm:$0xff]
    %v3981 = vld [vmem:[#allocation15 + $0x10] sm:$0xff]
    %v3982 = vld [vmem:[#allocation15 + $0x18] sm:$0xff]
    %v3983 = vld [vmem:[#allocation18] sm:$0xff]
    %v3984 = vld [vmem:[#allocation18 + $0x8] sm:$0xff]
    %v3985 = vld [vmem:[#allocation18 + $0x10] sm:$0xff]
    %v3986 = vld [vmem:[#allocation18 + $0x18] sm:$0xff]
    %v3987 = vld [vmem:[#allocation19] sm:$0xff]
    %v3988 = vld [vmem:[#allocation19 + $0x8] sm:$0xff]
    %v3989 = vld [vmem:[#allocation19 + $0x10] sm:$0xff]
    %v3990 = vld [vmem:[#allocation19 + $0x18] sm:$0xff]
    %v3991 = vld [vmem:[#allocation21] sm:$0x1]
    %v3993 = vlaneseq
    %v3994 = vshrl.u32 %v3993, 7
    %v3995 = vsub.s32 0, %v3994
    %v3996 = vrot.slane %v3991, %v3995
    %3998 = vmatprep.subr.mxu0 0.0
    %3999 = vmatpush1.msra.mxu0 %v3979
    %4000 = vmatprep.subr.mxu0 0.0
    %4001 = vmatpush1.msra.mxu0 %v3980
    %4002 = vmatprep.subr.mxu0 0.0
    %4003 = vmatpush1.msra.mxu0 %v3981
    %4004 = vmatprep.subr.mxu0 0.0
    %4005 = vmatpush1.msra.mxu0 %v3982
    %4006 = vmatprep.subr.mxu0 0.0
    %4007 = vmatpush1.msra.mxu0 0.0
    %4008 = vmatprep.subr.mxu0 0.0
    %4009 = vmatpush1.msra.mxu0 0.0
    %4010 = vmatprep.subr.mxu0 0.0
    %4011 = vmatpush1.msra.mxu0 0.0
    %4012 = vmatprep.subr.mxu0 0.0
    %4013 = vmatpush1.msra.mxu0 0.0
    %4014 = vmatprep.subr.mxu0 0.0
    %4015 = vmatpush1.msra.mxu0 0.0
    %4016 = vmatprep.subr.mxu0 0.0
    %4017 = vmatpush1.msra.mxu0 0.0
    %4018 = vmatprep.subr.mxu0 0.0
    %4019 = vmatpush1.msra.mxu0 0.0
    %4020 = vmatprep.subr.mxu0 0.0
    %4021 = vmatpush1.msra.mxu0 0.0
    %4022 = vmatprep.subr.mxu0 0.0
    %4023 = vmatpush1.msra.mxu0 0.0
    %4024 = vmatprep.subr.mxu0 0.0
    %4025 = vmatpush1.msra.mxu0 0.0
    %4026 = vmatprep.subr.mxu0 0.0
    %4027 = vmatpush1.msra.mxu0 0.0
    %4028 = vmatprep.subr.mxu0 0.0
    %4029 = vmatpush1.msra.mxu0 0.0
    %4030 = vmatprep.subr.mxu0 0.0
    %4031 = vmatpush1.msra.mxu0 0.0
    %4032 = vmatprep.subr.mxu0 0.0
    %4033 = vmatpush1.msra.mxu0 0.0
    %4034 = vmatprep.subr.mxu0 0.0
    %4035 = vmatpush1.msra.mxu0 0.0
    %4036 = vmatprep.subr.mxu0 0.0
    %4037 = vmatpush1.msra.mxu0 0.0
    %4038 = vmatprep.subr.mxu0 0.0
    %4039 = vmatpush1.msra.mxu0 0.0
    %4040 = vmatprep.subr.mxu0 0.0
    %4041 = vmatpush1.msra.mxu0 0.0
    %4042 = vmatprep.subr.mxu0 0.0
    %4043 = vmatpush1.msra.mxu0 0.0
    %4044 = vmatprep.subr.mxu0 0.0
    %4045 = vmatpush1.msra.mxu0 0.0
    %4046 = vmatprep.subr.mxu0 0.0
    %4047 = vmatpush1.msra.mxu0 0.0
    %4048 = vmatprep.subr.mxu0 0.0
    %4049 = vmatpush1.msra.mxu0 0.0
    %4050 = vmatprep.subr.mxu0 0.0
    %4051 = vmatpush1.msra.mxu0 0.0
    %4052 = vmatprep.subr.mxu0 0.0
    %4053 = vmatpush1.msra.mxu0 0.0
    %4054 = vmatprep.subr.mxu0 0.0
    %4055 = vmatpush1.msra.mxu0 0.0
    %4056 = vmatprep.subr.mxu0 0.0
    %4057 = vmatpush1.msra.mxu0 0.0
    %4058 = vmatprep.subr.mxu0 0.0
    %4059 = vmatpush1.msra.mxu0 0.0
    %4060 = vmatprep.subr.mxu0 0.0
    %4061 = vmatpush1.msra.mxu0 0.0
    %4062 = vmatprep.mubr.f32.mxu0 0.0
    %4063 = vmatmul.mubr.f32.gmra.mrb[0].mxu0 %v3567
    %v4064 = vpop.f32.mrb[0].mxu0
    %v4065 = vadd.f32 0.0, %v4064
    %v4066 = vpop.f32.mrb[0].mxu0
    %4067 = vdwg.mxu0
    %v4068 = vadd.f32 %v3966, %v4065
    %v4069 = vxor.u32 %v4068, 2147483648
    %v4070 = vmul.f32 %v4069, 1.442695
    %v4071 = vpow.pop %v4070
    %v4072 = vadd.f32 %v4071, 1.0
    %v4073 = vrcp.pop %v4072
    %v4074 = vmul.f32 1.0, %v4073
    %v4075 = vtanh.pop %v4068
    %v4076 = vmul.f32 %v4074, %v3557
    %4078 = vrot.lane.b32.xlu0 %v4075, 64
    %v4079 = vpop.permute.xlu0 %4078
    %v4081 = vmul.f32 %v4074, %v4079
    %4083 = vrot.lane.b32.xlu0 %v4081, 32
    %v4084 = vpop.permute.xlu0 %4083
    %v4086 = vadd.f32 %v4076, %v4084
    %v4087 = vtanh.pop %v4086
    %4089 = vrot.lane.b32.xlu0 %v4087, 64
    %v4090 = vpop.permute.xlu0 %4089
    %v4092 = vmul.f32 %v4074, %v4090
    %4094 = vrot.lane.b32.xlu0 %v4092, 32
    %v4095 = vpop.permute.xlu0 %4094
    %v4096 = vsel %vm442, %v4095, 0
    %4098 = vmatprep.subr.mxu0 0.0
    %4099 = vmatpush1.msra.mxu0 %v3983
    %4100 = vmatprep.subr.mxu0 0.0
    %4101 = vmatpush1.msra.mxu0 %v3984
    %4102 = vmatprep.subr.mxu0 0.0
    %4103 = vmatpush1.msra.mxu0 %v3985
    %4104 = vmatprep.subr.mxu0 0.0
    %4105 = vmatpush1.msra.mxu0 %v3986
    %4106 = vmatprep.subr.mxu0 0.0
    %4107 = vmatpush1.msra.mxu0 0.0
    %4108 = vmatprep.subr.mxu0 0.0
    %4109 = vmatpush1.msra.mxu0 0.0
    %4110 = vmatprep.subr.mxu0 0.0
    %4111 = vmatpush1.msra.mxu0 0.0
    %4112 = vmatprep.subr.mxu0 0.0
    %4113 = vmatpush1.msra.mxu0 0.0
    %4114 = vmatprep.subr.mxu0 0.0
    %4115 = vmatpush1.msra.mxu0 0.0
    %4116 = vmatprep.subr.mxu0 0.0
    %4117 = vmatpush1.msra.mxu0 0.0
    %4118 = vmatprep.subr.mxu0 0.0
    %4119 = vmatpush1.msra.mxu0 0.0
    %4120 = vmatprep.subr.mxu0 0.0
    %4121 = vmatpush1.msra.mxu0 0.0
    %4122 = vmatprep.subr.mxu0 0.0
    %4123 = vmatpush1.msra.mxu0 0.0
    %4124 = vmatprep.subr.mxu0 0.0
    %4125 = vmatpush1.msra.mxu0 0.0
    %4126 = vmatprep.subr.mxu0 0.0
    %4127 = vmatpush1.msra.mxu0 0.0
    %4128 = vmatprep.subr.mxu0 0.0
    %4129 = vmatpush1.msra.mxu0 0.0
    %4130 = vmatprep.subr.mxu0 0.0
    %4131 = vmatpush1.msra.mxu0 0.0
    %4132 = vmatprep.subr.mxu0 0.0
    %4133 = vmatpush1.msra.mxu0 0.0
    %4134 = vmatprep.subr.mxu0 0.0
    %4135 = vmatpush1.msra.mxu0 0.0
    %4136 = vmatprep.subr.mxu0 0.0
    %4137 = vmatpush1.msra.mxu0 0.0
    %4138 = vmatprep.subr.mxu0 0.0
    %4139 = vmatpush1.msra.mxu0 0.0
    %4140 = vmatprep.subr.mxu0 0.0
    %4141 = vmatpush1.msra.mxu0 0.0
    %4142 = vmatprep.subr.mxu0 0.0
    %4143 = vmatpush1.msra.mxu0 0.0
    %4144 = vmatprep.subr.mxu0 0.0
    %4145 = vmatpush1.msra.mxu0 0.0
    %4146 = vmatprep.subr.mxu0 0.0
    %4147 = vmatpush1.msra.mxu0 0.0
    %4148 = vmatprep.subr.mxu0 0.0
    %4149 = vmatpush1.msra.mxu0 0.0
    %4150 = vmatprep.subr.mxu0 0.0
    %4151 = vmatpush1.msra.mxu0 0.0
    %4152 = vmatprep.subr.mxu0 0.0
    %4153 = vmatpush1.msra.mxu0 0.0
    %4154 = vmatprep.subr.mxu0 0.0
    %4155 = vmatpush1.msra.mxu0 0.0
    %4156 = vmatprep.subr.mxu0 0.0
    %4157 = vmatpush1.msra.mxu0 0.0
    %4158 = vmatprep.subr.mxu0 0.0
    %4159 = vmatpush1.msra.mxu0 0.0
    %4160 = vmatprep.subr.mxu0 0.0
    %4161 = vmatpush1.msra.mxu0 0.0
    %4162 = vmatprep.mubr.f32.mxu0 0.0
    %4163 = vmatmul.mubr.f32.gmra.mrb[0].mxu0 %v4096
    %v4164 = vpop.f32.mrb[0].mxu0
    %v4165 = vadd.f32 %v3996, %v4164
    %v4166 = vpop.f32.mrb[0].mxu0
    %4167 = vdwg.mxu0
    %4168 = vrot.lane.b32.xlu0 %v3738, 32
    %v4169 = vpop.permute.xlu0 %4168
    %v4170 = vsel %vm442, %v4169, 0
    %4172 = vmatprep.subr.mxu0 0.0
    %4173 = vmatpush1.msra.mxu0 %v3987
    %4174 = vmatprep.subr.mxu0 0.0
    %4175 = vmatpush1.msra.mxu0 %v3988
    %4176 = vmatprep.subr.mxu0 0.0
    %4177 = vmatpush1.msra.mxu0 %v3989
    %4178 = vmatprep.subr.mxu0 0.0
    %4179 = vmatpush1.msra.mxu0 %v3990
    %4180 = vmatprep.subr.mxu0 0.0
    %4181 = vmatpush1.msra.mxu0 0.0
    %4182 = vmatprep.subr.mxu0 0.0
    %4183 = vmatpush1.msra.mxu0 0.0
    %4184 = vmatprep.subr.mxu0 0.0
    %4185 = vmatpush1.msra.mxu0 0.0
    %4186 = vmatprep.subr.mxu0 0.0
    %4187 = vmatpush1.msra.mxu0 0.0
    %4188 = vmatprep.subr.mxu0 0.0
    %4189 = vmatpush1.msra.mxu0 0.0
    %4190 = vmatprep.subr.mxu0 0.0
    %4191 = vmatpush1.msra.mxu0 0.0
    %4192 = vmatprep.subr.mxu0 0.0
    %4193 = vmatpush1.msra.mxu0 0.0
    %4194 = vmatprep.subr.mxu0 0.0
    %4195 = vmatpush1.msra.mxu0 0.0
    %4196 = vmatprep.subr.mxu0 0.0
    %4197 = vmatpush1.msra.mxu0 0.0
    %4198 = vmatprep.subr.mxu0 0.0
    %4199 = vmatpush1.msra.mxu0 0.0
    %4200 = vmatprep.subr.mxu0 0.0
    %4201 = vmatpush1.msra.mxu0 0.0
    %4202 = vmatprep.subr.mxu0 0.0
    %4203 = vmatpush1.msra.mxu0 0.0
    %4204 = vmatprep.subr.mxu0 0.0
    %4205 = vmatpush1.msra.mxu0 0.0
    %4206 = vmatprep.subr.mxu0 0.0
    %4207 = vmatpush1.msra.mxu0 0.0
    %4208 = vmatprep.subr.mxu0 0.0
    %4209 = vmatpush1.msra.mxu0 0.0
    %4210 = vmatprep.subr.mxu0 0.0
    %4211 = vmatpush1.msra.mxu0 0.0
    %4212 = vmatprep.subr.mxu0 0.0
    %4213 = vmatpush1.msra.mxu0 0.0
    %4214 = vmatprep.subr.mxu0 0.0
    %4215 = vmatpush1.msra.mxu0 0.0
    %4216 = vmatprep.subr.mxu0 0.0
    %4217 = vmatpush1.msra.mxu0 0.0
    %4218 = vmatprep.subr.mxu0 0.0
    %4219 = vmatpush1.msra.mxu0 0.0
    %4220 = vmatprep.subr.mxu0 0.0
    %4221 = vmatpush1.msra.mxu0 0.0
    %4222 = vmatprep.subr.mxu0 0.0
    %4223 = vmatpush1.msra.mxu0 0.0
    %4224 = vmatprep.subr.mxu0 0.0
    %4225 = vmatpush1.msra.mxu0 0.0
    %4226 = vmatprep.subr.mxu0 0.0
    %4227 = vmatpush1.msra.mxu0 0.0
    %4228 = vmatprep.subr.mxu0 0.0
    %4229 = vmatpush1.msra.mxu0 0.0
    %4230 = vmatprep.subr.mxu0 0.0
    %4231 = vmatpush1.msra.mxu0 0.0
    %4232 = vmatprep.subr.mxu0 0.0
    %4233 = vmatpush1.msra.mxu0 0.0
    %4234 = vmatprep.subr.mxu0 0.0
    %4235 = vmatpush1.msra.mxu0 0.0
    %4236 = vmatprep.mubr.f32.mxu0 0.0
    %4237 = vmatmul.mubr.f32.gmra.mrb[0].mxu0 %v4170
    %v4238 = vpop.f32.mrb[0].mxu0
    %v4239 = vadd.f32 0.0, %v4238
    %v4240 = vpop.f32.mrb[0].mxu0
    %4241 = vdwg.mxu0
    %v4242 = vadd.f32 %v4165, %v4239
    %v4243 = vxor.u32 %v4242, 2147483648
    %v4244 = vmul.f32 %v4243, 1.442695
    %v4245 = vpow.pop %v4244
    %v4246 = vadd.f32 %v4245, 1.0
    %v4247 = vrcp.pop %v4246
    %v4248 = vmul.f32 1.0, %v4247
    %v4249 = vtanh.pop %v4242
    %v4250 = vmul.f32 %v4248, %v3732
    %4252 = vrot.lane.b32.xlu0 %v4249, 64
    %v4253 = vpop.permute.xlu0 %4252
    %v4255 = vmul.f32 %v4248, %v4253
    %4257 = vrot.lane.b32.xlu0 %v4255, 32
    %v4258 = vpop.permute.xlu0 %4257
    %v4260 = vadd.f32 %v4250, %v4258
    %v4261 = vtanh.pop %v4260
    %4263 = vrot.lane.b32.xlu0 %v4261, 64
    %v4264 = vpop.permute.xlu0 %4263
    %v4266 = vmul.f32 %v4248, %v4264
    %4267 = vmatprep.subr.mxu0 0.0
    %4268 = vmatpush1.msra.mxu0 %v3979
    %4269 = vmatprep.subr.mxu0 0.0
    %4270 = vmatpush1.msra.mxu0 %v3980
    %4271 = vmatprep.subr.mxu0 0.0
    %4272 = vmatpush1.msra.mxu0 %v3981
    %4273 = vmatprep.subr.mxu0 0.0
    %4274 = vmatpush1.msra.mxu0 %v3982
    %4275 = vmatprep.subr.mxu0 0.0
    %4276 = vmatpush1.msra.mxu0 0.0
    %4277 = vmatprep.subr.mxu0 0.0
    %4278 = vmatpush1.msra.mxu0 0.0
    %4279 = vmatprep.subr.mxu0 0.0
    %4280 = vmatpush1.msra.mxu0 0.0
    %4281 = vmatprep.subr.mxu0 0.0
    %4282 = vmatpush1.msra.mxu0 0.0
    %4283 = vmatprep.subr.mxu0 0.0
    %4284 = vmatpush1.msra.mxu0 0.0
    %4285 = vmatprep.subr.mxu0 0.0
    %4286 = vmatpush1.msra.mxu0 0.0
    %4287 = vmatprep.subr.mxu0 0.0
    %4288 = vmatpush1.msra.mxu0 0.0
    %4289 = vmatprep.subr.mxu0 0.0
    %4290 = vmatpush1.msra.mxu0 0.0
    %4291 = vmatprep.subr.mxu0 0.0
    %4292 = vmatpush1.msra.mxu0 0.0
    %4293 = vmatprep.subr.mxu0 0.0
    %4294 = vmatpush1.msra.mxu0 0.0
    %4295 = vmatprep.subr.mxu0 0.0
    %4296 = vmatpush1.msra.mxu0 0.0
    %4297 = vmatprep.subr.mxu0 0.0
    %4298 = vmatpush1.msra.mxu0 0.0
    %4299 = vmatprep.subr.mxu0 0.0
    %4300 = vmatpush1.msra.mxu0 0.0
    %4301 = vmatprep.subr.mxu0 0.0
    %4302 = vmatpush1.msra.mxu0 0.0
    %4303 = vmatprep.subr.mxu0 0.0
    %4304 = vmatpush1.msra.mxu0 0.0
    %4305 = vmatprep.subr.mxu0 0.0
    %4306 = vmatpush1.msra.mxu0 0.0
    %4307 = vmatprep.subr.mxu0 0.0
    %4308 = vmatpush1.msra.mxu0 0.0
    %4309 = vmatprep.subr.mxu0 0.0
    %4310 = vmatpush1.msra.mxu0 0.0
    %4311 = vmatprep.subr.mxu0 0.0
    %4312 = vmatpush1.msra.mxu0 0.0
    %4313 = vmatprep.subr.mxu0 0.0
    %4314 = vmatpush1.msra.mxu0 0.0
    %4315 = vmatprep.subr.mxu0 0.0
    %4316 = vmatpush1.msra.mxu0 0.0
    %4317 = vmatprep.subr.mxu0 0.0
    %4318 = vmatpush1.msra.mxu0 0.0
    %4319 = vmatprep.subr.mxu0 0.0
    %4320 = vmatpush1.msra.mxu0 0.0
    %4321 = vmatprep.subr.mxu0 0.0
    %4322 = vmatpush1.msra.mxu0 0.0
    %4323 = vmatprep.subr.mxu0 0.0
    %4324 = vmatpush1.msra.mxu0 0.0
    %4325 = vmatprep.subr.mxu0 0.0
    %4326 = vmatpush1.msra.mxu0 0.0
    %4327 = vmatprep.subr.mxu0 0.0
    %4328 = vmatpush1.msra.mxu0 0.0
    %4329 = vmatprep.subr.mxu0 0.0
    %4330 = vmatpush1.msra.mxu0 0.0
    %4331 = vmatprep.mubr.f32.mxu0 0.0
    %4332 = vmatmul.mubr.f32.gmra.mrb[0].mxu0 %v4096
    %v4333 = vpop.f32.mrb[0].mxu0
    %v4334 = vadd.f32 0.0, %v4333
    %v4335 = vpop.f32.mrb[0].mxu0
    %4336 = vdwg.mxu0
    %v4338 = vrot.slane %v4334, 6
    %v4340 = vadd.f32 %v3966, %v4338
    %v4341 = vxor.u32 %v4340, 2147483648
    %v4342 = vmul.f32 %v4341, 1.442695
    %v4343 = vpow.pop %v4342
    %v4344 = vadd.f32 %v4343, 1.0
    %v4345 = vrcp.pop %v4344
    %v4346 = vmul.f32 1.0, %v4345
    %v4347 = vtanh.pop %v4340
    %v4349 = vrot.slane %v4086, 6
    %v4351 = vmul.f32 %v4346, %v4349
    %4353 = vrot.lane.b32.xlu0 %v4347, 64
    %v4354 = vpop.permute.xlu0 %4353
    %v4356 = vmul.f32 %v4346, %v4354
    %4358 = vrot.lane.b32.xlu0 %v4356, 32
    %v4359 = vpop.permute.xlu0 %4358
    %v4361 = vadd.f32 %v4351, %v4359
    %v4362 = vtanh.pop %v4361
    %4364 = vrot.lane.b32.xlu0 %v4362, 64
    %v4365 = vpop.permute.xlu0 %4364
    %v4367 = vmul.f32 %v4346, %v4365
    %v4369 = vrot.slane %v4367, 2
    %4370 = vrot.lane.b32.xlu0 %v4369, 32
    %v4371 = vpop.permute.xlu0 %4370
    %v4372 = vsel %vm442, %v4371, 0
    %4374 = vmatprep.subr.mxu0 0.0
    %4375 = vmatpush1.msra.mxu0 %v3983
    %4376 = vmatprep.subr.mxu0 0.0
    %4377 = vmatpush1.msra.mxu0 %v3984
    %4378 = vmatprep.subr.mxu0 0.0
    %4379 = vmatpush1.msra.mxu0 %v3985
    %4380 = vmatprep.subr.mxu0 0.0
    %4381 = vmatpush1.msra.mxu0 %v3986
    %4382 = vmatprep.subr.mxu0 0.0
    %4383 = vmatpush1.msra.mxu0 0.0
    %4384 = vmatprep.subr.mxu0 0.0
    %4385 = vmatpush1.msra.mxu0 0.0
    %4386 = vmatprep.subr.mxu0 0.0
    %4387 = vmatpush1.msra.mxu0 0.0
    %4388 = vmatprep.subr.mxu0 0.0
    %4389 = vmatpush1.msra.mxu0 0.0
    %4390 = vmatprep.subr.mxu0 0.0
    %4391 = vmatpush1.msra.mxu0 0.0
    %4392 = vmatprep.subr.mxu0 0.0
    %4393 = vmatpush1.msra.mxu0 0.0
    %4394 = vmatprep.subr.mxu0 0.0
    %4395 = vmatpush1.msra.mxu0 0.0
    %4396 = vmatprep.subr.mxu0 0.0
    %4397 = vmatpush1.msra.mxu0 0.0
    %4398 = vmatprep.subr.mxu0 0.0
    %4399 = vmatpush1.msra.mxu0 0.0
    %4400 = vmatprep.subr.mxu0 0.0
    %4401 = vmatpush1.msra.mxu0 0.0
    %4402 = vmatprep.subr.mxu0 0.0
    %4403 = vmatpush1.msra.mxu0 0.0
    %4404 = vmatprep.subr.mxu0 0.0
    %4405 = vmatpush1.msra.mxu0 0.0
    %4406 = vmatprep.subr.mxu0 0.0
    %4407 = vmatpush1.msra.mxu0 0.0
    %4408 = vmatprep.subr.mxu0 0.0
    %4409 = vmatpush1.msra.mxu0 0.0
    %4410 = vmatprep.subr.mxu0 0.0
    %4411 = vmatpush1.msra.mxu0 0.0
    %4412 = vmatprep.subr.mxu0 0.0
    %4413 = vmatpush1.msra.mxu0 0.0
    %4414 = vmatprep.subr.mxu0 0.0
    %4415 = vmatpush1.msra.mxu0 0.0
    %4416 = vmatprep.subr.mxu0 0.0
    %4417 = vmatpush1.msra.mxu0 0.0
    %4418 = vmatprep.subr.mxu0 0.0
    %4419 = vmatpush1.msra.mxu0 0.0
    %4420 = vmatprep.subr.mxu0 0.0
    %4421 = vmatpush1.msra.mxu0 0.0
    %4422 = vmatprep.subr.mxu0 0.0
    %4423 = vmatpush1.msra.mxu0 0.0
    %4424 = vmatprep.subr.mxu0 0.0
    %4425 = vmatpush1.msra.mxu0 0.0
    %4426 = vmatprep.subr.mxu0 0.0
    %4427 = vmatpush1.msra.mxu0 0.0
    %4428 = vmatprep.subr.mxu0 0.0
    %4429 = vmatpush1.msra.mxu0 0.0
    %4430 = vmatprep.subr.mxu0 0.0
    %4431 = vmatpush1.msra.mxu0 0.0
    %4432 = vmatprep.subr.mxu0 0.0
    %4433 = vmatpush1.msra.mxu0 0.0
    %4434 = vmatprep.subr.mxu0 0.0
    %4435 = vmatpush1.msra.mxu0 0.0
    %4436 = vmatprep.subr.mxu0 0.0
    %4437 = vmatpush1.msra.mxu0 0.0
    %4438 = vmatprep.mubr.f32.mxu0 0.0
    %4439 = vmatmul.mubr.f32.gmra.mrb[0].mxu0 %v4372
    %v4440 = vpop.f32.mrb[0].mxu0
    %v4441 = vadd.f32 %v3996, %v4440
    %v4442 = vpop.f32.mrb[0].mxu0
    %4443 = vdwg.mxu0
    %4445 = vrot.lane.b32.xlu0 %v4266, 32
    %v4446 = vpop.permute.xlu0 %4445
    %v4447 = vsel %vm442, %v4446, 0
    %4449 = vmatprep.subr.mxu0 0.0
    %4450 = vmatpush1.msra.mxu0 %v3987
    %4451 = vmatprep.subr.mxu0 0.0
    %4452 = vmatpush1.msra.mxu0 %v3988
    %4453 = vmatprep.subr.mxu0 0.0
    %4454 = vmatpush1.msra.mxu0 %v3989
    %4455 = vmatprep.subr.mxu0 0.0
    %4456 = vmatpush1.msra.mxu0 %v3990
    %4457 = vmatprep.subr.mxu0 0.0
    %4458 = vmatpush1.msra.mxu0 0.0
    %4459 = vmatprep.subr.mxu0 0.0
    %4460 = vmatpush1.msra.mxu0 0.0
    %4461 = vmatprep.subr.mxu0 0.0
    %4462 = vmatpush1.msra.mxu0 0.0
    %4463 = vmatprep.subr.mxu0 0.0
    %4464 = vmatpush1.msra.mxu0 0.0
    %4465 = vmatprep.subr.mxu0 0.0
    %4466 = vmatpush1.msra.mxu0 0.0
    %4467 = vmatprep.subr.mxu0 0.0
    %4468 = vmatpush1.msra.mxu0 0.0
    %4469 = vmatprep.subr.mxu0 0.0
    %4470 = vmatpush1.msra.mxu0 0.0
    %4471 = vmatprep.subr.mxu0 0.0
    %4472 = vmatpush1.msra.mxu0 0.0
    %4473 = vmatprep.subr.mxu0 0.0
    %4474 = vmatpush1.msra.mxu0 0.0
    %4475 = vmatprep.subr.mxu0 0.0
    %4476 = vmatpush1.msra.mxu0 0.0
    %4477 = vmatprep.subr.mxu0 0.0
    %4478 = vmatpush1.msra.mxu0 0.0
    %4479 = vmatprep.subr.mxu0 0.0
    %4480 = vmatpush1.msra.mxu0 0.0
    %4481 = vmatprep.subr.mxu0 0.0
    %4482 = vmatpush1.msra.mxu0 0.0
    %4483 = vmatprep.subr.mxu0 0.0
    %4484 = vmatpush1.msra.mxu0 0.0
    %4485 = vmatprep.subr.mxu0 0.0
    %4486 = vmatpush1.msra.mxu0 0.0
    %4487 = vmatprep.subr.mxu0 0.0
    %4488 = vmatpush1.msra.mxu0 0.0
    %4489 = vmatprep.subr.mxu0 0.0
    %4490 = vmatpush1.msra.mxu0 0.0
    %4491 = vmatprep.subr.mxu0 0.0
    %4492 = vmatpush1.msra.mxu0 0.0
    %4493 = vmatprep.subr.mxu0 0.0
    %4494 = vmatpush1.msra.mxu0 0.0
    %4495 = vmatprep.subr.mxu0 0.0
    %4496 = vmatpush1.msra.mxu0 0.0
    %4497 = vmatprep.subr.mxu0 0.0
    %4498 = vmatpush1.msra.mxu0 0.0
    %4499 = vmatprep.subr.mxu0 0.0
    %4500 = vmatpush1.msra.mxu0 0.0
    %4501 = vmatprep.subr.mxu0 0.0
    %4502 = vmatpush1.msra.mxu0 0.0
    %4503 = vmatprep.subr.mxu0 0.0
    %4504 = vmatpush1.msra.mxu0 0.0
    %4505 = vmatprep.subr.mxu0 0.0
    %4506 = vmatpush1.msra.mxu0 0.0
    %4507 = vmatprep.subr.mxu0 0.0
    %4508 = vmatpush1.msra.mxu0 0.0
    %4509 = vmatprep.subr.mxu0 0.0
    %4510 = vmatpush1.msra.mxu0 0.0
    %4511 = vmatprep.subr.mxu0 0.0
    %4512 = vmatpush1.msra.mxu0 0.0
    %4513 = vmatprep.mubr.f32.mxu0 0.0
    %4514 = vmatmul.mubr.f32.gmra.mrb[0].mxu0 %v4447
    %v4515 = vpop.f32.mrb[0].mxu0
    %v4516 = vadd.f32 0.0, %v4515
    %v4517 = vpop.f32.mrb[0].mxu0
    %4518 = vdwg.mxu0
    %v4519 = vadd.f32 %v4441, %v4516
    %v4520 = vxor.u32 %v4519, 2147483648
    %v4521 = vmul.f32 %v4520, 1.442695
    %v4522 = vpow.pop %v4521
    %v4523 = vadd.f32 %v4522, 1.0
    %v4524 = vrcp.pop %v4523
    %v4525 = vmul.f32 1.0, %v4524
    %v4526 = vtanh.pop %v4519
    %v4527 = vmul.f32 %v4525, %v4260
    %4529 = vrot.lane.b32.xlu0 %v4526, 64
    %v4530 = vpop.permute.xlu0 %4529
    %v4532 = vmul.f32 %v4525, %v4530
    %4534 = vrot.lane.b32.xlu0 %v4532, 32
    %v4535 = vpop.permute.xlu0 %4534
    %v4537 = vadd.f32 %v4527, %v4535
    %v4538 = vtanh.pop %v4537
    %4540 = vrot.lane.b32.xlu0 %v4538, 64
    %v4541 = vpop.permute.xlu0 %4540
    %v4543 = vmul.f32 %v4525, %v4541
    %4544 = vmatprep.subr.mxu0 0.0
    %4545 = vmatpush1.msra.mxu0 %v3979
    %4546 = vmatprep.subr.mxu0 0.0
    %4547 = vmatpush1.msra.mxu0 %v3980
    %4548 = vmatprep.subr.mxu0 0.0
    %4549 = vmatpush1.msra.mxu0 %v3981
    %4550 = vmatprep.subr.mxu0 0.0
    %4551 = vmatpush1.msra.mxu0 %v3982
    %4552 = vmatprep.subr.mxu0 0.0
    %4553 = vmatpush1.msra.mxu0 0.0
    %4554 = vmatprep.subr.mxu0 0.0
    %4555 = vmatpush1.msra.mxu0 0.0
    %4556 = vmatprep.subr.mxu0 0.0
    %4557 = vmatpush1.msra.mxu0 0.0
    %4558 = vmatprep.subr.mxu0 0.0
    %4559 = vmatpush1.msra.mxu0 0.0
    %4560 = vmatprep.subr.mxu0 0.0
    %4561 = vmatpush1.msra.mxu0 0.0
    %4562 = vmatprep.subr.mxu0 0.0
    %4563 = vmatpush1.msra.mxu0 0.0
    %4564 = vmatprep.subr.mxu0 0.0
    %4565 = vmatpush1.msra.mxu0 0.0
    %4566 = vmatprep.subr.mxu0 0.0
    %4567 = vmatpush1.msra.mxu0 0.0
    %4568 = vmatprep.subr.mxu0 0.0
    %4569 = vmatpush1.msra.mxu0 0.0
    %4570 = vmatprep.subr.mxu0 0.0
    %4571 = vmatpush1.msra.mxu0 0.0
    %4572 = vmatprep.subr.mxu0 0.0
    %4573 = vmatpush1.msra.mxu0 0.0
    %4574 = vmatprep.subr.mxu0 0.0
    %4575 = vmatpush1.msra.mxu0 0.0
    %4576 = vmatprep.subr.mxu0 0.0
    %4577 = vmatpush1.msra.mxu0 0.0
    %4578 = vmatprep.subr.mxu0 0.0
    %4579 = vmatpush1.msra.mxu0 0.0
    %4580 = vmatprep.subr.mxu0 0.0
    %4581 = vmatpush1.msra.mxu0 0.0
    %4582 = vmatprep.subr.mxu0 0.0
    %4583 = vmatpush1.msra.mxu0 0.0
    %4584 = vmatprep.subr.mxu0 0.0
    %4585 = vmatpush1.msra.mxu0 0.0
    %4586 = vmatprep.subr.mxu0 0.0
    %4587 = vmatpush1.msra.mxu0 0.0
    %4588 = vmatprep.subr.mxu0 0.0
    %4589 = vmatpush1.msra.mxu0 0.0
    %4590 = vmatprep.subr.mxu0 0.0
    %4591 = vmatpush1.msra.mxu0 0.0
    %4592 = vmatprep.subr.mxu0 0.0
    %4593 = vmatpush1.msra.mxu0 0.0
    %4594 = vmatprep.subr.mxu0 0.0
    %4595 = vmatpush1.msra.mxu0 0.0
    %4596 = vmatprep.subr.mxu0 0.0
    %4597 = vmatpush1.msra.mxu0 0.0
    %4598 = vmatprep.subr.mxu0 0.0
    %4599 = vmatpush1.msra.mxu0 0.0
    %4600 = vmatprep.subr.mxu0 0.0
    %4601 = vmatpush1.msra.mxu0 0.0
    %4602 = vmatprep.subr.mxu0 0.0
    %4603 = vmatpush1.msra.mxu0 0.0
    %4604 = vmatprep.subr.mxu0 0.0
    %4605 = vmatpush1.msra.mxu0 0.0
    %4606 = vmatprep.subr.mxu0 0.0
    %4607 = vmatpush1.msra.mxu0 0.0
    %4608 = vmatprep.mubr.f32.mxu0 0.0
    %4609 = vmatmul.mubr.f32.gmra.mrb[0].mxu0 %v4372
    %v4610 = vpop.f32.mrb[0].mxu0
    %v4611 = vadd.f32 0.0, %v4610
    %v4612 = vpop.f32.mrb[0].mxu0
    %4613 = vdwg.mxu0
    %v4615 = vrot.slane %v4611, 4
    %v4617 = vadd.f32 %v3966, %v4615
    %v4618 = vxor.u32 %v4617, 2147483648
    %v4619 = vmul.f32 %v4618, 1.442695
    %v4620 = vpow.pop %v4619
    %v4621 = vadd.f32 %v4620, 1.0
    %v4622 = vrcp.pop %v4621
    %v4623 = vmul.f32 1.0, %v4622
    %v4624 = vtanh.pop %v4617
    %v4626 = vrot.slane %v4361, 6
    %v4628 = vmul.f32 %v4623, %v4626
    %4630 = vrot.lane.b32.xlu0 %v4624, 64
    %v4631 = vpop.permute.xlu0 %4630
    %v4633 = vmul.f32 %v4623, %v4631
    %4635 = vrot.lane.b32.xlu0 %v4633, 32
    %v4636 = vpop.permute.xlu0 %4635
    %v4638 = vadd.f32 %v4628, %v4636
    %v4639 = vtanh.pop %v4638
    %4641 = vrot.lane.b32.xlu0 %v4639, 64
    %v4642 = vpop.permute.xlu0 %4641
    %v4644 = vmul.f32 %v4623, %v4642
    %v4646 = vrot.slane %v4644, 4
    %4647 = vrot.lane.b32.xlu0 %v4646, 32
    %v4648 = vpop.permute.xlu0 %4647
    %v4649 = vsel %vm442, %v4648, 0
    %4651 = vmatprep.subr.mxu0 0.0
    %4652 = vmatpush1.msra.mxu0 %v3983
    %4653 = vmatprep.subr.mxu0 0.0
    %4654 = vmatpush1.msra.mxu0 %v3984
    %4655 = vmatprep.subr.mxu0 0.0
    %4656 = vmatpush1.msra.mxu0 %v3985
    %4657 = vmatprep.subr.mxu0 0.0
    %4658 = vmatpush1.msra.mxu0 %v3986
    %4659 = vmatprep.subr.mxu0 0.0
    %4660 = vmatpush1.msra.mxu0 0.0
    %4661 = vmatprep.subr.mxu0 0.0
    %4662 = vmatpush1.msra.mxu0 0.0
    %4663 = vmatprep.subr.mxu0 0.0
    %4664 = vmatpush1.msra.mxu0 0.0
    %4665 = vmatprep.subr.mxu0 0.0
    %4666 = vmatpush1.msra.mxu0 0.0
    %4667 = vmatprep.subr.mxu0 0.0
    %4668 = vmatpush1.msra.mxu0 0.0
    %4669 = vmatprep.subr.mxu0 0.0
    %4670 = vmatpush1.msra.mxu0 0.0
    %4671 = vmatprep.subr.mxu0 0.0
    %4672 = vmatpush1.msra.mxu0 0.0
    %4673 = vmatprep.subr.mxu0 0.0
    %4674 = vmatpush1.msra.mxu0 0.0
    %4675 = vmatprep.subr.mxu0 0.0
    %4676 = vmatpush1.msra.mxu0 0.0
    %4677 = vmatprep.subr.mxu0 0.0
    %4678 = vmatpush1.msra.mxu0 0.0
    %4679 = vmatprep.subr.mxu0 0.0
    %4680 = vmatpush1.msra.mxu0 0.0
    %4681 = vmatprep.subr.mxu0 0.0
    %4682 = vmatpush1.msra.mxu0 0.0
    %4683 = vmatprep.subr.mxu0 0.0
    %4684 = vmatpush1.msra.mxu0 0.0
    %4685 = vmatprep.subr.mxu0 0.0
    %4686 = vmatpush1.msra.mxu0 0.0
    %4687 = vmatprep.subr.mxu0 0.0
    %4688 = vmatpush1.msra.mxu0 0.0
    %4689 = vmatprep.subr.mxu0 0.0
    %4690 = vmatpush1.msra.mxu0 0.0
    %4691 = vmatprep.subr.mxu0 0.0
    %4692 = vmatpush1.msra.mxu0 0.0
    %4693 = vmatprep.subr.mxu0 0.0
    %4694 = vmatpush1.msra.mxu0 0.0
    %4695 = vmatprep.subr.mxu0 0.0
    %4696 = vmatpush1.msra.mxu0 0.0
    %4697 = vmatprep.subr.mxu0 0.0
    %4698 = vmatpush1.msra.mxu0 0.0
    %4699 = vmatprep.subr.mxu0 0.0
    %4700 = vmatpush1.msra.mxu0 0.0
    %4701 = vmatprep.subr.mxu0 0.0
    %4702 = vmatpush1.msra.mxu0 0.0
    %4703 = vmatprep.subr.mxu0 0.0
    %4704 = vmatpush1.msra.mxu0 0.0
    %4705 = vmatprep.subr.mxu0 0.0
    %4706 = vmatpush1.msra.mxu0 0.0
    %4707 = vmatprep.subr.mxu0 0.0
    %4708 = vmatpush1.msra.mxu0 0.0
    %4709 = vmatprep.subr.mxu0 0.0
    %4710 = vmatpush1.msra.mxu0 0.0
    %4711 = vmatprep.subr.mxu0 0.0
    %4712 = vmatpush1.msra.mxu0 0.0
    %4713 = vmatprep.subr.mxu0 0.0
    %4714 = vmatpush1.msra.mxu0 0.0
    %4715 = vmatprep.mubr.f32.mxu0 0.0
    %4716 = vmatmul.mubr.f32.gmra.mrb[0].mxu0 %v4649
    %v4717 = vpop.f32.mrb[0].mxu0
    %v4718 = vadd.f32 %v3996, %v4717
    %v4719 = vpop.f32.mrb[0].mxu0
    %4720 = vdwg.mxu0
    %4722 = vrot.lane.b32.xlu0 %v4543, 32
    %v4723 = vpop.permute.xlu0 %4722
    %v4724 = vsel %vm442, %v4723, 0
    %4726 = vmatprep.subr.mxu0 0.0
    %4727 = vmatpush1.msra.mxu0 %v3987
    %4728 = vmatprep.subr.mxu0 0.0
    %4729 = vmatpush1.msra.mxu0 %v3988
    %4730 = vmatprep.subr.mxu0 0.0
    %4731 = vmatpush1.msra.mxu0 %v3989
    %4732 = vmatprep.subr.mxu0 0.0
    %4733 = vmatpush1.msra.mxu0 %v3990
    %4734 = vmatprep.subr.mxu0 0.0
    %4735 = vmatpush1.msra.mxu0 0.0
    %4736 = vmatprep.subr.mxu0 0.0
    %4737 = vmatpush1.msra.mxu0 0.0
    %4738 = vmatprep.subr.mxu0 0.0
    %4739 = vmatpush1.msra.mxu0 0.0
    %4740 = vmatprep.subr.mxu0 0.0
    %4741 = vmatpush1.msra.mxu0 0.0
    %4742 = vmatprep.subr.mxu0 0.0
    %4743 = vmatpush1.msra.mxu0 0.0
    %4744 = vmatprep.subr.mxu0 0.0
    %4745 = vmatpush1.msra.mxu0 0.0
    %4746 = vmatprep.subr.mxu0 0.0
    %4747 = vmatpush1.msra.mxu0 0.0
    %4748 = vmatprep.subr.mxu0 0.0
    %4749 = vmatpush1.msra.mxu0 0.0
    %4750 = vmatprep.subr.mxu0 0.0
    %4751 = vmatpush1.msra.mxu0 0.0
    %4752 = vmatprep.subr.mxu0 0.0
    %4753 = vmatpush1.msra.mxu0 0.0
    %4754 = vmatprep.subr.mxu0 0.0
    %4755 = vmatpush1.msra.mxu0 0.0
    %4756 = vmatprep.subr.mxu0 0.0
    %4757 = vmatpush1.msra.mxu0 0.0
    %4758 = vmatprep.subr.mxu0 0.0
    %4759 = vmatpush1.msra.mxu0 0.0
    %4760 = vmatprep.subr.mxu0 0.0
    %4761 = vmatpush1.msra.mxu0 0.0
    %4762 = vmatprep.subr.mxu0 0.0
    %4763 = vmatpush1.msra.mxu0 0.0
    %4764 = vmatprep.subr.mxu0 0.0
    %4765 = vmatpush1.msra.mxu0 0.0
    %4766 = vmatprep.subr.mxu0 0.0
    %4767 = vmatpush1.msra.mxu0 0.0
    %4768 = vmatprep.subr.mxu0 0.0
    %4769 = vmatpush1.msra.mxu0 0.0
    %4770 = vmatprep.subr.mxu0 0.0
    %4771 = vmatpush1.msra.mxu0 0.0
    %4772 = vmatprep.subr.mxu0 0.0
    %4773 = vmatpush1.msra.mxu0 0.0
    %4774 = vmatprep.subr.mxu0 0.0
    %4775 = vmatpush1.msra.mxu0 0.0
    %4776 = vmatprep.subr.mxu0 0.0
    %4777 = vmatpush1.msra.mxu0 0.0
    %4778 = vmatprep.subr.mxu0 0.0
    %4779 = vmatpush1.msra.mxu0 0.0
    %4780 = vmatprep.subr.mxu0 0.0
    %4781 = vmatpush1.msra.mxu0 0.0
    %4782 = vmatprep.subr.mxu0 0.0
    %4783 = vmatpush1.msra.mxu0 0.0
    %4784 = vmatprep.subr.mxu0 0.0
    %4785 = vmatpush1.msra.mxu0 0.0
    %4786 = vmatprep.subr.mxu0 0.0
    %4787 = vmatpush1.msra.mxu0 0.0
    %4788 = vmatprep.subr.mxu0 0.0
    %4789 = vmatpush1.msra.mxu0 0.0
    %4790 = vmatprep.mubr.f32.mxu0 0.0
    %4791 = vmatmul.mubr.f32.gmra.mrb[0].mxu0 %v4724
    %v4792 = vpop.f32.mrb[0].mxu0
    %v4793 = vadd.f32 0.0, %v4792
    %v4794 = vpop.f32.mrb[0].mxu0
    %4795 = vdwg.mxu0
    %v4796 = vadd.f32 %v4718, %v4793
    %v4797 = vxor.u32 %v4796, 2147483648
    %v4798 = vmul.f32 %v4797, 1.442695
    %v4799 = vpow.pop %v4798
    %v4800 = vadd.f32 %v4799, 1.0
    %v4801 = vrcp.pop %v4800
    %v4802 = vmul.f32 1.0, %v4801
    %v4803 = vtanh.pop %v4796
    %v4804 = vmul.f32 %v4802, %v4537
    %4806 = vrot.lane.b32.xlu0 %v4803, 64
    %v4807 = vpop.permute.xlu0 %4806
    %v4809 = vmul.f32 %v4802, %v4807
    %4811 = vrot.lane.b32.xlu0 %v4809, 32
    %v4812 = vpop.permute.xlu0 %4811
    %v4814 = vadd.f32 %v4804, %v4812
    %v4815 = vtanh.pop %v4814
    %4817 = vrot.lane.b32.xlu0 %v4815, 64
    %v4818 = vpop.permute.xlu0 %4817
    %v4820 = vmul.f32 %v4802, %v4818
    %4821 = vmatprep.subr.mxu0 0.0
    %4822 = vmatpush1.msra.mxu0 %v3979
    %4823 = vmatprep.subr.mxu0 0.0
    %4824 = vmatpush1.msra.mxu0 %v3980
    %4825 = vmatprep.subr.mxu0 0.0
    %4826 = vmatpush1.msra.mxu0 %v3981
    %4827 = vmatprep.subr.mxu0 0.0
    %4828 = vmatpush1.msra.mxu0 %v3982
    %4829 = vmatprep.subr.mxu0 0.0
    %4830 = vmatpush1.msra.mxu0 0.0
    %4831 = vmatprep.subr.mxu0 0.0
    %4832 = vmatpush1.msra.mxu0 0.0
    %4833 = vmatprep.subr.mxu0 0.0
    %4834 = vmatpush1.msra.mxu0 0.0
    %4835 = vmatprep.subr.mxu0 0.0
    %4836 = vmatpush1.msra.mxu0 0.0
    %4837 = vmatprep.subr.mxu0 0.0
    %4838 = vmatpush1.msra.mxu0 0.0
    %4839 = vmatprep.subr.mxu0 0.0
    %4840 = vmatpush1.msra.mxu0 0.0
    %4841 = vmatprep.subr.mxu0 0.0
    %4842 = vmatpush1.msra.mxu0 0.0
    %4843 = vmatprep.subr.mxu0 0.0
    %4844 = vmatpush1.msra.mxu0 0.0
    %4845 = vmatprep.subr.mxu0 0.0
    %4846 = vmatpush1.msra.mxu0 0.0
    %4847 = vmatprep.subr.mxu0 0.0
    %4848 = vmatpush1.msra.mxu0 0.0
    %4849 = vmatprep.subr.mxu0 0.0
    %4850 = vmatpush1.msra.mxu0 0.0
    %4851 = vmatprep.subr.mxu0 0.0
    %4852 = vmatpush1.msra.mxu0 0.0
    %4853 = vmatprep.subr.mxu0 0.0
    %4854 = vmatpush1.msra.mxu0 0.0
    %4855 = vmatprep.subr.mxu0 0.0
    %4856 = vmatpush1.msra.mxu0 0.0
    %4857 = vmatprep.subr.mxu0 0.0
    %4858 = vmatpush1.msra.mxu0 0.0
    %4859 = vmatprep.subr.mxu0 0.0
    %4860 = vmatpush1.msra.mxu0 0.0
    %4861 = vmatprep.subr.mxu0 0.0
    %4862 = vmatpush1.msra.mxu0 0.0
    %4863 = vmatprep.subr.mxu0 0.0
    %4864 = vmatpush1.msra.mxu0 0.0
    %4865 = vmatprep.subr.mxu0 0.0
    %4866 = vmatpush1.msra.mxu0 0.0
    %4867 = vmatprep.subr.mxu0 0.0
    %4868 = vmatpush1.msra.mxu0 0.0
    %4869 = vmatprep.subr.mxu0 0.0
    %4870 = vmatpush1.msra.mxu0 0.0
    %4871 = vmatprep.subr.mxu0 0.0
    %4872 = vmatpush1.msra.mxu0 0.0
    %4873 = vmatprep.subr.mxu0 0.0
    %4874 = vmatpush1.msra.mxu0 0.0
    %4875 = vmatprep.subr.mxu0 0.0
    %4876 = vmatpush1.msra.mxu0 0.0
    %4877 = vmatprep.subr.mxu0 0.0
    %4878 = vmatpush1.msra.mxu0 0.0
    %4879 = vmatprep.subr.mxu0 0.0
    %4880 = vmatpush1.msra.mxu0 0.0
    %4881 = vmatprep.subr.mxu0 0.0
    %4882 = vmatpush1.msra.mxu0 0.0
    %4883 = vmatprep.subr.mxu0 0.0
    %4884 = vmatpush1.msra.mxu0 0.0
    %4885 = vmatprep.mubr.f32.mxu0 0.0
    %4886 = vmatmul.mubr.f32.gmra.mrb[0].mxu0 %v4649
    %v4887 = vpop.f32.mrb[0].mxu0
    %v4888 = vadd.f32 0.0, %v4887
    %v4889 = vpop.f32.mrb[0].mxu0
    %4890 = vdwg.mxu0
    %v4892 = vrot.slane %v4888, 2
    %v4894 = vadd.f32 %v3966, %v4892
    %v4895 = vxor.u32 %v4894, 2147483648
    %v4896 = vmul.f32 %v4895, 1.442695
    %v4897 = vpow.pop %v4896
    %v4898 = vadd.f32 %v4897, 1.0
    %v4899 = vrcp.pop %v4898
    %v4900 = vmul.f32 1.0, %v4899
    %v4901 = vtanh.pop %v4894
    %v4903 = vrot.slane %v4638, 6
    %v4905 = vmul.f32 %v4900, %v4903
    %4907 = vrot.lane.b32.xlu0 %v4901, 64
    %v4908 = vpop.permute.xlu0 %4907
    %v4910 = vmul.f32 %v4900, %v4908
    %4912 = vrot.lane.b32.xlu0 %v4910, 32
    %v4913 = vpop.permute.xlu0 %4912
    %v4915 = vadd.f32 %v4905, %v4913
    %v4916 = vtanh.pop %v4915
    %4918 = vrot.lane.b32.xlu0 %v4916, 64
    %v4919 = vpop.permute.xlu0 %4918
    %v4921 = vmul.f32 %v4900, %v4919
    %v4923 = vrot.slane %v4921, 6
    %4924 = vrot.lane.b32.xlu0 %v4923, 32
    %v4925 = vpop.permute.xlu0 %4924
    %v4926 = vsel %vm442, %v4925, 0
    %4928 = vmatprep.subr.mxu0 0.0
    %4929 = vmatpush1.msra.mxu0 %v3983
    %4930 = vmatprep.subr.mxu0 0.0
    %4931 = vmatpush1.msra.mxu0 %v3984
    %4932 = vmatprep.subr.mxu0 0.0
    %4933 = vmatpush1.msra.mxu0 %v3985
    %4934 = vmatprep.subr.mxu0 0.0
    %4935 = vmatpush1.msra.mxu0 %v3986
    %4936 = vmatprep.subr.mxu0 0.0
    %4937 = vmatpush1.msra.mxu0 0.0
    %4938 = vmatprep.subr.mxu0 0.0
    %4939 = vmatpush1.msra.mxu0 0.0
    %4940 = vmatprep.subr.mxu0 0.0
    %4941 = vmatpush1.msra.mxu0 0.0
    %4942 = vmatprep.subr.mxu0 0.0
    %4943 = vmatpush1.msra.mxu0 0.0
    %4944 = vmatprep.subr.mxu0 0.0
    %4945 = vmatpush1.msra.mxu0 0.0
    %4946 = vmatprep.subr.mxu0 0.0
    %4947 = vmatpush1.msra.mxu0 0.0
    %4948 = vmatprep.subr.mxu0 0.0
    %4949 = vmatpush1.msra.mxu0 0.0
    %4950 = vmatprep.subr.mxu0 0.0
    %4951 = vmatpush1.msra.mxu0 0.0
    %4952 = vmatprep.subr.mxu0 0.0
    %4953 = vmatpush1.msra.mxu0 0.0
    %4954 = vmatprep.subr.mxu0 0.0
    %4955 = vmatpush1.msra.mxu0 0.0
    %4956 = vmatprep.subr.mxu0 0.0
    %4957 = vmatpush1.msra.mxu0 0.0
    %4958 = vmatprep.subr.mxu0 0.0
    %4959 = vmatpush1.msra.mxu0 0.0
    %4960 = vmatprep.subr.mxu0 0.0
    %4961 = vmatpush1.msra.mxu0 0.0
    %4962 = vmatprep.subr.mxu0 0.0
    %4963 = vmatpush1.msra.mxu0 0.0
    %4964 = vmatprep.subr.mxu0 0.0
    %4965 = vmatpush1.msra.mxu0 0.0
    %4966 = vmatprep.subr.mxu0 0.0
    %4967 = vmatpush1.msra.mxu0 0.0
    %4968 = vmatprep.subr.mxu0 0.0
    %4969 = vmatpush1.msra.mxu0 0.0
    %4970 = vmatprep.subr.mxu0 0.0
    %4971 = vmatpush1.msra.mxu0 0.0
    %4972 = vmatprep.subr.mxu0 0.0
    %4973 = vmatpush1.msra.mxu0 0.0
    %4974 = vmatprep.subr.mxu0 0.0
    %4975 = vmatpush1.msra.mxu0 0.0
    %4976 = vmatprep.subr.mxu0 0.0
    %4977 = vmatpush1.msra.mxu0 0.0
    %4978 = vmatprep.subr.mxu0 0.0
    %4979 = vmatpush1.msra.mxu0 0.0
    %4980 = vmatprep.subr.mxu0 0.0
    %4981 = vmatpush1.msra.mxu0 0.0
    %4982 = vmatprep.subr.mxu0 0.0
    %4983 = vmatpush1.msra.mxu0 0.0
    %4984 = vmatprep.subr.mxu0 0.0
    %4985 = vmatpush1.msra.mxu0 0.0
    %4986 = vmatprep.subr.mxu0 0.0
    %4987 = vmatpush1.msra.mxu0 0.0
    %4988 = vmatprep.subr.mxu0 0.0
    %4989 = vmatpush1.msra.mxu0 0.0
    %4990 = vmatprep.subr.mxu0 0.0
    %4991 = vmatpush1.msra.mxu0 0.0
    %4992 = vmatprep.mubr.f32.mxu0 0.0
    %4993 = vmatmul.mubr.f32.gmra.mrb[0].mxu0 %v4926
    %v4994 = vpop.f32.mrb[0].mxu0
    %v4995 = vadd.f32 %v3996, %v4994
    %v4996 = vpop.f32.mrb[0].mxu0
    %4997 = vdwg.mxu0
    %4999 = vrot.lane.b32.xlu0 %v4820, 32
    %v5000 = vpop.permute.xlu0 %4999
    %v5001 = vsel %vm442, %v5000, 0
    %5003 = vmatprep.subr.mxu0 0.0
    %5004 = vmatpush1.msra.mxu0 %v3987
    %5005 = vmatprep.subr.mxu0 0.0
    %5006 = vmatpush1.msra.mxu0 %v3988
    %5007 = vmatprep.subr.mxu0 0.0
    %5008 = vmatpush1.msra.mxu0 %v3989
    %5009 = vmatprep.subr.mxu0 0.0
    %5010 = vmatpush1.msra.mxu0 %v3990
    %5011 = vmatprep.subr.mxu0 0.0
    %5012 = vmatpush1.msra.mxu0 0.0
    %5013 = vmatprep.subr.mxu0 0.0
    %5014 = vmatpush1.msra.mxu0 0.0
    %5015 = vmatprep.subr.mxu0 0.0
    %5016 = vmatpush1.msra.mxu0 0.0
    %5017 = vmatprep.subr.mxu0 0.0
    %5018 = vmatpush1.msra.mxu0 0.0
    %5019 = vmatprep.subr.mxu0 0.0
    %5020 = vmatpush1.msra.mxu0 0.0
    %5021 = vmatprep.subr.mxu0 0.0
    %5022 = vmatpush1.msra.mxu0 0.0
    %5023 = vmatprep.subr.mxu0 0.0
    %5024 = vmatpush1.msra.mxu0 0.0
    %5025 = vmatprep.subr.mxu0 0.0
    %5026 = vmatpush1.msra.mxu0 0.0
    %5027 = vmatprep.subr.mxu0 0.0
    %5028 = vmatpush1.msra.mxu0 0.0
    %5029 = vmatprep.subr.mxu0 0.0
    %5030 = vmatpush1.msra.mxu0 0.0
    %5031 = vmatprep.subr.mxu0 0.0
    %5032 = vmatpush1.msra.mxu0 0.0
    %5033 = vmatprep.subr.mxu0 0.0
    %5034 = vmatpush1.msra.mxu0 0.0
    %5035 = vmatprep.subr.mxu0 0.0
    %5036 = vmatpush1.msra.mxu0 0.0
    %5037 = vmatprep.subr.mxu0 0.0
    %5038 = vmatpush1.msra.mxu0 0.0
    %5039 = vmatprep.subr.mxu0 0.0
    %5040 = vmatpush1.msra.mxu0 0.0
    %5041 = vmatprep.subr.mxu0 0.0
    %5042 = vmatpush1.msra.mxu0 0.0
    %5043 = vmatprep.subr.mxu0 0.0
    %5044 = vmatpush1.msra.mxu0 0.0
    %5045 = vmatprep.subr.mxu0 0.0
    %5046 = vmatpush1.msra.mxu0 0.0
    %5047 = vmatprep.subr.mxu0 0.0
    %5048 = vmatpush1.msra.mxu0 0.0
    %5049 = vmatprep.subr.mxu0 0.0
    %5050 = vmatpush1.msra.mxu0 0.0
    %5051 = vmatprep.subr.mxu0 0.0
    %5052 = vmatpush1.msra.mxu0 0.0
    %5053 = vmatprep.subr.mxu0 0.0
    %5054 = vmatpush1.msra.mxu0 0.0
    %5055 = vmatprep.subr.mxu0 0.0
    %5056 = vmatpush1.msra.mxu0 0.0
    %5057 = vmatprep.subr.mxu0 0.0
    %5058 = vmatpush1.msra.mxu0 0.0
    %5059 = vmatprep.subr.mxu0 0.0
    %5060 = vmatpush1.msra.mxu0 0.0
    %5061 = vmatprep.subr.mxu0 0.0
    %5062 = vmatpush1.msra.mxu0 0.0
    %5063 = vmatprep.subr.mxu0 0.0
    %5064 = vmatpush1.msra.mxu0 0.0
    %5065 = vmatprep.subr.mxu0 0.0
    %5066 = vmatpush1.msra.mxu0 0.0
    %5067 = vmatprep.mubr.f32.mxu0 0.0
    %5068 = vmatmul.mubr.f32.gmra.mrb[0].mxu0 %v5001
    %v5069 = vpop.f32.mrb[0].mxu0
    %v5070 = vadd.f32 0.0, %v5069
    %v5071 = vpop.f32.mrb[0].mxu0
    %5072 = vdwg.mxu0
    %v5073 = vadd.f32 %v4995, %v5070
    %v5074 = vxor.u32 %v5073, 2147483648
    %v5075 = vmul.f32 %v5074, 1.442695
    %v5076 = vpow.pop %v5075
    %v5077 = vadd.f32 %v5076, 1.0
    %v5078 = vrcp.pop %v5077
    %v5079 = vmul.f32 1.0, %v5078
    %v5080 = vtanh.pop %v5073
    %v5081 = vmul.f32 %v5079, %v4814
    %5083 = vrot.lane.b32.xlu0 %v5080, 64
    %v5084 = vpop.permute.xlu0 %5083
    %v5086 = vmul.f32 %v5079, %v5084
    %5088 = vrot.lane.b32.xlu0 %v5086, 32
    %v5089 = vpop.permute.xlu0 %5088
    %v5091 = vadd.f32 %v5081, %v5089
    %v5092 = vtanh.pop %v5091
    %5094 = vrot.lane.b32.xlu0 %v5092, 64
    %v5095 = vpop.permute.xlu0 %5094
    %v5097 = vmul.f32 %v5079, %v5095
    %5098 = vmatprep.subr.mxu0 0.0
    %5099 = vmatpush1.msra.mxu0 %v3979
    %5100 = vmatprep.subr.mxu0 0.0
    %5101 = vmatpush1.msra.mxu0 %v3980
    %5102 = vmatprep.subr.mxu0 0.0
    %5103 = vmatpush1.msra.mxu0 %v3981
    %5104 = vmatprep.subr.mxu0 0.0
    %5105 = vmatpush1.msra.mxu0 %v3982
    %5106 = vmatprep.subr.mxu0 0.0
    %5107 = vmatpush1.msra.mxu0 0.0
    %5108 = vmatprep.subr.mxu0 0.0
    %5109 = vmatpush1.msra.mxu0 0.0
    %5110 = vmatprep.subr.mxu0 0.0
    %5111 = vmatpush1.msra.mxu0 0.0
    %5112 = vmatprep.subr.mxu0 0.0
    %5113 = vmatpush1.msra.mxu0 0.0
    %5114 = vmatprep.subr.mxu0 0.0
    %5115 = vmatpush1.msra.mxu0 0.0
    %5116 = vmatprep.subr.mxu0 0.0
    %5117 = vmatpush1.msra.mxu0 0.0
    %5118 = vmatprep.subr.mxu0 0.0
    %5119 = vmatpush1.msra.mxu0 0.0
    %5120 = vmatprep.subr.mxu0 0.0
    %5121 = vmatpush1.msra.mxu0 0.0
    %5122 = vmatprep.subr.mxu0 0.0
    %5123 = vmatpush1.msra.mxu0 0.0
    %5124 = vmatprep.subr.mxu0 0.0
    %5125 = vmatpush1.msra.mxu0 0.0
    %5126 = vmatprep.subr.mxu0 0.0
    %5127 = vmatpush1.msra.mxu0 0.0
    %5128 = vmatprep.subr.mxu0 0.0
    %5129 = vmatpush1.msra.mxu0 0.0
    %5130 = vmatprep.subr.mxu0 0.0
    %5131 = vmatpush1.msra.mxu0 0.0
    %5132 = vmatprep.subr.mxu0 0.0
    %5133 = vmatpush1.msra.mxu0 0.0
    %5134 = vmatprep.subr.mxu0 0.0
    %5135 = vmatpush1.msra.mxu0 0.0
    %5136 = vmatprep.subr.mxu0 0.0
    %5137 = vmatpush1.msra.mxu0 0.0
    %5138 = vmatprep.subr.mxu0 0.0
    %5139 = vmatpush1.msra.mxu0 0.0
    %5140 = vmatprep.subr.mxu0 0.0
    %5141 = vmatpush1.msra.mxu0 0.0
    %5142 = vmatprep.subr.mxu0 0.0
    %5143 = vmatpush1.msra.mxu0 0.0
    %5144 = vmatprep.subr.mxu0 0.0
    %5145 = vmatpush1.msra.mxu0 0.0
    %5146 = vmatprep.subr.mxu0 0.0
    %5147 = vmatpush1.msra.mxu0 0.0
    %5148 = vmatprep.subr.mxu0 0.0
    %5149 = vmatpush1.msra.mxu0 0.0
    %5150 = vmatprep.subr.mxu0 0.0
    %5151 = vmatpush1.msra.mxu0 0.0
    %5152 = vmatprep.subr.mxu0 0.0
    %5153 = vmatpush1.msra.mxu0 0.0
    %5154 = vmatprep.subr.mxu0 0.0
    %5155 = vmatpush1.msra.mxu0 0.0
    %5156 = vmatprep.subr.mxu0 0.0
    %5157 = vmatpush1.msra.mxu0 0.0
    %5158 = vmatprep.subr.mxu0 0.0
    %5159 = vmatpush1.msra.mxu0 0.0
    %5160 = vmatprep.subr.mxu0 0.0
    %5161 = vmatpush1.msra.mxu0 0.0
    %5162 = vmatprep.mubr.f32.mxu0 0.0
    %5163 = vmatmul.mubr.f32.gmra.mrb[0].mxu0 %v4926
    %v5164 = vpop.f32.mrb[0].mxu0
    %v5165 = vadd.f32 0.0, %v5164
    %v5166 = vpop.f32.mrb[0].mxu0
    %5167 = vdwg.mxu0
    %v5168 = vadd.f32 %v3971, %v5165
    %v5169 = vxor.u32 %v5168, 2147483648
    %v5170 = vmul.f32 %v5169, 1.442695
    %v5171 = vpow.pop %v5170
    %v5172 = vadd.f32 %v5171, 1.0
    %v5173 = vrcp.pop %v5172
    %v5174 = vmul.f32 1.0, %v5173
    %v5175 = vtanh.pop %v5168
    %v5177 = vrot.slane %v4915, 6
    %v5179 = vmul.f32 %v5174, %v5177
    %5181 = vrot.lane.b32.xlu0 %v5175, 64
    %v5182 = vpop.permute.xlu0 %5181
    %v5184 = vmul.f32 %v5174, %v5182
    %5186 = vrot.lane.b32.xlu0 %v5184, 32
    %v5187 = vpop.permute.xlu0 %5186
    %v5189 = vadd.f32 %v5179, %v5187
    %v5190 = vtanh.pop %v5189
    %5192 = vrot.lane.b32.xlu0 %v5190, 64
    %v5193 = vpop.permute.xlu0 %5192
    %v5195 = vmul.f32 %v5174, %v5193
    %5197 = vrot.lane.b32.xlu0 %v5195, 32
    %v5198 = vpop.permute.xlu0 %5197
    %v5199 = vsel %vm442, %v5198, 0
    %5201 = vmatprep.subr.mxu0 0.0
    %5202 = vmatpush1.msra.mxu0 %v3983
    %5203 = vmatprep.subr.mxu0 0.0
    %5204 = vmatpush1.msra.mxu0 %v3984
    %5205 = vmatprep.subr.mxu0 0.0
    %5206 = vmatpush1.msra.mxu0 %v3985
    %5207 = vmatprep.subr.mxu0 0.0
    %5208 = vmatpush1.msra.mxu0 %v3986
    %5209 = vmatprep.subr.mxu0 0.0
    %5210 = vmatpush1.msra.mxu0 0.0
    %5211 = vmatprep.subr.mxu0 0.0
    %5212 = vmatpush1.msra.mxu0 0.0
    %5213 = vmatprep.subr.mxu0 0.0
    %5214 = vmatpush1.msra.mxu0 0.0
    %5215 = vmatprep.subr.mxu0 0.0
    %5216 = vmatpush1.msra.mxu0 0.0
    %5217 = vmatprep.subr.mxu0 0.0
    %5218 = vmatpush1.msra.mxu0 0.0
    %5219 = vmatprep.subr.mxu0 0.0
    %5220 = vmatpush1.msra.mxu0 0.0
    %5221 = vmatprep.subr.mxu0 0.0
    %5222 = vmatpush1.msra.mxu0 0.0
    %5223 = vmatprep.subr.mxu0 0.0
    %5224 = vmatpush1.msra.mxu0 0.0
    %5225 = vmatprep.subr.mxu0 0.0
    %5226 = vmatpush1.msra.mxu0 0.0
    %5227 = vmatprep.subr.mxu0 0.0
    %5228 = vmatpush1.msra.mxu0 0.0
    %5229 = vmatprep.subr.mxu0 0.0
    %5230 = vmatpush1.msra.mxu0 0.0
    %5231 = vmatprep.subr.mxu0 0.0
    %5232 = vmatpush1.msra.mxu0 0.0
    %5233 = vmatprep.subr.mxu0 0.0
    %5234 = vmatpush1.msra.mxu0 0.0
    %5235 = vmatprep.subr.mxu0 0.0
    %5236 = vmatpush1.msra.mxu0 0.0
    %5237 = vmatprep.subr.mxu0 0.0
    %5238 = vmatpush1.msra.mxu0 0.0
    %5239 = vmatprep.subr.mxu0 0.0
    %5240 = vmatpush1.msra.mxu0 0.0
    %5241 = vmatprep.subr.mxu0 0.0
    %5242 = vmatpush1.msra.mxu0 0.0
    %5243 = vmatprep.subr.mxu0 0.0
    %5244 = vmatpush1.msra.mxu0 0.0
    %5245 = vmatprep.subr.mxu0 0.0
    %5246 = vmatpush1.msra.mxu0 0.0
    %5247 = vmatprep.subr.mxu0 0.0
    %5248 = vmatpush1.msra.mxu0 0.0
    %5249 = vmatprep.subr.mxu0 0.0
    %5250 = vmatpush1.msra.mxu0 0.0
    %5251 = vmatprep.subr.mxu0 0.0
    %5252 = vmatpush1.msra.mxu0 0.0
    %5253 = vmatprep.subr.mxu0 0.0
    %5254 = vmatpush1.msra.mxu0 0.0
    %5255 = vmatprep.subr.mxu0 0.0
    %5256 = vmatpush1.msra.mxu0 0.0
    %5257 = vmatprep.subr.mxu0 0.0
    %5258 = vmatpush1.msra.mxu0 0.0
    %5259 = vmatprep.subr.mxu0 0.0
    %5260 = vmatpush1.msra.mxu0 0.0
    %5261 = vmatprep.subr.mxu0 0.0
    %5262 = vmatpush1.msra.mxu0 0.0
    %5263 = vmatprep.subr.mxu0 0.0
    %5264 = vmatpush1.msra.mxu0 0.0
    %5265 = vmatprep.mubr.f32.mxu0 0.0
    %5266 = vmatmul.mubr.f32.gmra.mrb[0].mxu0 %v5199
    %v5267 = vpop.f32.mrb[0].mxu0
    %v5268 = vadd.f32 %v3996, %v5267
    %v5269 = vpop.f32.mrb[0].mxu0
    %5270 = vdwg.mxu0
    %5272 = vrot.lane.b32.xlu0 %v5097, 32
    %v5273 = vpop.permute.xlu0 %5272
    %v5274 = vsel %vm442, %v5273, 0
    %5276 = vmatprep.subr.mxu0 0.0
    %5277 = vmatpush1.msra.mxu0 %v3987
    %5278 = vmatprep.subr.mxu0 0.0
    %5279 = vmatpush1.msra.mxu0 %v3988
    %5280 = vmatprep.subr.mxu0 0.0
    %5281 = vmatpush1.msra.mxu0 %v3989
    %5282 = vmatprep.subr.mxu0 0.0
    %5283 = vmatpush1.msra.mxu0 %v3990
    %5284 = vmatprep.subr.mxu0 0.0
    %5285 = vmatpush1.msra.mxu0 0.0
    %5286 = vmatprep.subr.mxu0 0.0
    %5287 = vmatpush1.msra.mxu0 0.0
    %5288 = vmatprep.subr.mxu0 0.0
    %5289 = vmatpush1.msra.mxu0 0.0
    %5290 = vmatprep.subr.mxu0 0.0
    %5291 = vmatpush1.msra.mxu0 0.0
    %5292 = vmatprep.subr.mxu0 0.0
    %5293 = vmatpush1.msra.mxu0 0.0
    %5294 = vmatprep.subr.mxu0 0.0
    %5295 = vmatpush1.msra.mxu0 0.0
    %5296 = vmatprep.subr.mxu0 0.0
    %5297 = vmatpush1.msra.mxu0 0.0
    %5298 = vmatprep.subr.mxu0 0.0
    %5299 = vmatpush1.msra.mxu0 0.0
    %5300 = vmatprep.subr.mxu0 0.0
    %5301 = vmatpush1.msra.mxu0 0.0
    %5302 = vmatprep.subr.mxu0 0.0
    %5303 = vmatpush1.msra.mxu0 0.0
    %5304 = vmatprep.subr.mxu0 0.0
    %5305 = vmatpush1.msra.mxu0 0.0
    %5306 = vmatprep.subr.mxu0 0.0
    %5307 = vmatpush1.msra.mxu0 0.0
    %5308 = vmatprep.subr.mxu0 0.0
    %5309 = vmatpush1.msra.mxu0 0.0
    %5310 = vmatprep.subr.mxu0 0.0
    %5311 = vmatpush1.msra.mxu0 0.0
    %5312 = vmatprep.subr.mxu0 0.0
    %5313 = vmatpush1.msra.mxu0 0.0
    %5314 = vmatprep.subr.mxu0 0.0
    %5315 = vmatpush1.msra.mxu0 0.0
    %5316 = vmatprep.subr.mxu0 0.0
    %5317 = vmatpush1.msra.mxu0 0.0
    %5318 = vmatprep.subr.mxu0 0.0
    %5319 = vmatpush1.msra.mxu0 0.0
    %5320 = vmatprep.subr.mxu0 0.0
    %5321 = vmatpush1.msra.mxu0 0.0
    %5322 = vmatprep.subr.mxu0 0.0
    %5323 = vmatpush1.msra.mxu0 0.0
    %5324 = vmatprep.subr.mxu0 0.0
    %5325 = vmatpush1.msra.mxu0 0.0
    %5326 = vmatprep.subr.mxu0 0.0
    %5327 = vmatpush1.msra.mxu0 0.0
    %5328 = vmatprep.subr.mxu0 0.0
    %5329 = vmatpush1.msra.mxu0 0.0
    %5330 = vmatprep.subr.mxu0 0.0
    %5331 = vmatpush1.msra.mxu0 0.0
    %5332 = vmatprep.subr.mxu0 0.0
    %5333 = vmatpush1.msra.mxu0 0.0
    %5334 = vmatprep.subr.mxu0 0.0
    %5335 = vmatpush1.msra.mxu0 0.0
    %5336 = vmatprep.subr.mxu0 0.0
    %5337 = vmatpush1.msra.mxu0 0.0
    %5338 = vmatprep.subr.mxu0 0.0
    %5339 = vmatpush1.msra.mxu0 0.0
    %5340 = vmatprep.mubr.f32.mxu0 0.0
    %5341 = vmatmul.mubr.f32.gmra.mrb[0].mxu0 %v5274
    %v5342 = vpop.f32.mrb[0].mxu0
    %v5343 = vadd.f32 0.0, %v5342
    %v5344 = vpop.f32.mrb[0].mxu0
    %5345 = vdwg.mxu0
    %v5346 = vadd.f32 %v5268, %v5343
    %v5347 = vxor.u32 %v5346, 2147483648
    %v5348 = vmul.f32 %v5347, 1.442695
    %v5349 = vpow.pop %v5348
    %v5350 = vadd.f32 %v5349, 1.0
    %v5351 = vrcp.pop %v5350
    %v5352 = vmul.f32 1.0, %v5351
    %v5353 = vtanh.pop %v5346
    %v5354 = vmul.f32 %v5352, %v5091
    %5356 = vrot.lane.b32.xlu0 %v5353, 64
    %v5357 = vpop.permute.xlu0 %5356
    %v5359 = vmul.f32 %v5352, %v5357
    %5361 = vrot.lane.b32.xlu0 %v5359, 32
    %v5362 = vpop.permute.xlu0 %5361
    %v5364 = vadd.f32 %v5354, %v5362
    %v5365 = vtanh.pop %v5364
    %5367 = vrot.lane.b32.xlu0 %v5365, 64
    %v5368 = vpop.permute.xlu0 %5367
    %v5370 = vmul.f32 %v5352, %v5368
    %5371 = vmatprep.subr.mxu0 0.0
    %5372 = vmatpush1.msra.mxu0 %v3979
    %5373 = vmatprep.subr.mxu0 0.0
    %5374 = vmatpush1.msra.mxu0 %v3980
    %5375 = vmatprep.subr.mxu0 0.0
    %5376 = vmatpush1.msra.mxu0 %v3981
    %5377 = vmatprep.subr.mxu0 0.0
    %5378 = vmatpush1.msra.mxu0 %v3982
    %5379 = vmatprep.subr.mxu0 0.0
    %5380 = vmatpush1.msra.mxu0 0.0
    %5381 = vmatprep.subr.mxu0 0.0
    %5382 = vmatpush1.msra.mxu0 0.0
    %5383 = vmatprep.subr.mxu0 0.0
    %5384 = vmatpush1.msra.mxu0 0.0
    %5385 = vmatprep.subr.mxu0 0.0
    %5386 = vmatpush1.msra.mxu0 0.0
    %5387 = vmatprep.subr.mxu0 0.0
    %5388 = vmatpush1.msra.mxu0 0.0
    %5389 = vmatprep.subr.mxu0 0.0
    %5390 = vmatpush1.msra.mxu0 0.0
    %5391 = vmatprep.subr.mxu0 0.0
    %5392 = vmatpush1.msra.mxu0 0.0
    %5393 = vmatprep.subr.mxu0 0.0
    %5394 = vmatpush1.msra.mxu0 0.0
    %5395 = vmatprep.subr.mxu0 0.0
    %5396 = vmatpush1.msra.mxu0 0.0
    %5397 = vmatprep.subr.mxu0 0.0
    %5398 = vmatpush1.msra.mxu0 0.0
    %5399 = vmatprep.subr.mxu0 0.0
    %5400 = vmatpush1.msra.mxu0 0.0
    %5401 = vmatprep.subr.mxu0 0.0
    %5402 = vmatpush1.msra.mxu0 0.0
    %5403 = vmatprep.subr.mxu0 0.0
    %5404 = vmatpush1.msra.mxu0 0.0
    %5405 = vmatprep.subr.mxu0 0.0
    %5406 = vmatpush1.msra.mxu0 0.0
    %5407 = vmatprep.subr.mxu0 0.0
    %5408 = vmatpush1.msra.mxu0 0.0
    %5409 = vmatprep.subr.mxu0 0.0
    %5410 = vmatpush1.msra.mxu0 0.0
    %5411 = vmatprep.subr.mxu0 0.0
    %5412 = vmatpush1.msra.mxu0 0.0
    %5413 = vmatprep.subr.mxu0 0.0
    %5414 = vmatpush1.msra.mxu0 0.0
    %5415 = vmatprep.subr.mxu0 0.0
    %5416 = vmatpush1.msra.mxu0 0.0
    %5417 = vmatprep.subr.mxu0 0.0
    %5418 = vmatpush1.msra.mxu0 0.0
    %5419 = vmatprep.subr.mxu0 0.0
    %5420 = vmatpush1.msra.mxu0 0.0
    %5421 = vmatprep.subr.mxu0 0.0
    %5422 = vmatpush1.msra.mxu0 0.0
    %5423 = vmatprep.subr.mxu0 0.0
    %5424 = vmatpush1.msra.mxu0 0.0
    %5425 = vmatprep.subr.mxu0 0.0
    %5426 = vmatpush1.msra.mxu0 0.0
    %5427 = vmatprep.subr.mxu0 0.0
    %5428 = vmatpush1.msra.mxu0 0.0
    %5429 = vmatprep.subr.mxu0 0.0
    %5430 = vmatpush1.msra.mxu0 0.0
    %5431 = vmatprep.subr.mxu0 0.0
    %5432 = vmatpush1.msra.mxu0 0.0
    %5433 = vmatprep.subr.mxu0 0.0
    %5434 = vmatpush1.msra.mxu0 0.0
    %5435 = vmatprep.mubr.f32.mxu0 0.0
    %5436 = vmatmul.mubr.f32.gmra.mrb[0].mxu0 %v5199
    %v5437 = vpop.f32.mrb[0].mxu0
    %v5438 = vadd.f32 0.0, %v5437
    %v5439 = vpop.f32.mrb[0].mxu0
    %5440 = vdwg.mxu0
    %v5442 = vrot.slane %v5438, 6
    %v5444 = vadd.f32 %v3971, %v5442
    %v5445 = vxor.u32 %v5444, 2147483648
    %v5446 = vmul.f32 %v5445, 1.442695
    %v5447 = vpow.pop %v5446
    %v5448 = vadd.f32 %v5447, 1.0
    %v5449 = vrcp.pop %v5448
    %v5450 = vmul.f32 1.0, %v5449
    %v5451 = vtanh.pop %v5444
    %v5453 = vrot.slane %v5189, 6
    %v5455 = vmul.f32 %v5450, %v5453
    %5457 = vrot.lane.b32.xlu0 %v5451, 64
    %v5458 = vpop.permute.xlu0 %5457
    %v5460 = vmul.f32 %v5450, %v5458
    %5462 = vrot.lane.b32.xlu0 %v5460, 32
    %v5463 = vpop.permute.xlu0 %5462
    %v5465 = vadd.f32 %v5455, %v5463
    %v5466 = vtanh.pop %v5465
    %5468 = vrot.lane.b32.xlu0 %v5466, 64
    %v5469 = vpop.permute.xlu0 %5468
    %v5471 = vmul.f32 %v5450, %v5469
    %v5473 = vrot.slane %v5471, 2
    %5474 = vrot.lane.b32.xlu0 %v5473, 32
    %v5475 = vpop.permute.xlu0 %5474
    %v5476 = vsel %vm442, %v5475, 0
    %5478 = vmatprep.subr.mxu0 0.0
    %5479 = vmatpush1.msra.mxu0 %v3983
    %5480 = vmatprep.subr.mxu0 0.0
    %5481 = vmatpush1.msra.mxu0 %v3984
    %5482 = vmatprep.subr.mxu0 0.0
    %5483 = vmatpush1.msra.mxu0 %v3985
    %5484 = vmatprep.subr.mxu0 0.0
    %5485 = vmatpush1.msra.mxu0 %v3986
    %5486 = vmatprep.subr.mxu0 0.0
    %5487 = vmatpush1.msra.mxu0 0.0
    %5488 = vmatprep.subr.mxu0 0.0
    %5489 = vmatpush1.msra.mxu0 0.0
    %5490 = vmatprep.subr.mxu0 0.0
    %5491 = vmatpush1.msra.mxu0 0.0
    %5492 = vmatprep.subr.mxu0 0.0
    %5493 = vmatpush1.msra.mxu0 0.0
    %5494 = vmatprep.subr.mxu0 0.0
    %5495 = vmatpush1.msra.mxu0 0.0
    %5496 = vmatprep.subr.mxu0 0.0
    %5497 = vmatpush1.msra.mxu0 0.0
    %5498 = vmatprep.subr.mxu0 0.0
    %5499 = vmatpush1.msra.mxu0 0.0
    %5500 = vmatprep.subr.mxu0 0.0
    %5501 = vmatpush1.msra.mxu0 0.0
    %5502 = vmatprep.subr.mxu0 0.0
    %5503 = vmatpush1.msra.mxu0 0.0
    %5504 = vmatprep.subr.mxu0 0.0
    %5505 = vmatpush1.msra.mxu0 0.0
    %5506 = vmatprep.subr.mxu0 0.0
    %5507 = vmatpush1.msra.mxu0 0.0
    %5508 = vmatprep.subr.mxu0 0.0
    %5509 = vmatpush1.msra.mxu0 0.0
    %5510 = vmatprep.subr.mxu0 0.0
    %5511 = vmatpush1.msra.mxu0 0.0
    %5512 = vmatprep.subr.mxu0 0.0
    %5513 = vmatpush1.msra.mxu0 0.0
    %5514 = vmatprep.subr.mxu0 0.0
    %5515 = vmatpush1.msra.mxu0 0.0
    %5516 = vmatprep.subr.mxu0 0.0
    %5517 = vmatpush1.msra.mxu0 0.0
    %5518 = vmatprep.subr.mxu0 0.0
    %5519 = vmatpush1.msra.mxu0 0.0
    %5520 = vmatprep.subr.mxu0 0.0
    %5521 = vmatpush1.msra.mxu0 0.0
    %5522 = vmatprep.subr.mxu0 0.0
    %5523 = vmatpush1.msra.mxu0 0.0
    %5524 = vmatprep.subr.mxu0 0.0
    %5525 = vmatpush1.msra.mxu0 0.0
    %5526 = vmatprep.subr.mxu0 0.0
    %5527 = vmatpush1.msra.mxu0 0.0
    %5528 = vmatprep.subr.mxu0 0.0
    %5529 = vmatpush1.msra.mxu0 0.0
    %5530 = vmatprep.subr.mxu0 0.0
    %5531 = vmatpush1.msra.mxu0 0.0
    %5532 = vmatprep.subr.mxu0 0.0
    %5533 = vmatpush1.msra.mxu0 0.0
    %5534 = vmatprep.subr.mxu0 0.0
    %5535 = vmatpush1.msra.mxu0 0.0
    %5536 = vmatprep.subr.mxu0 0.0
    %5537 = vmatpush1.msra.mxu0 0.0
    %5538 = vmatprep.subr.mxu0 0.0
    %5539 = vmatpush1.msra.mxu0 0.0
    %5540 = vmatprep.subr.mxu0 0.0
    %5541 = vmatpush1.msra.mxu0 0.0
    %5542 = vmatprep.mubr.f32.mxu0 0.0
    %5543 = vmatmul.mubr.f32.gmra.mrb[0].mxu0 %v5476
    %v5544 = vpop.f32.mrb[0].mxu0
    %v5545 = vadd.f32 %v3996, %v5544
    %v5546 = vpop.f32.mrb[0].mxu0
    %5547 = vdwg.mxu0
    %5549 = vrot.lane.b32.xlu0 %v5370, 32
    %v5550 = vpop.permute.xlu0 %5549
    %v5551 = vsel %vm442, %v5550, 0
    %5553 = vmatprep.subr.mxu0 0.0
    %5554 = vmatpush1.msra.mxu0 %v3987
    %5555 = vmatprep.subr.mxu0 0.0
    %5556 = vmatpush1.msra.mxu0 %v3988
    %5557 = vmatprep.subr.mxu0 0.0
    %5558 = vmatpush1.msra.mxu0 %v3989
    %5559 = vmatprep.subr.mxu0 0.0
    %5560 = vmatpush1.msra.mxu0 %v3990
    %5561 = vmatprep.subr.mxu0 0.0
    %5562 = vmatpush1.msra.mxu0 0.0
    %5563 = vmatprep.subr.mxu0 0.0
    %5564 = vmatpush1.msra.mxu0 0.0
    %5565 = vmatprep.subr.mxu0 0.0
    %5566 = vmatpush1.msra.mxu0 0.0
    %5567 = vmatprep.subr.mxu0 0.0
    %5568 = vmatpush1.msra.mxu0 0.0
    %5569 = vmatprep.subr.mxu0 0.0
    %5570 = vmatpush1.msra.mxu0 0.0
    %5571 = vmatprep.subr.mxu0 0.0
    %5572 = vmatpush1.msra.mxu0 0.0
    %5573 = vmatprep.subr.mxu0 0.0
    %5574 = vmatpush1.msra.mxu0 0.0
    %5575 = vmatprep.subr.mxu0 0.0
    %5576 = vmatpush1.msra.mxu0 0.0
    %5577 = vmatprep.subr.mxu0 0.0
    %5578 = vmatpush1.msra.mxu0 0.0
    %5579 = vmatprep.subr.mxu0 0.0
    %5580 = vmatpush1.msra.mxu0 0.0
    %5581 = vmatprep.subr.mxu0 0.0
    %5582 = vmatpush1.msra.mxu0 0.0
    %5583 = vmatprep.subr.mxu0 0.0
    %5584 = vmatpush1.msra.mxu0 0.0
    %5585 = vmatprep.subr.mxu0 0.0
    %5586 = vmatpush1.msra.mxu0 0.0
    %5587 = vmatprep.subr.mxu0 0.0
    %5588 = vmatpush1.msra.mxu0 0.0
    %5589 = vmatprep.subr.mxu0 0.0
    %5590 = vmatpush1.msra.mxu0 0.0
    %5591 = vmatprep.subr.mxu0 0.0
    %5592 = vmatpush1.msra.mxu0 0.0
    %5593 = vmatprep.subr.mxu0 0.0
    %5594 = vmatpush1.msra.mxu0 0.0
    %5595 = vmatprep.subr.mxu0 0.0
    %5596 = vmatpush1.msra.mxu0 0.0
    %5597 = vmatprep.subr.mxu0 0.0
    %5598 = vmatpush1.msra.mxu0 0.0
    %5599 = vmatprep.subr.mxu0 0.0
    %5600 = vmatpush1.msra.mxu0 0.0
    %5601 = vmatprep.subr.mxu0 0.0
    %5602 = vmatpush1.msra.mxu0 0.0
    %5603 = vmatprep.subr.mxu0 0.0
    %5604 = vmatpush1.msra.mxu0 0.0
    %5605 = vmatprep.subr.mxu0 0.0
    %5606 = vmatpush1.msra.mxu0 0.0
    %5607 = vmatprep.subr.mxu0 0.0
    %5608 = vmatpush1.msra.mxu0 0.0
    %5609 = vmatprep.subr.mxu0 0.0
    %5610 = vmatpush1.msra.mxu0 0.0
    %5611 = vmatprep.subr.mxu0 0.0
    %5612 = vmatpush1.msra.mxu0 0.0
    %5613 = vmatprep.subr.mxu0 0.0
    %5614 = vmatpush1.msra.mxu0 0.0
    %5615 = vmatprep.subr.mxu0 0.0
    %5616 = vmatpush1.msra.mxu0 0.0
    %5617 = vmatprep.mubr.f32.mxu0 0.0
    %5618 = vmatmul.mubr.f32.gmra.mrb[0].mxu0 %v5551
    %v5619 = vpop.f32.mrb[0].mxu0
    %v5620 = vadd.f32 0.0, %v5619
    %v5621 = vpop.f32.mrb[0].mxu0
    %5622 = vdwg.mxu0
    %v5623 = vadd.f32 %v5545, %v5620
    %v5624 = vxor.u32 %v5623, 2147483648
    %v5625 = vmul.f32 %v5624, 1.442695
    %v5626 = vpow.pop %v5625
    %v5627 = vadd.f32 %v5626, 1.0
    %v5628 = vrcp.pop %v5627
    %v5629 = vmul.f32 1.0, %v5628
    %v5630 = vtanh.pop %v5623
    %v5631 = vmul.f32 %v5629, %v5364
    %5633 = vrot.lane.b32.xlu0 %v5630, 64
    %v5634 = vpop.permute.xlu0 %5633
    %v5636 = vmul.f32 %v5629, %v5634
    %5638 = vrot.lane.b32.xlu0 %v5636, 32
    %v5639 = vpop.permute.xlu0 %5638
    %v5641 = vadd.f32 %v5631, %v5639
    %v5642 = vtanh.pop %v5641
    %5644 = vrot.lane.b32.xlu0 %v5642, 64
    %v5645 = vpop.permute.xlu0 %5644
    %v5647 = vmul.f32 %v5629, %v5645
    %5648 = vmatprep.subr.mxu0 0.0
    %5649 = vmatpush1.msra.mxu0 %v3979
    %5650 = vmatprep.subr.mxu0 0.0
    %5651 = vmatpush1.msra.mxu0 %v3980
    %5652 = vmatprep.subr.mxu0 0.0
    %5653 = vmatpush1.msra.mxu0 %v3981
    %5654 = vmatprep.subr.mxu0 0.0
    %5655 = vmatpush1.msra.mxu0 %v3982
    %5656 = vmatprep.subr.mxu0 0.0
    %5657 = vmatpush1.msra.mxu0 0.0
    %5658 = vmatprep.subr.mxu0 0.0
    %5659 = vmatpush1.msra.mxu0 0.0
    %5660 = vmatprep.subr.mxu0 0.0
    %5661 = vmatpush1.msra.mxu0 0.0
    %5662 = vmatprep.subr.mxu0 0.0
    %5663 = vmatpush1.msra.mxu0 0.0
    %5664 = vmatprep.subr.mxu0 0.0
    %5665 = vmatpush1.msra.mxu0 0.0
    %5666 = vmatprep.subr.mxu0 0.0
    %5667 = vmatpush1.msra.mxu0 0.0
    %5668 = vmatprep.subr.mxu0 0.0
    %5669 = vmatpush1.msra.mxu0 0.0
    %5670 = vmatprep.subr.mxu0 0.0
    %5671 = vmatpush1.msra.mxu0 0.0
    %5672 = vmatprep.subr.mxu0 0.0
    %5673 = vmatpush1.msra.mxu0 0.0
    %5674 = vmatprep.subr.mxu0 0.0
    %5675 = vmatpush1.msra.mxu0 0.0
    %5676 = vmatprep.subr.mxu0 0.0
    %5677 = vmatpush1.msra.mxu0 0.0
    %5678 = vmatprep.subr.mxu0 0.0
    %5679 = vmatpush1.msra.mxu0 0.0
    %5680 = vmatprep.subr.mxu0 0.0
    %5681 = vmatpush1.msra.mxu0 0.0
    %5682 = vmatprep.subr.mxu0 0.0
    %5683 = vmatpush1.msra.mxu0 0.0
    %5684 = vmatprep.subr.mxu0 0.0
    %5685 = vmatpush1.msra.mxu0 0.0
    %5686 = vmatprep.subr.mxu0 0.0
    %5687 = vmatpush1.msra.mxu0 0.0
    %5688 = vmatprep.subr.mxu0 0.0
    %5689 = vmatpush1.msra.mxu0 0.0
    %5690 = vmatprep.subr.mxu0 0.0
    %5691 = vmatpush1.msra.mxu0 0.0
    %5692 = vmatprep.subr.mxu0 0.0
    %5693 = vmatpush1.msra.mxu0 0.0
    %5694 = vmatprep.subr.mxu0 0.0
    %5695 = vmatpush1.msra.mxu0 0.0
    %5696 = vmatprep.subr.mxu0 0.0
    %5697 = vmatpush1.msra.mxu0 0.0
    %5698 = vmatprep.subr.mxu0 0.0
    %5699 = vmatpush1.msra.mxu0 0.0
    %5700 = vmatprep.subr.mxu0 0.0
    %5701 = vmatpush1.msra.mxu0 0.0
    %5702 = vmatprep.subr.mxu0 0.0
    %5703 = vmatpush1.msra.mxu0 0.0
    %5704 = vmatprep.subr.mxu0 0.0
    %5705 = vmatpush1.msra.mxu0 0.0
    %5706 = vmatprep.subr.mxu0 0.0
    %5707 = vmatpush1.msra.mxu0 0.0
    %5708 = vmatprep.subr.mxu0 0.0
    %5709 = vmatpush1.msra.mxu0 0.0
    %5710 = vmatprep.subr.mxu0 0.0
    %5711 = vmatpush1.msra.mxu0 0.0
    %5712 = vmatprep.mubr.f32.mxu0 0.0
    %5713 = vmatmul.mubr.f32.gmra.mrb[0].mxu0 %v5476
    %v5714 = vpop.f32.mrb[0].mxu0
    %v5715 = vadd.f32 0.0, %v5714
    %v5716 = vpop.f32.mrb[0].mxu0
    %5717 = vdwg.mxu0
    %v5719 = vrot.slane %v5715, 4
    %v5721 = vadd.f32 %v3971, %v5719
    %v5722 = vxor.u32 %v5721, 2147483648
    %v5723 = vmul.f32 %v5722, 1.442695
    %v5724 = vpow.pop %v5723
    %v5725 = vadd.f32 %v5724, 1.0
    %v5726 = vrcp.pop %v5725
    %v5727 = vmul.f32 1.0, %v5726
    %v5728 = vtanh.pop %v5721
    %v5730 = vrot.slane %v5465, 6
    %v5732 = vmul.f32 %v5727, %v5730
    %5734 = vrot.lane.b32.xlu0 %v5728, 64
    %v5735 = vpop.permute.xlu0 %5734
    %v5737 = vmul.f32 %v5727, %v5735
    %5739 = vrot.lane.b32.xlu0 %v5737, 32
    %v5740 = vpop.permute.xlu0 %5739
    %v5742 = vadd.f32 %v5732, %v5740
    %v5743 = vtanh.pop %v5742
    %5745 = vrot.lane.b32.xlu0 %v5743, 64
    %v5746 = vpop.permute.xlu0 %5745
    %v5748 = vmul.f32 %v5727, %v5746
    %v5750 = vrot.slane %v5748, 4
    %5751 = vrot.lane.b32.xlu0 %v5750, 32
    %v5752 = vpop.permute.xlu0 %5751
    %v5753 = vsel %vm442, %v5752, 0
    %5755 = vmatprep.subr.mxu0 0.0
    %5756 = vmatpush1.msra.mxu0 %v3983
    %5757 = vmatprep.subr.mxu0 0.0
    %5758 = vmatpush1.msra.mxu0 %v3984
    %5759 = vmatprep.subr.mxu0 0.0
    %5760 = vmatpush1.msra.mxu0 %v3985
    %5761 = vmatprep.subr.mxu0 0.0
    %5762 = vmatpush1.msra.mxu0 %v3986
    %5763 = vmatprep.subr.mxu0 0.0
    %5764 = vmatpush1.msra.mxu0 0.0
    %5765 = vmatprep.subr.mxu0 0.0
    %5766 = vmatpush1.msra.mxu0 0.0
    %5767 = vmatprep.subr.mxu0 0.0
    %5768 = vmatpush1.msra.mxu0 0.0
    %5769 = vmatprep.subr.mxu0 0.0
    %5770 = vmatpush1.msra.mxu0 0.0
    %5771 = vmatprep.subr.mxu0 0.0
    %5772 = vmatpush1.msra.mxu0 0.0
    %5773 = vmatprep.subr.mxu0 0.0
    %5774 = vmatpush1.msra.mxu0 0.0
    %5775 = vmatprep.subr.mxu0 0.0
    %5776 = vmatpush1.msra.mxu0 0.0
    %5777 = vmatprep.subr.mxu0 0.0
    %5778 = vmatpush1.msra.mxu0 0.0
    %5779 = vmatprep.subr.mxu0 0.0
    %5780 = vmatpush1.msra.mxu0 0.0
    %5781 = vmatprep.subr.mxu0 0.0
    %5782 = vmatpush1.msra.mxu0 0.0
    %5783 = vmatprep.subr.mxu0 0.0
    %5784 = vmatpush1.msra.mxu0 0.0
    %5785 = vmatprep.subr.mxu0 0.0
    %5786 = vmatpush1.msra.mxu0 0.0
    %5787 = vmatprep.subr.mxu0 0.0
    %5788 = vmatpush1.msra.mxu0 0.0
    %5789 = vmatprep.subr.mxu0 0.0
    %5790 = vmatpush1.msra.mxu0 0.0
    %5791 = vmatprep.subr.mxu0 0.0
    %5792 = vmatpush1.msra.mxu0 0.0
    %5793 = vmatprep.subr.mxu0 0.0
    %5794 = vmatpush1.msra.mxu0 0.0
    %5795 = vmatprep.subr.mxu0 0.0
    %5796 = vmatpush1.msra.mxu0 0.0
    %5797 = vmatprep.subr.mxu0 0.0
    %5798 = vmatpush1.msra.mxu0 0.0
    %5799 = vmatprep.subr.mxu0 0.0
    %5800 = vmatpush1.msra.mxu0 0.0
    %5801 = vmatprep.subr.mxu0 0.0
    %5802 = vmatpush1.msra.mxu0 0.0
    %5803 = vmatprep.subr.mxu0 0.0
    %5804 = vmatpush1.msra.mxu0 0.0
    %5805 = vmatprep.subr.mxu0 0.0
    %5806 = vmatpush1.msra.mxu0 0.0
    %5807 = vmatprep.subr.mxu0 0.0
    %5808 = vmatpush1.msra.mxu0 0.0
    %5809 = vmatprep.subr.mxu0 0.0
    %5810 = vmatpush1.msra.mxu0 0.0
    %5811 = vmatprep.subr.mxu0 0.0
    %5812 = vmatpush1.msra.mxu0 0.0
    %5813 = vmatprep.subr.mxu0 0.0
    %5814 = vmatpush1.msra.mxu0 0.0
    %5815 = vmatprep.subr.mxu0 0.0
    %5816 = vmatpush1.msra.mxu0 0.0
    %5817 = vmatprep.subr.mxu0 0.0
    %5818 = vmatpush1.msra.mxu0 0.0
    %5819 = vmatprep.mubr.f32.mxu0 0.0
    %5820 = vmatmul.mubr.f32.gmra.mrb[0].mxu0 %v5753
    %v5821 = vpop.f32.mrb[0].mxu0
    %v5822 = vadd.f32 %v3996, %v5821
    %v5823 = vpop.f32.mrb[0].mxu0
    %5824 = vdwg.mxu0
    %5826 = vrot.lane.b32.xlu0 %v5647, 32
    %v5827 = vpop.permute.xlu0 %5826
    %v5828 = vsel %vm442, %v5827, 0
    %5830 = vmatprep.subr.mxu0 0.0
    %5831 = vmatpush1.msra.mxu0 %v3987
    %5832 = vmatprep.subr.mxu0 0.0
    %5833 = vmatpush1.msra.mxu0 %v3988
    %5834 = vmatprep.subr.mxu0 0.0
    %5835 = vmatpush1.msra.mxu0 %v3989
    %5836 = vmatprep.subr.mxu0 0.0
    %5837 = vmatpush1.msra.mxu0 %v3990
    %5838 = vmatprep.subr.mxu0 0.0
    %5839 = vmatpush1.msra.mxu0 0.0
    %5840 = vmatprep.subr.mxu0 0.0
    %5841 = vmatpush1.msra.mxu0 0.0
    %5842 = vmatprep.subr.mxu0 0.0
    %5843 = vmatpush1.msra.mxu0 0.0
    %5844 = vmatprep.subr.mxu0 0.0
    %5845 = vmatpush1.msra.mxu0 0.0
    %5846 = vmatprep.subr.mxu0 0.0
    %5847 = vmatpush1.msra.mxu0 0.0
    %5848 = vmatprep.subr.mxu0 0.0
    %5849 = vmatpush1.msra.mxu0 0.0
    %5850 = vmatprep.subr.mxu0 0.0
    %5851 = vmatpush1.msra.mxu0 0.0
    %5852 = vmatprep.subr.mxu0 0.0
    %5853 = vmatpush1.msra.mxu0 0.0
    %5854 = vmatprep.subr.mxu0 0.0
    %5855 = vmatpush1.msra.mxu0 0.0
    %5856 = vmatprep.subr.mxu0 0.0
    %5857 = vmatpush1.msra.mxu0 0.0
    %5858 = vmatprep.subr.mxu0 0.0
    %5859 = vmatpush1.msra.mxu0 0.0
    %5860 = vmatprep.subr.mxu0 0.0
    %5861 = vmatpush1.msra.mxu0 0.0
    %5862 = vmatprep.subr.mxu0 0.0
    %5863 = vmatpush1.msra.mxu0 0.0
    %5864 = vmatprep.subr.mxu0 0.0
    %5865 = vmatpush1.msra.mxu0 0.0
    %5866 = vmatprep.subr.mxu0 0.0
    %5867 = vmatpush1.msra.mxu0 0.0
    %5868 = vmatprep.subr.mxu0 0.0
    %5869 = vmatpush1.msra.mxu0 0.0
    %5870 = vmatprep.subr.mxu0 0.0
    %5871 = vmatpush1.msra.mxu0 0.0
    %5872 = vmatprep.subr.mxu0 0.0
    %5873 = vmatpush1.msra.mxu0 0.0
    %5874 = vmatprep.subr.mxu0 0.0
    %5875 = vmatpush1.msra.mxu0 0.0
    %5876 = vmatprep.subr.mxu0 0.0
    %5877 = vmatpush1.msra.mxu0 0.0
    %5878 = vmatprep.subr.mxu0 0.0
    %5879 = vmatpush1.msra.mxu0 0.0
    %5880 = vmatprep.subr.mxu0 0.0
    %5881 = vmatpush1.msra.mxu0 0.0
    %5882 = vmatprep.subr.mxu0 0.0
    %5883 = vmatpush1.msra.mxu0 0.0
    %5884 = vmatprep.subr.mxu0 0.0
    %5885 = vmatpush1.msra.mxu0 0.0
    %5886 = vmatprep.subr.mxu0 0.0
    %5887 = vmatpush1.msra.mxu0 0.0
    %5888 = vmatprep.subr.mxu0 0.0
    %5889 = vmatpush1.msra.mxu0 0.0
    %5890 = vmatprep.subr.mxu0 0.0
    %5891 = vmatpush1.msra.mxu0 0.0
    %5892 = vmatprep.subr.mxu0 0.0
    %5893 = vmatpush1.msra.mxu0 0.0
    %5894 = vmatprep.mubr.f32.mxu0 0.0
    %5895 = vmatmul.mubr.f32.gmra.mrb[0].mxu0 %v5828
    %v5896 = vpop.f32.mrb[0].mxu0
    %v5897 = vadd.f32 0.0, %v5896
    %v5898 = vpop.f32.mrb[0].mxu0
    %5899 = vdwg.mxu0
    %v5900 = vadd.f32 %v5822, %v5897
    %v5901 = vxor.u32 %v5900, 2147483648
    %v5902 = vmul.f32 %v5901, 1.442695
    %v5903 = vpow.pop %v5902
    %v5904 = vadd.f32 %v5903, 1.0
    %v5905 = vrcp.pop %v5904
    %v5906 = vmul.f32 1.0, %v5905
    %v5907 = vtanh.pop %v5900
    %v5908 = vmul.f32 %v5906, %v5641
    %5910 = vrot.lane.b32.xlu0 %v5907, 64
    %v5911 = vpop.permute.xlu0 %5910
    %v5913 = vmul.f32 %v5906, %v5911
    %5915 = vrot.lane.b32.xlu0 %v5913, 32
    %v5916 = vpop.permute.xlu0 %5915
    %v5918 = vadd.f32 %v5908, %v5916
    %v5919 = vtanh.pop %v5918
    %5921 = vrot.lane.b32.xlu0 %v5919, 64
    %v5922 = vpop.permute.xlu0 %5921
    %v5924 = vmul.f32 %v5906, %v5922
    %5925 = vmatprep.subr.mxu0 0.0
    %5926 = vmatpush1.msra.mxu0 %v3979
    %5927 = vmatprep.subr.mxu0 0.0
    %5928 = vmatpush1.msra.mxu0 %v3980
    %5929 = vmatprep.subr.mxu0 0.0
    %5930 = vmatpush1.msra.mxu0 %v3981
    %5931 = vmatprep.subr.mxu0 0.0
    %5932 = vmatpush1.msra.mxu0 %v3982
    %5933 = vmatprep.subr.mxu0 0.0
    %5934 = vmatpush1.msra.mxu0 0.0
    %5935 = vmatprep.subr.mxu0 0.0
    %5936 = vmatpush1.msra.mxu0 0.0
    %5937 = vmatprep.subr.mxu0 0.0
    %5938 = vmatpush1.msra.mxu0 0.0
    %5939 = vmatprep.subr.mxu0 0.0
    %5940 = vmatpush1.msra.mxu0 0.0
    %5941 = vmatprep.subr.mxu0 0.0
    %5942 = vmatpush1.msra.mxu0 0.0
    %5943 = vmatprep.subr.mxu0 0.0
    %5944 = vmatpush1.msra.mxu0 0.0
    %5945 = vmatprep.subr.mxu0 0.0
    %5946 = vmatpush1.msra.mxu0 0.0
    %5947 = vmatprep.subr.mxu0 0.0
    %5948 = vmatpush1.msra.mxu0 0.0
    %5949 = vmatprep.subr.mxu0 0.0
    %5950 = vmatpush1.msra.mxu0 0.0
    %5951 = vmatprep.subr.mxu0 0.0
    %5952 = vmatpush1.msra.mxu0 0.0
    %5953 = vmatprep.subr.mxu0 0.0
    %5954 = vmatpush1.msra.mxu0 0.0
    %5955 = vmatprep.subr.mxu0 0.0
    %5956 = vmatpush1.msra.mxu0 0.0
    %5957 = vmatprep.subr.mxu0 0.0
    %5958 = vmatpush1.msra.mxu0 0.0
    %5959 = vmatprep.subr.mxu0 0.0
    %5960 = vmatpush1.msra.mxu0 0.0
    %5961 = vmatprep.subr.mxu0 0.0
    %5962 = vmatpush1.msra.mxu0 0.0
    %5963 = vmatprep.subr.mxu0 0.0
    %5964 = vmatpush1.msra.mxu0 0.0
    %5965 = vmatprep.subr.mxu0 0.0
    %5966 = vmatpush1.msra.mxu0 0.0
    %5967 = vmatprep.subr.mxu0 0.0
    %5968 = vmatpush1.msra.mxu0 0.0
    %5969 = vmatprep.subr.mxu0 0.0
    %5970 = vmatpush1.msra.mxu0 0.0
    %5971 = vmatprep.subr.mxu0 0.0
    %5972 = vmatpush1.msra.mxu0 0.0
    %5973 = vmatprep.subr.mxu0 0.0
    %5974 = vmatpush1.msra.mxu0 0.0
    %5975 = vmatprep.subr.mxu0 0.0
    %5976 = vmatpush1.msra.mxu0 0.0
    %5977 = vmatprep.subr.mxu0 0.0
    %5978 = vmatpush1.msra.mxu0 0.0
    %5979 = vmatprep.subr.mxu0 0.0
    %5980 = vmatpush1.msra.mxu0 0.0
    %5981 = vmatprep.subr.mxu0 0.0
    %5982 = vmatpush1.msra.mxu0 0.0
    %5983 = vmatprep.subr.mxu0 0.0
    %5984 = vmatpush1.msra.mxu0 0.0
    %5985 = vmatprep.subr.mxu0 0.0
    %5986 = vmatpush1.msra.mxu0 0.0
    %5987 = vmatprep.subr.mxu0 0.0
    %5988 = vmatpush1.msra.mxu0 0.0
    %5989 = vmatprep.mubr.f32.mxu0 0.0
    %5990 = vmatmul.mubr.f32.gmra.mrb[0].mxu0 %v5753
    %v5991 = vpop.f32.mrb[0].mxu0
    %v5992 = vadd.f32 0.0, %v5991
    %v5993 = vpop.f32.mrb[0].mxu0
    %5994 = vdwg.mxu0
    %v5996 = vrot.slane %v5992, 2
    %v5998 = vadd.f32 %v3971, %v5996
    %v5999 = vxor.u32 %v5998, 2147483648
    %v6000 = vmul.f32 %v5999, 1.442695
    %v6001 = vpow.pop %v6000
    %v6002 = vadd.f32 %v6001, 1.0
    %v6003 = vrcp.pop %v6002
    %v6004 = vmul.f32 1.0, %v6003
    %v6005 = vtanh.pop %v5998
    %v6007 = vrot.slane %v5742, 6
    %v6009 = vmul.f32 %v6004, %v6007
    %6011 = vrot.lane.b32.xlu0 %v6005, 64
    %v6012 = vpop.permute.xlu0 %6011
    %v6014 = vmul.f32 %v6004, %v6012
    %6016 = vrot.lane.b32.xlu0 %v6014, 32
    %v6017 = vpop.permute.xlu0 %6016
    %v6019 = vadd.f32 %v6009, %v6017
    %v6020 = vtanh.pop %v6019
    %6022 = vrot.lane.b32.xlu0 %v6020, 64
    %v6023 = vpop.permute.xlu0 %6022
    %v6025 = vmul.f32 %v6004, %v6023
    %v6027 = vrot.slane %v6025, 6
    %6028 = vrot.lane.b32.xlu0 %v6027, 32
    %v6029 = vpop.permute.xlu0 %6028
    %v6030 = vsel %vm442, %v6029, 0
    %6032 = vmatprep.subr.mxu0 0.0
    %6033 = vmatpush1.msra.mxu0 %v3983
    %6034 = vmatprep.subr.mxu0 0.0
    %6035 = vmatpush1.msra.mxu0 %v3984
    %6036 = vmatprep.subr.mxu0 0.0
    %6037 = vmatpush1.msra.mxu0 %v3985
    %6038 = vmatprep.subr.mxu0 0.0
    %6039 = vmatpush1.msra.mxu0 %v3986
    %6040 = vmatprep.subr.mxu0 0.0
    %6041 = vmatpush1.msra.mxu0 0.0
    %6042 = vmatprep.subr.mxu0 0.0
    %6043 = vmatpush1.msra.mxu0 0.0
    %6044 = vmatprep.subr.mxu0 0.0
    %6045 = vmatpush1.msra.mxu0 0.0
    %6046 = vmatprep.subr.mxu0 0.0
    %6047 = vmatpush1.msra.mxu0 0.0
    %6048 = vmatprep.subr.mxu0 0.0
    %6049 = vmatpush1.msra.mxu0 0.0
    %6050 = vmatprep.subr.mxu0 0.0
    %6051 = vmatpush1.msra.mxu0 0.0
    %6052 = vmatprep.subr.mxu0 0.0
    %6053 = vmatpush1.msra.mxu0 0.0
    %6054 = vmatprep.subr.mxu0 0.0
    %6055 = vmatpush1.msra.mxu0 0.0
    %6056 = vmatprep.subr.mxu0 0.0
    %6057 = vmatpush1.msra.mxu0 0.0
    %6058 = vmatprep.subr.mxu0 0.0
    %6059 = vmatpush1.msra.mxu0 0.0
    %6060 = vmatprep.subr.mxu0 0.0
    %6061 = vmatpush1.msra.mxu0 0.0
    %6062 = vmatprep.subr.mxu0 0.0
    %6063 = vmatpush1.msra.mxu0 0.0
    %6064 = vmatprep.subr.mxu0 0.0
    %6065 = vmatpush1.msra.mxu0 0.0
    %6066 = vmatprep.subr.mxu0 0.0
    %6067 = vmatpush1.msra.mxu0 0.0
    %6068 = vmatprep.subr.mxu0 0.0
    %6069 = vmatpush1.msra.mxu0 0.0
    %6070 = vmatprep.subr.mxu0 0.0
    %6071 = vmatpush1.msra.mxu0 0.0
    %6072 = vmatprep.subr.mxu0 0.0
    %6073 = vmatpush1.msra.mxu0 0.0
    %6074 = vmatprep.subr.mxu0 0.0
    %6075 = vmatpush1.msra.mxu0 0.0
    %6076 = vmatprep.subr.mxu0 0.0
    %6077 = vmatpush1.msra.mxu0 0.0
    %6078 = vmatprep.subr.mxu0 0.0
    %6079 = vmatpush1.msra.mxu0 0.0
    %6080 = vmatprep.subr.mxu0 0.0
    %6081 = vmatpush1.msra.mxu0 0.0
    %6082 = vmatprep.subr.mxu0 0.0
    %6083 = vmatpush1.msra.mxu0 0.0
    %6084 = vmatprep.subr.mxu0 0.0
    %6085 = vmatpush1.msra.mxu0 0.0
    %6086 = vmatprep.subr.mxu0 0.0
    %6087 = vmatpush1.msra.mxu0 0.0
    %6088 = vmatprep.subr.mxu0 0.0
    %6089 = vmatpush1.msra.mxu0 0.0
    %6090 = vmatprep.subr.mxu0 0.0
    %6091 = vmatpush1.msra.mxu0 0.0
    %6092 = vmatprep.subr.mxu0 0.0
    %6093 = vmatpush1.msra.mxu0 0.0
    %6094 = vmatprep.subr.mxu0 0.0
    %6095 = vmatpush1.msra.mxu0 0.0
    %6096 = vmatprep.mubr.f32.mxu0 0.0
    %6097 = vmatmul.mubr.f32.gmra.mrb[0].mxu0 %v6030
    %v6098 = vpop.f32.mrb[0].mxu0
    %v6099 = vadd.f32 %v3996, %v6098
    %v6100 = vpop.f32.mrb[0].mxu0
    %6101 = vdwg.mxu0
    %6103 = vrot.lane.b32.xlu0 %v5924, 32
    %v6104 = vpop.permute.xlu0 %6103
    %v6105 = vsel %vm442, %v6104, 0
    %6107 = vmatprep.subr.mxu0 0.0
    %6108 = vmatpush1.msra.mxu0 %v3987
    %6109 = vmatprep.subr.mxu0 0.0
    %6110 = vmatpush1.msra.mxu0 %v3988
    %6111 = vmatprep.subr.mxu0 0.0
    %6112 = vmatpush1.msra.mxu0 %v3989
    %6113 = vmatprep.subr.mxu0 0.0
    %6114 = vmatpush1.msra.mxu0 %v3990
    %6115 = vmatprep.subr.mxu0 0.0
    %6116 = vmatpush1.msra.mxu0 0.0
    %6117 = vmatprep.subr.mxu0 0.0
    %6118 = vmatpush1.msra.mxu0 0.0
    %6119 = vmatprep.subr.mxu0 0.0
    %6120 = vmatpush1.msra.mxu0 0.0
    %6121 = vmatprep.subr.mxu0 0.0
    %6122 = vmatpush1.msra.mxu0 0.0
    %6123 = vmatprep.subr.mxu0 0.0
    %6124 = vmatpush1.msra.mxu0 0.0
    %6125 = vmatprep.subr.mxu0 0.0
    %6126 = vmatpush1.msra.mxu0 0.0
    %6127 = vmatprep.subr.mxu0 0.0
    %6128 = vmatpush1.msra.mxu0 0.0
    %6129 = vmatprep.subr.mxu0 0.0
    %6130 = vmatpush1.msra.mxu0 0.0
    %6131 = vmatprep.subr.mxu0 0.0
    %6132 = vmatpush1.msra.mxu0 0.0
    %6133 = vmatprep.subr.mxu0 0.0
    %6134 = vmatpush1.msra.mxu0 0.0
    %6135 = vmatprep.subr.mxu0 0.0
    %6136 = vmatpush1.msra.mxu0 0.0
    %6137 = vmatprep.subr.mxu0 0.0
    %6138 = vmatpush1.msra.mxu0 0.0
    %6139 = vmatprep.subr.mxu0 0.0
    %6140 = vmatpush1.msra.mxu0 0.0
    %6141 = vmatprep.subr.mxu0 0.0
    %6142 = vmatpush1.msra.mxu0 0.0
    %6143 = vmatprep.subr.mxu0 0.0
    %6144 = vmatpush1.msra.mxu0 0.0
    %6145 = vmatprep.subr.mxu0 0.0
    %6146 = vmatpush1.msra.mxu0 0.0
    %6147 = vmatprep.subr.mxu0 0.0
    %6148 = vmatpush1.msra.mxu0 0.0
    %6149 = vmatprep.subr.mxu0 0.0
    %6150 = vmatpush1.msra.mxu0 0.0
    %6151 = vmatprep.subr.mxu0 0.0
    %6152 = vmatpush1.msra.mxu0 0.0
    %6153 = vmatprep.subr.mxu0 0.0
    %6154 = vmatpush1.msra.mxu0 0.0
    %6155 = vmatprep.subr.mxu0 0.0
    %6156 = vmatpush1.msra.mxu0 0.0
    %6157 = vmatprep.subr.mxu0 0.0
    %6158 = vmatpush1.msra.mxu0 0.0
    %6159 = vmatprep.subr.mxu0 0.0
    %6160 = vmatpush1.msra.mxu0 0.0
    %6161 = vmatprep.subr.mxu0 0.0
    %6162 = vmatpush1.msra.mxu0 0.0
    %6163 = vmatprep.subr.mxu0 0.0
    %6164 = vmatpush1.msra.mxu0 0.0
    %6165 = vmatprep.subr.mxu0 0.0
    %6166 = vmatpush1.msra.mxu0 0.0
    %6167 = vmatprep.subr.mxu0 0.0
    %6168 = vmatpush1.msra.mxu0 0.0
    %6169 = vmatprep.subr.mxu0 0.0
    %6170 = vmatpush1.msra.mxu0 0.0
    %6171 = vmatprep.mubr.f32.mxu0 0.0
    %6172 = vmatmul.mubr.f32.gmra.mrb[0].mxu0 %v6105
    %v6173 = vpop.f32.mrb[0].mxu0
    %v6174 = vadd.f32 0.0, %v6173
    %v6175 = vpop.f32.mrb[0].mxu0
    %6176 = vdwg.mxu0
    %v6177 = vadd.f32 %v6099, %v6174
    %v6178 = vxor.u32 %v6177, 2147483648
    %v6179 = vmul.f32 %v6178, 1.442695
    %v6180 = vpow.pop %v6179
    %v6181 = vadd.f32 %v6180, 1.0
    %v6182 = vrcp.pop %v6181
    %v6183 = vmul.f32 1.0, %v6182
    %v6184 = vtanh.pop %v6177
    %v6185 = vmul.f32 %v6183, %v5918
    %6187 = vrot.lane.b32.xlu0 %v6184, 64
    %v6188 = vpop.permute.xlu0 %6187
    %v6190 = vmul.f32 %v6183, %v6188
    %6192 = vrot.lane.b32.xlu0 %v6190, 32
    %v6193 = vpop.permute.xlu0 %6192
    %v6195 = vadd.f32 %v6185, %v6193
    %v6196 = vtanh.pop %v6195
    %6198 = vrot.lane.b32.xlu0 %v6196, 64
    %v6199 = vpop.permute.xlu0 %6198
    %v6201 = vmul.f32 %v6183, %v6199
    %6202 = vmatprep.subr.mxu0 0.0
    %6203 = vmatpush1.msra.mxu0 %v3979
    %6204 = vmatprep.subr.mxu0 0.0
    %6205 = vmatpush1.msra.mxu0 %v3980
    %6206 = vmatprep.subr.mxu0 0.0
    %6207 = vmatpush1.msra.mxu0 %v3981
    %6208 = vmatprep.subr.mxu0 0.0
    %6209 = vmatpush1.msra.mxu0 %v3982
    %6210 = vmatprep.subr.mxu0 0.0
    %6211 = vmatpush1.msra.mxu0 0.0
    %6212 = vmatprep.subr.mxu0 0.0
    %6213 = vmatpush1.msra.mxu0 0.0
    %6214 = vmatprep.subr.mxu0 0.0
    %6215 = vmatpush1.msra.mxu0 0.0
    %6216 = vmatprep.subr.mxu0 0.0
    %6217 = vmatpush1.msra.mxu0 0.0
    %6218 = vmatprep.subr.mxu0 0.0
    %6219 = vmatpush1.msra.mxu0 0.0
    %6220 = vmatprep.subr.mxu0 0.0
    %6221 = vmatpush1.msra.mxu0 0.0
    %6222 = vmatprep.subr.mxu0 0.0
    %6223 = vmatpush1.msra.mxu0 0.0
    %6224 = vmatprep.subr.mxu0 0.0
    %6225 = vmatpush1.msra.mxu0 0.0
    %6226 = vmatprep.subr.mxu0 0.0
    %6227 = vmatpush1.msra.mxu0 0.0
    %6228 = vmatprep.subr.mxu0 0.0
    %6229 = vmatpush1.msra.mxu0 0.0
    %6230 = vmatprep.subr.mxu0 0.0
    %6231 = vmatpush1.msra.mxu0 0.0
    %6232 = vmatprep.subr.mxu0 0.0
    %6233 = vmatpush1.msra.mxu0 0.0
    %6234 = vmatprep.subr.mxu0 0.0
    %6235 = vmatpush1.msra.mxu0 0.0
    %6236 = vmatprep.subr.mxu0 0.0
    %6237 = vmatpush1.msra.mxu0 0.0
    %6238 = vmatprep.subr.mxu0 0.0
    %6239 = vmatpush1.msra.mxu0 0.0
    %6240 = vmatprep.subr.mxu0 0.0
    %6241 = vmatpush1.msra.mxu0 0.0
    %6242 = vmatprep.subr.mxu0 0.0
    %6243 = vmatpush1.msra.mxu0 0.0
    %6244 = vmatprep.subr.mxu0 0.0
    %6245 = vmatpush1.msra.mxu0 0.0
    %6246 = vmatprep.subr.mxu0 0.0
    %6247 = vmatpush1.msra.mxu0 0.0
    %6248 = vmatprep.subr.mxu0 0.0
    %6249 = vmatpush1.msra.mxu0 0.0
    %6250 = vmatprep.subr.mxu0 0.0
    %6251 = vmatpush1.msra.mxu0 0.0
    %6252 = vmatprep.subr.mxu0 0.0
    %6253 = vmatpush1.msra.mxu0 0.0
    %6254 = vmatprep.subr.mxu0 0.0
    %6255 = vmatpush1.msra.mxu0 0.0
    %6256 = vmatprep.subr.mxu0 0.0
    %6257 = vmatpush1.msra.mxu0 0.0
    %6258 = vmatprep.subr.mxu0 0.0
    %6259 = vmatpush1.msra.mxu0 0.0
    %6260 = vmatprep.subr.mxu0 0.0
    %6261 = vmatpush1.msra.mxu0 0.0
    %6262 = vmatprep.subr.mxu0 0.0
    %6263 = vmatpush1.msra.mxu0 0.0
    %6264 = vmatprep.subr.mxu0 0.0
    %6265 = vmatpush1.msra.mxu0 0.0
    %6266 = vmatprep.mubr.f32.mxu0 0.0
    %6267 = vmatmul.mubr.f32.gmra.mrb[0].mxu0 %v6030
    %v6268 = vpop.f32.mrb[0].mxu0
    %v6269 = vadd.f32 0.0, %v6268
    %v6270 = vpop.f32.mrb[0].mxu0
    %6271 = vdwg.mxu0
    %v6272 = vadd.f32 %v3976, %v6269
    %v6273 = vxor.u32 %v6272, 2147483648
    %v6274 = vmul.f32 %v6273, 1.442695
    %v6275 = vpow.pop %v6274
    %v6276 = vadd.f32 %v6275, 1.0
    %v6277 = vrcp.pop %v6276
    %v6278 = vmul.f32 1.0, %v6277
    %v6279 = vtanh.pop %v6272
    %v6281 = vrot.slane %v6019, 6
    %v6283 = vmul.f32 %v6278, %v6281
    %6285 = vrot.lane.b32.xlu0 %v6279, 64
    %v6286 = vpop.permute.xlu0 %6285
    %v6288 = vmul.f32 %v6278, %v6286
    %6290 = vrot.lane.b32.xlu0 %v6288, 32
    %v6291 = vpop.permute.xlu0 %6290
    %v6293 = vadd.f32 %v6283, %v6291
    %v6294 = vtanh.pop %v6293
    %6296 = vrot.lane.b32.xlu0 %v6294, 64
    %v6297 = vpop.permute.xlu0 %6296
    %v6299 = vmul.f32 %v6278, %v6297
    %6301 = vrot.lane.b32.xlu0 %v6299, 32
    %v6302 = vpop.permute.xlu0 %6301
    %v6303 = vsel %vm442, %v6302, 0
    %6305 = vmatprep.subr.mxu0 0.0
    %6306 = vmatpush1.msra.mxu0 %v3983
    %6307 = vmatprep.subr.mxu0 0.0
    %6308 = vmatpush1.msra.mxu0 %v3984
    %6309 = vmatprep.subr.mxu0 0.0
    %6310 = vmatpush1.msra.mxu0 %v3985
    %6311 = vmatprep.subr.mxu0 0.0
    %6312 = vmatpush1.msra.mxu0 %v3986
    %6313 = vmatprep.subr.mxu0 0.0
    %6314 = vmatpush1.msra.mxu0 0.0
    %6315 = vmatprep.subr.mxu0 0.0
    %6316 = vmatpush1.msra.mxu0 0.0
    %6317 = vmatprep.subr.mxu0 0.0
    %6318 = vmatpush1.msra.mxu0 0.0
    %6319 = vmatprep.subr.mxu0 0.0
    %6320 = vmatpush1.msra.mxu0 0.0
    %6321 = vmatprep.subr.mxu0 0.0
    %6322 = vmatpush1.msra.mxu0 0.0
    %6323 = vmatprep.subr.mxu0 0.0
    %6324 = vmatpush1.msra.mxu0 0.0
    %6325 = vmatprep.subr.mxu0 0.0
    %6326 = vmatpush1.msra.mxu0 0.0
    %6327 = vmatprep.subr.mxu0 0.0
    %6328 = vmatpush1.msra.mxu0 0.0
    %6329 = vmatprep.subr.mxu0 0.0
    %6330 = vmatpush1.msra.mxu0 0.0
    %6331 = vmatprep.subr.mxu0 0.0
    %6332 = vmatpush1.msra.mxu0 0.0
    %6333 = vmatprep.subr.mxu0 0.0
    %6334 = vmatpush1.msra.mxu0 0.0
    %6335 = vmatprep.subr.mxu0 0.0
    %6336 = vmatpush1.msra.mxu0 0.0
    %6337 = vmatprep.subr.mxu0 0.0
    %6338 = vmatpush1.msra.mxu0 0.0
    %6339 = vmatprep.subr.mxu0 0.0
    %6340 = vmatpush1.msra.mxu0 0.0
    %6341 = vmatprep.subr.mxu0 0.0
    %6342 = vmatpush1.msra.mxu0 0.0
    %6343 = vmatprep.subr.mxu0 0.0
    %6344 = vmatpush1.msra.mxu0 0.0
    %6345 = vmatprep.subr.mxu0 0.0
    %6346 = vmatpush1.msra.mxu0 0.0
    %6347 = vmatprep.subr.mxu0 0.0
    %6348 = vmatpush1.msra.mxu0 0.0
    %6349 = vmatprep.subr.mxu0 0.0
    %6350 = vmatpush1.msra.mxu0 0.0
    %6351 = vmatprep.subr.mxu0 0.0
    %6352 = vmatpush1.msra.mxu0 0.0
    %6353 = vmatprep.subr.mxu0 0.0
    %6354 = vmatpush1.msra.mxu0 0.0
    %6355 = vmatprep.subr.mxu0 0.0
    %6356 = vmatpush1.msra.mxu0 0.0
    %6357 = vmatprep.subr.mxu0 0.0
    %6358 = vmatpush1.msra.mxu0 0.0
    %6359 = vmatprep.subr.mxu0 0.0
    %6360 = vmatpush1.msra.mxu0 0.0
    %6361 = vmatprep.subr.mxu0 0.0
    %6362 = vmatpush1.msra.mxu0 0.0
    %6363 = vmatprep.subr.mxu0 0.0
    %6364 = vmatpush1.msra.mxu0 0.0
    %6365 = vmatprep.subr.mxu0 0.0
    %6366 = vmatpush1.msra.mxu0 0.0
    %6367 = vmatprep.subr.mxu0 0.0
    %6368 = vmatpush1.msra.mxu0 0.0
    %6369 = vmatprep.mubr.f32.mxu0 0.0
    %6370 = vmatmul.mubr.f32.gmra.mrb[0].mxu0 %v6303
    %v6371 = vpop.f32.mrb[0].mxu0
    %v6372 = vadd.f32 %v3996, %v6371
    %v6373 = vpop.f32.mrb[0].mxu0
    %6374 = vdwg.mxu0
    %6376 = vrot.lane.b32.xlu0 %v6201, 32
    %v6377 = vpop.permute.xlu0 %6376
    %v6378 = vsel %vm442, %v6377, 0
    %6380 = vmatprep.subr.mxu0 0.0
    %6381 = vmatpush1.msra.mxu0 %v3987
    %6382 = vmatprep.subr.mxu0 0.0
    %6383 = vmatpush1.msra.mxu0 %v3988
    %6384 = vmatprep.subr.mxu0 0.0
    %6385 = vmatpush1.msra.mxu0 %v3989
    %6386 = vmatprep.subr.mxu0 0.0
    %6387 = vmatpush1.msra.mxu0 %v3990
    %6388 = vmatprep.subr.mxu0 0.0
    %6389 = vmatpush1.msra.mxu0 0.0
    %6390 = vmatprep.subr.mxu0 0.0
    %6391 = vmatpush1.msra.mxu0 0.0
    %6392 = vmatprep.subr.mxu0 0.0
    %6393 = vmatpush1.msra.mxu0 0.0
    %6394 = vmatprep.subr.mxu0 0.0
    %6395 = vmatpush1.msra.mxu0 0.0
    %6396 = vmatprep.subr.mxu0 0.0
    %6397 = vmatpush1.msra.mxu0 0.0
    %6398 = vmatprep.subr.mxu0 0.0
    %6399 = vmatpush1.msra.mxu0 0.0
    %6400 = vmatprep.subr.mxu0 0.0
    %6401 = vmatpush1.msra.mxu0 0.0
    %6402 = vmatprep.subr.mxu0 0.0
    %6403 = vmatpush1.msra.mxu0 0.0
    %6404 = vmatprep.subr.mxu0 0.0
    %6405 = vmatpush1.msra.mxu0 0.0
    %6406 = vmatprep.subr.mxu0 0.0
    %6407 = vmatpush1.msra.mxu0 0.0
    %6408 = vmatprep.subr.mxu0 0.0
    %6409 = vmatpush1.msra.mxu0 0.0
    %6410 = vmatprep.subr.mxu0 0.0
    %6411 = vmatpush1.msra.mxu0 0.0
    %6412 = vmatprep.subr.mxu0 0.0
    %6413 = vmatpush1.msra.mxu0 0.0
    %6414 = vmatprep.subr.mxu0 0.0
    %6415 = vmatpush1.msra.mxu0 0.0
    %6416 = vmatprep.subr.mxu0 0.0
    %6417 = vmatpush1.msra.mxu0 0.0
    %6418 = vmatprep.subr.mxu0 0.0
    %6419 = vmatpush1.msra.mxu0 0.0
    %6420 = vmatprep.subr.mxu0 0.0
    %6421 = vmatpush1.msra.mxu0 0.0
    %6422 = vmatprep.subr.mxu0 0.0
    %6423 = vmatpush1.msra.mxu0 0.0
    %6424 = vmatprep.subr.mxu0 0.0
    %6425 = vmatpush1.msra.mxu0 0.0
    %6426 = vmatprep.subr.mxu0 0.0
    %6427 = vmatpush1.msra.mxu0 0.0
    %6428 = vmatprep.subr.mxu0 0.0
    %6429 = vmatpush1.msra.mxu0 0.0
    %6430 = vmatprep.subr.mxu0 0.0
    %6431 = vmatpush1.msra.mxu0 0.0
    %6432 = vmatprep.subr.mxu0 0.0
    %6433 = vmatpush1.msra.mxu0 0.0
    %6434 = vmatprep.subr.mxu0 0.0
    %6435 = vmatpush1.msra.mxu0 0.0
    %6436 = vmatprep.subr.mxu0 0.0
    %6437 = vmatpush1.msra.mxu0 0.0
    %6438 = vmatprep.subr.mxu0 0.0
    %6439 = vmatpush1.msra.mxu0 0.0
    %6440 = vmatprep.subr.mxu0 0.0
    %6441 = vmatpush1.msra.mxu0 0.0
    %6442 = vmatprep.subr.mxu0 0.0
    %6443 = vmatpush1.msra.mxu0 0.0
    %6444 = vmatprep.mubr.f32.mxu0 0.0
    %6445 = vmatmul.mubr.f32.gmra.mrb[0].mxu0 %v6378
    %v6446 = vpop.f32.mrb[0].mxu0
    %v6447 = vadd.f32 0.0, %v6446
    %v6448 = vpop.f32.mrb[0].mxu0
    %6449 = vdwg.mxu0
    %v6450 = vadd.f32 %v6372, %v6447
    %v6451 = vxor.u32 %v6450, 2147483648
    %v6452 = vmul.f32 %v6451, 1.442695
    %v6453 = vpow.pop %v6452
    %v6454 = vadd.f32 %v6453, 1.0
    %v6455 = vrcp.pop %v6454
    %v6456 = vmul.f32 1.0, %v6455
    %v6457 = vtanh.pop %v6450
    %v6458 = vmul.f32 %v6456, %v6195
    %6460 = vrot.lane.b32.xlu0 %v6457, 64
    %v6461 = vpop.permute.xlu0 %6460
    %v6463 = vmul.f32 %v6456, %v6461
    %6465 = vrot.lane.b32.xlu0 %v6463, 32
    %v6466 = vpop.permute.xlu0 %6465
    %v6468 = vadd.f32 %v6458, %v6466
    %v6469 = vtanh.pop %v6468
    %6471 = vrot.lane.b32.xlu0 %v6469, 64
    %v6472 = vpop.permute.xlu0 %6471
    %v6474 = vmul.f32 %v6456, %v6472
    %6475 = vmatprep.subr.mxu0 0.0
    %6476 = vmatpush1.msra.mxu0 %v3979
    %6477 = vmatprep.subr.mxu0 0.0
    %6478 = vmatpush1.msra.mxu0 %v3980
    %6479 = vmatprep.subr.mxu0 0.0
    %6480 = vmatpush1.msra.mxu0 %v3981
    %6481 = vmatprep.subr.mxu0 0.0
    %6482 = vmatpush1.msra.mxu0 %v3982
    %6483 = vmatprep.subr.mxu0 0.0
    %6484 = vmatpush1.msra.mxu0 0.0
    %6485 = vmatprep.subr.mxu0 0.0
    %6486 = vmatpush1.msra.mxu0 0.0
    %6487 = vmatprep.subr.mxu0 0.0
    %6488 = vmatpush1.msra.mxu0 0.0
    %6489 = vmatprep.subr.mxu0 0.0
    %6490 = vmatpush1.msra.mxu0 0.0
    %6491 = vmatprep.subr.mxu0 0.0
    %6492 = vmatpush1.msra.mxu0 0.0
    %6493 = vmatprep.subr.mxu0 0.0
    %6494 = vmatpush1.msra.mxu0 0.0
    %6495 = vmatprep.subr.mxu0 0.0
    %6496 = vmatpush1.msra.mxu0 0.0
    %6497 = vmatprep.subr.mxu0 0.0
    %6498 = vmatpush1.msra.mxu0 0.0
    %6499 = vmatprep.subr.mxu0 0.0
    %6500 = vmatpush1.msra.mxu0 0.0
    %6501 = vmatprep.subr.mxu0 0.0
    %6502 = vmatpush1.msra.mxu0 0.0
    %6503 = vmatprep.subr.mxu0 0.0
    %6504 = vmatpush1.msra.mxu0 0.0
    %6505 = vmatprep.subr.mxu0 0.0
    %6506 = vmatpush1.msra.mxu0 0.0
    %6507 = vmatprep.subr.mxu0 0.0
    %6508 = vmatpush1.msra.mxu0 0.0
    %6509 = vmatprep.subr.mxu0 0.0
    %6510 = vmatpush1.msra.mxu0 0.0
    %6511 = vmatprep.subr.mxu0 0.0
    %6512 = vmatpush1.msra.mxu0 0.0
    %6513 = vmatprep.subr.mxu0 0.0
    %6514 = vmatpush1.msra.mxu0 0.0
    %6515 = vmatprep.subr.mxu0 0.0
    %6516 = vmatpush1.msra.mxu0 0.0
    %6517 = vmatprep.subr.mxu0 0.0
    %6518 = vmatpush1.msra.mxu0 0.0
    %6519 = vmatprep.subr.mxu0 0.0
    %6520 = vmatpush1.msra.mxu0 0.0
    %6521 = vmatprep.subr.mxu0 0.0
    %6522 = vmatpush1.msra.mxu0 0.0
    %6523 = vmatprep.subr.mxu0 0.0
    %6524 = vmatpush1.msra.mxu0 0.0
    %6525 = vmatprep.subr.mxu0 0.0
    %6526 = vmatpush1.msra.mxu0 0.0
    %6527 = vmatprep.subr.mxu0 0.0
    %6528 = vmatpush1.msra.mxu0 0.0
    %6529 = vmatprep.subr.mxu0 0.0
    %6530 = vmatpush1.msra.mxu0 0.0
    %6531 = vmatprep.subr.mxu0 0.0
    %6532 = vmatpush1.msra.mxu0 0.0
    %6533 = vmatprep.subr.mxu0 0.0
    %6534 = vmatpush1.msra.mxu0 0.0
    %6535 = vmatprep.subr.mxu0 0.0
    %6536 = vmatpush1.msra.mxu0 0.0
    %6537 = vmatprep.subr.mxu0 0.0
    %6538 = vmatpush1.msra.mxu0 0.0
    %6539 = vmatprep.mubr.f32.mxu0 0.0
    %6540 = vmatmul.mubr.f32.gmra.mrb[0].mxu0 %v6303
    %v6541 = vpop.f32.mrb[0].mxu0
    %v6542 = vadd.f32 0.0, %v6541
    %v6543 = vpop.f32.mrb[0].mxu0
    %6544 = vdwg.mxu0
    %v6546 = vrot.slane %v6542, 6
    %v6548 = vadd.f32 %v3976, %v6546
    %v6549 = vxor.u32 %v6548, 2147483648
    %v6550 = vmul.f32 %v6549, 1.442695
    %v6551 = vpow.pop %v6550
    %v6552 = vadd.f32 %v6551, 1.0
    %v6553 = vrcp.pop %v6552
    %v6554 = vmul.f32 1.0, %v6553
    %v6555 = vtanh.pop %v6548
    %v6557 = vrot.slane %v6293, 6
    %v6559 = vmul.f32 %v6554, %v6557
    %6561 = vrot.lane.b32.xlu0 %v6555, 64
    %v6562 = vpop.permute.xlu0 %6561
    %v6564 = vmul.f32 %v6554, %v6562
    %6566 = vrot.lane.b32.xlu0 %v6564, 32
    %v6567 = vpop.permute.xlu0 %6566
    %v6569 = vadd.f32 %v6559, %v6567
    %v6570 = vtanh.pop %v6569
    %6572 = vrot.lane.b32.xlu0 %v6570, 64
    %v6573 = vpop.permute.xlu0 %6572
    %v6575 = vmul.f32 %v6554, %v6573
    %v6577 = vrot.slane %v6575, 2
    %6578 = vrot.lane.b32.xlu0 %v6577, 32
    %v6579 = vpop.permute.xlu0 %6578
    %v6580 = vsel %vm442, %v6579, 0
    %6582 = vmatprep.subr.mxu0 0.0
    %6583 = vmatpush1.msra.mxu0 %v3983
    %6584 = vmatprep.subr.mxu0 0.0
    %6585 = vmatpush1.msra.mxu0 %v3984
    %6586 = vmatprep.subr.mxu0 0.0
    %6587 = vmatpush1.msra.mxu0 %v3985
    %6588 = vmatprep.subr.mxu0 0.0
    %6589 = vmatpush1.msra.mxu0 %v3986
    %6590 = vmatprep.subr.mxu0 0.0
    %6591 = vmatpush1.msra.mxu0 0.0
    %6592 = vmatprep.subr.mxu0 0.0
    %6593 = vmatpush1.msra.mxu0 0.0
    %6594 = vmatprep.subr.mxu0 0.0
    %6595 = vmatpush1.msra.mxu0 0.0
    %6596 = vmatprep.subr.mxu0 0.0
    %6597 = vmatpush1.msra.mxu0 0.0
    %6598 = vmatprep.subr.mxu0 0.0
    %6599 = vmatpush1.msra.mxu0 0.0
    %6600 = vmatprep.subr.mxu0 0.0
    %6601 = vmatpush1.msra.mxu0 0.0
    %6602 = vmatprep.subr.mxu0 0.0
    %6603 = vmatpush1.msra.mxu0 0.0
    %6604 = vmatprep.subr.mxu0 0.0
    %6605 = vmatpush1.msra.mxu0 0.0
    %6606 = vmatprep.subr.mxu0 0.0
    %6607 = vmatpush1.msra.mxu0 0.0
    %6608 = vmatprep.subr.mxu0 0.0
    %6609 = vmatpush1.msra.mxu0 0.0
    %6610 = vmatprep.subr.mxu0 0.0
    %6611 = vmatpush1.msra.mxu0 0.0
    %6612 = vmatprep.subr.mxu0 0.0
    %6613 = vmatpush1.msra.mxu0 0.0
    %6614 = vmatprep.subr.mxu0 0.0
    %6615 = vmatpush1.msra.mxu0 0.0
    %6616 = vmatprep.subr.mxu0 0.0
    %6617 = vmatpush1.msra.mxu0 0.0
    %6618 = vmatprep.subr.mxu0 0.0
    %6619 = vmatpush1.msra.mxu0 0.0
    %6620 = vmatprep.subr.mxu0 0.0
    %6621 = vmatpush1.msra.mxu0 0.0
    %6622 = vmatprep.subr.mxu0 0.0
    %6623 = vmatpush1.msra.mxu0 0.0
    %6624 = vmatprep.subr.mxu0 0.0
    %6625 = vmatpush1.msra.mxu0 0.0
    %6626 = vmatprep.subr.mxu0 0.0
    %6627 = vmatpush1.msra.mxu0 0.0
    %6628 = vmatprep.subr.mxu0 0.0
    %6629 = vmatpush1.msra.mxu0 0.0
    %6630 = vmatprep.subr.mxu0 0.0
    %6631 = vmatpush1.msra.mxu0 0.0
    %6632 = vmatprep.subr.mxu0 0.0
    %6633 = vmatpush1.msra.mxu0 0.0
    %6634 = vmatprep.subr.mxu0 0.0
    %6635 = vmatpush1.msra.mxu0 0.0
    %6636 = vmatprep.subr.mxu0 0.0
    %6637 = vmatpush1.msra.mxu0 0.0
    %6638 = vmatprep.subr.mxu0 0.0
    %6639 = vmatpush1.msra.mxu0 0.0
    %6640 = vmatprep.subr.mxu0 0.0
    %6641 = vmatpush1.msra.mxu0 0.0
    %6642 = vmatprep.subr.mxu0 0.0
    %6643 = vmatpush1.msra.mxu0 0.0
    %6644 = vmatprep.subr.mxu0 0.0
    %6645 = vmatpush1.msra.mxu0 0.0
    %6646 = vmatprep.mubr.f32.mxu0 0.0
    %6647 = vmatmul.mubr.f32.gmra.mrb[0].mxu0 %v6580
    %v6648 = vpop.f32.mrb[0].mxu0
    %v6649 = vadd.f32 %v3996, %v6648
    %v6650 = vpop.f32.mrb[0].mxu0
    %6651 = vdwg.mxu0
    %6653 = vrot.lane.b32.xlu0 %v6474, 32
    %v6654 = vpop.permute.xlu0 %6653
    %v6655 = vsel %vm442, %v6654, 0
    %6657 = vmatprep.subr.mxu0 0.0
    %6658 = vmatpush1.msra.mxu0 %v3987
    %6659 = vmatprep.subr.mxu0 0.0
    %6660 = vmatpush1.msra.mxu0 %v3988
    %6661 = vmatprep.subr.mxu0 0.0
    %6662 = vmatpush1.msra.mxu0 %v3989
    %6663 = vmatprep.subr.mxu0 0.0
    %6664 = vmatpush1.msra.mxu0 %v3990
    %6665 = vmatprep.subr.mxu0 0.0
    %6666 = vmatpush1.msra.mxu0 0.0
    %6667 = vmatprep.subr.mxu0 0.0
    %6668 = vmatpush1.msra.mxu0 0.0
    %6669 = vmatprep.subr.mxu0 0.0
    %6670 = vmatpush1.msra.mxu0 0.0
    %6671 = vmatprep.subr.mxu0 0.0
    %6672 = vmatpush1.msra.mxu0 0.0
    %6673 = vmatprep.subr.mxu0 0.0
    %6674 = vmatpush1.msra.mxu0 0.0
    %6675 = vmatprep.subr.mxu0 0.0
    %6676 = vmatpush1.msra.mxu0 0.0
    %6677 = vmatprep.subr.mxu0 0.0
    %6678 = vmatpush1.msra.mxu0 0.0
    %6679 = vmatprep.subr.mxu0 0.0
    %6680 = vmatpush1.msra.mxu0 0.0
    %6681 = vmatprep.subr.mxu0 0.0
    %6682 = vmatpush1.msra.mxu0 0.0
    %6683 = vmatprep.subr.mxu0 0.0
    %6684 = vmatpush1.msra.mxu0 0.0
    %6685 = vmatprep.subr.mxu0 0.0
    %6686 = vmatpush1.msra.mxu0 0.0
    %6687 = vmatprep.subr.mxu0 0.0
    %6688 = vmatpush1.msra.mxu0 0.0
    %6689 = vmatprep.subr.mxu0 0.0
    %6690 = vmatpush1.msra.mxu0 0.0
    %6691 = vmatprep.subr.mxu0 0.0
    %6692 = vmatpush1.msra.mxu0 0.0
    %6693 = vmatprep.subr.mxu0 0.0
    %6694 = vmatpush1.msra.mxu0 0.0
    %6695 = vmatprep.subr.mxu0 0.0
    %6696 = vmatpush1.msra.mxu0 0.0
    %6697 = vmatprep.subr.mxu0 0.0
    %6698 = vmatpush1.msra.mxu0 0.0
    %6699 = vmatprep.subr.mxu0 0.0
    %6700 = vmatpush1.msra.mxu0 0.0
    %6701 = vmatprep.subr.mxu0 0.0
    %6702 = vmatpush1.msra.mxu0 0.0
    %6703 = vmatprep.subr.mxu0 0.0
    %6704 = vmatpush1.msra.mxu0 0.0
    %6705 = vmatprep.subr.mxu0 0.0
    %6706 = vmatpush1.msra.mxu0 0.0
    %6707 = vmatprep.subr.mxu0 0.0
    %6708 = vmatpush1.msra.mxu0 0.0
    %6709 = vmatprep.subr.mxu0 0.0
    %6710 = vmatpush1.msra.mxu0 0.0
    %6711 = vmatprep.subr.mxu0 0.0
    %6712 = vmatpush1.msra.mxu0 0.0
    %6713 = vmatprep.subr.mxu0 0.0
    %6714 = vmatpush1.msra.mxu0 0.0
    %6715 = vmatprep.subr.mxu0 0.0
    %6716 = vmatpush1.msra.mxu0 0.0
    %6717 = vmatprep.subr.mxu0 0.0
    %6718 = vmatpush1.msra.mxu0 0.0
    %6719 = vmatprep.subr.mxu0 0.0
    %6720 = vmatpush1.msra.mxu0 0.0
    %6721 = vmatprep.mubr.f32.mxu0 0.0
    %6722 = vmatmul.mubr.f32.gmra.mrb[0].mxu0 %v6655
    %v6723 = vpop.f32.mrb[0].mxu0
    %v6724 = vadd.f32 0.0, %v6723
    %v6725 = vpop.f32.mrb[0].mxu0
    %6726 = vdwg.mxu0
    %v6727 = vadd.f32 %v6649, %v6724
    %v6728 = vxor.u32 %v6727, 2147483648
    %v6729 = vmul.f32 %v6728, 1.442695
    %v6730 = vpow.pop %v6729
    %v6731 = vadd.f32 %v6730, 1.0
    %v6732 = vrcp.pop %v6731
    %v6733 = vmul.f32 1.0, %v6732
    %v6734 = vtanh.pop %v6727
    %v6735 = vmul.f32 %v6733, %v6468
    %6737 = vrot.lane.b32.xlu0 %v6734, 64
    %v6738 = vpop.permute.xlu0 %6737
    %v6740 = vmul.f32 %v6733, %v6738
    %6742 = vrot.lane.b32.xlu0 %v6740, 32
    %v6743 = vpop.permute.xlu0 %6742
    %v6745 = vadd.f32 %v6735, %v6743
    %v6746 = vtanh.pop %v6745
    %6748 = vrot.lane.b32.xlu0 %v6746, 64
    %v6749 = vpop.permute.xlu0 %6748
    %v6751 = vmul.f32 %v6733, %v6749
    %6752 = vmatprep.subr.mxu0 0.0
    %6753 = vmatpush1.msra.mxu0 %v3979
    %6754 = vmatprep.subr.mxu0 0.0
    %6755 = vmatpush1.msra.mxu0 %v3980
    %6756 = vmatprep.subr.mxu0 0.0
    %6757 = vmatpush1.msra.mxu0 %v3981
    %6758 = vmatprep.subr.mxu0 0.0
    %6759 = vmatpush1.msra.mxu0 %v3982
    %6760 = vmatprep.subr.mxu0 0.0
    %6761 = vmatpush1.msra.mxu0 0.0
    %6762 = vmatprep.subr.mxu0 0.0
    %6763 = vmatpush1.msra.mxu0 0.0
    %6764 = vmatprep.subr.mxu0 0.0
    %6765 = vmatpush1.msra.mxu0 0.0
    %6766 = vmatprep.subr.mxu0 0.0
    %6767 = vmatpush1.msra.mxu0 0.0
    %6768 = vmatprep.subr.mxu0 0.0
    %6769 = vmatpush1.msra.mxu0 0.0
    %6770 = vmatprep.subr.mxu0 0.0
    %6771 = vmatpush1.msra.mxu0 0.0
    %6772 = vmatprep.subr.mxu0 0.0
    %6773 = vmatpush1.msra.mxu0 0.0
    %6774 = vmatprep.subr.mxu0 0.0
    %6775 = vmatpush1.msra.mxu0 0.0
    %6776 = vmatprep.subr.mxu0 0.0
    %6777 = vmatpush1.msra.mxu0 0.0
    %6778 = vmatprep.subr.mxu0 0.0
    %6779 = vmatpush1.msra.mxu0 0.0
    %6780 = vmatprep.subr.mxu0 0.0
    %6781 = vmatpush1.msra.mxu0 0.0
    %6782 = vmatprep.subr.mxu0 0.0
    %6783 = vmatpush1.msra.mxu0 0.0
    %6784 = vmatprep.subr.mxu0 0.0
    %6785 = vmatpush1.msra.mxu0 0.0
    %6786 = vmatprep.subr.mxu0 0.0
    %6787 = vmatpush1.msra.mxu0 0.0
    %6788 = vmatprep.subr.mxu0 0.0
    %6789 = vmatpush1.msra.mxu0 0.0
    %6790 = vmatprep.subr.mxu0 0.0
    %6791 = vmatpush1.msra.mxu0 0.0
    %6792 = vmatprep.subr.mxu0 0.0
    %6793 = vmatpush1.msra.mxu0 0.0
    %6794 = vmatprep.subr.mxu0 0.0
    %6795 = vmatpush1.msra.mxu0 0.0
    %6796 = vmatprep.subr.mxu0 0.0
    %6797 = vmatpush1.msra.mxu0 0.0
    %6798 = vmatprep.subr.mxu0 0.0
    %6799 = vmatpush1.msra.mxu0 0.0
    %6800 = vmatprep.subr.mxu0 0.0
    %6801 = vmatpush1.msra.mxu0 0.0
    %6802 = vmatprep.subr.mxu0 0.0
    %6803 = vmatpush1.msra.mxu0 0.0
    %6804 = vmatprep.subr.mxu0 0.0
    %6805 = vmatpush1.msra.mxu0 0.0
    %6806 = vmatprep.subr.mxu0 0.0
    %6807 = vmatpush1.msra.mxu0 0.0
    %6808 = vmatprep.subr.mxu0 0.0
    %6809 = vmatpush1.msra.mxu0 0.0
    %6810 = vmatprep.subr.mxu0 0.0
    %6811 = vmatpush1.msra.mxu0 0.0
    %6812 = vmatprep.subr.mxu0 0.0
    %6813 = vmatpush1.msra.mxu0 0.0
    %6814 = vmatprep.subr.mxu0 0.0
    %6815 = vmatpush1.msra.mxu0 0.0
    %6816 = vmatprep.mubr.f32.mxu0 0.0
    %6817 = vmatmul.mubr.f32.gmra.mrb[0].mxu0 %v6580
    %v6818 = vpop.f32.mrb[0].mxu0
    %v6819 = vadd.f32 0.0, %v6818
    %v6820 = vpop.f32.mrb[0].mxu0
    %6821 = vdwg.mxu0
    %v6823 = vrot.slane %v6819, 4
    %v6825 = vadd.f32 %v3976, %v6823
    %v6826 = vxor.u32 %v6825, 2147483648
    %v6827 = vmul.f32 %v6826, 1.442695
    %v6828 = vpow.pop %v6827
    %v6829 = vadd.f32 %v6828, 1.0
    %v6830 = vrcp.pop %v6829
    %v6831 = vmul.f32 1.0, %v6830
    %v6832 = vtanh.pop %v6825
    %v6834 = vrot.slane %v6569, 6
    %v6836 = vmul.f32 %v6831, %v6834
    %6838 = vrot.lane.b32.xlu0 %v6832, 64
    %v6839 = vpop.permute.xlu0 %6838
    %v6841 = vmul.f32 %v6831, %v6839
    %6843 = vrot.lane.b32.xlu0 %v6841, 32
    %v6844 = vpop.permute.xlu0 %6843
    %v6846 = vadd.f32 %v6836, %v6844
    %v6847 = vtanh.pop %v6846
    %6849 = vrot.lane.b32.xlu0 %v6847, 64
    %v6850 = vpop.permute.xlu0 %6849
    %v6852 = vmul.f32 %v6831, %v6850
    %v6854 = vrot.slane %v6852, 4
    %6855 = vrot.lane.b32.xlu0 %v6854, 32
    %v6856 = vpop.permute.xlu0 %6855
    %v6857 = vsel %vm442, %v6856, 0
    %6859 = vmatprep.subr.mxu0 0.0
    %6860 = vmatpush1.msra.mxu0 %v3983
    %6861 = vmatprep.subr.mxu0 0.0
    %6862 = vmatpush1.msra.mxu0 %v3984
    %6863 = vmatprep.subr.mxu0 0.0
    %6864 = vmatpush1.msra.mxu0 %v3985
    %6865 = vmatprep.subr.mxu0 0.0
    %6866 = vmatpush1.msra.mxu0 %v3986
    %6867 = vmatprep.subr.mxu0 0.0
    %6868 = vmatpush1.msra.mxu0 0.0
    %6869 = vmatprep.subr.mxu0 0.0
    %6870 = vmatpush1.msra.mxu0 0.0
    %6871 = vmatprep.subr.mxu0 0.0
    %6872 = vmatpush1.msra.mxu0 0.0
    %6873 = vmatprep.subr.mxu0 0.0
    %6874 = vmatpush1.msra.mxu0 0.0
    %6875 = vmatprep.subr.mxu0 0.0
    %6876 = vmatpush1.msra.mxu0 0.0
    %6877 = vmatprep.subr.mxu0 0.0
    %6878 = vmatpush1.msra.mxu0 0.0
    %6879 = vmatprep.subr.mxu0 0.0
    %6880 = vmatpush1.msra.mxu0 0.0
    %6881 = vmatprep.subr.mxu0 0.0
    %6882 = vmatpush1.msra.mxu0 0.0
    %6883 = vmatprep.subr.mxu0 0.0
    %6884 = vmatpush1.msra.mxu0 0.0
    %6885 = vmatprep.subr.mxu0 0.0
    %6886 = vmatpush1.msra.mxu0 0.0
    %6887 = vmatprep.subr.mxu0 0.0
    %6888 = vmatpush1.msra.mxu0 0.0
    %6889 = vmatprep.subr.mxu0 0.0
    %6890 = vmatpush1.msra.mxu0 0.0
    %6891 = vmatprep.subr.mxu0 0.0
    %6892 = vmatpush1.msra.mxu0 0.0
    %6893 = vmatprep.subr.mxu0 0.0
    %6894 = vmatpush1.msra.mxu0 0.0
    %6895 = vmatprep.subr.mxu0 0.0
    %6896 = vmatpush1.msra.mxu0 0.0
    %6897 = vmatprep.subr.mxu0 0.0
    %6898 = vmatpush1.msra.mxu0 0.0
    %6899 = vmatprep.subr.mxu0 0.0
    %6900 = vmatpush1.msra.mxu0 0.0
    %6901 = vmatprep.subr.mxu0 0.0
    %6902 = vmatpush1.msra.mxu0 0.0
    %6903 = vmatprep.subr.mxu0 0.0
    %6904 = vmatpush1.msra.mxu0 0.0
    %6905 = vmatprep.subr.mxu0 0.0
    %6906 = vmatpush1.msra.mxu0 0.0
    %6907 = vmatprep.subr.mxu0 0.0
    %6908 = vmatpush1.msra.mxu0 0.0
    %6909 = vmatprep.subr.mxu0 0.0
    %6910 = vmatpush1.msra.mxu0 0.0
    %6911 = vmatprep.subr.mxu0 0.0
    %6912 = vmatpush1.msra.mxu0 0.0
    %6913 = vmatprep.subr.mxu0 0.0
    %6914 = vmatpush1.msra.mxu0 0.0
    %6915 = vmatprep.subr.mxu0 0.0
    %6916 = vmatpush1.msra.mxu0 0.0
    %6917 = vmatprep.subr.mxu0 0.0
    %6918 = vmatpush1.msra.mxu0 0.0
    %6919 = vmatprep.subr.mxu0 0.0
    %6920 = vmatpush1.msra.mxu0 0.0
    %6921 = vmatprep.subr.mxu0 0.0
    %6922 = vmatpush1.msra.mxu0 0.0
    %6923 = vmatprep.mubr.f32.mxu0 0.0
    %6924 = vmatmul.mubr.f32.gmra.mrb[0].mxu0 %v6857
    %v6925 = vpop.f32.mrb[0].mxu0
    %v6926 = vadd.f32 %v3996, %v6925
    %v6927 = vpop.f32.mrb[0].mxu0
    %6928 = vdwg.mxu0
    %6930 = vrot.lane.b32.xlu0 %v6751, 32
    %v6931 = vpop.permute.xlu0 %6930
    %v6932 = vsel %vm442, %v6931, 0
    %6934 = vmatprep.subr.mxu0 0.0
    %6935 = vmatpush1.msra.mxu0 %v3987
    %6936 = vmatprep.subr.mxu0 0.0
    %6937 = vmatpush1.msra.mxu0 %v3988
    %6938 = vmatprep.subr.mxu0 0.0
    %6939 = vmatpush1.msra.mxu0 %v3989
    %6940 = vmatprep.subr.mxu0 0.0
    %6941 = vmatpush1.msra.mxu0 %v3990
    %6942 = vmatprep.subr.mxu0 0.0
    %6943 = vmatpush1.msra.mxu0 0.0
    %6944 = vmatprep.subr.mxu0 0.0
    %6945 = vmatpush1.msra.mxu0 0.0
    %6946 = vmatprep.subr.mxu0 0.0
    %6947 = vmatpush1.msra.mxu0 0.0
    %6948 = vmatprep.subr.mxu0 0.0
    %6949 = vmatpush1.msra.mxu0 0.0
    %6950 = vmatprep.subr.mxu0 0.0
    %6951 = vmatpush1.msra.mxu0 0.0
    %6952 = vmatprep.subr.mxu0 0.0
    %6953 = vmatpush1.msra.mxu0 0.0
    %6954 = vmatprep.subr.mxu0 0.0
    %6955 = vmatpush1.msra.mxu0 0.0
    %6956 = vmatprep.subr.mxu0 0.0
    %6957 = vmatpush1.msra.mxu0 0.0
    %6958 = vmatprep.subr.mxu0 0.0
    %6959 = vmatpush1.msra.mxu0 0.0
    %6960 = vmatprep.subr.mxu0 0.0
    %6961 = vmatpush1.msra.mxu0 0.0
    %6962 = vmatprep.subr.mxu0 0.0
    %6963 = vmatpush1.msra.mxu0 0.0
    %6964 = vmatprep.subr.mxu0 0.0
    %6965 = vmatpush1.msra.mxu0 0.0
    %6966 = vmatprep.subr.mxu0 0.0
    %6967 = vmatpush1.msra.mxu0 0.0
    %6968 = vmatprep.subr.mxu0 0.0
    %6969 = vmatpush1.msra.mxu0 0.0
    %6970 = vmatprep.subr.mxu0 0.0
    %6971 = vmatpush1.msra.mxu0 0.0
    %6972 = vmatprep.subr.mxu0 0.0
    %6973 = vmatpush1.msra.mxu0 0.0
    %6974 = vmatprep.subr.mxu0 0.0
    %6975 = vmatpush1.msra.mxu0 0.0
    %6976 = vmatprep.subr.mxu0 0.0
    %6977 = vmatpush1.msra.mxu0 0.0
    %6978 = vmatprep.subr.mxu0 0.0
    %6979 = vmatpush1.msra.mxu0 0.0
    %6980 = vmatprep.subr.mxu0 0.0
    %6981 = vmatpush1.msra.mxu0 0.0
    %6982 = vmatprep.subr.mxu0 0.0
    %6983 = vmatpush1.msra.mxu0 0.0
    %6984 = vmatprep.subr.mxu0 0.0
    %6985 = vmatpush1.msra.mxu0 0.0
    %6986 = vmatprep.subr.mxu0 0.0
    %6987 = vmatpush1.msra.mxu0 0.0
    %6988 = vmatprep.subr.mxu0 0.0
    %6989 = vmatpush1.msra.mxu0 0.0
    %6990 = vmatprep.subr.mxu0 0.0
    %6991 = vmatpush1.msra.mxu0 0.0
    %6992 = vmatprep.subr.mxu0 0.0
    %6993 = vmatpush1.msra.mxu0 0.0
    %6994 = vmatprep.subr.mxu0 0.0
    %6995 = vmatpush1.msra.mxu0 0.0
    %6996 = vmatprep.subr.mxu0 0.0
    %6997 = vmatpush1.msra.mxu0 0.0
    %6998 = vmatprep.mubr.f32.mxu0 0.0
    %6999 = vmatmul.mubr.f32.gmra.mrb[0].mxu0 %v6932
    %v7000 = vpop.f32.mrb[0].mxu0
    %v7001 = vadd.f32 0.0, %v7000
    %v7002 = vpop.f32.mrb[0].mxu0
    %7003 = vdwg.mxu0
    %v7004 = vadd.f32 %v6926, %v7001
    %v7005 = vxor.u32 %v7004, 2147483648
    %v7006 = vmul.f32 %v7005, 1.442695
    %v7007 = vpow.pop %v7006
    %v7008 = vadd.f32 %v7007, 1.0
    %v7009 = vrcp.pop %v7008
    %v7010 = vmul.f32 1.0, %v7009
    %v7011 = vtanh.pop %v7004
    %v7012 = vmul.f32 %v7010, %v6745
    %7014 = vrot.lane.b32.xlu0 %v7011, 64
    %v7015 = vpop.permute.xlu0 %7014
    %v7017 = vmul.f32 %v7010, %v7015
    %7019 = vrot.lane.b32.xlu0 %v7017, 32
    %v7020 = vpop.permute.xlu0 %7019
    %v7022 = vadd.f32 %v7012, %v7020
    %v7023 = vtanh.pop %v7022
    %7025 = vrot.lane.b32.xlu0 %v7023, 64
    %v7026 = vpop.permute.xlu0 %7025
    %v7028 = vmul.f32 %v7010, %v7026
    %7029 = vmatprep.subr.mxu0 0.0
    %7030 = vmatpush1.msra.mxu0 %v3979
    %7031 = vmatprep.subr.mxu0 0.0
    %7032 = vmatpush1.msra.mxu0 %v3980
    %7033 = vmatprep.subr.mxu0 0.0
    %7034 = vmatpush1.msra.mxu0 %v3981
    %7035 = vmatprep.subr.mxu0 0.0
    %7036 = vmatpush1.msra.mxu0 %v3982
    %7037 = vmatprep.subr.mxu0 0.0
    %7038 = vmatpush1.msra.mxu0 0.0
    %7039 = vmatprep.subr.mxu0 0.0
    %7040 = vmatpush1.msra.mxu0 0.0
    %7041 = vmatprep.subr.mxu0 0.0
    %7042 = vmatpush1.msra.mxu0 0.0
    %7043 = vmatprep.subr.mxu0 0.0
    %7044 = vmatpush1.msra.mxu0 0.0
    %7045 = vmatprep.subr.mxu0 0.0
    %7046 = vmatpush1.msra.mxu0 0.0
    %7047 = vmatprep.subr.mxu0 0.0
    %7048 = vmatpush1.msra.mxu0 0.0
    %7049 = vmatprep.subr.mxu0 0.0
    %7050 = vmatpush1.msra.mxu0 0.0
    %7051 = vmatprep.subr.mxu0 0.0
    %7052 = vmatpush1.msra.mxu0 0.0
    %7053 = vmatprep.subr.mxu0 0.0
    %7054 = vmatpush1.msra.mxu0 0.0
    %7055 = vmatprep.subr.mxu0 0.0
    %7056 = vmatpush1.msra.mxu0 0.0
    %7057 = vmatprep.subr.mxu0 0.0
    %7058 = vmatpush1.msra.mxu0 0.0
    %7059 = vmatprep.subr.mxu0 0.0
    %7060 = vmatpush1.msra.mxu0 0.0
    %7061 = vmatprep.subr.mxu0 0.0
    %7062 = vmatpush1.msra.mxu0 0.0
    %7063 = vmatprep.subr.mxu0 0.0
    %7064 = vmatpush1.msra.mxu0 0.0
    %7065 = vmatprep.subr.mxu0 0.0
    %7066 = vmatpush1.msra.mxu0 0.0
    %7067 = vmatprep.subr.mxu0 0.0
    %7068 = vmatpush1.msra.mxu0 0.0
    %7069 = vmatprep.subr.mxu0 0.0
    %7070 = vmatpush1.msra.mxu0 0.0
    %7071 = vmatprep.subr.mxu0 0.0
    %7072 = vmatpush1.msra.mxu0 0.0
    %7073 = vmatprep.subr.mxu0 0.0
    %7074 = vmatpush1.msra.mxu0 0.0
    %7075 = vmatprep.subr.mxu0 0.0
    %7076 = vmatpush1.msra.mxu0 0.0
    %7077 = vmatprep.subr.mxu0 0.0
    %7078 = vmatpush1.msra.mxu0 0.0
    %7079 = vmatprep.subr.mxu0 0.0
    %7080 = vmatpush1.msra.mxu0 0.0
    %7081 = vmatprep.subr.mxu0 0.0
    %7082 = vmatpush1.msra.mxu0 0.0
    %7083 = vmatprep.subr.mxu0 0.0
    %7084 = vmatpush1.msra.mxu0 0.0
    %7085 = vmatprep.subr.mxu0 0.0
    %7086 = vmatpush1.msra.mxu0 0.0
    %7087 = vmatprep.subr.mxu0 0.0
    %7088 = vmatpush1.msra.mxu0 0.0
    %7089 = vmatprep.subr.mxu0 0.0
    %7090 = vmatpush1.msra.mxu0 0.0
    %7091 = vmatprep.subr.mxu0 0.0
    %7092 = vmatpush1.msra.mxu0 0.0
    %7093 = vmatprep.mubr.f32.mxu0 0.0
    %7094 = vmatmul.mubr.f32.gmra.mrb[0].mxu0 %v6857
    %v7095 = vpop.f32.mrb[0].mxu0
    %v7096 = vadd.f32 0.0, %v7095
    %v7097 = vpop.f32.mrb[0].mxu0
    %7098 = vdwg.mxu0
    %v7100 = vrot.slane %v7096, 2
    %v7102 = vadd.f32 %v3976, %v7100
    %v7103 = vxor.u32 %v7102, 2147483648
    %v7104 = vmul.f32 %v7103, 1.442695
    %v7105 = vpow.pop %v7104
    %v7106 = vadd.f32 %v7105, 1.0
    %v7107 = vrcp.pop %v7106
    %v7108 = vmul.f32 1.0, %v7107
    %v7109 = vtanh.pop %v7102
    %v7111 = vrot.slane %v6846, 6
    %v7113 = vmul.f32 %v7108, %v7111
    %7115 = vrot.lane.b32.xlu0 %v7109, 64
    %v7116 = vpop.permute.xlu0 %7115
    %v7118 = vmul.f32 %v7108, %v7116
    %7120 = vrot.lane.b32.xlu0 %v7118, 32
    %v7121 = vpop.permute.xlu0 %7120
    %v7123 = vadd.f32 %v7113, %v7121
    %v7124 = vtanh.pop %v7123
    %7126 = vrot.lane.b32.xlu0 %v7124, 64
    %v7127 = vpop.permute.xlu0 %7126
    %v7129 = vmul.f32 %v7108, %v7127
    %v7131 = vrot.slane %v7129, 6
    %7132 = vrot.lane.b32.xlu0 %v7131, 32
    %v7133 = vpop.permute.xlu0 %7132
    %v7134 = vsel %vm442, %v7133, 0
    %7136 = vmatprep.subr.mxu0 0.0
    %7137 = vmatpush1.msra.mxu0 %v3983
    %7138 = vmatprep.subr.mxu0 0.0
    %7139 = vmatpush1.msra.mxu0 %v3984
    %7140 = vmatprep.subr.mxu0 0.0
    %7141 = vmatpush1.msra.mxu0 %v3985
    %7142 = vmatprep.subr.mxu0 0.0
    %7143 = vmatpush1.msra.mxu0 %v3986
    %7144 = vmatprep.subr.mxu0 0.0
    %7145 = vmatpush1.msra.mxu0 0.0
    %7146 = vmatprep.subr.mxu0 0.0
    %7147 = vmatpush1.msra.mxu0 0.0
    %7148 = vmatprep.subr.mxu0 0.0
    %7149 = vmatpush1.msra.mxu0 0.0
    %7150 = vmatprep.subr.mxu0 0.0
    %7151 = vmatpush1.msra.mxu0 0.0
    %7152 = vmatprep.subr.mxu0 0.0
    %7153 = vmatpush1.msra.mxu0 0.0
    %7154 = vmatprep.subr.mxu0 0.0
    %7155 = vmatpush1.msra.mxu0 0.0
    %7156 = vmatprep.subr.mxu0 0.0
    %7157 = vmatpush1.msra.mxu0 0.0
    %7158 = vmatprep.subr.mxu0 0.0
    %7159 = vmatpush1.msra.mxu0 0.0
    %7160 = vmatprep.subr.mxu0 0.0
    %7161 = vmatpush1.msra.mxu0 0.0
    %7162 = vmatprep.subr.mxu0 0.0
    %7163 = vmatpush1.msra.mxu0 0.0
    %7164 = vmatprep.subr.mxu0 0.0
    %7165 = vmatpush1.msra.mxu0 0.0
    %7166 = vmatprep.subr.mxu0 0.0
    %7167 = vmatpush1.msra.mxu0 0.0
    %7168 = vmatprep.subr.mxu0 0.0
    %7169 = vmatpush1.msra.mxu0 0.0
    %7170 = vmatprep.subr.mxu0 0.0
    %7171 = vmatpush1.msra.mxu0 0.0
    %7172 = vmatprep.subr.mxu0 0.0
    %7173 = vmatpush1.msra.mxu0 0.0
    %7174 = vmatprep.subr.mxu0 0.0
    %7175 = vmatpush1.msra.mxu0 0.0
    %7176 = vmatprep.subr.mxu0 0.0
    %7177 = vmatpush1.msra.mxu0 0.0
    %7178 = vmatprep.subr.mxu0 0.0
    %7179 = vmatpush1.msra.mxu0 0.0
    %7180 = vmatprep.subr.mxu0 0.0
    %7181 = vmatpush1.msra.mxu0 0.0
    %7182 = vmatprep.subr.mxu0 0.0
    %7183 = vmatpush1.msra.mxu0 0.0
    %7184 = vmatprep.subr.mxu0 0.0
    %7185 = vmatpush1.msra.mxu0 0.0
    %7186 = vmatprep.subr.mxu0 0.0
    %7187 = vmatpush1.msra.mxu0 0.0
    %7188 = vmatprep.subr.mxu0 0.0
    %7189 = vmatpush1.msra.mxu0 0.0
    %7190 = vmatprep.subr.mxu0 0.0
    %7191 = vmatpush1.msra.mxu0 0.0
    %7192 = vmatprep.subr.mxu0 0.0
    %7193 = vmatpush1.msra.mxu0 0.0
    %7194 = vmatprep.subr.mxu0 0.0
    %7195 = vmatpush1.msra.mxu0 0.0
    %7196 = vmatprep.subr.mxu0 0.0
    %7197 = vmatpush1.msra.mxu0 0.0
    %7198 = vmatprep.subr.mxu0 0.0
    %7199 = vmatpush1.msra.mxu0 0.0
    %7200 = vmatprep.mubr.f32.mxu0 0.0
    %7201 = vmatmul.mubr.f32.gmra.mrb[0].mxu0 %v7134
    %v7202 = vpop.f32.mrb[0].mxu0
    %v7203 = vadd.f32 %v3996, %v7202
    %v7204 = vpop.f32.mrb[0].mxu0
    %7205 = vdwg.mxu0
    %7207 = vrot.lane.b32.xlu0 %v7028, 32
    %v7208 = vpop.permute.xlu0 %7207
    %v7209 = vsel %vm442, %v7208, 0
    %7211 = vmatprep.subr.mxu0 0.0
    %7212 = vmatpush1.msra.mxu0 %v3987
    %7213 = vmatprep.subr.mxu0 0.0
    %7214 = vmatpush1.msra.mxu0 %v3988
    %7215 = vmatprep.subr.mxu0 0.0
    %7216 = vmatpush1.msra.mxu0 %v3989
    %7217 = vmatprep.subr.mxu0 0.0
    %7218 = vmatpush1.msra.mxu0 %v3990
    %7219 = vmatprep.subr.mxu0 0.0
    %7220 = vmatpush1.msra.mxu0 0.0
    %7221 = vmatprep.subr.mxu0 0.0
    %7222 = vmatpush1.msra.mxu0 0.0
    %7223 = vmatprep.subr.mxu0 0.0
    %7224 = vmatpush1.msra.mxu0 0.0
    %7225 = vmatprep.subr.mxu0 0.0
    %7226 = vmatpush1.msra.mxu0 0.0
    %7227 = vmatprep.subr.mxu0 0.0
    %7228 = vmatpush1.msra.mxu0 0.0
    %7229 = vmatprep.subr.mxu0 0.0
    %7230 = vmatpush1.msra.mxu0 0.0
    %7231 = vmatprep.subr.mxu0 0.0
    %7232 = vmatpush1.msra.mxu0 0.0
    %7233 = vmatprep.subr.mxu0 0.0
    %7234 = vmatpush1.msra.mxu0 0.0
    %7235 = vmatprep.subr.mxu0 0.0
    %7236 = vmatpush1.msra.mxu0 0.0
    %7237 = vmatprep.subr.mxu0 0.0
    %7238 = vmatpush1.msra.mxu0 0.0
    %7239 = vmatprep.subr.mxu0 0.0
    %7240 = vmatpush1.msra.mxu0 0.0
    %7241 = vmatprep.subr.mxu0 0.0
    %7242 = vmatpush1.msra.mxu0 0.0
    %7243 = vmatprep.subr.mxu0 0.0
    %7244 = vmatpush1.msra.mxu0 0.0
    %7245 = vmatprep.subr.mxu0 0.0
    %7246 = vmatpush1.msra.mxu0 0.0
    %7247 = vmatprep.subr.mxu0 0.0
    %7248 = vmatpush1.msra.mxu0 0.0
    %7249 = vmatprep.subr.mxu0 0.0
    %7250 = vmatpush1.msra.mxu0 0.0
    %7251 = vmatprep.subr.mxu0 0.0
    %7252 = vmatpush1.msra.mxu0 0.0
    %7253 = vmatprep.subr.mxu0 0.0
    %7254 = vmatpush1.msra.mxu0 0.0
    %7255 = vmatprep.subr.mxu0 0.0
    %7256 = vmatpush1.msra.mxu0 0.0
    %7257 = vmatprep.subr.mxu0 0.0
    %7258 = vmatpush1.msra.mxu0 0.0
    %7259 = vmatprep.subr.mxu0 0.0
    %7260 = vmatpush1.msra.mxu0 0.0
    %7261 = vmatprep.subr.mxu0 0.0
    %7262 = vmatpush1.msra.mxu0 0.0
    %7263 = vmatprep.subr.mxu0 0.0
    %7264 = vmatpush1.msra.mxu0 0.0
    %7265 = vmatprep.subr.mxu0 0.0
    %7266 = vmatpush1.msra.mxu0 0.0
    %7267 = vmatprep.subr.mxu0 0.0
    %7268 = vmatpush1.msra.mxu0 0.0
    %7269 = vmatprep.subr.mxu0 0.0
    %7270 = vmatpush1.msra.mxu0 0.0
    %7271 = vmatprep.subr.mxu0 0.0
    %7272 = vmatpush1.msra.mxu0 0.0
    %7273 = vmatprep.subr.mxu0 0.0
    %7274 = vmatpush1.msra.mxu0 0.0
    %7275 = vmatprep.mubr.f32.mxu0 0.0
    %7276 = vmatmul.mubr.f32.gmra.mrb[0].mxu0 %v7209
    %v7277 = vpop.f32.mrb[0].mxu0
    %v7278 = vadd.f32 0.0, %v7277
    %v7279 = vpop.f32.mrb[0].mxu0
    %7280 = vdwg.mxu0
    %v7281 = vadd.f32 %v7203, %v7278
    %v7282 = vxor.u32 %v7281, 2147483648
    %v7283 = vmul.f32 %v7282, 1.442695
    %v7284 = vpow.pop %v7283
    %v7285 = vadd.f32 %v7284, 1.0
    %v7286 = vrcp.pop %v7285
    %v7287 = vmul.f32 1.0, %v7286
    %v7288 = vtanh.pop %v7281
    %v7289 = vmul.f32 %v7287, %v7022
    %7291 = vrot.lane.b32.xlu0 %v7288, 64
    %v7292 = vpop.permute.xlu0 %7291
    %v7294 = vmul.f32 %v7287, %v7292
    %7296 = vrot.lane.b32.xlu0 %v7294, 32
    %v7297 = vpop.permute.xlu0 %7296
    %v7299 = vadd.f32 %v7289, %v7297
    %v7300 = vtanh.pop %v7299
    %7302 = vrot.lane.b32.xlu0 %v7300, 64
    %v7303 = vpop.permute.xlu0 %7302
    %v7305 = vmul.f32 %v7287, %v7303
    %v7306 = vrot.slane %v4543, 6
    %v7308 = vrot.slane %v4820, 4
    %v7310 = vrot.slane %v5097, 2
    %v7312 = vrot.slane %v5647, 6
    %v7314 = vrot.slane %v5924, 4
    %v7316 = vrot.slane %v6201, 2
    %v7318 = vrot.slane %v6751, 6
    %v7320 = vrot.slane %v7028, 4
    %v7323 = vrot.slane %v7305, 2
    %v7325 = vsel %vm3758, %v4266, %v7306
    %v7326 = vsel %vm3760, %v7325, %v7308
    %v7327 = vsel %vm3762, %v7326, %v7310
    %v7328 = vsel %vm3758, %v5370, %v7312
    %v7329 = vsel %vm3760, %v7328, %v7314
    %v7330 = vsel %vm3762, %v7329, %v7316
    %v7331 = vsel %vm3758, %v6474, %v7318
    %v7332 = vsel %vm3760, %v7331, %v7320
    %v7333 = vsel %vm3762, %v7332, %v7323
    %v7334 = vld [vmem:[%s17] sm:$0xff]
    %v7335 = vld [vmem:[%s17 + $0x8] sm:$0xff]
    %v7336 = vld [vmem:[%s17 + $0x10] sm:$0xff]
    %v7337 = vld [vmem:[%s17 + $0x18] sm:$0xff]
    %v7338 = vld [vmem:[%s18] sm:$0x1]
    %v7340 = vlaneseq
    %v7341 = vshrl.u32 %v7340, 7
    %v7342 = vsub.s32 0, %v7341
    %v7343 = vrot.slane %v7338, %v7342
    %7348 = vrot.lane.b32.xlu0 %v7327, 32
    %v7349 = vpop.permute.xlu0 %7348
    %7350 = vrot.lane.b32.xlu0 %v7330, 32
    %v7351 = vpop.permute.xlu0 %7350
    %7352 = vrot.lane.b32.xlu0 %v7333, 32
    %v7353 = vpop.permute.xlu0 %7352
    %v7354 = vsel %vm442, %v7349, 0
    %v7356 = vsel %vm442, %v7351, 0
    %v7358 = vsel %vm442, %v7353, 0
    %7360 = vmatprep.subr.mxu0 0.0
    %7361 = vmatpush1.msra.mxu0 %v7334
    %7362 = vmatprep.subr.mxu0 0.0
    %7363 = vmatpush1.msra.mxu0 %v7335
    %7364 = vmatprep.subr.mxu0 0.0
    %7365 = vmatpush1.msra.mxu0 %v7336
    %7366 = vmatprep.subr.mxu0 0.0
    %7367 = vmatpush1.msra.mxu0 %v7337
    %7368 = vmatprep.subr.mxu0 0.0
    %7369 = vmatpush1.msra.mxu0 0.0
    %7370 = vmatprep.subr.mxu0 0.0
    %7371 = vmatpush1.msra.mxu0 0.0
    %7372 = vmatprep.subr.mxu0 0.0
    %7373 = vmatpush1.msra.mxu0 0.0
    %7374 = vmatprep.subr.mxu0 0.0
    %7375 = vmatpush1.msra.mxu0 0.0
    %7376 = vmatprep.subr.mxu0 0.0
    %7377 = vmatpush1.msra.mxu0 0.0
    %7378 = vmatprep.subr.mxu0 0.0
    %7379 = vmatpush1.msra.mxu0 0.0
    %7380 = vmatprep.subr.mxu0 0.0
    %7381 = vmatpush1.msra.mxu0 0.0
    %7382 = vmatprep.subr.mxu0 0.0
    %7383 = vmatpush1.msra.mxu0 0.0
    %7384 = vmatprep.subr.mxu0 0.0
    %7385 = vmatpush1.msra.mxu0 0.0
    %7386 = vmatprep.subr.mxu0 0.0
    %7387 = vmatpush1.msra.mxu0 0.0
    %7388 = vmatprep.subr.mxu0 0.0
    %7389 = vmatpush1.msra.mxu0 0.0
    %7390 = vmatprep.subr.mxu0 0.0
    %7391 = vmatpush1.msra.mxu0 0.0
    %7392 = vmatprep.subr.mxu0 0.0
    %7393 = vmatpush1.msra.mxu0 0.0
    %7394 = vmatprep.subr.mxu0 0.0
    %7395 = vmatpush1.msra.mxu0 0.0
    %7396 = vmatprep.subr.mxu0 0.0
    %7397 = vmatpush1.msra.mxu0 0.0
    %7398 = vmatprep.subr.mxu0 0.0
    %7399 = vmatpush1.msra.mxu0 0.0
    %7400 = vmatprep.subr.mxu0 0.0
    %7401 = vmatpush1.msra.mxu0 0.0
    %7402 = vmatprep.subr.mxu0 0.0
    %7403 = vmatpush1.msra.mxu0 0.0
    %7404 = vmatprep.subr.mxu0 0.0
    %7405 = vmatpush1.msra.mxu0 0.0
    %7406 = vmatprep.subr.mxu0 0.0
    %7407 = vmatpush1.msra.mxu0 0.0
    %7408 = vmatprep.subr.mxu0 0.0
    %7409 = vmatpush1.msra.mxu0 0.0
    %7410 = vmatprep.subr.mxu0 0.0
    %7411 = vmatpush1.msra.mxu0 0.0
    %7412 = vmatprep.subr.mxu0 0.0
    %7413 = vmatpush1.msra.mxu0 0.0
    %7414 = vmatprep.subr.mxu0 0.0
    %7415 = vmatpush1.msra.mxu0 0.0
    %7416 = vmatprep.subr.mxu0 0.0
    %7417 = vmatpush1.msra.mxu0 0.0
    %7418 = vmatprep.subr.mxu0 0.0
    %7419 = vmatpush1.msra.mxu0 0.0
    %7420 = vmatprep.subr.mxu0 0.0
    %7421 = vmatpush1.msra.mxu0 0.0
    %7422 = vmatprep.subr.mxu0 0.0
    %7423 = vmatpush1.msra.mxu0 0.0
    %7424 = vmatprep.mubr.f32.mxu0 0.0
    %7425 = vmatmul.mubr.f32.gmra.mrb[0].mxu0 %v7354
    %v7426 = vpop.f32.mrb[0].mxu0
    %v7427 = vadd.f32 %v7343, %v7426
    %v7428 = vpop.f32.mrb[0].mxu0
    %7429 = vmatprep.mubr.f32.mxu0 0.0
    %7430 = vmatmul.mubr.f32.gmra.mrb[0].mxu0 %v7356
    %v7431 = vpop.f32.mrb[0].mxu0
    %v7432 = vadd.f32 %v7343, %v7431
    %v7433 = vpop.f32.mrb[0].mxu0
    %7434 = vmatprep.mubr.f32.mxu0 0.0
    %7435 = vmatmul.mubr.f32.gmra.mrb[0].mxu0 %v7358
    %v7436 = vpop.f32.mrb[0].mxu0
    %v7437 = vadd.f32 %v7343, %v7436
    %v7438 = vpop.f32.mrb[0].mxu0
    %7439 = vdwg.mxu0
    %v7440 = vmax.f32 %v7427, 0.0
    %v7441 = vmax.f32 %v7432, 0.0
    %v7442 = vmax.f32 %v7437, 0.0
    %v7443 = vld [vmem:[%s19] sm:$0xff]
    %v7444 = vld [vmem:[%s19 + $0x8] sm:$0xff]
    %v7445 = vld [vmem:[%s19 + $0x10] sm:$0xff]
    %v7446 = vld [vmem:[%s19 + $0x18] sm:$0xff]
    %v7447 = vld [vmem:[%s20] sm:$0x1]
    %v7449 = vlaneseq
    %v7450 = vshrl.u32 %v7449, 7
    %v7451 = vsub.s32 0, %v7450
    %v7452 = vrot.slane %v7447, %v7451
    %v7455 = vsel %vm442, %v7440, 0
    %v7458 = vsel %vm442, %v7441, 0
    %v7461 = vsel %vm442, %v7442, 0
    %7463 = vmatprep.subr.mxu0 0.0
    %7464 = vmatpush1.msra.mxu0 %v7443
    %7465 = vmatprep.subr.mxu0 0.0
    %7466 = vmatpush1.msra.mxu0 %v7444
    %7467 = vmatprep.subr.mxu0 0.0
    %7468 = vmatpush1.msra.mxu0 %v7445
    %7469 = vmatprep.subr.mxu0 0.0
    %7470 = vmatpush1.msra.mxu0 %v7446
    %7471 = vmatprep.subr.mxu0 0.0
    %7472 = vmatpush1.msra.mxu0 0.0
    %7473 = vmatprep.subr.mxu0 0.0
    %7474 = vmatpush1.msra.mxu0 0.0
    %7475 = vmatprep.subr.mxu0 0.0
    %7476 = vmatpush1.msra.mxu0 0.0
    %7477 = vmatprep.subr.mxu0 0.0
    %7478 = vmatpush1.msra.mxu0 0.0
    %7479 = vmatprep.subr.mxu0 0.0
    %7480 = vmatpush1.msra.mxu0 0.0
    %7481 = vmatprep.subr.mxu0 0.0
    %7482 = vmatpush1.msra.mxu0 0.0
    %7483 = vmatprep.subr.mxu0 0.0
    %7484 = vmatpush1.msra.mxu0 0.0
    %7485 = vmatprep.subr.mxu0 0.0
    %7486 = vmatpush1.msra.mxu0 0.0
    %7487 = vmatprep.subr.mxu0 0.0
    %7488 = vmatpush1.msra.mxu0 0.0
    %7489 = vmatprep.subr.mxu0 0.0
    %7490 = vmatpush1.msra.mxu0 0.0
    %7491 = vmatprep.subr.mxu0 0.0
    %7492 = vmatpush1.msra.mxu0 0.0
    %7493 = vmatprep.subr.mxu0 0.0
    %7494 = vmatpush1.msra.mxu0 0.0
    %7495 = vmatprep.subr.mxu0 0.0
    %7496 = vmatpush1.msra.mxu0 0.0
    %7497 = vmatprep.subr.mxu0 0.0
    %7498 = vmatpush1.msra.mxu0 0.0
    %7499 = vmatprep.subr.mxu0 0.0
    %7500 = vmatpush1.msra.mxu0 0.0
    %7501 = vmatprep.subr.mxu0 0.0
    %7502 = vmatpush1.msra.mxu0 0.0
    %7503 = vmatprep.subr.mxu0 0.0
    %7504 = vmatpush1.msra.mxu0 0.0
    %7505 = vmatprep.subr.mxu0 0.0
    %7506 = vmatpush1.msra.mxu0 0.0
    %7507 = vmatprep.subr.mxu0 0.0
    %7508 = vmatpush1.msra.mxu0 0.0
    %7509 = vmatprep.subr.mxu0 0.0
    %7510 = vmatpush1.msra.mxu0 0.0
    %7511 = vmatprep.subr.mxu0 0.0
    %7512 = vmatpush1.msra.mxu0 0.0
    %7513 = vmatprep.subr.mxu0 0.0
    %7514 = vmatpush1.msra.mxu0 0.0
    %7515 = vmatprep.subr.mxu0 0.0
    %7516 = vmatpush1.msra.mxu0 0.0
    %7517 = vmatprep.subr.mxu0 0.0
    %7518 = vmatpush1.msra.mxu0 0.0
    %7519 = vmatprep.subr.mxu0 0.0
    %7520 = vmatpush1.msra.mxu0 0.0
    %7521 = vmatprep.subr.mxu0 0.0
    %7522 = vmatpush1.msra.mxu0 0.0
    %7523 = vmatprep.subr.mxu0 0.0
    %7524 = vmatpush1.msra.mxu0 0.0
    %7525 = vmatprep.subr.mxu0 0.0
    %7526 = vmatpush1.msra.mxu0 0.0
    %7527 = vmatprep.mubr.f32.mxu0 0.0
    %7528 = vmatmul.mubr.f32.gmra.mrb[0].mxu0 %v7455
    %v7529 = vpop.f32.mrb[0].mxu0
    %v7530 = vadd.f32 %v7452, %v7529
    %v7531 = vpop.f32.mrb[0].mxu0
    %7532 = vmatprep.mubr.f32.mxu0 0.0
    %7533 = vmatmul.mubr.f32.gmra.mrb[0].mxu0 %v7458
    %v7534 = vpop.f32.mrb[0].mxu0
    %v7535 = vadd.f32 %v7452, %v7534
    %v7536 = vpop.f32.mrb[0].mxu0
    %7537 = vmatprep.mubr.f32.mxu0 0.0
    %7538 = vmatmul.mubr.f32.gmra.mrb[0].mxu0 %v7461
    %v7539 = vpop.f32.mrb[0].mxu0
    %v7540 = vadd.f32 %v7452, %v7539
    %v7541 = vpop.f32.mrb[0].mxu0
    %7542 = vdwg.mxu0
    %v7544 = vrot.slane %v7530, 1
    %v7546 = vrot.slane %v7530, 2
    %v7548 = vrot.slane %v7530, 3
    %v7551 = vrot.slane %v7535, 4
    %v7553 = vrot.slane %v7535, 5
    %v7555 = vrot.slane %v7535, 6
    %v7557 = vrot.slane %v7535, 7
    %v7560 = vrot.slane %v7540, 1
    %v7562 = vrot.slane %v7540, 2
    %v7564 = vrot.slane %v7540, 3
    %v7566 = vrot.slane %v7530, 5
    %v7568 = vrot.slane %v7530, 6
    %v7570 = vrot.slane %v7530, 7
    %v7572 = vsel %vm440, %v7530, %v7544
    %v7573 = vsel %vm3758, %v7572, %v7546
    %vm7574 = vcmask 1042432
    %v7575 = vsel %vm7574, %v7573, %v7548
    %v7576 = vsel %vm3760, %v7575, %v7551
    %vm7577 = vcmask 1044480
    %v7578 = vsel %vm7577, %v7576, %v7553
    %v7579 = vsel %vm3762, %v7578, %v7555
    %vm7580 = vcmask 1046528
    %v7581 = vsel %vm7580, %v7579, %v7557
    %v7582 = vsel %vm440, %v7540, %v7560
    %v7583 = vsel %vm3758, %v7582, %v7562
    %v7584 = vsel %vm7574, %v7583, %v7564
    %v7585 = vsel %vm3760, %v7584, %v7566
    %v7586 = vsel %vm7577, %v7585, %v7568
    %v7587 = vsel %vm3762, %v7586, %v7570
    %v7588 = vsel %vm7580, %v7587, %v7530
    %v7589 = vrot.slane %v7535, 1
    %v7591 = vrot.slane %v7535, 2
    %v7593 = vrot.slane %v7535, 3
    %v7595 = vrot.slane %v7540, 5
    %v7597 = vrot.slane %v7540, 6
    %v7599 = vrot.slane %v7540, 7
    %v7601 = vsel %vm440, %v7589, %v7591
    %v7602 = vsel %vm3758, %v7601, %v7593
    %v7603 = vsel %vm7574, %v7602, %v7551
    %v7604 = vsel %vm3760, %v7603, %v7595
    %v7605 = vsel %vm7577, %v7604, %v7597
    %v7606 = vsel %vm3762, %v7605, %v7599
    %v7607 = vsel %vm7580, %v7606, %v7540
    %vm7608 = vcmask 64512
    %7609 = vst.msk [vmem:[%s21] sm:$0xff] %vm7608, %v7581
    %7610 = vst.msk [vmem:[%s21 + $0x8] sm:$0xff] %vm7608, %v7588
    %7611 = vst.msk [vmem:[%s21 + $0x10] sm:$0xff] %vm7608, %v7607
    // Predicated region
    $region154: #{lstm_model_forward.1} parent=1 // pred_check
      _
    $region155: #{lstm_model_forward.1} parent=1 // pred_check_branch
      %7613 = sbr.rel (0) target = $region157
    $region156: #{lstm_model_forward.1} parent=1 // pred_region
      _
    $region157: #{lstm_model_forward.1} parent=1 // pred_fallthru
      _
    // Predicated region
    $region158: #{lstm_model_forward.1} parent=1 // pred_check
      _
    $region159: #{lstm_model_forward.1} parent=1 // pred_check_branch
      %7615 = sbr.rel (0) target = $region161
    $region160: #{lstm_model_forward.1} parent=1 // pred_region
      _
    $region161: #{lstm_model_forward.1} parent=1 // pred_fallthru
      _
    %7616 = vsyncpa [#allocation3], 1
    %7617 = vsyncpa [#allocation5], 1
    %7618 = vsyncpa [#allocation8], 1
    %7619 = vsyncpa [#allocation11], 1
    %7620 = vsyncpa [#allocation14], 1
    %7621 = vsyncpa [#allocation17], 1
    %7622 = vsyncpa [#allocation20], 1
    %7623 = vsyncpa [#allocation23], 1
    %7624 = vsyncpa [#allocation26], 1

</llo_original>
